<compile_context>
chip_gen: v7x
topology: tpu7x:2x2x1
jax: 0.10.0
libtpu: 0.0.40
codegen_flags: <defaults>
</compile_context>

<pallas_src>
import functools

import jax
import jax.numpy as jnp
from jax import lax
from jax.experimental import pallas as pl
from jax.experimental.pallas import tpu as pltpu


def _silu(x):
    return x * jax.nn.sigmoid(x)


def _l_ifm_kernel(x_ref, w1_ref, b1_ref, wf_ref, bf_ref, w2t_ref, b2t_ref,
                  o_ref, ypad_ref, *, H, W, E, n_blocks):
    """One batch element per grid step.

    x_ref   : (1, H, W, Cin)  f32                       -- NHWC input tile
    w1_ref  : (Cin, E) bf16,  b1_ref : (1, E) f32       -- conv1 (1x1, BN folded)
    wf_ref  : (n_blocks*9, E, E) bf16                   -- RepVGG blocks, fully
    bf_ref  : (n_blocks, 1, E)   f32                       reparameterized to 3x3
    w2t_ref : (Cout, E) bf16, b2t_ref: (Cout, 1) f32    -- conv2 (1x1, BN folded),
                                                           output-channel major
    o_ref   : (1, Cout, H*W) f32                        -- lane-dense, NCHW-flat
    ypad_ref: VMEM scratch (H+2, W+2, E) f32 for zero-padded 3x3 shifts
    """
    f32 = jnp.float32
    bf16 = jnp.bfloat16

    # ---- conv1: 1x1 conv (BN folded) + SiLU -------------------------------
    x2d = x_ref[0].reshape(H * W, -1).astype(bf16)
    y = jnp.dot(x2d, w1_ref[...], preferred_element_type=f32) + b1_ref[...]
    y = _silu(y)                                        # (H*W, E) f32

    # ---- zero only the 1-px halo border of the padded scratch -------------
    # (interior is overwritten every block; done every grid step instead of
    #  under @pl.when(program_id==0) so it stays correct if the parallel batch
    #  axis is split across the two TensorCores of a v7x chip, each of which
    #  gets its own scratch buffer)
    zrow = jnp.zeros((1, W + 2, E), f32)
    ypad_ref[0:1, :, :] = zrow
    ypad_ref[H + 1:H + 2, :, :] = zrow
    zcol = jnp.zeros((H + 2, 1, E), f32)
    ypad_ref[:, 0:1, :] = zcol
    ypad_ref[:, W + 1:W + 2, :] = zcol

    # ---- RepVGG blocks (statically unrolled; fuse_block_num is small) -----
    # Deploy-time fused: only the 3x3 conv (9 shifted-window bf16 MXU matmuls)
    # + one bias + ReLU per block remain.
    for b in range(n_blocks):
        ypad_ref[1:H + 1, 1:W + 1, :] = y.reshape(H, W, E)
        acc = None
        for dy in range(3):
            for dx in range(3):
                patch = ypad_ref[dy:dy + H, dx:dx + W, :].reshape(H * W, E)
                d = jnp.dot(patch.astype(bf16),
                            wf_ref[b * 9 + dy * 3 + dx, :, :],
                            preferred_element_type=f32)
                acc = d if acc is None else acc + d
        y = jnp.maximum(acc + bf_ref[b], 0.0)           # (H*W, E) f32

    # ---- conv2: 1x1 conv (BN folded) + SiLU, computed output-channel major
    #      (Cout, H*W): lane-dense store, and the epilogue runs on dense vregs.
    out_cf = lax.dot_general(w2t_ref[...], y.astype(bf16),
                             dimension_numbers=(((1,), (1,)), ((), ())),
                             preferred_element_type=f32)        # (Cout, H*W)
    out_cf = _silu(out_cf + b2t_ref[...])
    o_ref[0] = out_cf.astype(o_ref.dtype)


# ----------------------- wrapper-side parameter fusion -----------------------
def _fuse_repvgg(wd, bd, wp, bp, ids, idb):
    """Standard RepVGG deploy-time reparameterization (BN already folded):
    fold the 1x1 branch and the identity-BN branch into the center tap of the
    3x3 branch; sum the biases.  Zero numerical change."""
    B, _, _, E, _ = wd.shape
    eye = jnp.eye(E, dtype=wd.dtype)
    center = wd[:, 1, 1] + wp + eye[None, :, :] * ids[:, 0][:, None, :]
    wf = wd.at[:, 1, 1].set(center).reshape(B * 9, E, E)   # rows: (ky, kx, cin)
    bf = bd + bp + idb                                      # (B, 1, E)
    return wf, bf


def l_ifm_pallas(x_nchw, params):
    (w1, b1, wd, bd, wp, bp, ids, idb, w2, b2) = params
    N, Cin, H, W = x_nchw.shape
    E = w1.shape[1]
    Cout = w2.shape[1]
    n_blocks = wd.shape[0]

    x = jnp.transpose(x_nchw, (0, 2, 3, 1))          # NCHW -> NHWC

    # RepVGG deploy-time fusion + bf16 MXU operands (biases stay f32).
    wf, bf = _fuse_repvgg(wd, bd, wp, bp, ids, idb)
    w1b = w1.astype(jnp.bfloat16)
    wfb = wf.astype(jnp.bfloat16)
    w2t = jnp.transpose(w2).astype(jnp.bfloat16)     # (Cout, E)
    b2t = jnp.transpose(b2)                          # (Cout, 1)

    kernel = functools.partial(_l_ifm_kernel, H=H, W=W, E=E, n_blocks=n_blocks)

    # TODO(synk): for production feature-map sizes add a row-stripe grid axis
    # (with an n_blocks-row halo, since each RepVGG block widens the receptive
    # field) to bound VMEM on v7x (64 MiB) and feed both of its TensorCores.
    out = pl.pallas_call(
        kernel,
        out_shape=jax.ShapeDtypeStruct((N, Cout, H * W), jnp.float32),
        grid=(N,),
        in_specs=[
            pl.BlockSpec((1, H, W, Cin), lambda n: (n, 0, 0, 0)),
            pl.BlockSpec((Cin, E), lambda n: (0, 0)),
            pl.BlockSpec((1, E), lambda n: (0, 0)),
            pl.BlockSpec((n_blocks * 9, E, E), lambda n: (0, 0, 0)),
            pl.BlockSpec((n_blocks, 1, E), lambda n: (0, 0, 0)),
            pl.BlockSpec((Cout, E), lambda n: (0, 0)),
            pl.BlockSpec((Cout, 1), lambda n: (0, 0)),
        ],
        out_specs=pl.BlockSpec((1, Cout, H * W), lambda n: (n, 0, 0)),
        scratch_shapes=[pltpu.VMEM((H + 2, W + 2, E), jnp.float32)],
        compiler_params=pltpu.CompilerParams(dimension_semantics=("parallel",)),
    )(x, w1b, b1, wfb, bf, w2t, b2t)

    # (N, Cout, H*W) is already channel-major: reshape straight to NCHW.
    return out.reshape(N, Cout, H, W)


# ------------------------- parameter construction -------------------------
def make_params(key, in_channels, embed_dims, fuse_block_num, out_channels):
    eps = 1e-5
    keys = iter(jax.random.split(key, 64))

    def bn(c):
        g = 1.0 + 0.1 * jax.random.normal(next(keys), (c,), jnp.float32)
        b = 0.1 * jax.random.normal(next(keys), (c,), jnp.float32)
        m = 0.1 * jax.random.normal(next(keys), (c,), jnp.float32)
        v = jnp.abs(1.0 + 0.1 * jax.random.normal(next(keys), (c,), jnp.float32))
        s = g / jnp.sqrt(v + eps)
        return s, b - m * s                     # (scale, bias)

    def conv_w(shape):                          # (..., Cin, Cout): out-ch last
        return 0.1 * jax.random.normal(next(keys), shape, jnp.float32)

    # conv1 (1x1) + BN folded
    s, bias = bn(embed_dims)
    w1 = conv_w((in_channels, embed_dims)) * s
    b1 = bias.reshape(1, embed_dims)

    wd, bd, wp, bp, ids, idb = [], [], [], [], [], []
    for _ in range(fuse_block_num):
        s3, bias3 = bn(embed_dims)
        wd.append(conv_w((3, 3, embed_dims, embed_dims)) * s3)      # HWIO
        bd.append(bias3.reshape(1, embed_dims))
        s1, bias1 = bn(embed_dims)
        wp.append(conv_w((embed_dims, embed_dims)) * s1)
        bp.append(bias1.reshape(1, embed_dims))
        si, biasi = bn(embed_dims)
        ids.append(si.reshape(1, embed_dims))
        idb.append(biasi.reshape(1, embed_dims))
    wd = jnp.stack(wd); bd = jnp.stack(bd)
    wp = jnp.stack(wp); bp = jnp.stack(bp)
    ids = jnp.stack(ids); idb = jnp.stack(idb)

    # conv2 (1x1) + BN folded
    s, bias = bn(out_channels)
    w2 = conv_w((embed_dims, out_channels)) * s
    b2 = bias.reshape(1, out_channels)

    return (w1, b1, wd, bd, wp, bp, ids, idb, w2, b2)


# ------------------------- pure-JAX reference -------------------------
def l_ifm_reference(x_nchw, params):
    (w1, b1, wd, bd, wp, bp, ids, idb, w2, b2) = params
    x = jnp.transpose(x_nchw, (0, 2, 3, 1))
    y = jax.nn.silu(jnp.einsum('nhwc,ce->nhwe', x, w1) + b1[0])
    for b in range(bd.shape[0]):
        dense = jax.lax.conv_general_dilated(
            y, wd[b], window_strides=(1, 1), padding='SAME',
            dimension_numbers=('NHWC', 'HWIO', 'NHWC')) + bd[b, 0]
        pw = jnp.einsum('nhwc,ce->nhwe', y, wp[b]) + bp[b, 0]
        idn = y * ids[b, 0] + idb[b, 0]
        y = jnp.maximum(dense + pw + idn, 0.0)
    out = jax.nn.silu(jnp.einsum('nhwc,ce->nhwe', y, w2) + b2[0])
    return jnp.transpose(out, (0, 3, 1, 2))


if __name__ == "__main__":
    N, Cin, H, W = 2, 4, 16, 16
    embed_dims, fuse_block_num, out_channels = 32, 2, 16

    key = jax.random.PRNGKey(0)
    kx, kp = jax.random.split(key)
    x = jax.random.normal(kx, (N, Cin, H, W), jnp.float32)       # NCHW like PyTorch
    params = make_params(kp, Cin, embed_dims, fuse_block_num, out_channels)

    out = jax.block_until_ready(l_ifm_pallas(x, params))
    ref = jax.block_until_ready(l_ifm_reference(x, params))

    assert out.shape == (N, out_channels, H, W), out.shape
    # bf16 MXU operands (f32 accumulation) vs. a pure-f32 reference.
    assert jnp.allclose(out, ref, atol=3e-2, rtol=3e-2), \
        f"max abs err = {float(jnp.max(jnp.abs(out - ref)))}"
    print("KERNEL_OK")
</pallas_src>

<mosaic_0001>
module attributes {stable_mosaic.version = 11 : i64} {
  func.func @_l_ifm_kernel(%arg0: i32, %arg1: memref<1x16x16x4xf32, #tpu.memory_space<vmem>>, %arg2: memref<4x32xbf16, #tpu.memory_space<vmem>>, %arg3: memref<1x32xf32, #tpu.memory_space<vmem>>, %arg4: memref<18x32x32xbf16, #tpu.memory_space<vmem>>, %arg5: memref<2x1x32xf32, #tpu.memory_space<vmem>>, %arg6: memref<16x32xbf16, #tpu.memory_space<vmem>>, %arg7: memref<16x1xf32, #tpu.memory_space<vmem>>, %arg8: memref<1x16x256xf32, #tpu.memory_space<vmem>>, %arg9: memref<18x18x32xf32, #tpu.memory_space<vmem>>) attributes {dimension_semantics = [#tpu.dimension_semantics<parallel>], iteration_bounds = array<i64: 2>, scalar_prefetch = 0 : i64, scratch_operands = 1 : i64, tpu.core_type = #tpu.core_type<tc>, window_params = [{transform_indices = @transform_0, window_bounds = array<i64: 1, 16, 16, 4>}, {pipeline_mode = #tpu.pipeline_mode<synchronous>, transform_indices = @transform_1, window_bounds = array<i64: 4, 32>}, {pipeline_mode = #tpu.pipeline_mode<synchronous>, transform_indices = @transform_2, window_bounds = array<i64: 1, 32>}, {pipeline_mode = #tpu.pipeline_mode<synchronous>, transform_indices = @transform_3, window_bounds = array<i64: 18, 32, 32>}, {pipeline_mode = #tpu.pipeline_mode<synchronous>, transform_indices = @transform_4, window_bounds = array<i64: 2, 1, 32>}, {pipeline_mode = #tpu.pipeline_mode<synchronous>, transform_indices = @transform_5, window_bounds = array<i64: 16, 32>}, {pipeline_mode = #tpu.pipeline_mode<synchronous>, transform_indices = @transform_6, window_bounds = array<i64: 16, 1>}, {transform_indices = @transform_7, window_bounds = array<i64: 1, 16, 256>}]} {
    %c0 = arith.constant 0 : index
    %c0_0 = arith.constant 0 : index
    %c0_1 = arith.constant 0 : index
    %c0_2 = arith.constant 0 : index
    %0 = vector.load %arg1[%c0, %c0_0, %c0_1, %c0_2] : memref<1x16x16x4xf32, #tpu.memory_space<vmem>>, vector<1x16x16x4xf32>
    %1 = vector.shape_cast %0 : vector<1x16x16x4xf32> to vector<16x16x4xf32>
    %2 = vector.shape_cast %1 : vector<16x16x4xf32> to vector<256x4xf32>
    %3 = arith.truncf %2 : vector<256x4xf32> to vector<256x4xbf16>
    %c0_3 = arith.constant 0 : index
    %c0_4 = arith.constant 0 : index
    %4 = vector.load %arg2[%c0_3, %c0_4] : memref<4x32xbf16, #tpu.memory_space<vmem>>, vector<4x32xbf16>
    %cst = arith.constant dense<0.000000e+00> : vector<256x32xf32>
    %5 = tpu.matmul %3, %4, %cst {dimension_numbers = #tpu.dot_dimension_numbers<[1], [0], [0], [1], [0, 0, 1, 1], [], []>} : vector<256x4xbf16>, vector<4x32xbf16>, vector<256x32xf32> -> vector<256x32xf32>
    %c0_5 = arith.constant 0 : index
    %c0_6 = arith.constant 0 : index
    %6 = vector.load %arg3[%c0_5, %c0_6] : memref<1x32xf32, #tpu.memory_space<vmem>>, vector<1x32xf32>
    %7 = vector.broadcast %6 : vector<1x32xf32> to vector<256x32xf32>
    %8 = arith.addf %5, %7 : vector<256x32xf32>
    %9 = arith.negf %8 : vector<256x32xf32>
    %10 = math.exp %9 : vector<256x32xf32>
    %cst_7 = arith.constant 1.000000e+00 : f32
    %11 = vector.broadcast %cst_7 : f32 to vector<256x32xf32>
    %12 = arith.addf %11, %10 : vector<256x32xf32>
    %13 = arith.divf %11, %12 : vector<256x32xf32>
    %14 = arith.mulf %8, %13 : vector<256x32xf32>
    %cst_8 = arith.constant 0.000000e+00 : f32
    %15 = vector.broadcast %cst_8 : f32 to vector<1x18x32xf32>
    %c0_9 = arith.constant 0 : index
    %c0_10 = arith.constant 0 : index
    %c0_11 = arith.constant 0 : index
    %16 = vector.load %arg9[%c0_9, %c0_10, %c0_11] : memref<18x18x32xf32, #tpu.memory_space<vmem>>, vector<1x18x32xf32>
    tpu.vector_store %arg9[%c0_9, %c0_10, %c0_11], %15 {strides = array<i32>} : memref<18x18x32xf32, #tpu.memory_space<vmem>>, vector<1x18x32xf32>,
    %c17 = arith.constant 17 : index
    %c0_12 = arith.constant 0 : index
    %c0_13 = arith.constant 0 : index
    %17 = vector.load %arg9[%c17, %c0_12, %c0_13] : memref<18x18x32xf32, #tpu.memory_space<vmem>>, vector<1x18x32xf32>
    tpu.vector_store %arg9[%c17, %c0_12, %c0_13], %15 {strides = array<i32>} : memref<18x18x32xf32, #tpu.memory_space<vmem>>, vector<1x18x32xf32>,
    %cst_14 = arith.constant 0.000000e+00 : f32
    %18 = vector.broadcast %cst_14 : f32 to vector<18x1x32xf32>
    %c0_15 = arith.constant 0 : index
    %c0_16 = arith.constant 0 : index
    %c0_17 = arith.constant 0 : index
    %19 = vector.load %arg9[%c0_15, %c0_16, %c0_17] : memref<18x18x32xf32, #tpu.memory_space<vmem>>, vector<18x1x32xf32>
    tpu.vector_store %arg9[%c0_15, %c0_16, %c0_17], %18 {strides = array<i32>} : memref<18x18x32xf32, #tpu.memory_space<vmem>>, vector<18x1x32xf32>,
    %c0_18 = arith.constant 0 : index
    %c17_19 = arith.constant 17 : index
    %c0_20 = arith.constant 0 : index
    %20 = vector.load %arg9[%c0_18, %c17_19, %c0_20] : memref<18x18x32xf32, #tpu.memory_space<vmem>>, vector<18x1x32xf32>
    tpu.vector_store %arg9[%c0_18, %c17_19, %c0_20], %18 {strides = array<i32>} : memref<18x18x32xf32, #tpu.memory_space<vmem>>, vector<18x1x32xf32>,
    %21 = vector.shape_cast %14 : vector<256x32xf32> to vector<16x16x32xf32>
    %c1 = arith.constant 1 : index
    %c1_21 = arith.constant 1 : index
    %c0_22 = arith.constant 0 : index
    %22 = vector.load %arg9[%c1, %c1_21, %c0_22] : memref<18x18x32xf32, #tpu.memory_space<vmem>>, vector<16x16x32xf32>
    tpu.vector_store %arg9[%c1, %c1_21, %c0_22], %21 {strides = array<i32>} : memref<18x18x32xf32, #tpu.memory_space<vmem>>, vector<16x16x32xf32>,
    %c0_23 = arith.constant 0 : index
    %c0_24 = arith.constant 0 : index
    %c0_25 = arith.constant 0 : index
    %23 = vector.load %arg9[%c0_23, %c0_24, %c0_25] : memref<18x18x32xf32, #tpu.memory_space<vmem>>, vector<16x16x32xf32>
    %24 = vector.shape_cast %23 : vector<16x16x32xf32> to vector<256x32xf32>
    %25 = arith.truncf %24 : vector<256x32xf32> to vector<256x32xbf16>
    %c0_26 = arith.constant 0 : index
    %c0_27 = arith.constant 0 : index
    %c0_28 = arith.constant 0 : index
    %26 = vector.load %arg4[%c0_26, %c0_27, %c0_28] : memref<18x32x32xbf16, #tpu.memory_space<vmem>>, vector<1x32x32xbf16>
    %27 = vector.shape_cast %26 : vector<1x32x32xbf16> to vector<32x32xbf16>
    %cst_29 = arith.constant dense<0.000000e+00> : vector<256x32xf32>
    %28 = tpu.matmul %25, %27, %cst_29 {dimension_numbers = #tpu.dot_dimension_numbers<[1], [0], [0], [1], [0, 0, 1, 1], [], []>} : vector<256x32xbf16>, vector<32x32xbf16>, vector<256x32xf32> -> vector<256x32xf32>
    %c0_30 = arith.constant 0 : index
    %c1_31 = arith.constant 1 : index
    %c0_32 = arith.constant 0 : index
    %29 = vector.load %arg9[%c0_30, %c1_31, %c0_32] : memref<18x18x32xf32, #tpu.memory_space<vmem>>, vector<16x16x32xf32>
    %30 = vector.shape_cast %29 : vector<16x16x32xf32> to vector<256x32xf32>
    %31 = arith.truncf %30 : vector<256x32xf32> to vector<256x32xbf16>
    %c1_33 = arith.constant 1 : index
    %c0_34 = arith.constant 0 : index
    %c0_35 = arith.constant 0 : index
    %32 = vector.load %arg4[%c1_33, %c0_34, %c0_35] : memref<18x32x32xbf16, #tpu.memory_space<vmem>>, vector<1x32x32xbf16>
    %33 = vector.shape_cast %32 : vector<1x32x32xbf16> to vector<32x32xbf16>
    %cst_36 = arith.constant dense<0.000000e+00> : vector<256x32xf32>
    %34 = tpu.matmul %31, %33, %cst_36 {dimension_numbers = #tpu.dot_dimension_numbers<[1], [0], [0], [1], [0, 0, 1, 1], [], []>} : vector<256x32xbf16>, vector<32x32xbf16>, vector<256x32xf32> -> vector<256x32xf32>
    %35 = arith.addf %28, %34 : vector<256x32xf32>
    %c0_37 = arith.constant 0 : index
    %c2 = arith.constant 2 : index
    %c0_38 = arith.constant 0 : index
    %36 = vector.load %arg9[%c0_37, %c2, %c0_38] : memref<18x18x32xf32, #tpu.memory_space<vmem>>, vector<16x16x32xf32>
    %37 = vector.shape_cast %36 : vector<16x16x32xf32> to vector<256x32xf32>
    %38 = arith.truncf %37 : vector<256x32xf32> to vector<256x32xbf16>
    %c2_39 = arith.constant 2 : index
    %c0_40 = arith.constant 0 : index
    %c0_41 = arith.constant 0 : index
    %39 = vector.load %arg4[%c2_39, %c0_40, %c0_41] : memref<18x32x32xbf16, #tpu.memory_space<vmem>>, vector<1x32x32xbf16>
    %40 = vector.shape_cast %39 : vector<1x32x32xbf16> to vector<32x32xbf16>
    %cst_42 = arith.constant dense<0.000000e+00> : vector<256x32xf32>
    %41 = tpu.matmul %38, %40, %cst_42 {dimension_numbers = #tpu.dot_dimension_numbers<[1], [0], [0], [1], [0, 0, 1, 1], [], []>} : vector<256x32xbf16>, vector<32x32xbf16>, vector<256x32xf32> -> vector<256x32xf32>
    %42 = arith.addf %35, %41 : vector<256x32xf32>
    %c1_43 = arith.constant 1 : index
    %c0_44 = arith.constant 0 : index
    %c0_45 = arith.constant 0 : index
    %43 = vector.load %arg9[%c1_43, %c0_44, %c0_45] : memref<18x18x32xf32, #tpu.memory_space<vmem>>, vector<16x16x32xf32>
    %44 = vector.shape_cast %43 : vector<16x16x32xf32> to vector<256x32xf32>
    %45 = arith.truncf %44 : vector<256x32xf32> to vector<256x32xbf16>
    %c3 = arith.constant 3 : index
    %c0_46 = arith.constant 0 : index
    %c0_47 = arith.constant 0 : index
    %46 = vector.load %arg4[%c3, %c0_46, %c0_47] : memref<18x32x32xbf16, #tpu.memory_space<vmem>>, vector<1x32x32xbf16>
    %47 = vector.shape_cast %46 : vector<1x32x32xbf16> to vector<32x32xbf16>
    %cst_48 = arith.constant dense<0.000000e+00> : vector<256x32xf32>
    %48 = tpu.matmul %45, %47, %cst_48 {dimension_numbers = #tpu.dot_dimension_numbers<[1], [0], [0], [1], [0, 0, 1, 1], [], []>} : vector<256x32xbf16>, vector<32x32xbf16>, vector<256x32xf32> -> vector<256x32xf32>
    %49 = arith.addf %42, %48 : vector<256x32xf32>
    %c1_49 = arith.constant 1 : index
    %c1_50 = arith.constant 1 : index
    %c0_51 = arith.constant 0 : index
    %50 = vector.load %arg9[%c1_49, %c1_50, %c0_51] : memref<18x18x32xf32, #tpu.memory_space<vmem>>, vector<16x16x32xf32>
    %51 = vector.shape_cast %50 : vector<16x16x32xf32> to vector<256x32xf32>
    %52 = arith.truncf %51 : vector<256x32xf32> to vector<256x32xbf16>
    %c4 = arith.constant 4 : index
    %c0_52 = arith.constant 0 : index
    %c0_53 = arith.constant 0 : index
    %53 = vector.load %arg4[%c4, %c0_52, %c0_53] : memref<18x32x32xbf16, #tpu.memory_space<vmem>>, vector<1x32x32xbf16>
    %54 = vector.shape_cast %53 : vector<1x32x32xbf16> to vector<32x32xbf16>
    %cst_54 = arith.constant dense<0.000000e+00> : vector<256x32xf32>
    %55 = tpu.matmul %52, %54, %cst_54 {dimension_numbers = #tpu.dot_dimension_numbers<[1], [0], [0], [1], [0, 0, 1, 1], [], []>} : vector<256x32xbf16>, vector<32x32xbf16>, vector<256x32xf32> -> vector<256x32xf32>
    %56 = arith.addf %49, %55 : vector<256x32xf32>
    %c1_55 = arith.constant 1 : index
    %c2_56 = arith.constant 2 : index
    %c0_57 = arith.constant 0 : index
    %57 = vector.load %arg9[%c1_55, %c2_56, %c0_57] : memref<18x18x32xf32, #tpu.memory_space<vmem>>, vector<16x16x32xf32>
    %58 = vector.shape_cast %57 : vector<16x16x32xf32> to vector<256x32xf32>
    %59 = arith.truncf %58 : vector<256x32xf32> to vector<256x32xbf16>
    %c5 = arith.constant 5 : index
    %c0_58 = arith.constant 0 : index
    %c0_59 = arith.constant 0 : index
    %60 = vector.load %arg4[%c5, %c0_58, %c0_59] : memref<18x32x32xbf16, #tpu.memory_space<vmem>>, vector<1x32x32xbf16>
    %61 = vector.shape_cast %60 : vector<1x32x32xbf16> to vector<32x32xbf16>
    %cst_60 = arith.constant dense<0.000000e+00> : vector<256x32xf32>
    %62 = tpu.matmul %59, %61, %cst_60 {dimension_numbers = #tpu.dot_dimension_numbers<[1], [0], [0], [1], [0, 0, 1, 1], [], []>} : vector<256x32xbf16>, vector<32x32xbf16>, vector<256x32xf32> -> vector<256x32xf32>
    %63 = arith.addf %56, %62 : vector<256x32xf32>
    %c2_61 = arith.constant 2 : index
    %c0_62 = arith.constant 0 : index
    %c0_63 = arith.constant 0 : index
    %64 = vector.load %arg9[%c2_61, %c0_62, %c0_63] : memref<18x18x32xf32, #tpu.memory_space<vmem>>, vector<16x16x32xf32>
    %65 = vector.shape_cast %64 : vector<16x16x32xf32> to vector<256x32xf32>
    %66 = arith.truncf %65 : vector<256x32xf32> to vector<256x32xbf16>
    %c6 = arith.constant 6 : index
    %c0_64 = arith.constant 0 : index
    %c0_65 = arith.constant 0 : index
    %67 = vector.load %arg4[%c6, %c0_64, %c0_65] : memref<18x32x32xbf16, #tpu.memory_space<vmem>>, vector<1x32x32xbf16>
    %68 = vector.shape_cast %67 : vector<1x32x32xbf16> to vector<32x32xbf16>
    %cst_66 = arith.constant dense<0.000000e+00> : vector<256x32xf32>
    %69 = tpu.matmul %66, %68, %cst_66 {dimension_numbers = #tpu.dot_dimension_numbers<[1], [0], [0], [1], [0, 0, 1, 1], [], []>} : vector<256x32xbf16>, vector<32x32xbf16>, vector<256x32xf32> -> vector<256x32xf32>
    %70 = arith.addf %63, %69 : vector<256x32xf32>
    %c2_67 = arith.constant 2 : index
    %c1_68 = arith.constant 1 : index
    %c0_69 = arith.constant 0 : index
    %71 = vector.load %arg9[%c2_67, %c1_68, %c0_69] : memref<18x18x32xf32, #tpu.memory_space<vmem>>, vector<16x16x32xf32>
    %72 = vector.shape_cast %71 : vector<16x16x32xf32> to vector<256x32xf32>
    %73 = arith.truncf %72 : vector<256x32xf32> to vector<256x32xbf16>
    %c7 = arith.constant 7 : index
    %c0_70 = arith.constant 0 : index
    %c0_71 = arith.constant 0 : index
    %74 = vector.load %arg4[%c7, %c0_70, %c0_71] : memref<18x32x32xbf16, #tpu.memory_space<vmem>>, vector<1x32x32xbf16>
    %75 = vector.shape_cast %74 : vector<1x32x32xbf16> to vector<32x32xbf16>
    %cst_72 = arith.constant dense<0.000000e+00> : vector<256x32xf32>
    %76 = tpu.matmul %73, %75, %cst_72 {dimension_numbers = #tpu.dot_dimension_numbers<[1], [0], [0], [1], [0, 0, 1, 1], [], []>} : vector<256x32xbf16>, vector<32x32xbf16>, vector<256x32xf32> -> vector<256x32xf32>
    %77 = arith.addf %70, %76 : vector<256x32xf32>
    %c2_73 = arith.constant 2 : index
    %c2_74 = arith.constant 2 : index
    %c0_75 = arith.constant 0 : index
    %78 = vector.load %arg9[%c2_73, %c2_74, %c0_75] : memref<18x18x32xf32, #tpu.memory_space<vmem>>, vector<16x16x32xf32>
    %79 = vector.shape_cast %78 : vector<16x16x32xf32> to vector<256x32xf32>
    %80 = arith.truncf %79 : vector<256x32xf32> to vector<256x32xbf16>
    %c8 = arith.constant 8 : index
    %c0_76 = arith.constant 0 : index
    %c0_77 = arith.constant 0 : index
    %81 = vector.load %arg4[%c8, %c0_76, %c0_77] : memref<18x32x32xbf16, #tpu.memory_space<vmem>>, vector<1x32x32xbf16>
    %82 = vector.shape_cast %81 : vector<1x32x32xbf16> to vector<32x32xbf16>
    %cst_78 = arith.constant dense<0.000000e+00> : vector<256x32xf32>
    %83 = tpu.matmul %80, %82, %cst_78 {dimension_numbers = #tpu.dot_dimension_numbers<[1], [0], [0], [1], [0, 0, 1, 1], [], []>} : vector<256x32xbf16>, vector<32x32xbf16>, vector<256x32xf32> -> vector<256x32xf32>
    %84 = arith.addf %77, %83 : vector<256x32xf32>
    %c0_79 = arith.constant 0 : index
    %c0_80 = arith.constant 0 : index
    %c0_81 = arith.constant 0 : index
    %85 = vector.load %arg5[%c0_79, %c0_80, %c0_81] : memref<2x1x32xf32, #tpu.memory_space<vmem>>, vector<1x1x32xf32>
    %86 = vector.shape_cast %85 : vector<1x1x32xf32> to vector<1x32xf32>
    %87 = vector.broadcast %86 : vector<1x32xf32> to vector<256x32xf32>
    %88 = arith.addf %84, %87 : vector<256x32xf32>
    %cst_82 = arith.constant 0.000000e+00 : f32
    %89 = vector.broadcast %cst_82 : f32 to vector<256x32xf32>
    %90 = arith.maximumf %88, %89 : vector<256x32xf32>
    %91 = vector.shape_cast %90 : vector<256x32xf32> to vector<16x16x32xf32>
    %c1_83 = arith.constant 1 : index
    %c1_84 = arith.constant 1 : index
    %c0_85 = arith.constant 0 : index
    %92 = vector.load %arg9[%c1_83, %c1_84, %c0_85] : memref<18x18x32xf32, #tpu.memory_space<vmem>>, vector<16x16x32xf32>
    tpu.vector_store %arg9[%c1_83, %c1_84, %c0_85], %91 {strides = array<i32>} : memref<18x18x32xf32, #tpu.memory_space<vmem>>, vector<16x16x32xf32>,
    %c0_86 = arith.constant 0 : index
    %c0_87 = arith.constant 0 : index
    %c0_88 = arith.constant 0 : index
    %93 = vector.load %arg9[%c0_86, %c0_87, %c0_88] : memref<18x18x32xf32, #tpu.memory_space<vmem>>, vector<16x16x32xf32>
    %94 = vector.shape_cast %93 : vector<16x16x32xf32> to vector<256x32xf32>
    %95 = arith.truncf %94 : vector<256x32xf32> to vector<256x32xbf16>
    %c9 = arith.constant 9 : index
    %c0_89 = arith.constant 0 : index
    %c0_90 = arith.constant 0 : index
    %96 = vector.load %arg4[%c9, %c0_89, %c0_90] : memref<18x32x32xbf16, #tpu.memory_space<vmem>>, vector<1x32x32xbf16>
    %97 = vector.shape_cast %96 : vector<1x32x32xbf16> to vector<32x32xbf16>
    %cst_91 = arith.constant dense<0.000000e+00> : vector<256x32xf32>
    %98 = tpu.matmul %95, %97, %cst_91 {dimension_numbers = #tpu.dot_dimension_numbers<[1], [0], [0], [1], [0, 0, 1, 1], [], []>} : vector<256x32xbf16>, vector<32x32xbf16>, vector<256x32xf32> -> vector<256x32xf32>
    %c0_92 = arith.constant 0 : index
    %c1_93 = arith.constant 1 : index
    %c0_94 = arith.constant 0 : index
    %99 = vector.load %arg9[%c0_92, %c1_93, %c0_94] : memref<18x18x32xf32, #tpu.memory_space<vmem>>, vector<16x16x32xf32>
    %100 = vector.shape_cast %99 : vector<16x16x32xf32> to vector<256x32xf32>
    %101 = arith.truncf %100 : vector<256x32xf32> to vector<256x32xbf16>
    %c10 = arith.constant 10 : index
    %c0_95 = arith.constant 0 : index
    %c0_96 = arith.constant 0 : index
    %102 = vector.load %arg4[%c10, %c0_95, %c0_96] : memref<18x32x32xbf16, #tpu.memory_space<vmem>>, vector<1x32x32xbf16>
    %103 = vector.shape_cast %102 : vector<1x32x32xbf16> to vector<32x32xbf16>
    %cst_97 = arith.constant dense<0.000000e+00> : vector<256x32xf32>
    %104 = tpu.matmul %101, %103, %cst_97 {dimension_numbers = #tpu.dot_dimension_numbers<[1], [0], [0], [1], [0, 0, 1, 1], [], []>} : vector<256x32xbf16>, vector<32x32xbf16>, vector<256x32xf32> -> vector<256x32xf32>
    %105 = arith.addf %98, %104 : vector<256x32xf32>
    %c0_98 = arith.constant 0 : index
    %c2_99 = arith.constant 2 : index
    %c0_100 = arith.constant 0 : index
    %106 = vector.load %arg9[%c0_98, %c2_99, %c0_100] : memref<18x18x32xf32, #tpu.memory_space<vmem>>, vector<16x16x32xf32>
    %107 = vector.shape_cast %106 : vector<16x16x32xf32> to vector<256x32xf32>
    %108 = arith.truncf %107 : vector<256x32xf32> to vector<256x32xbf16>
    %c11 = arith.constant 11 : index
    %c0_101 = arith.constant 0 : index
    %c0_102 = arith.constant 0 : index
    %109 = vector.load %arg4[%c11, %c0_101, %c0_102] : memref<18x32x32xbf16, #tpu.memory_space<vmem>>, vector<1x32x32xbf16>
    %110 = vector.shape_cast %109 : vector<1x32x32xbf16> to vector<32x32xbf16>
    %cst_103 = arith.constant dense<0.000000e+00> : vector<256x32xf32>
    %111 = tpu.matmul %108, %110, %cst_103 {dimension_numbers = #tpu.dot_dimension_numbers<[1], [0], [0], [1], [0, 0, 1, 1], [], []>} : vector<256x32xbf16>, vector<32x32xbf16>, vector<256x32xf32> -> vector<256x32xf32>
    %112 = arith.addf %105, %111 : vector<256x32xf32>
    %c1_104 = arith.constant 1 : index
    %c0_105 = arith.constant 0 : index
    %c0_106 = arith.constant 0 : index
    %113 = vector.load %arg9[%c1_104, %c0_105, %c0_106] : memref<18x18x32xf32, #tpu.memory_space<vmem>>, vector<16x16x32xf32>
    %114 = vector.shape_cast %113 : vector<16x16x32xf32> to vector<256x32xf32>
    %115 = arith.truncf %114 : vector<256x32xf32> to vector<256x32xbf16>
    %c12 = arith.constant 12 : index
    %c0_107 = arith.constant 0 : index
    %c0_108 = arith.constant 0 : index
    %116 = vector.load %arg4[%c12, %c0_107, %c0_108] : memref<18x32x32xbf16, #tpu.memory_space<vmem>>, vector<1x32x32xbf16>
    %117 = vector.shape_cast %116 : vector<1x32x32xbf16> to vector<32x32xbf16>
    %cst_109 = arith.constant dense<0.000000e+00> : vector<256x32xf32>
    %118 = tpu.matmul %115, %117, %cst_109 {dimension_numbers = #tpu.dot_dimension_numbers<[1], [0], [0], [1], [0, 0, 1, 1], [], []>} : vector<256x32xbf16>, vector<32x32xbf16>, vector<256x32xf32> -> vector<256x32xf32>
    %119 = arith.addf %112, %118 : vector<256x32xf32>
    %c1_110 = arith.constant 1 : index
    %c1_111 = arith.constant 1 : index
    %c0_112 = arith.constant 0 : index
    %120 = vector.load %arg9[%c1_110, %c1_111, %c0_112] : memref<18x18x32xf32, #tpu.memory_space<vmem>>, vector<16x16x32xf32>
    %121 = vector.shape_cast %120 : vector<16x16x32xf32> to vector<256x32xf32>
    %122 = arith.truncf %121 : vector<256x32xf32> to vector<256x32xbf16>
    %c13 = arith.constant 13 : index
    %c0_113 = arith.constant 0 : index
    %c0_114 = arith.constant 0 : index
    %123 = vector.load %arg4[%c13, %c0_113, %c0_114] : memref<18x32x32xbf16, #tpu.memory_space<vmem>>, vector<1x32x32xbf16>
    %124 = vector.shape_cast %123 : vector<1x32x32xbf16> to vector<32x32xbf16>
    %cst_115 = arith.constant dense<0.000000e+00> : vector<256x32xf32>
    %125 = tpu.matmul %122, %124, %cst_115 {dimension_numbers = #tpu.dot_dimension_numbers<[1], [0], [0], [1], [0, 0, 1, 1], [], []>} : vector<256x32xbf16>, vector<32x32xbf16>, vector<256x32xf32> -> vector<256x32xf32>
    %126 = arith.addf %119, %125 : vector<256x32xf32>
    %c1_116 = arith.constant 1 : index
    %c2_117 = arith.constant 2 : index
    %c0_118 = arith.constant 0 : index
    %127 = vector.load %arg9[%c1_116, %c2_117, %c0_118] : memref<18x18x32xf32, #tpu.memory_space<vmem>>, vector<16x16x32xf32>
    %128 = vector.shape_cast %127 : vector<16x16x32xf32> to vector<256x32xf32>
    %129 = arith.truncf %128 : vector<256x32xf32> to vector<256x32xbf16>
    %c14 = arith.constant 14 : index
    %c0_119 = arith.constant 0 : index
    %c0_120 = arith.constant 0 : index
    %130 = vector.load %arg4[%c14, %c0_119, %c0_120] : memref<18x32x32xbf16, #tpu.memory_space<vmem>>, vector<1x32x32xbf16>
    %131 = vector.shape_cast %130 : vector<1x32x32xbf16> to vector<32x32xbf16>
    %cst_121 = arith.constant dense<0.000000e+00> : vector<256x32xf32>
    %132 = tpu.matmul %129, %131, %cst_121 {dimension_numbers = #tpu.dot_dimension_numbers<[1], [0], [0], [1], [0, 0, 1, 1], [], []>} : vector<256x32xbf16>, vector<32x32xbf16>, vector<256x32xf32> -> vector<256x32xf32>
    %133 = arith.addf %126, %132 : vector<256x32xf32>
    %c2_122 = arith.constant 2 : index
    %c0_123 = arith.constant 0 : index
    %c0_124 = arith.constant 0 : index
    %134 = vector.load %arg9[%c2_122, %c0_123, %c0_124] : memref<18x18x32xf32, #tpu.memory_space<vmem>>, vector<16x16x32xf32>
    %135 = vector.shape_cast %134 : vector<16x16x32xf32> to vector<256x32xf32>
    %136 = arith.truncf %135 : vector<256x32xf32> to vector<256x32xbf16>
    %c15 = arith.constant 15 : index
    %c0_125 = arith.constant 0 : index
    %c0_126 = arith.constant 0 : index
    %137 = vector.load %arg4[%c15, %c0_125, %c0_126] : memref<18x32x32xbf16, #tpu.memory_space<vmem>>, vector<1x32x32xbf16>
    %138 = vector.shape_cast %137 : vector<1x32x32xbf16> to vector<32x32xbf16>
    %cst_127 = arith.constant dense<0.000000e+00> : vector<256x32xf32>
    %139 = tpu.matmul %136, %138, %cst_127 {dimension_numbers = #tpu.dot_dimension_numbers<[1], [0], [0], [1], [0, 0, 1, 1], [], []>} : vector<256x32xbf16>, vector<32x32xbf16>, vector<256x32xf32> -> vector<256x32xf32>
    %140 = arith.addf %133, %139 : vector<256x32xf32>
    %c2_128 = arith.constant 2 : index
    %c1_129 = arith.constant 1 : index
    %c0_130 = arith.constant 0 : index
    %141 = vector.load %arg9[%c2_128, %c1_129, %c0_130] : memref<18x18x32xf32, #tpu.memory_space<vmem>>, vector<16x16x32xf32>
    %142 = vector.shape_cast %141 : vector<16x16x32xf32> to vector<256x32xf32>
    %143 = arith.truncf %142 : vector<256x32xf32> to vector<256x32xbf16>
    %c16 = arith.constant 16 : index
    %c0_131 = arith.constant 0 : index
    %c0_132 = arith.constant 0 : index
    %144 = vector.load %arg4[%c16, %c0_131, %c0_132] : memref<18x32x32xbf16, #tpu.memory_space<vmem>>, vector<1x32x32xbf16>
    %145 = vector.shape_cast %144 : vector<1x32x32xbf16> to vector<32x32xbf16>
    %cst_133 = arith.constant dense<0.000000e+00> : vector<256x32xf32>
    %146 = tpu.matmul %143, %145, %cst_133 {dimension_numbers = #tpu.dot_dimension_numbers<[1], [0], [0], [1], [0, 0, 1, 1], [], []>} : vector<256x32xbf16>, vector<32x32xbf16>, vector<256x32xf32> -> vector<256x32xf32>
    %147 = arith.addf %140, %146 : vector<256x32xf32>
    %c2_134 = arith.constant 2 : index
    %c2_135 = arith.constant 2 : index
    %c0_136 = arith.constant 0 : index
    %148 = vector.load %arg9[%c2_134, %c2_135, %c0_136] : memref<18x18x32xf32, #tpu.memory_space<vmem>>, vector<16x16x32xf32>
    %149 = vector.shape_cast %148 : vector<16x16x32xf32> to vector<256x32xf32>
    %150 = arith.truncf %149 : vector<256x32xf32> to vector<256x32xbf16>
    %c17_137 = arith.constant 17 : index
    %c0_138 = arith.constant 0 : index
    %c0_139 = arith.constant 0 : index
    %151 = vector.load %arg4[%c17_137, %c0_138, %c0_139] : memref<18x32x32xbf16, #tpu.memory_space<vmem>>, vector<1x32x32xbf16>
    %152 = vector.shape_cast %151 : vector<1x32x32xbf16> to vector<32x32xbf16>
    %cst_140 = arith.constant dense<0.000000e+00> : vector<256x32xf32>
    %153 = tpu.matmul %150, %152, %cst_140 {dimension_numbers = #tpu.dot_dimension_numbers<[1], [0], [0], [1], [0, 0, 1, 1], [], []>} : vector<256x32xbf16>, vector<32x32xbf16>, vector<256x32xf32> -> vector<256x32xf32>
    %154 = arith.addf %147, %153 : vector<256x32xf32>
    %c1_141 = arith.constant 1 : index
    %c0_142 = arith.constant 0 : index
    %c0_143 = arith.constant 0 : index
    %155 = vector.load %arg5[%c1_141, %c0_142, %c0_143] : memref<2x1x32xf32, #tpu.memory_space<vmem>>, vector<1x1x32xf32>
    %156 = vector.shape_cast %155 : vector<1x1x32xf32> to vector<1x32xf32>
    %157 = vector.broadcast %156 : vector<1x32xf32> to vector<256x32xf32>
    %158 = arith.addf %154, %157 : vector<256x32xf32>
    %cst_144 = arith.constant 0.000000e+00 : f32
    %159 = vector.broadcast %cst_144 : f32 to vector<256x32xf32>
    %160 = arith.maximumf %158, %159 : vector<256x32xf32>
    %c0_145 = arith.constant 0 : index
    %c0_146 = arith.constant 0 : index
    %161 = vector.load %arg6[%c0_145, %c0_146] : memref<16x32xbf16, #tpu.memory_space<vmem>>, vector<16x32xbf16>
    %162 = arith.truncf %160 : vector<256x32xf32> to vector<256x32xbf16>
    %cst_147 = arith.constant dense<0.000000e+00> : vector<16x256xf32>
    %163 = tpu.matmul %161, %162, %cst_147 {dimension_numbers = #tpu.dot_dimension_numbers<[1], [1], [0], [0], [0, 0, 1, 0], [], []>} : vector<16x32xbf16>, vector<256x32xbf16>, vector<16x256xf32> -> vector<16x256xf32>
    %c0_148 = arith.constant 0 : index
    %c0_149 = arith.constant 0 : index
    %164 = vector.load %arg7[%c0_148, %c0_149] : memref<16x1xf32, #tpu.memory_space<vmem>>, vector<16x1xf32>
    %165 = vector.broadcast %164 : vector<16x1xf32> to vector<16x256xf32>
    %166 = arith.addf %163, %165 : vector<16x256xf32>
    %167 = arith.negf %166 : vector<16x256xf32>
    %168 = math.exp %167 : vector<16x256xf32>
    %cst_150 = arith.constant 1.000000e+00 : f32
    %169 = vector.broadcast %cst_150 : f32 to vector<16x256xf32>
    %170 = arith.addf %169, %168 : vector<16x256xf32>
    %171 = arith.divf %169, %170 : vector<16x256xf32>
    %172 = arith.mulf %166, %171 : vector<16x256xf32>
    %c0_151 = arith.constant 0 : index
    %c0_152 = arith.constant 0 : index
    %c0_153 = arith.constant 0 : index
    %173 = vector.load %arg8[%c0_151, %c0_152, %c0_153] : memref<1x16x256xf32, #tpu.memory_space<vmem>>, vector<1x16x256xf32>
    %174 = vector.shape_cast %173 : vector<1x16x256xf32> to vector<16x256xf32>
    %175 = vector.shape_cast %172 : vector<16x256xf32> to vector<1x16x256xf32>
    tpu.vector_store %arg8[%c0_151, %c0_152, %c0_153], %175 {strides = array<i32>} : memref<1x16x256xf32, #tpu.memory_space<vmem>>, vector<1x16x256xf32>,
    return
  }
  func.func @transform_0(%arg0: i32) -> (i32, i32, i32, i32) {
    %c0_i32 = arith.constant 0 : i32
    %c0_i32_0 = arith.constant 0 : i32
    %c0_i32_1 = arith.constant 0 : i32
    %c0_i32_2 = arith.constant 0 : i32
    return %arg0, %c0_i32, %c0_i32_0, %c0_i32_1 : i32, i32, i32, i32
  }
  func.func @transform_1(%arg0: i32) -> (i32, i32) {
    %c0_i32 = arith.constant 0 : i32
    %c0_i32_0 = arith.constant 0 : i32
    %c0_i32_1 = arith.constant 0 : i32
    return %c0_i32, %c0_i32_0 : i32, i32
  }
  func.func @transform_2(%arg0: i32) -> (i32, i32) {
    %c0_i32 = arith.constant 0 : i32
    %c0_i32_0 = arith.constant 0 : i32
    %c0_i32_1 = arith.constant 0 : i32
    return %c0_i32, %c0_i32_0 : i32, i32
  }
  func.func @transform_3(%arg0: i32) -> (i32, i32, i32) {
    %c0_i32 = arith.constant 0 : i32
    %c0_i32_0 = arith.constant 0 : i32
    %c0_i32_1 = arith.constant 0 : i32
    %c0_i32_2 = arith.constant 0 : i32
    return %c0_i32, %c0_i32_0, %c0_i32_1 : i32, i32, i32
  }
  func.func @transform_4(%arg0: i32) -> (i32, i32, i32) {
    %c0_i32 = arith.constant 0 : i32
    %c0_i32_0 = arith.constant 0 : i32
    %c0_i32_1 = arith.constant 0 : i32
    %c0_i32_2 = arith.constant 0 : i32
    return %c0_i32, %c0_i32_0, %c0_i32_1 : i32, i32, i32
  }
  func.func @transform_5(%arg0: i32) -> (i32, i32) {
    %c0_i32 = arith.constant 0 : i32
    %c0_i32_0 = arith.constant 0 : i32
    %c0_i32_1 = arith.constant 0 : i32
    return %c0_i32, %c0_i32_0 : i32, i32
  }
  func.func @transform_6(%arg0: i32) -> (i32, i32) {
    %c0_i32 = arith.constant 0 : i32
    %c0_i32_0 = arith.constant 0 : i32
    %c0_i32_1 = arith.constant 0 : i32
    return %c0_i32, %c0_i32_0 : i32, i32
  }
  func.func @transform_7(%arg0: i32) -> (i32, i32, i32) {
    %c0_i32 = arith.constant 0 : i32
    %c0_i32_0 = arith.constant 0 : i32
    %c0_i32_1 = arith.constant 0 : i32
    return %arg0, %c0_i32, %c0_i32_0 : i32, i32, i32
  }
}

</mosaic_0001>

<llo_original>
// kernel: tpu_custom_call.1
$region0: #{tpu_custom_call.1}
  #allocation0 [shape = 'u32[]', space=smem, size = 0x4, offset = 0x4, fixed_abs, tag = 'smem constant byte address 0x4 - core index']
  #allocation1 [shape = 'u32[144,128]{1,0:T(1,128)}', space=vmem, size = 0x12000, scoped, tag = 'internal scratch']
  #allocation2 [shape = 'f32[18,18,32]{2,1,0:T(8,128)}', space=vmem, size = 0x36000, scoped, tag = 'scratch operand']
  %s0 = inlined_call_operand.vmem [shape: f32[2,16,16,4], index: 0, kind: input, shape index: {}]
  %s1 = inlined_call_operand.vmem [shape: bf16[4,32], index: 1, kind: input, shape index: {}]
  %s2 = inlined_call_operand.vmem [shape: f32[1,32], index: 2, kind: input, shape index: {}]
  %s3 = inlined_call_operand.vmem [shape: bf16[18,32,32], index: 3, kind: input, shape index: {}]
  %s4 = inlined_call_operand.vmem [shape: f32[2,1,32], index: 4, kind: input, shape index: {}]
  %s5 = inlined_call_operand.vmem [shape: bf16[16,32], index: 5, kind: input, shape index: {}]
  %s6 = inlined_call_operand.vmem [shape: f32[16,1], index: 6, kind: input, shape index: {}]
  %s7 = inlined_call_operand.hbm [shape: f32[2,16,256], index: 7, kind: output, shape index: {}]
  %s8 = sld [smem:[#allocation0]]
  $region61: #{tpu_custom_call.1} parent=0
    _
  %s10 = ssub.s32 1, %s8
  %s11 = scalar_select 0, %s10, %s8
  $region1: #{tpu_custom_call.1} parent=0
    #allocation3 [shape = 'u8[32768]{0}', space=vmem, size = 0x8000, scoped, tag = 'output window, operand 0']
    #allocation4 [shape = 's32[2]{0}', space=sflag, size = 0x8, scoped, tag = 'scoped memory for tpu_custom_call.1']
    %12 = vsyncpa [#allocation4], 0
    %s13 = scalar_lea.sflag [#allocation4], 1
    %14 = vsyncpa %s13, 0
    loop: start=0, step=1, limit=4
    $region2: #{tpu_custom_call.1} parent=1 // loop_pre_header
      _
    $region3: #{tpu_custom_call.1} parent=1 // loop_header
      %s16 = sphi 0, %s20
      %p17 = scmp.ge.s32.totalorder %s16, 4
      %s26 = sphi 0, %s28
      %s29 = sphi 0, %s26
      %s30 = sphi 0, %s29
      %s46 = sphi 0, %s30
      %s50 = sphi 0, %s50
      %s52 = sphi 0, %s50
      %s53 = sphi 0, %s52
      %s67 = sphi 0, %s53
      %s71 = sphi 0, %s71
      %s73 = sphi 0, %s71
      %s74 = sphi 0, %s73
      %s88 = sphi 0, %s74
      %s92 = sphi 0, %s92
      %s94 = sphi 0, %s92
      %s95 = sphi 0, %s94
      %s109 = sphi 0, %s95
      %s113 = sphi 0, %s113
      %s115 = sphi 0, %s113
      %s116 = sphi 0, %s115
      %s130 = sphi 0, %s116
      %s134 = sphi 0, %s134
      %s136 = sphi 0, %s134
      %s137 = sphi 0, %s136
      %s151 = sphi 0, %s137
      %s155 = sphi 0, %s155
      %s157 = sphi 0, %s155
      %s158 = sphi 0, %s157
      %s172 = sphi 0, %s158
      %s178 = sphi 0, %s180
      %s181 = sphi 0, %s178
      %s182 = sphi 0, %s181
      %s198 = sphi 0, %s182
    $region4: #{tpu_custom_call.1} parent=1 // loop_header_branch
      %19 = sbr.rel (%p17) target = $region8
    $region5: #{tpu_custom_call.1} parent=1 // loop_body
      %s21 = ssub.s32 %s16, 1
      %s22 = ssub.s32 %s16, 2
      %s23 = sadd.s32 %s16, 1
      %s24 = ssub.s32 %s16, %s23
      %p25 = scmp.eq.s32.totalorder %s24, 0
      %s27 = sadd.s32 %s26, 1
      %s28 = scalar_select %p25, %s26, %s27
      %p31 = pneg %p25
      %p32 = scmp.eq.s32.totalorder %s16, 1
      %p33 = por %p31, %p32
      %p34 = scmp.ne.s32.totalorder %s26, %s29
      %p35 = scmp.eq.s32.totalorder %s16, 0
      %p36 = por %p34, %p35
      %p37 = scmp.ne.s32.totalorder %s26, %s29
      %p38 = scmp.eq.s32.totalorder %s21, 1
      %p39 = por %p37, %p38
      %p40 = scmp.ne.s32.totalorder %s29, %s30
      %p41 = scmp.eq.s32.totalorder %s21, 0
      %p42 = por %p40, %p41
      %p43 = scmp.ne.s32.totalorder %s29, %s30
      %p44 = scmp.eq.s32.totalorder %s22, 1
      %p45 = por %p43, %p44
      %p47 = scmp.ne.s32.totalorder %s30, %s46
      %p48 = scmp.eq.s32.totalorder %s22, 0
      %p49 = por %p47, %p48
      %s51 = sadd.s32 %s50, 1
      %p54 = scmp.eq.s32.totalorder %s16, 1
      %p55 = scmp.ne.s32.totalorder %s50, %s52
      %p56 = scmp.eq.s32.totalorder %s16, 0
      %p57 = por %p55, %p56
      %p58 = scmp.ne.s32.totalorder %s50, %s52
      %p59 = scmp.eq.s32.totalorder %s21, 1
      %p60 = por %p58, %p59
      %p61 = scmp.ne.s32.totalorder %s52, %s53
      %p62 = scmp.eq.s32.totalorder %s21, 0
      %p63 = por %p61, %p62
      %p64 = scmp.ne.s32.totalorder %s52, %s53
      %p65 = scmp.eq.s32.totalorder %s22, 1
      %p66 = por %p64, %p65
      %p68 = scmp.ne.s32.totalorder %s53, %s67
      %p69 = scmp.eq.s32.totalorder %s22, 0
      %p70 = por %p68, %p69
      %s72 = sadd.s32 %s71, 1
      %p75 = scmp.eq.s32.totalorder %s16, 1
      %p76 = scmp.ne.s32.totalorder %s71, %s73
      %p77 = scmp.eq.s32.totalorder %s16, 0
      %p78 = por %p76, %p77
      %p79 = scmp.ne.s32.totalorder %s71, %s73
      %p80 = scmp.eq.s32.totalorder %s21, 1
      %p81 = por %p79, %p80
      %p82 = scmp.ne.s32.totalorder %s73, %s74
      %p83 = scmp.eq.s32.totalorder %s21, 0
      %p84 = por %p82, %p83
      %p85 = scmp.ne.s32.totalorder %s73, %s74
      %p86 = scmp.eq.s32.totalorder %s22, 1
      %p87 = por %p85, %p86
      %p89 = scmp.ne.s32.totalorder %s74, %s88
      %p90 = scmp.eq.s32.totalorder %s22, 0
      %p91 = por %p89, %p90
      %s93 = sadd.s32 %s92, 1
      %p96 = scmp.eq.s32.totalorder %s16, 1
      %p97 = scmp.ne.s32.totalorder %s92, %s94
      %p98 = scmp.eq.s32.totalorder %s16, 0
      %p99 = por %p97, %p98
      %p100 = scmp.ne.s32.totalorder %s92, %s94
      %p101 = scmp.eq.s32.totalorder %s21, 1
      %p102 = por %p100, %p101
      %p103 = scmp.ne.s32.totalorder %s94, %s95
      %p104 = scmp.eq.s32.totalorder %s21, 0
      %p105 = por %p103, %p104
      %p106 = scmp.ne.s32.totalorder %s94, %s95
      %p107 = scmp.eq.s32.totalorder %s22, 1
      %p108 = por %p106, %p107
      %p110 = scmp.ne.s32.totalorder %s95, %s109
      %p111 = scmp.eq.s32.totalorder %s22, 0
      %p112 = por %p110, %p111
      %s114 = sadd.s32 %s113, 1
      %p117 = scmp.eq.s32.totalorder %s16, 1
      %p118 = scmp.ne.s32.totalorder %s113, %s115
      %p119 = scmp.eq.s32.totalorder %s16, 0
      %p120 = por %p118, %p119
      %p121 = scmp.ne.s32.totalorder %s113, %s115
      %p122 = scmp.eq.s32.totalorder %s21, 1
      %p123 = por %p121, %p122
      %p124 = scmp.ne.s32.totalorder %s115, %s116
      %p125 = scmp.eq.s32.totalorder %s21, 0
      %p126 = por %p124, %p125
      %p127 = scmp.ne.s32.totalorder %s115, %s116
      %p128 = scmp.eq.s32.totalorder %s22, 1
      %p129 = por %p127, %p128
      %p131 = scmp.ne.s32.totalorder %s116, %s130
      %p132 = scmp.eq.s32.totalorder %s22, 0
      %p133 = por %p131, %p132
      %s135 = sadd.s32 %s134, 1
      %p138 = scmp.eq.s32.totalorder %s16, 1
      %p139 = scmp.ne.s32.totalorder %s134, %s136
      %p140 = scmp.eq.s32.totalorder %s16, 0
      %p141 = por %p139, %p140
      %p142 = scmp.ne.s32.totalorder %s134, %s136
      %p143 = scmp.eq.s32.totalorder %s21, 1
      %p144 = por %p142, %p143
      %p145 = scmp.ne.s32.totalorder %s136, %s137
      %p146 = scmp.eq.s32.totalorder %s21, 0
      %p147 = por %p145, %p146
      %p148 = scmp.ne.s32.totalorder %s136, %s137
      %p149 = scmp.eq.s32.totalorder %s22, 1
      %p150 = por %p148, %p149
      %p152 = scmp.ne.s32.totalorder %s137, %s151
      %p153 = scmp.eq.s32.totalorder %s22, 0
      %p154 = por %p152, %p153
      %s156 = sadd.s32 %s155, 1
      %p159 = scmp.eq.s32.totalorder %s16, 1
      %p160 = scmp.ne.s32.totalorder %s155, %s157
      %p161 = scmp.eq.s32.totalorder %s16, 0
      %p162 = por %p160, %p161
      %p163 = scmp.ne.s32.totalorder %s155, %s157
      %p164 = scmp.eq.s32.totalorder %s21, 1
      %p165 = por %p163, %p164
      %p166 = scmp.ne.s32.totalorder %s157, %s158
      %p167 = scmp.eq.s32.totalorder %s21, 0
      %p168 = por %p166, %p167
      %p169 = scmp.ne.s32.totalorder %s157, %s158
      %p170 = scmp.eq.s32.totalorder %s22, 1
      %p171 = por %p169, %p170
      %p173 = scmp.ne.s32.totalorder %s158, %s172
      %p174 = scmp.eq.s32.totalorder %s22, 0
      %p175 = por %p173, %p174
      %s176 = ssub.s32 %s16, %s23
      %p177 = scmp.eq.s32.totalorder %s176, 0
      %s179 = sadd.s32 %s178, 1
      %s180 = scalar_select %p177, %s178, %s179
      %p183 = pneg %p177
      %p184 = scmp.eq.s32.totalorder %s16, 1
      %p185 = por %p183, %p184
      %p186 = scmp.ne.s32.totalorder %s178, %s181
      %p187 = scmp.eq.s32.totalorder %s16, 0
      %p188 = por %p186, %p187
      %p189 = scmp.ne.s32.totalorder %s178, %s181
      %p190 = scmp.eq.s32.totalorder %s21, 1
      %p191 = por %p189, %p190
      %p192 = scmp.ne.s32.totalorder %s181, %s182
      %p193 = scmp.eq.s32.totalorder %s21, 0
      %p194 = por %p192, %p193
      %p195 = scmp.ne.s32.totalorder %s181, %s182
      %p196 = scmp.eq.s32.totalorder %s22, 1
      %p197 = por %p195, %p196
      %p199 = scmp.ne.s32.totalorder %s182, %s198
      %p200 = scmp.eq.s32.totalorder %s22, 0
      %p201 = por %p199, %p200
      %p202 = scmp.le.s32.totalorder 1, %s16
      %p203 = scmp.lt.s32.totalorder %s16, 3
      %p204 = pnand %p202, %p203
      %p205 = pneg %p204
      // Predicated region
      $region9: #{tpu_custom_call.1} parent=5 // pred_check
        _
      $region10: #{tpu_custom_call.1} parent=5 // pred_check_branch
        %207 = sbr.rel (%p204) target = $region12
      $region11: #{tpu_custom_call.1} parent=5 // pred_region
        %s208 = ssub.s32 %s16, 1
        // Predicated region
        $region13: #{tpu_custom_call.1} parent=11 // pred_check
          %p209 = pneg %p63
        $region14: #{tpu_custom_call.1} parent=11 // pred_check_branch
          %211 = sbr.rel (%p209) target = $region16
        $region15: #{tpu_custom_call.1} parent=11 // pred_region
          _
        $region16: #{tpu_custom_call.1} parent=11 // pred_fallthru
          _
        // Predicated region
        $region17: #{tpu_custom_call.1} parent=11 // pred_check
          %p212 = pneg %p84
        $region18: #{tpu_custom_call.1} parent=11 // pred_check_branch
          %214 = sbr.rel (%p212) target = $region20
        $region19: #{tpu_custom_call.1} parent=11 // pred_region
          _
        $region20: #{tpu_custom_call.1} parent=11 // pred_fallthru
          _
        // Predicated region
        $region21: #{tpu_custom_call.1} parent=11 // pred_check
          %p215 = pneg %p105
        $region22: #{tpu_custom_call.1} parent=11 // pred_check_branch
          %217 = sbr.rel (%p215) target = $region24
        $region23: #{tpu_custom_call.1} parent=11 // pred_region
          _
        $region24: #{tpu_custom_call.1} parent=11 // pred_fallthru
          _
        // Predicated region
        $region25: #{tpu_custom_call.1} parent=11 // pred_check
          %p218 = pneg %p126
        $region26: #{tpu_custom_call.1} parent=11 // pred_check_branch
          %220 = sbr.rel (%p218) target = $region28
        $region27: #{tpu_custom_call.1} parent=11 // pred_region
          _
        $region28: #{tpu_custom_call.1} parent=11 // pred_fallthru
          _
        // Predicated region
        $region29: #{tpu_custom_call.1} parent=11 // pred_check
          %p221 = pneg %p147
        $region30: #{tpu_custom_call.1} parent=11 // pred_check_branch
          %223 = sbr.rel (%p221) target = $region32
        $region31: #{tpu_custom_call.1} parent=11 // pred_region
          _
        $region32: #{tpu_custom_call.1} parent=11 // pred_fallthru
          _
        // Predicated region
        $region33: #{tpu_custom_call.1} parent=11 // pred_check
          %p224 = pneg %p168
        $region34: #{tpu_custom_call.1} parent=11 // pred_check_branch
          %226 = sbr.rel (%p224) target = $region36
        $region35: #{tpu_custom_call.1} parent=11 // pred_region
          _
        $region36: #{tpu_custom_call.1} parent=11 // pred_fallthru
          _
      $region12: #{tpu_custom_call.1} parent=5 // pred_fallthru
        _
      %p227 = scmp.lt.s32.totalorder %s16, 2
      // Predicated region
      $region37: #{tpu_custom_call.1} parent=5 // pred_check
        %p228 = pneg %p227
      $region38: #{tpu_custom_call.1} parent=5 // pred_check_branch
        %230 = sbr.rel (%p228) target = $region40
      $region39: #{tpu_custom_call.1} parent=5 // pred_region
        // Predicated region
        $region41: #{tpu_custom_call.1} parent=39 // pred_check
          %p231 = pneg %p36
        $region42: #{tpu_custom_call.1} parent=39 // pred_check_branch
          %233 = sbr.rel (%p231) target = $region44
        $region43: #{tpu_custom_call.1} parent=39 // pred_region
          %p234 = scmp.lt.s32.totalorder %s16, 1
          %s235 = scalar_select %p234, %s16, 1
          %s236 = smul.addr %s235, 32
          %s237 = smul.addr %s236, 8
          %s238 = scalar_lea.vmem %s0, %s237
        $region44: #{tpu_custom_call.1} parent=39 // pred_fallthru
          _
      $region40: #{tpu_custom_call.1} parent=5 // pred_fallthru
        _
      %p239 = scmp.le.s32.totalorder 1, %s16
      %p240 = scmp.lt.s32.totalorder %s16, 3
      %p241 = pnand %p239, %p240
      %p242 = pneg %p241
      // Predicated region
      $region45: #{tpu_custom_call.1} parent=5 // pred_check
        _
      $region46: #{tpu_custom_call.1} parent=5 // pred_check_branch
        %244 = sbr.rel (%p241) target = $region48
      $region47: #{tpu_custom_call.1} parent=5 // pred_region
        %s245 = ssub.s32 %s16, 1
        %p246 = scmp.lt.s32.totalorder %s21, 1
        %s247 = scalar_select %p246, %s21, 1
        %s248 = smul.addr %s247, 32
        %s249 = smul.addr %s248, 8
        %s250 = scalar_lea.vmem %s0, %s249
        %p251 = pneg %p42
        %p252 = pneg %p39
        %p253 = pneg %p63
        %p254 = pneg %p60
        %p255 = pneg %p84
        %p256 = pneg %p81
        %p257 = pneg %p105
        %p258 = pneg %p102
        %p259 = pneg %p126
        %p260 = pneg %p123
        %p261 = pneg %p147
        %p262 = pneg %p144
        %p263 = pneg %p168
        %p264 = pneg %p165
        %p265 = pneg %p194
        %p266 = pneg %p191
        %s267 = sand.u32 %s181, 1
        %s268 = scalar_lea.sflag [#allocation4], %s267
        %s269 = sand.u32 %s181, 1
        %s270 = smul.addr %s269, 32
        %s271 = scalar_lea.vmem [#allocation3], %s270
        %p272 = scmp.lt.s32.totalorder %s21, 1
        %s273 = scalar_select %p272, %s21, 1
        %s274 = smul.addr %s273, 32
        %s275 = smul.addr %s274, 8
        %s276 = scalar_lea.vmem %s0, %s275
        %v278 = vld [vmem:[%s276] sm:$0xff]
        %v279 = vld [vmem:[%s276 + $0x8] sm:$0xff]
        %v280 = vld [vmem:[%s276 + $0x10] sm:$0xff]
        %v281 = vld [vmem:[%s276 + $0x18] sm:$0xff]
        %v282 = vld [vmem:[%s276 + $0x20] sm:$0xff]
        %v283 = vld [vmem:[%s276 + $0x28] sm:$0xff]
        %v284 = vld [vmem:[%s276 + $0x30] sm:$0xff]
        %v285 = vld [vmem:[%s276 + $0x38] sm:$0xff]
        %v286 = vld [vmem:[%s276 + $0x40] sm:$0xff]
        %v287 = vld [vmem:[%s276 + $0x48] sm:$0xff]
        %v288 = vld [vmem:[%s276 + $0x50] sm:$0xff]
        %v289 = vld [vmem:[%s276 + $0x58] sm:$0xff]
        %v290 = vld [vmem:[%s276 + $0x60] sm:$0xff]
        %v291 = vld [vmem:[%s276 + $0x68] sm:$0xff]
        %v292 = vld [vmem:[%s276 + $0x70] sm:$0xff]
        %v293 = vld [vmem:[%s276 + $0x78] sm:$0xff]
        %v294 = vld [vmem:[%s276 + $0x80] sm:$0xff]
        %v295 = vld [vmem:[%s276 + $0x88] sm:$0xff]
        %v296 = vld [vmem:[%s276 + $0x90] sm:$0xff]
        %v297 = vld [vmem:[%s276 + $0x98] sm:$0xff]
        %v298 = vld [vmem:[%s276 + $0xa0] sm:$0xff]
        %v299 = vld [vmem:[%s276 + $0xa8] sm:$0xff]
        %v300 = vld [vmem:[%s276 + $0xb0] sm:$0xff]
        %v301 = vld [vmem:[%s276 + $0xb8] sm:$0xff]
        %v302 = vld [vmem:[%s276 + $0xc0] sm:$0xff]
        %v303 = vld [vmem:[%s276 + $0xc8] sm:$0xff]
        %v304 = vld [vmem:[%s276 + $0xd0] sm:$0xff]
        %v305 = vld [vmem:[%s276 + $0xd8] sm:$0xff]
        %v306 = vld [vmem:[%s276 + $0xe0] sm:$0xff]
        %v307 = vld [vmem:[%s276 + $0xe8] sm:$0xff]
        %v308 = vld [vmem:[%s276 + $0xf0] sm:$0xff]
        %v309 = vld [vmem:[%s276 + $0xf8] sm:$0xff]
        %v310 = vpack.c.bf16 %v279, %v278
        %v311 = vpack.c.bf16 %v281, %v280
        %v312 = vpack.c.bf16 %v283, %v282
        %v313 = vpack.c.bf16 %v285, %v284
        %v314 = vpack.c.bf16 %v287, %v286
        %v315 = vpack.c.bf16 %v289, %v288
        %v316 = vpack.c.bf16 %v291, %v290
        %v317 = vpack.c.bf16 %v293, %v292
        %v318 = vpack.c.bf16 %v295, %v294
        %v319 = vpack.c.bf16 %v297, %v296
        %v320 = vpack.c.bf16 %v299, %v298
        %v321 = vpack.c.bf16 %v301, %v300
        %v322 = vpack.c.bf16 %v303, %v302
        %v323 = vpack.c.bf16 %v305, %v304
        %v324 = vpack.c.bf16 %v307, %v306
        %v325 = vpack.c.bf16 %v309, %v308
        %v326 = vld [vmem:[%s1] sm:$0x3]
        %v327 = vld [vmem:[%s2] sm:$0x1]
        %v329 = vlaneseq
        %v330 = vshrl.u32 %v329, 7
        %v331 = vsub.s32 0, %v330
        %v332 = vrot.slane %v327, %v331
        %vm334 = vcmask 31744
        %v336 = vsel %vm334, %v310, 0
        %v339 = vsel %vm334, %v311, 0
        %v342 = vsel %vm334, %v312, 0
        %v345 = vsel %vm334, %v313, 0
        %v348 = vsel %vm334, %v314, 0
        %v351 = vsel %vm334, %v315, 0
        %v354 = vsel %vm334, %v316, 0
        %v357 = vsel %vm334, %v317, 0
        %v360 = vsel %vm334, %v318, 0
        %v363 = vsel %vm334, %v319, 0
        %v366 = vsel %vm334, %v320, 0
        %v369 = vsel %vm334, %v321, 0
        %v372 = vsel %vm334, %v322, 0
        %v375 = vsel %vm334, %v323, 0
        %v378 = vsel %vm334, %v324, 0
        %v381 = vsel %vm334, %v325, 0
        %vm383 = vcmask 1041408
        %v385 = vsel %vm383, %v326, 0
        %387 = vmatprep.subr.bf16.mxu0 0
        %388 = vmatpush1.bf16.msra.mxu0 %v385
        %389 = vmatprep.subr.bf16.mxu0 0
        %390 = vmatpush1.bf16.msra.mxu0 0
        %391 = vmatprep.subr.bf16.mxu0 0
        %392 = vmatpush1.bf16.msra.mxu0 0
        %393 = vmatprep.subr.bf16.mxu0 0
        %394 = vmatpush1.bf16.msra.mxu0 0
        %395 = vmatprep.subr.bf16.mxu0 0
        %396 = vmatpush1.bf16.msra.mxu0 0
        %397 = vmatprep.subr.bf16.mxu0 0
        %398 = vmatpush1.bf16.msra.mxu0 0
        %399 = vmatprep.subr.bf16.mxu0 0
        %400 = vmatpush1.bf16.msra.mxu0 0
        %401 = vmatprep.subr.bf16.mxu0 0
        %402 = vmatpush1.bf16.msra.mxu0 0
        %403 = vmatprep.subr.bf16.mxu0 0
        %404 = vmatpush1.bf16.msra.mxu0 0
        %405 = vmatprep.subr.bf16.mxu0 0
        %406 = vmatpush1.bf16.msra.mxu0 0
        %407 = vmatprep.subr.bf16.mxu0 0
        %408 = vmatpush1.bf16.msra.mxu0 0
        %409 = vmatprep.subr.bf16.mxu0 0
        %410 = vmatpush1.bf16.msra.mxu0 0
        %411 = vmatprep.subr.bf16.mxu0 0
        %412 = vmatpush1.bf16.msra.mxu0 0
        %413 = vmatprep.subr.bf16.mxu0 0
        %414 = vmatpush1.bf16.msra.mxu0 0
        %415 = vmatprep.subr.bf16.mxu0 0
        %416 = vmatpush1.bf16.msra.mxu0 0
        %417 = vmatprep.subr.bf16.mxu0 0
        %418 = vmatpush1.bf16.msra.mxu0 0
        %419 = vmatprep.mubr.bf16.mxu0 0
        %420 = vmatmul.mubr.bf16.gmra.mrb[0].mxu0 %v336
        %v421 = vpop.f32.mrb[0].mxu0
        %v422 = vadd.f32 %v332, %v421
        %v423 = vpop.f32.mrb[0].mxu0
        %v424 = vpop.f32.mrb[0].mxu0
        %v425 = vadd.f32 %v332, %v424
        %v426 = vpop.f32.mrb[0].mxu0
        %427 = vmatprep.mubr.bf16.mxu0 0
        %428 = vmatmul.mubr.bf16.gmra.mrb[0].mxu0 %v339
        %v429 = vpop.f32.mrb[0].mxu0
        %v430 = vadd.f32 %v332, %v429
        %v431 = vpop.f32.mrb[0].mxu0
        %v432 = vpop.f32.mrb[0].mxu0
        %v433 = vadd.f32 %v332, %v432
        %v434 = vpop.f32.mrb[0].mxu0
        %435 = vmatprep.mubr.bf16.mxu0 0
        %436 = vmatmul.mubr.bf16.gmra.mrb[0].mxu0 %v342
        %v437 = vpop.f32.mrb[0].mxu0
        %v438 = vadd.f32 %v332, %v437
        %v439 = vpop.f32.mrb[0].mxu0
        %v440 = vpop.f32.mrb[0].mxu0
        %v441 = vadd.f32 %v332, %v440
        %v442 = vpop.f32.mrb[0].mxu0
        %443 = vmatprep.mubr.bf16.mxu0 0
        %444 = vmatmul.mubr.bf16.gmra.mrb[0].mxu0 %v345
        %v445 = vpop.f32.mrb[0].mxu0
        %v446 = vadd.f32 %v332, %v445
        %v447 = vpop.f32.mrb[0].mxu0
        %v448 = vpop.f32.mrb[0].mxu0
        %v449 = vadd.f32 %v332, %v448
        %v450 = vpop.f32.mrb[0].mxu0
        %451 = vmatprep.mubr.bf16.mxu0 0
        %452 = vmatmul.mubr.bf16.gmra.mrb[0].mxu0 %v348
        %v453 = vpop.f32.mrb[0].mxu0
        %v454 = vadd.f32 %v332, %v453
        %v455 = vpop.f32.mrb[0].mxu0
        %v456 = vpop.f32.mrb[0].mxu0
        %v457 = vadd.f32 %v332, %v456
        %v458 = vpop.f32.mrb[0].mxu0
        %459 = vmatprep.mubr.bf16.mxu0 0
        %460 = vmatmul.mubr.bf16.gmra.mrb[0].mxu0 %v351
        %v461 = vpop.f32.mrb[0].mxu0
        %v462 = vadd.f32 %v332, %v461
        %v463 = vpop.f32.mrb[0].mxu0
        %v464 = vpop.f32.mrb[0].mxu0
        %v465 = vadd.f32 %v332, %v464
        %v466 = vpop.f32.mrb[0].mxu0
        %467 = vmatprep.mubr.bf16.mxu0 0
        %468 = vmatmul.mubr.bf16.gmra.mrb[0].mxu0 %v354
        %v469 = vpop.f32.mrb[0].mxu0
        %v470 = vadd.f32 %v332, %v469
        %v471 = vpop.f32.mrb[0].mxu0
        %v472 = vpop.f32.mrb[0].mxu0
        %v473 = vadd.f32 %v332, %v472
        %v474 = vpop.f32.mrb[0].mxu0
        %475 = vmatprep.mubr.bf16.mxu0 0
        %476 = vmatmul.mubr.bf16.gmra.mrb[0].mxu0 %v357
        %v477 = vpop.f32.mrb[0].mxu0
        %v478 = vadd.f32 %v332, %v477
        %v479 = vpop.f32.mrb[0].mxu0
        %v480 = vpop.f32.mrb[0].mxu0
        %v481 = vadd.f32 %v332, %v480
        %v482 = vpop.f32.mrb[0].mxu0
        %483 = vmatprep.mubr.bf16.mxu0 0
        %484 = vmatmul.mubr.bf16.gmra.mrb[0].mxu0 %v360
        %v485 = vpop.f32.mrb[0].mxu0
        %v486 = vadd.f32 %v332, %v485
        %v487 = vpop.f32.mrb[0].mxu0
        %v488 = vpop.f32.mrb[0].mxu0
        %v489 = vadd.f32 %v332, %v488
        %v490 = vpop.f32.mrb[0].mxu0
        %491 = vmatprep.mubr.bf16.mxu0 0
        %492 = vmatmul.mubr.bf16.gmra.mrb[0].mxu0 %v363
        %v493 = vpop.f32.mrb[0].mxu0
        %v494 = vadd.f32 %v332, %v493
        %v495 = vpop.f32.mrb[0].mxu0
        %v496 = vpop.f32.mrb[0].mxu0
        %v497 = vadd.f32 %v332, %v496
        %v498 = vpop.f32.mrb[0].mxu0
        %499 = vmatprep.mubr.bf16.mxu0 0
        %500 = vmatmul.mubr.bf16.gmra.mrb[0].mxu0 %v366
        %v501 = vpop.f32.mrb[0].mxu0
        %v502 = vadd.f32 %v332, %v501
        %v503 = vpop.f32.mrb[0].mxu0
        %v504 = vpop.f32.mrb[0].mxu0
        %v505 = vadd.f32 %v332, %v504
        %v506 = vpop.f32.mrb[0].mxu0
        %507 = vmatprep.mubr.bf16.mxu0 0
        %508 = vmatmul.mubr.bf16.gmra.mrb[0].mxu0 %v369
        %v509 = vpop.f32.mrb[0].mxu0
        %v510 = vadd.f32 %v332, %v509
        %v511 = vpop.f32.mrb[0].mxu0
        %v512 = vpop.f32.mrb[0].mxu0
        %v513 = vadd.f32 %v332, %v512
        %v514 = vpop.f32.mrb[0].mxu0
        %515 = vmatprep.mubr.bf16.mxu0 0
        %516 = vmatmul.mubr.bf16.gmra.mrb[0].mxu0 %v372
        %v517 = vpop.f32.mrb[0].mxu0
        %v518 = vadd.f32 %v332, %v517
        %v519 = vpop.f32.mrb[0].mxu0
        %v520 = vpop.f32.mrb[0].mxu0
        %v521 = vadd.f32 %v332, %v520
        %v522 = vpop.f32.mrb[0].mxu0
        %523 = vmatprep.mubr.bf16.mxu0 0
        %524 = vmatmul.mubr.bf16.gmra.mrb[0].mxu0 %v375
        %v525 = vpop.f32.mrb[0].mxu0
        %v526 = vadd.f32 %v332, %v525
        %v527 = vpop.f32.mrb[0].mxu0
        %v528 = vpop.f32.mrb[0].mxu0
        %v529 = vadd.f32 %v332, %v528
        %v530 = vpop.f32.mrb[0].mxu0
        %531 = vmatprep.mubr.bf16.mxu0 0
        %532 = vmatmul.mubr.bf16.gmra.mrb[0].mxu0 %v378
        %v533 = vpop.f32.mrb[0].mxu0
        %v534 = vadd.f32 %v332, %v533
        %v535 = vpop.f32.mrb[0].mxu0
        %v536 = vpop.f32.mrb[0].mxu0
        %v537 = vadd.f32 %v332, %v536
        %v538 = vpop.f32.mrb[0].mxu0
        %539 = vmatprep.mubr.bf16.mxu0 0
        %540 = vmatmul.mubr.bf16.gmra.mrb[0].mxu0 %v381
        %v541 = vpop.f32.mrb[0].mxu0
        %v542 = vadd.f32 %v332, %v541
        %v543 = vpop.f32.mrb[0].mxu0
        %v544 = vpop.f32.mrb[0].mxu0
        %v545 = vadd.f32 %v332, %v544
        %v546 = vpop.f32.mrb[0].mxu0
        %547 = vdwg.mxu0
        %v548 = vxor.u32 %v422, 2147483648
        %v549 = vxor.u32 %v425, 2147483648
        %v550 = vxor.u32 %v430, 2147483648
        %v551 = vxor.u32 %v433, 2147483648
        %v552 = vxor.u32 %v438, 2147483648
        %v553 = vxor.u32 %v441, 2147483648
        %v554 = vxor.u32 %v446, 2147483648
        %v555 = vxor.u32 %v449, 2147483648
        %v556 = vxor.u32 %v454, 2147483648
        %v557 = vxor.u32 %v457, 2147483648
        %v558 = vxor.u32 %v462, 2147483648
        %v559 = vxor.u32 %v465, 2147483648
        %v560 = vxor.u32 %v470, 2147483648
        %v561 = vxor.u32 %v473, 2147483648
        %v562 = vxor.u32 %v478, 2147483648
        %v563 = vxor.u32 %v481, 2147483648
        %v564 = vxor.u32 %v486, 2147483648
        %v565 = vxor.u32 %v489, 2147483648
        %v566 = vxor.u32 %v494, 2147483648
        %v567 = vxor.u32 %v497, 2147483648
        %v568 = vxor.u32 %v502, 2147483648
        %v569 = vxor.u32 %v505, 2147483648
        %v570 = vxor.u32 %v510, 2147483648
        %v571 = vxor.u32 %v513, 2147483648
        %v572 = vxor.u32 %v518, 2147483648
        %v573 = vxor.u32 %v521, 2147483648
        %v574 = vxor.u32 %v526, 2147483648
        %v575 = vxor.u32 %v529, 2147483648
        %v576 = vxor.u32 %v534, 2147483648
        %v577 = vxor.u32 %v537, 2147483648
        %v578 = vxor.u32 %v542, 2147483648
        %v579 = vxor.u32 %v545, 2147483648
        %v580 = vmul.f32 %v548, 1.442695
        %v581 = vpow.pop %v580
        %v582 = vmul.f32 %v549, 1.442695
        %v583 = vpow.pop %v582
        %v584 = vmul.f32 %v550, 1.442695
        %v585 = vpow.pop %v584
        %v586 = vmul.f32 %v551, 1.442695
        %v587 = vpow.pop %v586
        %v588 = vmul.f32 %v552, 1.442695
        %v589 = vpow.pop %v588
        %v590 = vmul.f32 %v553, 1.442695
        %v591 = vpow.pop %v590
        %v592 = vmul.f32 %v554, 1.442695
        %v593 = vpow.pop %v592
        %v594 = vmul.f32 %v555, 1.442695
        %v595 = vpow.pop %v594
        %v596 = vmul.f32 %v556, 1.442695
        %v597 = vpow.pop %v596
        %v598 = vmul.f32 %v557, 1.442695
        %v599 = vpow.pop %v598
        %v600 = vmul.f32 %v558, 1.442695
        %v601 = vpow.pop %v600
        %v602 = vmul.f32 %v559, 1.442695
        %v603 = vpow.pop %v602
        %v604 = vmul.f32 %v560, 1.442695
        %v605 = vpow.pop %v604
        %v606 = vmul.f32 %v561, 1.442695
        %v607 = vpow.pop %v606
        %v608 = vmul.f32 %v562, 1.442695
        %v609 = vpow.pop %v608
        %v610 = vmul.f32 %v563, 1.442695
        %v611 = vpow.pop %v610
        %v612 = vmul.f32 %v564, 1.442695
        %v613 = vpow.pop %v612
        %v614 = vmul.f32 %v565, 1.442695
        %v615 = vpow.pop %v614
        %v616 = vmul.f32 %v566, 1.442695
        %v617 = vpow.pop %v616
        %v618 = vmul.f32 %v567, 1.442695
        %v619 = vpow.pop %v618
        %v620 = vmul.f32 %v568, 1.442695
        %v621 = vpow.pop %v620
        %v622 = vmul.f32 %v569, 1.442695
        %v623 = vpow.pop %v622
        %v624 = vmul.f32 %v570, 1.442695
        %v625 = vpow.pop %v624
        %v626 = vmul.f32 %v571, 1.442695
        %v627 = vpow.pop %v626
        %v628 = vmul.f32 %v572, 1.442695
        %v629 = vpow.pop %v628
        %v630 = vmul.f32 %v573, 1.442695
        %v631 = vpow.pop %v630
        %v632 = vmul.f32 %v574, 1.442695
        %v633 = vpow.pop %v632
        %v634 = vmul.f32 %v575, 1.442695
        %v635 = vpow.pop %v634
        %v636 = vmul.f32 %v576, 1.442695
        %v637 = vpow.pop %v636
        %v638 = vmul.f32 %v577, 1.442695
        %v639 = vpow.pop %v638
        %v640 = vmul.f32 %v578, 1.442695
        %v641 = vpow.pop %v640
        %v642 = vmul.f32 %v579, 1.442695
        %v643 = vpow.pop %v642
        %v644 = vadd.f32 %v581, 1.0
        %v645 = vadd.f32 %v583, 1.0
        %v646 = vadd.f32 %v585, 1.0
        %v647 = vadd.f32 %v587, 1.0
        %v648 = vadd.f32 %v589, 1.0
        %v649 = vadd.f32 %v591, 1.0
        %v650 = vadd.f32 %v593, 1.0
        %v651 = vadd.f32 %v595, 1.0
        %v652 = vadd.f32 %v597, 1.0
        %v653 = vadd.f32 %v599, 1.0
        %v654 = vadd.f32 %v601, 1.0
        %v655 = vadd.f32 %v603, 1.0
        %v656 = vadd.f32 %v605, 1.0
        %v657 = vadd.f32 %v607, 1.0
        %v658 = vadd.f32 %v609, 1.0
        %v659 = vadd.f32 %v611, 1.0
        %v660 = vadd.f32 %v613, 1.0
        %v661 = vadd.f32 %v615, 1.0
        %v662 = vadd.f32 %v617, 1.0
        %v663 = vadd.f32 %v619, 1.0
        %v664 = vadd.f32 %v621, 1.0
        %v665 = vadd.f32 %v623, 1.0
        %v666 = vadd.f32 %v625, 1.0
        %v667 = vadd.f32 %v627, 1.0
        %v668 = vadd.f32 %v629, 1.0
        %v669 = vadd.f32 %v631, 1.0
        %v670 = vadd.f32 %v633, 1.0
        %v671 = vadd.f32 %v635, 1.0
        %v672 = vadd.f32 %v637, 1.0
        %v673 = vadd.f32 %v639, 1.0
        %v674 = vadd.f32 %v641, 1.0
        %v675 = vadd.f32 %v643, 1.0
        %v676 = vrcp.pop %v644
        %v677 = vmul.f32 1.0, %v676
        %v678 = vrcp.pop %v645
        %v679 = vmul.f32 1.0, %v678
        %v680 = vrcp.pop %v646
        %v681 = vmul.f32 1.0, %v680
        %v682 = vrcp.pop %v647
        %v683 = vmul.f32 1.0, %v682
        %v684 = vrcp.pop %v648
        %v685 = vmul.f32 1.0, %v684
        %v686 = vrcp.pop %v649
        %v687 = vmul.f32 1.0, %v686
        %v688 = vrcp.pop %v650
        %v689 = vmul.f32 1.0, %v688
        %v690 = vrcp.pop %v651
        %v691 = vmul.f32 1.0, %v690
        %v692 = vrcp.pop %v652
        %v693 = vmul.f32 1.0, %v692
        %v694 = vrcp.pop %v653
        %v695 = vmul.f32 1.0, %v694
        %v696 = vrcp.pop %v654
        %v697 = vmul.f32 1.0, %v696
        %v698 = vrcp.pop %v655
        %v699 = vmul.f32 1.0, %v698
        %v700 = vrcp.pop %v656
        %v701 = vmul.f32 1.0, %v700
        %v702 = vrcp.pop %v657
        %v703 = vmul.f32 1.0, %v702
        %v704 = vrcp.pop %v658
        %v705 = vmul.f32 1.0, %v704
        %v706 = vrcp.pop %v659
        %v707 = vmul.f32 1.0, %v706
        %v708 = vrcp.pop %v660
        %v709 = vmul.f32 1.0, %v708
        %v710 = vrcp.pop %v661
        %v711 = vmul.f32 1.0, %v710
        %v712 = vrcp.pop %v662
        %v713 = vmul.f32 1.0, %v712
        %v714 = vrcp.pop %v663
        %v715 = vmul.f32 1.0, %v714
        %v716 = vrcp.pop %v664
        %v717 = vmul.f32 1.0, %v716
        %v718 = vrcp.pop %v665
        %v719 = vmul.f32 1.0, %v718
        %v720 = vrcp.pop %v666
        %v721 = vmul.f32 1.0, %v720
        %v722 = vrcp.pop %v667
        %v723 = vmul.f32 1.0, %v722
        %v724 = vrcp.pop %v668
        %v725 = vmul.f32 1.0, %v724
        %v726 = vrcp.pop %v669
        %v727 = vmul.f32 1.0, %v726
        %v728 = vrcp.pop %v670
        %v729 = vmul.f32 1.0, %v728
        %v730 = vrcp.pop %v671
        %v731 = vmul.f32 1.0, %v730
        %v732 = vrcp.pop %v672
        %v733 = vmul.f32 1.0, %v732
        %v734 = vrcp.pop %v673
        %v735 = vmul.f32 1.0, %v734
        %v736 = vrcp.pop %v674
        %v737 = vmul.f32 1.0, %v736
        %v738 = vrcp.pop %v675
        %v739 = vmul.f32 1.0, %v738
        %v740 = vmul.f32 %v422, %v677
        %v741 = vmul.f32 %v425, %v679
        %v742 = vmul.f32 %v430, %v681
        %v743 = vmul.f32 %v433, %v683
        %v744 = vmul.f32 %v438, %v685
        %v745 = vmul.f32 %v441, %v687
        %v746 = vmul.f32 %v446, %v689
        %v747 = vmul.f32 %v449, %v691
        %v748 = vmul.f32 %v454, %v693
        %v749 = vmul.f32 %v457, %v695
        %v750 = vmul.f32 %v462, %v697
        %v751 = vmul.f32 %v465, %v699
        %v752 = vmul.f32 %v470, %v701
        %v753 = vmul.f32 %v473, %v703
        %v754 = vmul.f32 %v478, %v705
        %v755 = vmul.f32 %v481, %v707
        %v756 = vmul.f32 %v486, %v709
        %v757 = vmul.f32 %v489, %v711
        %v758 = vmul.f32 %v494, %v713
        %v759 = vmul.f32 %v497, %v715
        %v760 = vmul.f32 %v502, %v717
        %v761 = vmul.f32 %v505, %v719
        %v762 = vmul.f32 %v510, %v721
        %v763 = vmul.f32 %v513, %v723
        %v764 = vmul.f32 %v518, %v725
        %v765 = vmul.f32 %v521, %v727
        %v766 = vmul.f32 %v526, %v729
        %v767 = vmul.f32 %v529, %v731
        %v768 = vmul.f32 %v534, %v733
        %v769 = vmul.f32 %v537, %v735
        %v770 = vmul.f32 %v542, %v737
        %v771 = vmul.f32 %v545, %v739
        %vm772 = vcmask 261120
        %773 = vst.msk [vmem:[#allocation2] sm:$0xff] %vm772, 0.0
        %774 = vst.msk [vmem:[#allocation2 + $0x8] sm:$0xff] %vm772, 0.0
        %vm775 = vcmask 254976
        %776 = vst.msk [vmem:[#allocation2 + $0x10] sm:$0x3] %vm775, 0.0
        %s777 = scalar_lea.vmem [#allocation2], 408
        %778 = vst.msk [vmem:[%s777] sm:$0xff] %vm772, 0.0
        %779 = vst.msk [vmem:[%s777 + $0x8] sm:$0xff] %vm772, 0.0
        %780 = vst.msk [vmem:[%s777 + $0x10] sm:$0x3] %vm775, 0.0
        %vm781 = vcmask 253952
        %782 = vst.msk [vmem:[#allocation2] sm:$0x1] %vm781, 0.0
        %783 = vst.msk [vmem:[#allocation2 + $0x18] sm:$0x1] %vm781, 0.0
        %784 = vst.msk [vmem:[#allocation2 + $0x30] sm:$0x1] %vm781, 0.0
        %785 = vst.msk [vmem:[#allocation2 + $0x48] sm:$0x1] %vm781, 0.0
        %786 = vst.msk [vmem:[#allocation2 + $0x60] sm:$0x1] %vm781, 0.0
        %787 = vst.msk [vmem:[#allocation2 + $0x78] sm:$0x1] %vm781, 0.0
        %788 = vst.msk [vmem:[#allocation2 + $0x90] sm:$0x1] %vm781, 0.0
        %789 = vst.msk [vmem:[#allocation2 + $0xa8] sm:$0x1] %vm781, 0.0
        %790 = vst.msk [vmem:[#allocation2 + $0xc0] sm:$0x1] %vm781, 0.0
        %791 = vst.msk [vmem:[#allocation2 + $0xd8] sm:$0x1] %vm781, 0.0
        %792 = vst.msk [vmem:[#allocation2 + $0xf0] sm:$0x1] %vm781, 0.0
        %793 = vst.msk [vmem:[#allocation2 + $0x108] sm:$0x1] %vm781, 0.0
        %794 = vst.msk [vmem:[#allocation2 + $0x120] sm:$0x1] %vm781, 0.0
        %795 = vst.msk [vmem:[#allocation2 + $0x138] sm:$0x1] %vm781, 0.0
        %796 = vst.msk [vmem:[#allocation2 + $0x150] sm:$0x1] %vm781, 0.0
        %797 = vst.msk [vmem:[#allocation2 + $0x168] sm:$0x1] %vm781, 0.0
        %798 = vst.msk [vmem:[#allocation2 + $0x180] sm:$0x1] %vm781, 0.0
        %799 = vst.msk [vmem:[#allocation2 + $0x198] sm:$0x1] %vm781, 0.0
        %800 = vst.msk [vmem:[#allocation2 + $0x11] sm:$0x1] %vm781, 0.0
        %801 = vst.msk [vmem:[#allocation2 + $0x29] sm:$0x1] %vm781, 0.0
        %802 = vst.msk [vmem:[#allocation2 + $0x41] sm:$0x1] %vm781, 0.0
        %803 = vst.msk [vmem:[#allocation2 + $0x59] sm:$0x1] %vm781, 0.0
        %804 = vst.msk [vmem:[#allocation2 + $0x71] sm:$0x1] %vm781, 0.0
        %805 = vst.msk [vmem:[#allocation2 + $0x89] sm:$0x1] %vm781, 0.0
        %806 = vst.msk [vmem:[#allocation2 + $0xa1] sm:$0x1] %vm781, 0.0
        %807 = vst.msk [vmem:[#allocation2 + $0xb9] sm:$0x1] %vm781, 0.0
        %808 = vst.msk [vmem:[#allocation2 + $0xd1] sm:$0x1] %vm781, 0.0
        %809 = vst.msk [vmem:[#allocation2 + $0xe9] sm:$0x1] %vm781, 0.0
        %810 = vst.msk [vmem:[#allocation2 + $0x101] sm:$0x1] %vm781, 0.0
        %811 = vst.msk [vmem:[#allocation2 + $0x119] sm:$0x1] %vm781, 0.0
        %812 = vst.msk [vmem:[#allocation2 + $0x131] sm:$0x1] %vm781, 0.0
        %813 = vst.msk [vmem:[#allocation2 + $0x149] sm:$0x1] %vm781, 0.0
        %814 = vst.msk [vmem:[#allocation2 + $0x161] sm:$0x1] %vm781, 0.0
        %815 = vst.msk [vmem:[#allocation2 + $0x179] sm:$0x1] %vm781, 0.0
        %816 = vst.msk [vmem:[#allocation2 + $0x191] sm:$0x1] %vm781, 0.0
        %817 = vst.msk [vmem:[#allocation2 + $0x1a9] sm:$0x1] %vm781, 0.0
        %s818 = scalar_lea.vmem [#allocation2], 24
        %819 = vst.msk [vmem:[%s818 + $0x1] sm:$0xff] %vm772, %v740
        %820 = vst.msk [vmem:[%s818 + $0x9] sm:$0xff] %vm772, %v741
        %821 = vst.msk [vmem:[%s818 + $0x19] sm:$0xff] %vm772, %v742
        %822 = vst.msk [vmem:[%s818 + $0x21] sm:$0xff] %vm772, %v743
        %823 = vst.msk [vmem:[%s818 + $0x31] sm:$0xff] %vm772, %v744
        %824 = vst.msk [vmem:[%s818 + $0x39] sm:$0xff] %vm772, %v745
        %825 = vst.msk [vmem:[%s818 + $0x49] sm:$0xff] %vm772, %v746
        %826 = vst.msk [vmem:[%s818 + $0x51] sm:$0xff] %vm772, %v747
        %827 = vst.msk [vmem:[%s818 + $0x61] sm:$0xff] %vm772, %v748
        %828 = vst.msk [vmem:[%s818 + $0x69] sm:$0xff] %vm772, %v749
        %829 = vst.msk [vmem:[%s818 + $0x79] sm:$0xff] %vm772, %v750
        %830 = vst.msk [vmem:[%s818 + $0x81] sm:$0xff] %vm772, %v751
        %831 = vst.msk [vmem:[%s818 + $0x91] sm:$0xff] %vm772, %v752
        %832 = vst.msk [vmem:[%s818 + $0x99] sm:$0xff] %vm772, %v753
        %833 = vst.msk [vmem:[%s818 + $0xa9] sm:$0xff] %vm772, %v754
        %834 = vst.msk [vmem:[%s818 + $0xb1] sm:$0xff] %vm772, %v755
        %835 = vst.msk [vmem:[%s818 + $0xc1] sm:$0xff] %vm772, %v756
        %836 = vst.msk [vmem:[%s818 + $0xc9] sm:$0xff] %vm772, %v757
        %837 = vst.msk [vmem:[%s818 + $0xd9] sm:$0xff] %vm772, %v758
        %838 = vst.msk [vmem:[%s818 + $0xe1] sm:$0xff] %vm772, %v759
        %839 = vst.msk [vmem:[%s818 + $0xf1] sm:$0xff] %vm772, %v760
        %840 = vst.msk [vmem:[%s818 + $0xf9] sm:$0xff] %vm772, %v761
        %841 = vst.msk [vmem:[%s818 + $0x109] sm:$0xff] %vm772, %v762
        %842 = vst.msk [vmem:[%s818 + $0x111] sm:$0xff] %vm772, %v763
        %843 = vst.msk [vmem:[%s818 + $0x121] sm:$0xff] %vm772, %v764
        %844 = vst.msk [vmem:[%s818 + $0x129] sm:$0xff] %vm772, %v765
        %845 = vst.msk [vmem:[%s818 + $0x139] sm:$0xff] %vm772, %v766
        %846 = vst.msk [vmem:[%s818 + $0x141] sm:$0xff] %vm772, %v767
        %847 = vst.msk [vmem:[%s818 + $0x151] sm:$0xff] %vm772, %v768
        %848 = vst.msk [vmem:[%s818 + $0x159] sm:$0xff] %vm772, %v769
        %849 = vst.msk [vmem:[%s818 + $0x169] sm:$0xff] %vm772, %v770
        %850 = vst.msk [vmem:[%s818 + $0x171] sm:$0xff] %vm772, %v771
        %v851 = vld [vmem:[#allocation2] sm:$0xff]
        %v852 = vld [vmem:[#allocation2 + $0x8] sm:$0xff]
        %v853 = vld [vmem:[#allocation2 + $0x18] sm:$0xff]
        %v854 = vld [vmem:[#allocation2 + $0x20] sm:$0xff]
        %v855 = vld [vmem:[#allocation2 + $0x30] sm:$0xff]
        %v856 = vld [vmem:[#allocation2 + $0x38] sm:$0xff]
        %v857 = vld [vmem:[#allocation2 + $0x48] sm:$0xff]
        %v858 = vld [vmem:[#allocation2 + $0x50] sm:$0xff]
        %v859 = vld [vmem:[#allocation2 + $0x60] sm:$0xff]
        %v860 = vld [vmem:[#allocation2 + $0x68] sm:$0xff]
        %v861 = vld [vmem:[#allocation2 + $0x78] sm:$0xff]
        %v862 = vld [vmem:[#allocation2 + $0x80] sm:$0xff]
        %v863 = vld [vmem:[#allocation2 + $0x90] sm:$0xff]
        %v864 = vld [vmem:[#allocation2 + $0x98] sm:$0xff]
        %v865 = vld [vmem:[#allocation2 + $0xa8] sm:$0xff]
        %v866 = vld [vmem:[#allocation2 + $0xb0] sm:$0xff]
        %v867 = vld [vmem:[#allocation2 + $0xc0] sm:$0xff]
        %v868 = vld [vmem:[#allocation2 + $0xc8] sm:$0xff]
        %v869 = vld [vmem:[#allocation2 + $0xd8] sm:$0xff]
        %v870 = vld [vmem:[#allocation2 + $0xe0] sm:$0xff]
        %v871 = vld [vmem:[#allocation2 + $0xf0] sm:$0xff]
        %v872 = vld [vmem:[#allocation2 + $0xf8] sm:$0xff]
        %v873 = vld [vmem:[#allocation2 + $0x108] sm:$0xff]
        %v874 = vld [vmem:[#allocation2 + $0x110] sm:$0xff]
        %v875 = vld [vmem:[#allocation2 + $0x120] sm:$0xff]
        %v876 = vld [vmem:[#allocation2 + $0x128] sm:$0xff]
        %v877 = vld [vmem:[#allocation2 + $0x138] sm:$0xff]
        %v878 = vld [vmem:[#allocation2 + $0x140] sm:$0xff]
        %v879 = vld [vmem:[#allocation2 + $0x150] sm:$0xff]
        %v880 = vld [vmem:[#allocation2 + $0x158] sm:$0xff]
        %v881 = vld [vmem:[#allocation2 + $0x168] sm:$0xff]
        %v882 = vld [vmem:[#allocation2 + $0x170] sm:$0xff]
        %v883 = vpack.c.bf16 %v852, %v851
        %v884 = vpack.c.bf16 %v854, %v853
        %v885 = vpack.c.bf16 %v856, %v855
        %v886 = vpack.c.bf16 %v858, %v857
        %v887 = vpack.c.bf16 %v860, %v859
        %v888 = vpack.c.bf16 %v862, %v861
        %v889 = vpack.c.bf16 %v864, %v863
        %v890 = vpack.c.bf16 %v866, %v865
        %v891 = vpack.c.bf16 %v868, %v867
        %v892 = vpack.c.bf16 %v870, %v869
        %v893 = vpack.c.bf16 %v872, %v871
        %v894 = vpack.c.bf16 %v874, %v873
        %v895 = vpack.c.bf16 %v876, %v875
        %v896 = vpack.c.bf16 %v878, %v877
        %v897 = vpack.c.bf16 %v880, %v879
        %v898 = vpack.c.bf16 %v882, %v881
        %v899 = vld [vmem:[%s3] sm:$0xf]
        %v900 = vld [vmem:[%s3 + $0x4] sm:$0xf]
        %v901 = vld [vmem:[%s3 + $0x8] sm:$0xf]
        %v902 = vld [vmem:[%s3 + $0xc] sm:$0xf]
        %v903 = vld [vmem:[#allocation2 + $0x1] sm:$0xff]
        %v904 = vld [vmem:[#allocation2 + $0x9] sm:$0xff]
        %v905 = vld [vmem:[#allocation2 + $0x19] sm:$0xff]
        %v906 = vld [vmem:[#allocation2 + $0x21] sm:$0xff]
        %v907 = vld [vmem:[#allocation2 + $0x31] sm:$0xff]
        %v908 = vld [vmem:[#allocation2 + $0x39] sm:$0xff]
        %v909 = vld [vmem:[#allocation2 + $0x49] sm:$0xff]
        %v910 = vld [vmem:[#allocation2 + $0x51] sm:$0xff]
        %v911 = vld [vmem:[#allocation2 + $0x61] sm:$0xff]
        %v912 = vld [vmem:[#allocation2 + $0x69] sm:$0xff]
        %v913 = vld [vmem:[#allocation2 + $0x79] sm:$0xff]
        %v914 = vld [vmem:[#allocation2 + $0x81] sm:$0xff]
        %v915 = vld [vmem:[#allocation2 + $0x91] sm:$0xff]
        %v916 = vld [vmem:[#allocation2 + $0x99] sm:$0xff]
        %v917 = vld [vmem:[#allocation2 + $0xa9] sm:$0xff]
        %v918 = vld [vmem:[#allocation2 + $0xb1] sm:$0xff]
        %v919 = vld [vmem:[#allocation2 + $0xc1] sm:$0xff]
        %v920 = vld [vmem:[#allocation2 + $0xc9] sm:$0xff]
        %v921 = vld [vmem:[#allocation2 + $0xd9] sm:$0xff]
        %v922 = vld [vmem:[#allocation2 + $0xe1] sm:$0xff]
        %v923 = vld [vmem:[#allocation2 + $0xf1] sm:$0xff]
        %v924 = vld [vmem:[#allocation2 + $0xf9] sm:$0xff]
        %v925 = vld [vmem:[#allocation2 + $0x109] sm:$0xff]
        %v926 = vld [vmem:[#allocation2 + $0x111] sm:$0xff]
        %v927 = vld [vmem:[#allocation2 + $0x121] sm:$0xff]
        %v928 = vld [vmem:[#allocation2 + $0x129] sm:$0xff]
        %v929 = vld [vmem:[#allocation2 + $0x139] sm:$0xff]
        %v930 = vld [vmem:[#allocation2 + $0x141] sm:$0xff]
        %v931 = vld [vmem:[#allocation2 + $0x151] sm:$0xff]
        %v932 = vld [vmem:[#allocation2 + $0x159] sm:$0xff]
        %v933 = vld [vmem:[#allocation2 + $0x169] sm:$0xff]
        %v934 = vld [vmem:[#allocation2 + $0x171] sm:$0xff]
        %v935 = vpack.c.bf16 %v904, %v903
        %v936 = vpack.c.bf16 %v906, %v905
        %v937 = vpack.c.bf16 %v908, %v907
        %v938 = vpack.c.bf16 %v910, %v909
        %v939 = vpack.c.bf16 %v912, %v911
        %v940 = vpack.c.bf16 %v914, %v913
        %v941 = vpack.c.bf16 %v916, %v915
        %v942 = vpack.c.bf16 %v918, %v917
        %v943 = vpack.c.bf16 %v920, %v919
        %v944 = vpack.c.bf16 %v922, %v921
        %v945 = vpack.c.bf16 %v924, %v923
        %v946 = vpack.c.bf16 %v926, %v925
        %v947 = vpack.c.bf16 %v928, %v927
        %v948 = vpack.c.bf16 %v930, %v929
        %v949 = vpack.c.bf16 %v932, %v931
        %v950 = vpack.c.bf16 %v934, %v933
        %s951 = scalar_lea.vmem %s3, 16
        %v952 = vld [vmem:[%s951] sm:$0xf]
        %v953 = vld [vmem:[%s951 + $0x4] sm:$0xf]
        %v954 = vld [vmem:[%s951 + $0x8] sm:$0xf]
        %v955 = vld [vmem:[%s951 + $0xc] sm:$0xf]
        %v960 = vunpack.c.l.b16 %v952
        %v961 = vunpack.c.l.b16 %v953
        %v962 = vunpack.c.l.b16 %v954
        %v963 = vunpack.c.l.b16 %v955
        %v964 = vpack.c.b16 %v961, %v960
        %v965 = vpack.c.b16 %v963, %v962
        %v969 = vsel %vm772, %v935, 0
        %v972 = vsel %vm772, %v936, 0
        %v975 = vsel %vm772, %v937, 0
        %v978 = vsel %vm772, %v938, 0
        %v981 = vsel %vm772, %v939, 0
        %v984 = vsel %vm772, %v940, 0
        %v987 = vsel %vm772, %v941, 0
        %v990 = vsel %vm772, %v942, 0
        %v993 = vsel %vm772, %v943, 0
        %v996 = vsel %vm772, %v944, 0
        %v999 = vsel %vm772, %v945, 0
        %v1002 = vsel %vm772, %v946, 0
        %v1005 = vsel %vm772, %v947, 0
        %v1008 = vsel %vm772, %v948, 0
        %v1011 = vsel %vm772, %v949, 0
        %v1014 = vsel %vm772, %v950, 0
        %1016 = vmatprep.subr.bf16.mxu0 0
        %1017 = vmatpush1.bf16.msra.mxu0 %v964
        %1018 = vmatprep.subr.bf16.mxu0 0
        %1019 = vmatpush1.bf16.msra.mxu0 %v965
        %1020 = vmatprep.subr.bf16.mxu0 0
        %1021 = vmatpush1.bf16.msra.mxu0 0
        %1022 = vmatprep.subr.bf16.mxu0 0
        %1023 = vmatpush1.bf16.msra.mxu0 0
        %1024 = vmatprep.subr.bf16.mxu0 0
        %1025 = vmatpush1.bf16.msra.mxu0 0
        %1026 = vmatprep.subr.bf16.mxu0 0
        %1027 = vmatpush1.bf16.msra.mxu0 0
        %1028 = vmatprep.subr.bf16.mxu0 0
        %1029 = vmatpush1.bf16.msra.mxu0 0
        %1030 = vmatprep.subr.bf16.mxu0 0
        %1031 = vmatpush1.bf16.msra.mxu0 0
        %1032 = vmatprep.subr.bf16.mxu0 0
        %1033 = vmatpush1.bf16.msra.mxu0 0
        %1034 = vmatprep.subr.bf16.mxu0 0
        %1035 = vmatpush1.bf16.msra.mxu0 0
        %1036 = vmatprep.subr.bf16.mxu0 0
        %1037 = vmatpush1.bf16.msra.mxu0 0
        %1038 = vmatprep.subr.bf16.mxu0 0
        %1039 = vmatpush1.bf16.msra.mxu0 0
        %1040 = vmatprep.subr.bf16.mxu0 0
        %1041 = vmatpush1.bf16.msra.mxu0 0
        %1042 = vmatprep.subr.bf16.mxu0 0
        %1043 = vmatpush1.bf16.msra.mxu0 0
        %1044 = vmatprep.subr.bf16.mxu0 0
        %1045 = vmatpush1.bf16.msra.mxu0 0
        %1046 = vmatprep.subr.bf16.mxu0 0
        %1047 = vmatpush1.bf16.msra.mxu0 0
        %1048 = vmatprep.mubr.bf16.mxu0 0
        %1049 = vmatmul.mubr.bf16.gmra.mrb[0].mxu0 %v969
        %v1050 = vpop.f32.mrb[0].mxu0
        %v1051 = vadd.f32 0.0, %v1050
        %v1052 = vpop.f32.mrb[0].mxu0
        %v1053 = vpop.f32.mrb[0].mxu0
        %v1054 = vadd.f32 0.0, %v1053
        %v1055 = vpop.f32.mrb[0].mxu0
        %1056 = vmatprep.mubr.bf16.mxu0 0
        %1057 = vmatmul.mubr.bf16.gmra.mrb[0].mxu0 %v972
        %v1058 = vpop.f32.mrb[0].mxu0
        %v1059 = vadd.f32 0.0, %v1058
        %v1060 = vpop.f32.mrb[0].mxu0
        %v1061 = vpop.f32.mrb[0].mxu0
        %v1062 = vadd.f32 0.0, %v1061
        %v1063 = vpop.f32.mrb[0].mxu0
        %1064 = vmatprep.mubr.bf16.mxu0 0
        %1065 = vmatmul.mubr.bf16.gmra.mrb[0].mxu0 %v975
        %v1066 = vpop.f32.mrb[0].mxu0
        %v1067 = vadd.f32 0.0, %v1066
        %v1068 = vpop.f32.mrb[0].mxu0
        %v1069 = vpop.f32.mrb[0].mxu0
        %v1070 = vadd.f32 0.0, %v1069
        %v1071 = vpop.f32.mrb[0].mxu0
        %1072 = vmatprep.mubr.bf16.mxu0 0
        %1073 = vmatmul.mubr.bf16.gmra.mrb[0].mxu0 %v978
        %v1074 = vpop.f32.mrb[0].mxu0
        %v1075 = vadd.f32 0.0, %v1074
        %v1076 = vpop.f32.mrb[0].mxu0
        %v1077 = vpop.f32.mrb[0].mxu0
        %v1078 = vadd.f32 0.0, %v1077
        %v1079 = vpop.f32.mrb[0].mxu0
        %1080 = vmatprep.mubr.bf16.mxu0 0
        %1081 = vmatmul.mubr.bf16.gmra.mrb[0].mxu0 %v981
        %v1082 = vpop.f32.mrb[0].mxu0
        %v1083 = vadd.f32 0.0, %v1082
        %v1084 = vpop.f32.mrb[0].mxu0
        %v1085 = vpop.f32.mrb[0].mxu0
        %v1086 = vadd.f32 0.0, %v1085
        %v1087 = vpop.f32.mrb[0].mxu0
        %1088 = vmatprep.mubr.bf16.mxu0 0
        %1089 = vmatmul.mubr.bf16.gmra.mrb[0].mxu0 %v984
        %v1090 = vpop.f32.mrb[0].mxu0
        %v1091 = vadd.f32 0.0, %v1090
        %v1092 = vpop.f32.mrb[0].mxu0
        %v1093 = vpop.f32.mrb[0].mxu0
        %v1094 = vadd.f32 0.0, %v1093
        %v1095 = vpop.f32.mrb[0].mxu0
        %1096 = vmatprep.mubr.bf16.mxu0 0
        %1097 = vmatmul.mubr.bf16.gmra.mrb[0].mxu0 %v987
        %v1098 = vpop.f32.mrb[0].mxu0
        %v1099 = vadd.f32 0.0, %v1098
        %v1100 = vpop.f32.mrb[0].mxu0
        %v1101 = vpop.f32.mrb[0].mxu0
        %v1102 = vadd.f32 0.0, %v1101
        %v1103 = vpop.f32.mrb[0].mxu0
        %1104 = vmatprep.mubr.bf16.mxu0 0
        %1105 = vmatmul.mubr.bf16.gmra.mrb[0].mxu0 %v990
        %v1106 = vpop.f32.mrb[0].mxu0
        %v1107 = vadd.f32 0.0, %v1106
        %v1108 = vpop.f32.mrb[0].mxu0
        %v1109 = vpop.f32.mrb[0].mxu0
        %v1110 = vadd.f32 0.0, %v1109
        %v1111 = vpop.f32.mrb[0].mxu0
        %1112 = vmatprep.mubr.bf16.mxu0 0
        %1113 = vmatmul.mubr.bf16.gmra.mrb[0].mxu0 %v993
        %v1114 = vpop.f32.mrb[0].mxu0
        %v1115 = vadd.f32 0.0, %v1114
        %v1116 = vpop.f32.mrb[0].mxu0
        %v1117 = vpop.f32.mrb[0].mxu0
        %v1118 = vadd.f32 0.0, %v1117
        %v1119 = vpop.f32.mrb[0].mxu0
        %1120 = vmatprep.mubr.bf16.mxu0 0
        %1121 = vmatmul.mubr.bf16.gmra.mrb[0].mxu0 %v996
        %v1122 = vpop.f32.mrb[0].mxu0
        %v1123 = vadd.f32 0.0, %v1122
        %v1124 = vpop.f32.mrb[0].mxu0
        %v1125 = vpop.f32.mrb[0].mxu0
        %v1126 = vadd.f32 0.0, %v1125
        %v1127 = vpop.f32.mrb[0].mxu0
        %1128 = vmatprep.mubr.bf16.mxu0 0
        %1129 = vmatmul.mubr.bf16.gmra.mrb[0].mxu0 %v999
        %v1130 = vpop.f32.mrb[0].mxu0
        %v1131 = vadd.f32 0.0, %v1130
        %v1132 = vpop.f32.mrb[0].mxu0
        %v1133 = vpop.f32.mrb[0].mxu0
        %v1134 = vadd.f32 0.0, %v1133
        %v1135 = vpop.f32.mrb[0].mxu0
        %1136 = vmatprep.mubr.bf16.mxu0 0
        %1137 = vmatmul.mubr.bf16.gmra.mrb[0].mxu0 %v1002
        %v1138 = vpop.f32.mrb[0].mxu0
        %v1139 = vadd.f32 0.0, %v1138
        %v1140 = vpop.f32.mrb[0].mxu0
        %v1141 = vpop.f32.mrb[0].mxu0
        %v1142 = vadd.f32 0.0, %v1141
        %v1143 = vpop.f32.mrb[0].mxu0
        %1144 = vmatprep.mubr.bf16.mxu0 0
        %1145 = vmatmul.mubr.bf16.gmra.mrb[0].mxu0 %v1005
        %v1146 = vpop.f32.mrb[0].mxu0
        %v1147 = vadd.f32 0.0, %v1146
        %v1148 = vpop.f32.mrb[0].mxu0
        %v1149 = vpop.f32.mrb[0].mxu0
        %v1150 = vadd.f32 0.0, %v1149
        %v1151 = vpop.f32.mrb[0].mxu0
        %1152 = vmatprep.mubr.bf16.mxu0 0
        %1153 = vmatmul.mubr.bf16.gmra.mrb[0].mxu0 %v1008
        %v1154 = vpop.f32.mrb[0].mxu0
        %v1155 = vadd.f32 0.0, %v1154
        %v1156 = vpop.f32.mrb[0].mxu0
        %v1157 = vpop.f32.mrb[0].mxu0
        %v1158 = vadd.f32 0.0, %v1157
        %v1159 = vpop.f32.mrb[0].mxu0
        %1160 = vmatprep.mubr.bf16.mxu0 0
        %1161 = vmatmul.mubr.bf16.gmra.mrb[0].mxu0 %v1011
        %v1162 = vpop.f32.mrb[0].mxu0
        %v1163 = vadd.f32 0.0, %v1162
        %v1164 = vpop.f32.mrb[0].mxu0
        %v1165 = vpop.f32.mrb[0].mxu0
        %v1166 = vadd.f32 0.0, %v1165
        %v1167 = vpop.f32.mrb[0].mxu0
        %1168 = vmatprep.mubr.bf16.mxu0 0
        %1169 = vmatmul.mubr.bf16.gmra.mrb[0].mxu0 %v1014
        %v1170 = vpop.f32.mrb[0].mxu0
        %v1171 = vadd.f32 0.0, %v1170
        %v1172 = vpop.f32.mrb[0].mxu0
        %v1173 = vpop.f32.mrb[0].mxu0
        %v1174 = vadd.f32 0.0, %v1173
        %v1175 = vpop.f32.mrb[0].mxu0
        %1176 = vdwg.mxu0
        %v1181 = vunpack.c.l.b16 %v899
        %v1182 = vunpack.c.l.b16 %v900
        %v1183 = vunpack.c.l.b16 %v901
        %v1184 = vunpack.c.l.b16 %v902
        %v1185 = vpack.c.b16 %v1182, %v1181
        %v1186 = vpack.c.b16 %v1184, %v1183
        %v1190 = vsel %vm772, %v883, 0
        %v1193 = vsel %vm772, %v884, 0
        %v1196 = vsel %vm772, %v885, 0
        %v1199 = vsel %vm772, %v886, 0
        %v1202 = vsel %vm772, %v887, 0
        %v1205 = vsel %vm772, %v888, 0
        %v1208 = vsel %vm772, %v889, 0
        %v1211 = vsel %vm772, %v890, 0
        %v1214 = vsel %vm772, %v891, 0
        %v1217 = vsel %vm772, %v892, 0
        %v1220 = vsel %vm772, %v893, 0
        %v1223 = vsel %vm772, %v894, 0
        %v1226 = vsel %vm772, %v895, 0
        %v1229 = vsel %vm772, %v896, 0
        %v1232 = vsel %vm772, %v897, 0
        %v1235 = vsel %vm772, %v898, 0
        %1237 = vmatprep.subr.bf16.mxu0 0
        %1238 = vmatpush1.bf16.msra.mxu0 %v1185
        %1239 = vmatprep.subr.bf16.mxu0 0
        %1240 = vmatpush1.bf16.msra.mxu0 %v1186
        %1241 = vmatprep.subr.bf16.mxu0 0
        %1242 = vmatpush1.bf16.msra.mxu0 0
        %1243 = vmatprep.subr.bf16.mxu0 0
        %1244 = vmatpush1.bf16.msra.mxu0 0
        %1245 = vmatprep.subr.bf16.mxu0 0
        %1246 = vmatpush1.bf16.msra.mxu0 0
        %1247 = vmatprep.subr.bf16.mxu0 0
        %1248 = vmatpush1.bf16.msra.mxu0 0
        %1249 = vmatprep.subr.bf16.mxu0 0
        %1250 = vmatpush1.bf16.msra.mxu0 0
        %1251 = vmatprep.subr.bf16.mxu0 0
        %1252 = vmatpush1.bf16.msra.mxu0 0
        %1253 = vmatprep.subr.bf16.mxu0 0
        %1254 = vmatpush1.bf16.msra.mxu0 0
        %1255 = vmatprep.subr.bf16.mxu0 0
        %1256 = vmatpush1.bf16.msra.mxu0 0
        %1257 = vmatprep.subr.bf16.mxu0 0
        %1258 = vmatpush1.bf16.msra.mxu0 0
        %1259 = vmatprep.subr.bf16.mxu0 0
        %1260 = vmatpush1.bf16.msra.mxu0 0
        %1261 = vmatprep.subr.bf16.mxu0 0
        %1262 = vmatpush1.bf16.msra.mxu0 0
        %1263 = vmatprep.subr.bf16.mxu0 0
        %1264 = vmatpush1.bf16.msra.mxu0 0
        %1265 = vmatprep.subr.bf16.mxu0 0
        %1266 = vmatpush1.bf16.msra.mxu0 0
        %1267 = vmatprep.subr.bf16.mxu0 0
        %1268 = vmatpush1.bf16.msra.mxu0 0
        %1269 = vmatprep.mubr.bf16.mxu0 0
        %1270 = vmatmul.mubr.bf16.gmra.mrb[0].mxu0 %v1190
        %v1271 = vpop.f32.mrb[0].mxu0
        %v1272 = vadd.f32 %v1051, %v1271
        %v1273 = vpop.f32.mrb[0].mxu0
        %v1274 = vpop.f32.mrb[0].mxu0
        %v1275 = vadd.f32 %v1054, %v1274
        %v1276 = vpop.f32.mrb[0].mxu0
        %1277 = vmatprep.mubr.bf16.mxu0 0
        %1278 = vmatmul.mubr.bf16.gmra.mrb[0].mxu0 %v1193
        %v1279 = vpop.f32.mrb[0].mxu0
        %v1280 = vadd.f32 %v1059, %v1279
        %v1281 = vpop.f32.mrb[0].mxu0
        %v1282 = vpop.f32.mrb[0].mxu0
        %v1283 = vadd.f32 %v1062, %v1282
        %v1284 = vpop.f32.mrb[0].mxu0
        %1285 = vmatprep.mubr.bf16.mxu0 0
        %1286 = vmatmul.mubr.bf16.gmra.mrb[0].mxu0 %v1196
        %v1287 = vpop.f32.mrb[0].mxu0
        %v1288 = vadd.f32 %v1067, %v1287
        %v1289 = vpop.f32.mrb[0].mxu0
        %v1290 = vpop.f32.mrb[0].mxu0
        %v1291 = vadd.f32 %v1070, %v1290
        %v1292 = vpop.f32.mrb[0].mxu0
        %1293 = vmatprep.mubr.bf16.mxu0 0
        %1294 = vmatmul.mubr.bf16.gmra.mrb[0].mxu0 %v1199
        %v1295 = vpop.f32.mrb[0].mxu0
        %v1296 = vadd.f32 %v1075, %v1295
        %v1297 = vpop.f32.mrb[0].mxu0
        %v1298 = vpop.f32.mrb[0].mxu0
        %v1299 = vadd.f32 %v1078, %v1298
        %v1300 = vpop.f32.mrb[0].mxu0
        %1301 = vmatprep.mubr.bf16.mxu0 0
        %1302 = vmatmul.mubr.bf16.gmra.mrb[0].mxu0 %v1202
        %v1303 = vpop.f32.mrb[0].mxu0
        %v1304 = vadd.f32 %v1083, %v1303
        %v1305 = vpop.f32.mrb[0].mxu0
        %v1306 = vpop.f32.mrb[0].mxu0
        %v1307 = vadd.f32 %v1086, %v1306
        %v1308 = vpop.f32.mrb[0].mxu0
        %1309 = vmatprep.mubr.bf16.mxu0 0
        %1310 = vmatmul.mubr.bf16.gmra.mrb[0].mxu0 %v1205
        %v1311 = vpop.f32.mrb[0].mxu0
        %v1312 = vadd.f32 %v1091, %v1311
        %v1313 = vpop.f32.mrb[0].mxu0
        %v1314 = vpop.f32.mrb[0].mxu0
        %v1315 = vadd.f32 %v1094, %v1314
        %v1316 = vpop.f32.mrb[0].mxu0
        %1317 = vmatprep.mubr.bf16.mxu0 0
        %1318 = vmatmul.mubr.bf16.gmra.mrb[0].mxu0 %v1208
        %v1319 = vpop.f32.mrb[0].mxu0
        %v1320 = vadd.f32 %v1099, %v1319
        %v1321 = vpop.f32.mrb[0].mxu0
        %v1322 = vpop.f32.mrb[0].mxu0
        %v1323 = vadd.f32 %v1102, %v1322
        %v1324 = vpop.f32.mrb[0].mxu0
        %1325 = vmatprep.mubr.bf16.mxu0 0
        %1326 = vmatmul.mubr.bf16.gmra.mrb[0].mxu0 %v1211
        %v1327 = vpop.f32.mrb[0].mxu0
        %v1328 = vadd.f32 %v1107, %v1327
        %v1329 = vpop.f32.mrb[0].mxu0
        %v1330 = vpop.f32.mrb[0].mxu0
        %v1331 = vadd.f32 %v1110, %v1330
        %v1332 = vpop.f32.mrb[0].mxu0
        %1333 = vmatprep.mubr.bf16.mxu0 0
        %1334 = vmatmul.mubr.bf16.gmra.mrb[0].mxu0 %v1214
        %v1335 = vpop.f32.mrb[0].mxu0
        %v1336 = vadd.f32 %v1115, %v1335
        %v1337 = vpop.f32.mrb[0].mxu0
        %v1338 = vpop.f32.mrb[0].mxu0
        %v1339 = vadd.f32 %v1118, %v1338
        %v1340 = vpop.f32.mrb[0].mxu0
        %1341 = vmatprep.mubr.bf16.mxu0 0
        %1342 = vmatmul.mubr.bf16.gmra.mrb[0].mxu0 %v1217
        %v1343 = vpop.f32.mrb[0].mxu0
        %v1344 = vadd.f32 %v1123, %v1343
        %v1345 = vpop.f32.mrb[0].mxu0
        %v1346 = vpop.f32.mrb[0].mxu0
        %v1347 = vadd.f32 %v1126, %v1346
        %v1348 = vpop.f32.mrb[0].mxu0
        %1349 = vmatprep.mubr.bf16.mxu0 0
        %1350 = vmatmul.mubr.bf16.gmra.mrb[0].mxu0 %v1220
        %v1351 = vpop.f32.mrb[0].mxu0
        %v1352 = vadd.f32 %v1131, %v1351
        %v1353 = vpop.f32.mrb[0].mxu0
        %v1354 = vpop.f32.mrb[0].mxu0
        %v1355 = vadd.f32 %v1134, %v1354
        %v1356 = vpop.f32.mrb[0].mxu0
        %1357 = vmatprep.mubr.bf16.mxu0 0
        %1358 = vmatmul.mubr.bf16.gmra.mrb[0].mxu0 %v1223
        %v1359 = vpop.f32.mrb[0].mxu0
        %v1360 = vadd.f32 %v1139, %v1359
        %v1361 = vpop.f32.mrb[0].mxu0
        %v1362 = vpop.f32.mrb[0].mxu0
        %v1363 = vadd.f32 %v1142, %v1362
        %v1364 = vpop.f32.mrb[0].mxu0
        %1365 = vmatprep.mubr.bf16.mxu0 0
        %1366 = vmatmul.mubr.bf16.gmra.mrb[0].mxu0 %v1226
        %v1367 = vpop.f32.mrb[0].mxu0
        %v1368 = vadd.f32 %v1147, %v1367
        %v1369 = vpop.f32.mrb[0].mxu0
        %v1370 = vpop.f32.mrb[0].mxu0
        %v1371 = vadd.f32 %v1150, %v1370
        %v1372 = vpop.f32.mrb[0].mxu0
        %1373 = vmatprep.mubr.bf16.mxu0 0
        %1374 = vmatmul.mubr.bf16.gmra.mrb[0].mxu0 %v1229
        %v1375 = vpop.f32.mrb[0].mxu0
        %v1376 = vadd.f32 %v1155, %v1375
        %v1377 = vpop.f32.mrb[0].mxu0
        %v1378 = vpop.f32.mrb[0].mxu0
        %v1379 = vadd.f32 %v1158, %v1378
        %v1380 = vpop.f32.mrb[0].mxu0
        %1381 = vmatprep.mubr.bf16.mxu0 0
        %1382 = vmatmul.mubr.bf16.gmra.mrb[0].mxu0 %v1232
        %v1383 = vpop.f32.mrb[0].mxu0
        %v1384 = vadd.f32 %v1163, %v1383
        %v1385 = vpop.f32.mrb[0].mxu0
        %v1386 = vpop.f32.mrb[0].mxu0
        %v1387 = vadd.f32 %v1166, %v1386
        %v1388 = vpop.f32.mrb[0].mxu0
        %1389 = vmatprep.mubr.bf16.mxu0 0
        %1390 = vmatmul.mubr.bf16.gmra.mrb[0].mxu0 %v1235
        %v1391 = vpop.f32.mrb[0].mxu0
        %v1392 = vadd.f32 %v1171, %v1391
        %v1393 = vpop.f32.mrb[0].mxu0
        %v1394 = vpop.f32.mrb[0].mxu0
        %v1395 = vadd.f32 %v1174, %v1394
        %v1396 = vpop.f32.mrb[0].mxu0
        %1397 = vdwg.mxu0
        %v1398 = vld [vmem:[#allocation2 + $0x2] sm:$0xff]
        %v1399 = vld [vmem:[#allocation2 + $0xa] sm:$0xff]
        %v1400 = vld [vmem:[#allocation2 + $0x1a] sm:$0xff]
        %v1401 = vld [vmem:[#allocation2 + $0x22] sm:$0xff]
        %v1402 = vld [vmem:[#allocation2 + $0x32] sm:$0xff]
        %v1403 = vld [vmem:[#allocation2 + $0x3a] sm:$0xff]
        %v1404 = vld [vmem:[#allocation2 + $0x4a] sm:$0xff]
        %v1405 = vld [vmem:[#allocation2 + $0x52] sm:$0xff]
        %v1406 = vld [vmem:[#allocation2 + $0x62] sm:$0xff]
        %v1407 = vld [vmem:[#allocation2 + $0x6a] sm:$0xff]
        %v1408 = vld [vmem:[#allocation2 + $0x7a] sm:$0xff]
        %v1409 = vld [vmem:[#allocation2 + $0x82] sm:$0xff]
        %v1410 = vld [vmem:[#allocation2 + $0x92] sm:$0xff]
        %v1411 = vld [vmem:[#allocation2 + $0x9a] sm:$0xff]
        %v1412 = vld [vmem:[#allocation2 + $0xaa] sm:$0xff]
        %v1413 = vld [vmem:[#allocation2 + $0xb2] sm:$0xff]
        %v1414 = vld [vmem:[#allocation2 + $0xc2] sm:$0xff]
        %v1415 = vld [vmem:[#allocation2 + $0xca] sm:$0xff]
        %v1416 = vld [vmem:[#allocation2 + $0xda] sm:$0xff]
        %v1417 = vld [vmem:[#allocation2 + $0xe2] sm:$0xff]
        %v1418 = vld [vmem:[#allocation2 + $0xf2] sm:$0xff]
        %v1419 = vld [vmem:[#allocation2 + $0xfa] sm:$0xff]
        %v1420 = vld [vmem:[#allocation2 + $0x10a] sm:$0xff]
        %v1421 = vld [vmem:[#allocation2 + $0x112] sm:$0xff]
        %v1422 = vld [vmem:[#allocation2 + $0x122] sm:$0xff]
        %v1423 = vld [vmem:[#allocation2 + $0x12a] sm:$0xff]
        %v1424 = vld [vmem:[#allocation2 + $0x13a] sm:$0xff]
        %v1425 = vld [vmem:[#allocation2 + $0x142] sm:$0xff]
        %v1426 = vld [vmem:[#allocation2 + $0x152] sm:$0xff]
        %v1427 = vld [vmem:[#allocation2 + $0x15a] sm:$0xff]
        %v1428 = vld [vmem:[#allocation2 + $0x16a] sm:$0xff]
        %v1429 = vld [vmem:[#allocation2 + $0x172] sm:$0xff]
        %v1430 = vpack.c.bf16 %v1399, %v1398
        %v1431 = vpack.c.bf16 %v1401, %v1400
        %v1432 = vpack.c.bf16 %v1403, %v1402
        %v1433 = vpack.c.bf16 %v1405, %v1404
        %v1434 = vpack.c.bf16 %v1407, %v1406
        %v1435 = vpack.c.bf16 %v1409, %v1408
        %v1436 = vpack.c.bf16 %v1411, %v1410
        %v1437 = vpack.c.bf16 %v1413, %v1412
        %v1438 = vpack.c.bf16 %v1415, %v1414
        %v1439 = vpack.c.bf16 %v1417, %v1416
        %v1440 = vpack.c.bf16 %v1419, %v1418
        %v1441 = vpack.c.bf16 %v1421, %v1420
        %v1442 = vpack.c.bf16 %v1423, %v1422
        %v1443 = vpack.c.bf16 %v1425, %v1424
        %v1444 = vpack.c.bf16 %v1427, %v1426
        %v1445 = vpack.c.bf16 %v1429, %v1428
        %s1446 = scalar_lea.vmem %s3, 32
        %v1447 = vld [vmem:[%s1446] sm:$0xf]
        %v1448 = vld [vmem:[%s1446 + $0x4] sm:$0xf]
        %v1449 = vld [vmem:[%s1446 + $0x8] sm:$0xf]
        %v1450 = vld [vmem:[%s1446 + $0xc] sm:$0xf]
        %v1455 = vunpack.c.l.b16 %v1447
        %v1456 = vunpack.c.l.b16 %v1448
        %v1457 = vunpack.c.l.b16 %v1449
        %v1458 = vunpack.c.l.b16 %v1450
        %v1459 = vpack.c.b16 %v1456, %v1455
        %v1460 = vpack.c.b16 %v1458, %v1457
        %v1464 = vsel %vm772, %v1430, 0
        %v1467 = vsel %vm772, %v1431, 0
        %v1470 = vsel %vm772, %v1432, 0
        %v1473 = vsel %vm772, %v1433, 0
        %v1476 = vsel %vm772, %v1434, 0
        %v1479 = vsel %vm772, %v1435, 0
        %v1482 = vsel %vm772, %v1436, 0
        %v1485 = vsel %vm772, %v1437, 0
        %v1488 = vsel %vm772, %v1438, 0
        %v1491 = vsel %vm772, %v1439, 0
        %v1494 = vsel %vm772, %v1440, 0
        %v1497 = vsel %vm772, %v1441, 0
        %v1500 = vsel %vm772, %v1442, 0
        %v1503 = vsel %vm772, %v1443, 0
        %v1506 = vsel %vm772, %v1444, 0
        %v1509 = vsel %vm772, %v1445, 0
        %1511 = vmatprep.subr.bf16.mxu0 0
        %1512 = vmatpush1.bf16.msra.mxu0 %v1459
        %1513 = vmatprep.subr.bf16.mxu0 0
        %1514 = vmatpush1.bf16.msra.mxu0 %v1460
        %1515 = vmatprep.subr.bf16.mxu0 0
        %1516 = vmatpush1.bf16.msra.mxu0 0
        %1517 = vmatprep.subr.bf16.mxu0 0
        %1518 = vmatpush1.bf16.msra.mxu0 0
        %1519 = vmatprep.subr.bf16.mxu0 0
        %1520 = vmatpush1.bf16.msra.mxu0 0
        %1521 = vmatprep.subr.bf16.mxu0 0
        %1522 = vmatpush1.bf16.msra.mxu0 0
        %1523 = vmatprep.subr.bf16.mxu0 0
        %1524 = vmatpush1.bf16.msra.mxu0 0
        %1525 = vmatprep.subr.bf16.mxu0 0
        %1526 = vmatpush1.bf16.msra.mxu0 0
        %1527 = vmatprep.subr.bf16.mxu0 0
        %1528 = vmatpush1.bf16.msra.mxu0 0
        %1529 = vmatprep.subr.bf16.mxu0 0
        %1530 = vmatpush1.bf16.msra.mxu0 0
        %1531 = vmatprep.subr.bf16.mxu0 0
        %1532 = vmatpush1.bf16.msra.mxu0 0
        %1533 = vmatprep.subr.bf16.mxu0 0
        %1534 = vmatpush1.bf16.msra.mxu0 0
        %1535 = vmatprep.subr.bf16.mxu0 0
        %1536 = vmatpush1.bf16.msra.mxu0 0
        %1537 = vmatprep.subr.bf16.mxu0 0
        %1538 = vmatpush1.bf16.msra.mxu0 0
        %1539 = vmatprep.subr.bf16.mxu0 0
        %1540 = vmatpush1.bf16.msra.mxu0 0
        %1541 = vmatprep.subr.bf16.mxu0 0
        %1542 = vmatpush1.bf16.msra.mxu0 0
        %1543 = vmatprep.mubr.bf16.mxu0 0
        %1544 = vmatmul.mubr.bf16.gmra.mrb[0].mxu0 %v1464
        %v1545 = vpop.f32.mrb[0].mxu0
        %v1546 = vadd.f32 0.0, %v1545
        %v1547 = vpop.f32.mrb[0].mxu0
        %v1548 = vpop.f32.mrb[0].mxu0
        %v1549 = vadd.f32 0.0, %v1548
        %v1550 = vpop.f32.mrb[0].mxu0
        %1551 = vmatprep.mubr.bf16.mxu0 0
        %1552 = vmatmul.mubr.bf16.gmra.mrb[0].mxu0 %v1467
        %v1553 = vpop.f32.mrb[0].mxu0
        %v1554 = vadd.f32 0.0, %v1553
        %v1555 = vpop.f32.mrb[0].mxu0
        %v1556 = vpop.f32.mrb[0].mxu0
        %v1557 = vadd.f32 0.0, %v1556
        %v1558 = vpop.f32.mrb[0].mxu0
        %1559 = vmatprep.mubr.bf16.mxu0 0
        %1560 = vmatmul.mubr.bf16.gmra.mrb[0].mxu0 %v1470
        %v1561 = vpop.f32.mrb[0].mxu0
        %v1562 = vadd.f32 0.0, %v1561
        %v1563 = vpop.f32.mrb[0].mxu0
        %v1564 = vpop.f32.mrb[0].mxu0
        %v1565 = vadd.f32 0.0, %v1564
        %v1566 = vpop.f32.mrb[0].mxu0
        %1567 = vmatprep.mubr.bf16.mxu0 0
        %1568 = vmatmul.mubr.bf16.gmra.mrb[0].mxu0 %v1473
        %v1569 = vpop.f32.mrb[0].mxu0
        %v1570 = vadd.f32 0.0, %v1569
        %v1571 = vpop.f32.mrb[0].mxu0
        %v1572 = vpop.f32.mrb[0].mxu0
        %v1573 = vadd.f32 0.0, %v1572
        %v1574 = vpop.f32.mrb[0].mxu0
        %1575 = vmatprep.mubr.bf16.mxu0 0
        %1576 = vmatmul.mubr.bf16.gmra.mrb[0].mxu0 %v1476
        %v1577 = vpop.f32.mrb[0].mxu0
        %v1578 = vadd.f32 0.0, %v1577
        %v1579 = vpop.f32.mrb[0].mxu0
        %v1580 = vpop.f32.mrb[0].mxu0
        %v1581 = vadd.f32 0.0, %v1580
        %v1582 = vpop.f32.mrb[0].mxu0
        %1583 = vmatprep.mubr.bf16.mxu0 0
        %1584 = vmatmul.mubr.bf16.gmra.mrb[0].mxu0 %v1479
        %v1585 = vpop.f32.mrb[0].mxu0
        %v1586 = vadd.f32 0.0, %v1585
        %v1587 = vpop.f32.mrb[0].mxu0
        %v1588 = vpop.f32.mrb[0].mxu0
        %v1589 = vadd.f32 0.0, %v1588
        %v1590 = vpop.f32.mrb[0].mxu0
        %1591 = vmatprep.mubr.bf16.mxu0 0
        %1592 = vmatmul.mubr.bf16.gmra.mrb[0].mxu0 %v1482
        %v1593 = vpop.f32.mrb[0].mxu0
        %v1594 = vadd.f32 0.0, %v1593
        %v1595 = vpop.f32.mrb[0].mxu0
        %v1596 = vpop.f32.mrb[0].mxu0
        %v1597 = vadd.f32 0.0, %v1596
        %v1598 = vpop.f32.mrb[0].mxu0
        %1599 = vmatprep.mubr.bf16.mxu0 0
        %1600 = vmatmul.mubr.bf16.gmra.mrb[0].mxu0 %v1485
        %v1601 = vpop.f32.mrb[0].mxu0
        %v1602 = vadd.f32 0.0, %v1601
        %v1603 = vpop.f32.mrb[0].mxu0
        %v1604 = vpop.f32.mrb[0].mxu0
        %v1605 = vadd.f32 0.0, %v1604
        %v1606 = vpop.f32.mrb[0].mxu0
        %1607 = vmatprep.mubr.bf16.mxu0 0
        %1608 = vmatmul.mubr.bf16.gmra.mrb[0].mxu0 %v1488
        %v1609 = vpop.f32.mrb[0].mxu0
        %v1610 = vadd.f32 0.0, %v1609
        %v1611 = vpop.f32.mrb[0].mxu0
        %v1612 = vpop.f32.mrb[0].mxu0
        %v1613 = vadd.f32 0.0, %v1612
        %v1614 = vpop.f32.mrb[0].mxu0
        %1615 = vmatprep.mubr.bf16.mxu0 0
        %1616 = vmatmul.mubr.bf16.gmra.mrb[0].mxu0 %v1491
        %v1617 = vpop.f32.mrb[0].mxu0
        %v1618 = vadd.f32 0.0, %v1617
        %v1619 = vpop.f32.mrb[0].mxu0
        %v1620 = vpop.f32.mrb[0].mxu0
        %v1621 = vadd.f32 0.0, %v1620
        %v1622 = vpop.f32.mrb[0].mxu0
        %1623 = vmatprep.mubr.bf16.mxu0 0
        %1624 = vmatmul.mubr.bf16.gmra.mrb[0].mxu0 %v1494
        %v1625 = vpop.f32.mrb[0].mxu0
        %v1626 = vadd.f32 0.0, %v1625
        %v1627 = vpop.f32.mrb[0].mxu0
        %v1628 = vpop.f32.mrb[0].mxu0
        %v1629 = vadd.f32 0.0, %v1628
        %v1630 = vpop.f32.mrb[0].mxu0
        %1631 = vmatprep.mubr.bf16.mxu0 0
        %1632 = vmatmul.mubr.bf16.gmra.mrb[0].mxu0 %v1497
        %v1633 = vpop.f32.mrb[0].mxu0
        %v1634 = vadd.f32 0.0, %v1633
        %v1635 = vpop.f32.mrb[0].mxu0
        %v1636 = vpop.f32.mrb[0].mxu0
        %v1637 = vadd.f32 0.0, %v1636
        %v1638 = vpop.f32.mrb[0].mxu0
        %1639 = vmatprep.mubr.bf16.mxu0 0
        %1640 = vmatmul.mubr.bf16.gmra.mrb[0].mxu0 %v1500
        %v1641 = vpop.f32.mrb[0].mxu0
        %v1642 = vadd.f32 0.0, %v1641
        %v1643 = vpop.f32.mrb[0].mxu0
        %v1644 = vpop.f32.mrb[0].mxu0
        %v1645 = vadd.f32 0.0, %v1644
        %v1646 = vpop.f32.mrb[0].mxu0
        %1647 = vmatprep.mubr.bf16.mxu0 0
        %1648 = vmatmul.mubr.bf16.gmra.mrb[0].mxu0 %v1503
        %v1649 = vpop.f32.mrb[0].mxu0
        %v1650 = vadd.f32 0.0, %v1649
        %v1651 = vpop.f32.mrb[0].mxu0
        %v1652 = vpop.f32.mrb[0].mxu0
        %v1653 = vadd.f32 0.0, %v1652
        %v1654 = vpop.f32.mrb[0].mxu0
        %1655 = vmatprep.mubr.bf16.mxu0 0
        %1656 = vmatmul.mubr.bf16.gmra.mrb[0].mxu0 %v1506
        %v1657 = vpop.f32.mrb[0].mxu0
        %v1658 = vadd.f32 0.0, %v1657
        %v1659 = vpop.f32.mrb[0].mxu0
        %v1660 = vpop.f32.mrb[0].mxu0
        %v1661 = vadd.f32 0.0, %v1660
        %v1662 = vpop.f32.mrb[0].mxu0
        %1663 = vmatprep.mubr.bf16.mxu0 0
        %1664 = vmatmul.mubr.bf16.gmra.mrb[0].mxu0 %v1509
        %v1665 = vpop.f32.mrb[0].mxu0
        %v1666 = vadd.f32 0.0, %v1665
        %v1667 = vpop.f32.mrb[0].mxu0
        %v1668 = vpop.f32.mrb[0].mxu0
        %v1669 = vadd.f32 0.0, %v1668
        %v1670 = vpop.f32.mrb[0].mxu0
        %1671 = vdwg.mxu0
        %v1672 = vadd.f32 %v1272, %v1546
        %v1673 = vadd.f32 %v1275, %v1549
        %v1674 = vadd.f32 %v1280, %v1554
        %v1675 = vadd.f32 %v1283, %v1557
        %v1676 = vadd.f32 %v1288, %v1562
        %v1677 = vadd.f32 %v1291, %v1565
        %v1678 = vadd.f32 %v1296, %v1570
        %v1679 = vadd.f32 %v1299, %v1573
        %v1680 = vadd.f32 %v1304, %v1578
        %v1681 = vadd.f32 %v1307, %v1581
        %v1682 = vadd.f32 %v1312, %v1586
        %v1683 = vadd.f32 %v1315, %v1589
        %v1684 = vadd.f32 %v1320, %v1594
        %v1685 = vadd.f32 %v1323, %v1597
        %v1686 = vadd.f32 %v1328, %v1602
        %v1687 = vadd.f32 %v1331, %v1605
        %v1688 = vadd.f32 %v1336, %v1610
        %v1689 = vadd.f32 %v1339, %v1613
        %v1690 = vadd.f32 %v1344, %v1618
        %v1691 = vadd.f32 %v1347, %v1621
        %v1692 = vadd.f32 %v1352, %v1626
        %v1693 = vadd.f32 %v1355, %v1629
        %v1694 = vadd.f32 %v1360, %v1634
        %v1695 = vadd.f32 %v1363, %v1637
        %v1696 = vadd.f32 %v1368, %v1642
        %v1697 = vadd.f32 %v1371, %v1645
        %v1698 = vadd.f32 %v1376, %v1650
        %v1699 = vadd.f32 %v1379, %v1653
        %v1700 = vadd.f32 %v1384, %v1658
        %v1701 = vadd.f32 %v1387, %v1661
        %v1702 = vadd.f32 %v1392, %v1666
        %v1703 = vadd.f32 %v1395, %v1669
        %v1704 = vld [vmem:[%s818] sm:$0xff]
        %v1705 = vld [vmem:[%s818 + $0x8] sm:$0xff]
        %v1706 = vld [vmem:[%s818 + $0x18] sm:$0xff]
        %v1707 = vld [vmem:[%s818 + $0x20] sm:$0xff]
        %v1708 = vld [vmem:[%s818 + $0x30] sm:$0xff]
        %v1709 = vld [vmem:[%s818 + $0x38] sm:$0xff]
        %v1710 = vld [vmem:[%s818 + $0x48] sm:$0xff]
        %v1711 = vld [vmem:[%s818 + $0x50] sm:$0xff]
        %v1712 = vld [vmem:[%s818 + $0x60] sm:$0xff]
        %v1713 = vld [vmem:[%s818 + $0x68] sm:$0xff]
        %v1714 = vld [vmem:[%s818 + $0x78] sm:$0xff]
        %v1715 = vld [vmem:[%s818 + $0x80] sm:$0xff]
        %v1716 = vld [vmem:[%s818 + $0x90] sm:$0xff]
        %v1717 = vld [vmem:[%s818 + $0x98] sm:$0xff]
        %v1718 = vld [vmem:[%s818 + $0xa8] sm:$0xff]
        %v1719 = vld [vmem:[%s818 + $0xb0] sm:$0xff]
        %v1720 = vld [vmem:[%s818 + $0xc0] sm:$0xff]
        %v1721 = vld [vmem:[%s818 + $0xc8] sm:$0xff]
        %v1722 = vld [vmem:[%s818 + $0xd8] sm:$0xff]
        %v1723 = vld [vmem:[%s818 + $0xe0] sm:$0xff]
        %v1724 = vld [vmem:[%s818 + $0xf0] sm:$0xff]
        %v1725 = vld [vmem:[%s818 + $0xf8] sm:$0xff]
        %v1726 = vld [vmem:[%s818 + $0x108] sm:$0xff]
        %v1727 = vld [vmem:[%s818 + $0x110] sm:$0xff]
        %v1728 = vld [vmem:[%s818 + $0x120] sm:$0xff]
        %v1729 = vld [vmem:[%s818 + $0x128] sm:$0xff]
        %v1730 = vld [vmem:[%s818 + $0x138] sm:$0xff]
        %v1731 = vld [vmem:[%s818 + $0x140] sm:$0xff]
        %v1732 = vld [vmem:[%s818 + $0x150] sm:$0xff]
        %v1733 = vld [vmem:[%s818 + $0x158] sm:$0xff]
        %v1734 = vld [vmem:[%s818 + $0x168] sm:$0xff]
        %v1735 = vld [vmem:[%s818 + $0x170] sm:$0xff]
        %v1736 = vpack.c.bf16 %v1705, %v1704
        %v1737 = vpack.c.bf16 %v1707, %v1706
        %v1738 = vpack.c.bf16 %v1709, %v1708
        %v1739 = vpack.c.bf16 %v1711, %v1710
        %v1740 = vpack.c.bf16 %v1713, %v1712
        %v1741 = vpack.c.bf16 %v1715, %v1714
        %v1742 = vpack.c.bf16 %v1717, %v1716
        %v1743 = vpack.c.bf16 %v1719, %v1718
        %v1744 = vpack.c.bf16 %v1721, %v1720
        %v1745 = vpack.c.bf16 %v1723, %v1722
        %v1746 = vpack.c.bf16 %v1725, %v1724
        %v1747 = vpack.c.bf16 %v1727, %v1726
        %v1748 = vpack.c.bf16 %v1729, %v1728
        %v1749 = vpack.c.bf16 %v1731, %v1730
        %v1750 = vpack.c.bf16 %v1733, %v1732
        %v1751 = vpack.c.bf16 %v1735, %v1734
        %s1752 = scalar_lea.vmem %s3, 48
        %v1753 = vld [vmem:[%s1752] sm:$0xf]
        %v1754 = vld [vmem:[%s1752 + $0x4] sm:$0xf]
        %v1755 = vld [vmem:[%s1752 + $0x8] sm:$0xf]
        %v1756 = vld [vmem:[%s1752 + $0xc] sm:$0xf]
        %v1761 = vunpack.c.l.b16 %v1753
        %v1762 = vunpack.c.l.b16 %v1754
        %v1763 = vunpack.c.l.b16 %v1755
        %v1764 = vunpack.c.l.b16 %v1756
        %v1765 = vpack.c.b16 %v1762, %v1761
        %v1766 = vpack.c.b16 %v1764, %v1763
        %v1770 = vsel %vm772, %v1736, 0
        %v1773 = vsel %vm772, %v1737, 0
        %v1776 = vsel %vm772, %v1738, 0
        %v1779 = vsel %vm772, %v1739, 0
        %v1782 = vsel %vm772, %v1740, 0
        %v1785 = vsel %vm772, %v1741, 0
        %v1788 = vsel %vm772, %v1742, 0
        %v1791 = vsel %vm772, %v1743, 0
        %v1794 = vsel %vm772, %v1744, 0
        %v1797 = vsel %vm772, %v1745, 0
        %v1800 = vsel %vm772, %v1746, 0
        %v1803 = vsel %vm772, %v1747, 0
        %v1806 = vsel %vm772, %v1748, 0
        %v1809 = vsel %vm772, %v1749, 0
        %v1812 = vsel %vm772, %v1750, 0
        %v1815 = vsel %vm772, %v1751, 0
        %1817 = vmatprep.subr.bf16.mxu0 0
        %1818 = vmatpush1.bf16.msra.mxu0 %v1765
        %1819 = vmatprep.subr.bf16.mxu0 0
        %1820 = vmatpush1.bf16.msra.mxu0 %v1766
        %1821 = vmatprep.subr.bf16.mxu0 0
        %1822 = vmatpush1.bf16.msra.mxu0 0
        %1823 = vmatprep.subr.bf16.mxu0 0
        %1824 = vmatpush1.bf16.msra.mxu0 0
        %1825 = vmatprep.subr.bf16.mxu0 0
        %1826 = vmatpush1.bf16.msra.mxu0 0
        %1827 = vmatprep.subr.bf16.mxu0 0
        %1828 = vmatpush1.bf16.msra.mxu0 0
        %1829 = vmatprep.subr.bf16.mxu0 0
        %1830 = vmatpush1.bf16.msra.mxu0 0
        %1831 = vmatprep.subr.bf16.mxu0 0
        %1832 = vmatpush1.bf16.msra.mxu0 0
        %1833 = vmatprep.subr.bf16.mxu0 0
        %1834 = vmatpush1.bf16.msra.mxu0 0
        %1835 = vmatprep.subr.bf16.mxu0 0
        %1836 = vmatpush1.bf16.msra.mxu0 0
        %1837 = vmatprep.subr.bf16.mxu0 0
        %1838 = vmatpush1.bf16.msra.mxu0 0
        %1839 = vmatprep.subr.bf16.mxu0 0
        %1840 = vmatpush1.bf16.msra.mxu0 0
        %1841 = vmatprep.subr.bf16.mxu0 0
        %1842 = vmatpush1.bf16.msra.mxu0 0
        %1843 = vmatprep.subr.bf16.mxu0 0
        %1844 = vmatpush1.bf16.msra.mxu0 0
        %1845 = vmatprep.subr.bf16.mxu0 0
        %1846 = vmatpush1.bf16.msra.mxu0 0
        %1847 = vmatprep.subr.bf16.mxu0 0
        %1848 = vmatpush1.bf16.msra.mxu0 0
        %1849 = vmatprep.mubr.bf16.mxu0 0
        %1850 = vmatmul.mubr.bf16.gmra.mrb[0].mxu0 %v1770
        %v1851 = vpop.f32.mrb[0].mxu0
        %v1852 = vadd.f32 0.0, %v1851
        %v1853 = vpop.f32.mrb[0].mxu0
        %v1854 = vpop.f32.mrb[0].mxu0
        %v1855 = vadd.f32 0.0, %v1854
        %v1856 = vpop.f32.mrb[0].mxu0
        %1857 = vmatprep.mubr.bf16.mxu0 0
        %1858 = vmatmul.mubr.bf16.gmra.mrb[0].mxu0 %v1773
        %v1859 = vpop.f32.mrb[0].mxu0
        %v1860 = vadd.f32 0.0, %v1859
        %v1861 = vpop.f32.mrb[0].mxu0
        %v1862 = vpop.f32.mrb[0].mxu0
        %v1863 = vadd.f32 0.0, %v1862
        %v1864 = vpop.f32.mrb[0].mxu0
        %1865 = vmatprep.mubr.bf16.mxu0 0
        %1866 = vmatmul.mubr.bf16.gmra.mrb[0].mxu0 %v1776
        %v1867 = vpop.f32.mrb[0].mxu0
        %v1868 = vadd.f32 0.0, %v1867
        %v1869 = vpop.f32.mrb[0].mxu0
        %v1870 = vpop.f32.mrb[0].mxu0
        %v1871 = vadd.f32 0.0, %v1870
        %v1872 = vpop.f32.mrb[0].mxu0
        %1873 = vmatprep.mubr.bf16.mxu0 0
        %1874 = vmatmul.mubr.bf16.gmra.mrb[0].mxu0 %v1779
        %v1875 = vpop.f32.mrb[0].mxu0
        %v1876 = vadd.f32 0.0, %v1875
        %v1877 = vpop.f32.mrb[0].mxu0
        %v1878 = vpop.f32.mrb[0].mxu0
        %v1879 = vadd.f32 0.0, %v1878
        %v1880 = vpop.f32.mrb[0].mxu0
        %1881 = vmatprep.mubr.bf16.mxu0 0
        %1882 = vmatmul.mubr.bf16.gmra.mrb[0].mxu0 %v1782
        %v1883 = vpop.f32.mrb[0].mxu0
        %v1884 = vadd.f32 0.0, %v1883
        %v1885 = vpop.f32.mrb[0].mxu0
        %v1886 = vpop.f32.mrb[0].mxu0
        %v1887 = vadd.f32 0.0, %v1886
        %v1888 = vpop.f32.mrb[0].mxu0
        %1889 = vmatprep.mubr.bf16.mxu0 0
        %1890 = vmatmul.mubr.bf16.gmra.mrb[0].mxu0 %v1785
        %v1891 = vpop.f32.mrb[0].mxu0
        %v1892 = vadd.f32 0.0, %v1891
        %v1893 = vpop.f32.mrb[0].mxu0
        %v1894 = vpop.f32.mrb[0].mxu0
        %v1895 = vadd.f32 0.0, %v1894
        %v1896 = vpop.f32.mrb[0].mxu0
        %1897 = vmatprep.mubr.bf16.mxu0 0
        %1898 = vmatmul.mubr.bf16.gmra.mrb[0].mxu0 %v1788
        %v1899 = vpop.f32.mrb[0].mxu0
        %v1900 = vadd.f32 0.0, %v1899
        %v1901 = vpop.f32.mrb[0].mxu0
        %v1902 = vpop.f32.mrb[0].mxu0
        %v1903 = vadd.f32 0.0, %v1902
        %v1904 = vpop.f32.mrb[0].mxu0
        %1905 = vmatprep.mubr.bf16.mxu0 0
        %1906 = vmatmul.mubr.bf16.gmra.mrb[0].mxu0 %v1791
        %v1907 = vpop.f32.mrb[0].mxu0
        %v1908 = vadd.f32 0.0, %v1907
        %v1909 = vpop.f32.mrb[0].mxu0
        %v1910 = vpop.f32.mrb[0].mxu0
        %v1911 = vadd.f32 0.0, %v1910
        %v1912 = vpop.f32.mrb[0].mxu0
        %1913 = vmatprep.mubr.bf16.mxu0 0
        %1914 = vmatmul.mubr.bf16.gmra.mrb[0].mxu0 %v1794
        %v1915 = vpop.f32.mrb[0].mxu0
        %v1916 = vadd.f32 0.0, %v1915
        %v1917 = vpop.f32.mrb[0].mxu0
        %v1918 = vpop.f32.mrb[0].mxu0
        %v1919 = vadd.f32 0.0, %v1918
        %v1920 = vpop.f32.mrb[0].mxu0
        %1921 = vmatprep.mubr.bf16.mxu0 0
        %1922 = vmatmul.mubr.bf16.gmra.mrb[0].mxu0 %v1797
        %v1923 = vpop.f32.mrb[0].mxu0
        %v1924 = vadd.f32 0.0, %v1923
        %v1925 = vpop.f32.mrb[0].mxu0
        %v1926 = vpop.f32.mrb[0].mxu0
        %v1927 = vadd.f32 0.0, %v1926
        %v1928 = vpop.f32.mrb[0].mxu0
        %1929 = vmatprep.mubr.bf16.mxu0 0
        %1930 = vmatmul.mubr.bf16.gmra.mrb[0].mxu0 %v1800
        %v1931 = vpop.f32.mrb[0].mxu0
        %v1932 = vadd.f32 0.0, %v1931
        %v1933 = vpop.f32.mrb[0].mxu0
        %v1934 = vpop.f32.mrb[0].mxu0
        %v1935 = vadd.f32 0.0, %v1934
        %v1936 = vpop.f32.mrb[0].mxu0
        %1937 = vmatprep.mubr.bf16.mxu0 0
        %1938 = vmatmul.mubr.bf16.gmra.mrb[0].mxu0 %v1803
        %v1939 = vpop.f32.mrb[0].mxu0
        %v1940 = vadd.f32 0.0, %v1939
        %v1941 = vpop.f32.mrb[0].mxu0
        %v1942 = vpop.f32.mrb[0].mxu0
        %v1943 = vadd.f32 0.0, %v1942
        %v1944 = vpop.f32.mrb[0].mxu0
        %1945 = vmatprep.mubr.bf16.mxu0 0
        %1946 = vmatmul.mubr.bf16.gmra.mrb[0].mxu0 %v1806
        %v1947 = vpop.f32.mrb[0].mxu0
        %v1948 = vadd.f32 0.0, %v1947
        %v1949 = vpop.f32.mrb[0].mxu0
        %v1950 = vpop.f32.mrb[0].mxu0
        %v1951 = vadd.f32 0.0, %v1950
        %v1952 = vpop.f32.mrb[0].mxu0
        %1953 = vmatprep.mubr.bf16.mxu0 0
        %1954 = vmatmul.mubr.bf16.gmra.mrb[0].mxu0 %v1809
        %v1955 = vpop.f32.mrb[0].mxu0
        %v1956 = vadd.f32 0.0, %v1955
        %v1957 = vpop.f32.mrb[0].mxu0
        %v1958 = vpop.f32.mrb[0].mxu0
        %v1959 = vadd.f32 0.0, %v1958
        %v1960 = vpop.f32.mrb[0].mxu0
        %1961 = vmatprep.mubr.bf16.mxu0 0
        %1962 = vmatmul.mubr.bf16.gmra.mrb[0].mxu0 %v1812
        %v1963 = vpop.f32.mrb[0].mxu0
        %v1964 = vadd.f32 0.0, %v1963
        %v1965 = vpop.f32.mrb[0].mxu0
        %v1966 = vpop.f32.mrb[0].mxu0
        %v1967 = vadd.f32 0.0, %v1966
        %v1968 = vpop.f32.mrb[0].mxu0
        %1969 = vmatprep.mubr.bf16.mxu0 0
        %1970 = vmatmul.mubr.bf16.gmra.mrb[0].mxu0 %v1815
        %v1971 = vpop.f32.mrb[0].mxu0
        %v1972 = vadd.f32 0.0, %v1971
        %v1973 = vpop.f32.mrb[0].mxu0
        %v1974 = vpop.f32.mrb[0].mxu0
        %v1975 = vadd.f32 0.0, %v1974
        %v1976 = vpop.f32.mrb[0].mxu0
        %1977 = vdwg.mxu0
        %v1978 = vadd.f32 %v1672, %v1852
        %v1979 = vadd.f32 %v1673, %v1855
        %v1980 = vadd.f32 %v1674, %v1860
        %v1981 = vadd.f32 %v1675, %v1863
        %v1982 = vadd.f32 %v1676, %v1868
        %v1983 = vadd.f32 %v1677, %v1871
        %v1984 = vadd.f32 %v1678, %v1876
        %v1985 = vadd.f32 %v1679, %v1879
        %v1986 = vadd.f32 %v1680, %v1884
        %v1987 = vadd.f32 %v1681, %v1887
        %v1988 = vadd.f32 %v1682, %v1892
        %v1989 = vadd.f32 %v1683, %v1895
        %v1990 = vadd.f32 %v1684, %v1900
        %v1991 = vadd.f32 %v1685, %v1903
        %v1992 = vadd.f32 %v1686, %v1908
        %v1993 = vadd.f32 %v1687, %v1911
        %v1994 = vadd.f32 %v1688, %v1916
        %v1995 = vadd.f32 %v1689, %v1919
        %v1996 = vadd.f32 %v1690, %v1924
        %v1997 = vadd.f32 %v1691, %v1927
        %v1998 = vadd.f32 %v1692, %v1932
        %v1999 = vadd.f32 %v1693, %v1935
        %v2000 = vadd.f32 %v1694, %v1940
        %v2001 = vadd.f32 %v1695, %v1943
        %v2002 = vadd.f32 %v1696, %v1948
        %v2003 = vadd.f32 %v1697, %v1951
        %v2004 = vadd.f32 %v1698, %v1956
        %v2005 = vadd.f32 %v1699, %v1959
        %v2006 = vadd.f32 %v1700, %v1964
        %v2007 = vadd.f32 %v1701, %v1967
        %v2008 = vadd.f32 %v1702, %v1972
        %v2009 = vadd.f32 %v1703, %v1975
        %v2010 = vld [vmem:[%s818 + $0x1] sm:$0xff]
        %v2011 = vld [vmem:[%s818 + $0x9] sm:$0xff]
        %v2012 = vld [vmem:[%s818 + $0x19] sm:$0xff]
        %v2013 = vld [vmem:[%s818 + $0x21] sm:$0xff]
        %v2014 = vld [vmem:[%s818 + $0x31] sm:$0xff]
        %v2015 = vld [vmem:[%s818 + $0x39] sm:$0xff]
        %v2016 = vld [vmem:[%s818 + $0x49] sm:$0xff]
        %v2017 = vld [vmem:[%s818 + $0x51] sm:$0xff]
        %v2018 = vld [vmem:[%s818 + $0x61] sm:$0xff]
        %v2019 = vld [vmem:[%s818 + $0x69] sm:$0xff]
        %v2020 = vld [vmem:[%s818 + $0x79] sm:$0xff]
        %v2021 = vld [vmem:[%s818 + $0x81] sm:$0xff]
        %v2022 = vld [vmem:[%s818 + $0x91] sm:$0xff]
        %v2023 = vld [vmem:[%s818 + $0x99] sm:$0xff]
        %v2024 = vld [vmem:[%s818 + $0xa9] sm:$0xff]
        %v2025 = vld [vmem:[%s818 + $0xb1] sm:$0xff]
        %v2026 = vld [vmem:[%s818 + $0xc1] sm:$0xff]
        %v2027 = vld [vmem:[%s818 + $0xc9] sm:$0xff]
        %v2028 = vld [vmem:[%s818 + $0xd9] sm:$0xff]
        %v2029 = vld [vmem:[%s818 + $0xe1] sm:$0xff]
        %v2030 = vld [vmem:[%s818 + $0xf1] sm:$0xff]
        %v2031 = vld [vmem:[%s818 + $0xf9] sm:$0xff]
        %v2032 = vld [vmem:[%s818 + $0x109] sm:$0xff]
        %v2033 = vld [vmem:[%s818 + $0x111] sm:$0xff]
        %v2034 = vld [vmem:[%s818 + $0x121] sm:$0xff]
        %v2035 = vld [vmem:[%s818 + $0x129] sm:$0xff]
        %v2036 = vld [vmem:[%s818 + $0x139] sm:$0xff]
        %v2037 = vld [vmem:[%s818 + $0x141] sm:$0xff]
        %v2038 = vld [vmem:[%s818 + $0x151] sm:$0xff]
        %v2039 = vld [vmem:[%s818 + $0x159] sm:$0xff]
        %v2040 = vld [vmem:[%s818 + $0x169] sm:$0xff]
        %v2041 = vld [vmem:[%s818 + $0x171] sm:$0xff]
        %v2042 = vpack.c.bf16 %v2011, %v2010
        %v2043 = vpack.c.bf16 %v2013, %v2012
        %v2044 = vpack.c.bf16 %v2015, %v2014
        %v2045 = vpack.c.bf16 %v2017, %v2016
        %v2046 = vpack.c.bf16 %v2019, %v2018
        %v2047 = vpack.c.bf16 %v2021, %v2020
        %v2048 = vpack.c.bf16 %v2023, %v2022
        %v2049 = vpack.c.bf16 %v2025, %v2024
        %v2050 = vpack.c.bf16 %v2027, %v2026
        %v2051 = vpack.c.bf16 %v2029, %v2028
        %v2052 = vpack.c.bf16 %v2031, %v2030
        %v2053 = vpack.c.bf16 %v2033, %v2032
        %v2054 = vpack.c.bf16 %v2035, %v2034
        %v2055 = vpack.c.bf16 %v2037, %v2036
        %v2056 = vpack.c.bf16 %v2039, %v2038
        %v2057 = vpack.c.bf16 %v2041, %v2040
        %s2058 = scalar_lea.vmem %s3, 64
        %v2059 = vld [vmem:[%s2058] sm:$0xf]
        %v2060 = vld [vmem:[%s2058 + $0x4] sm:$0xf]
        %v2061 = vld [vmem:[%s2058 + $0x8] sm:$0xf]
        %v2062 = vld [vmem:[%s2058 + $0xc] sm:$0xf]
        %v2067 = vunpack.c.l.b16 %v2059
        %v2068 = vunpack.c.l.b16 %v2060
        %v2069 = vunpack.c.l.b16 %v2061
        %v2070 = vunpack.c.l.b16 %v2062
        %v2071 = vpack.c.b16 %v2068, %v2067
        %v2072 = vpack.c.b16 %v2070, %v2069
        %v2076 = vsel %vm772, %v2042, 0
        %v2079 = vsel %vm772, %v2043, 0
        %v2082 = vsel %vm772, %v2044, 0
        %v2085 = vsel %vm772, %v2045, 0
        %v2088 = vsel %vm772, %v2046, 0
        %v2091 = vsel %vm772, %v2047, 0
        %v2094 = vsel %vm772, %v2048, 0
        %v2097 = vsel %vm772, %v2049, 0
        %v2100 = vsel %vm772, %v2050, 0
        %v2103 = vsel %vm772, %v2051, 0
        %v2106 = vsel %vm772, %v2052, 0
        %v2109 = vsel %vm772, %v2053, 0
        %v2112 = vsel %vm772, %v2054, 0
        %v2115 = vsel %vm772, %v2055, 0
        %v2118 = vsel %vm772, %v2056, 0
        %v2121 = vsel %vm772, %v2057, 0
        %2123 = vmatprep.subr.bf16.mxu0 0
        %2124 = vmatpush1.bf16.msra.mxu0 %v2071
        %2125 = vmatprep.subr.bf16.mxu0 0
        %2126 = vmatpush1.bf16.msra.mxu0 %v2072
        %2127 = vmatprep.subr.bf16.mxu0 0
        %2128 = vmatpush1.bf16.msra.mxu0 0
        %2129 = vmatprep.subr.bf16.mxu0 0
        %2130 = vmatpush1.bf16.msra.mxu0 0
        %2131 = vmatprep.subr.bf16.mxu0 0
        %2132 = vmatpush1.bf16.msra.mxu0 0
        %2133 = vmatprep.subr.bf16.mxu0 0
        %2134 = vmatpush1.bf16.msra.mxu0 0
        %2135 = vmatprep.subr.bf16.mxu0 0
        %2136 = vmatpush1.bf16.msra.mxu0 0
        %2137 = vmatprep.subr.bf16.mxu0 0
        %2138 = vmatpush1.bf16.msra.mxu0 0
        %2139 = vmatprep.subr.bf16.mxu0 0
        %2140 = vmatpush1.bf16.msra.mxu0 0
        %2141 = vmatprep.subr.bf16.mxu0 0
        %2142 = vmatpush1.bf16.msra.mxu0 0
        %2143 = vmatprep.subr.bf16.mxu0 0
        %2144 = vmatpush1.bf16.msra.mxu0 0
        %2145 = vmatprep.subr.bf16.mxu0 0
        %2146 = vmatpush1.bf16.msra.mxu0 0
        %2147 = vmatprep.subr.bf16.mxu0 0
        %2148 = vmatpush1.bf16.msra.mxu0 0
        %2149 = vmatprep.subr.bf16.mxu0 0
        %2150 = vmatpush1.bf16.msra.mxu0 0
        %2151 = vmatprep.subr.bf16.mxu0 0
        %2152 = vmatpush1.bf16.msra.mxu0 0
        %2153 = vmatprep.subr.bf16.mxu0 0
        %2154 = vmatpush1.bf16.msra.mxu0 0
        %2155 = vmatprep.mubr.bf16.mxu0 0
        %2156 = vmatmul.mubr.bf16.gmra.mrb[0].mxu0 %v2076
        %v2157 = vpop.f32.mrb[0].mxu0
        %v2158 = vadd.f32 0.0, %v2157
        %v2159 = vpop.f32.mrb[0].mxu0
        %v2160 = vpop.f32.mrb[0].mxu0
        %v2161 = vadd.f32 0.0, %v2160
        %v2162 = vpop.f32.mrb[0].mxu0
        %2163 = vmatprep.mubr.bf16.mxu0 0
        %2164 = vmatmul.mubr.bf16.gmra.mrb[0].mxu0 %v2079
        %v2165 = vpop.f32.mrb[0].mxu0
        %v2166 = vadd.f32 0.0, %v2165
        %v2167 = vpop.f32.mrb[0].mxu0
        %v2168 = vpop.f32.mrb[0].mxu0
        %v2169 = vadd.f32 0.0, %v2168
        %v2170 = vpop.f32.mrb[0].mxu0
        %2171 = vmatprep.mubr.bf16.mxu0 0
        %2172 = vmatmul.mubr.bf16.gmra.mrb[0].mxu0 %v2082
        %v2173 = vpop.f32.mrb[0].mxu0
        %v2174 = vadd.f32 0.0, %v2173
        %v2175 = vpop.f32.mrb[0].mxu0
        %v2176 = vpop.f32.mrb[0].mxu0
        %v2177 = vadd.f32 0.0, %v2176
        %v2178 = vpop.f32.mrb[0].mxu0
        %2179 = vmatprep.mubr.bf16.mxu0 0
        %2180 = vmatmul.mubr.bf16.gmra.mrb[0].mxu0 %v2085
        %v2181 = vpop.f32.mrb[0].mxu0
        %v2182 = vadd.f32 0.0, %v2181
        %v2183 = vpop.f32.mrb[0].mxu0
        %v2184 = vpop.f32.mrb[0].mxu0
        %v2185 = vadd.f32 0.0, %v2184
        %v2186 = vpop.f32.mrb[0].mxu0
        %2187 = vmatprep.mubr.bf16.mxu0 0
        %2188 = vmatmul.mubr.bf16.gmra.mrb[0].mxu0 %v2088
        %v2189 = vpop.f32.mrb[0].mxu0
        %v2190 = vadd.f32 0.0, %v2189
        %v2191 = vpop.f32.mrb[0].mxu0
        %v2192 = vpop.f32.mrb[0].mxu0
        %v2193 = vadd.f32 0.0, %v2192
        %v2194 = vpop.f32.mrb[0].mxu0
        %2195 = vmatprep.mubr.bf16.mxu0 0
        %2196 = vmatmul.mubr.bf16.gmra.mrb[0].mxu0 %v2091
        %v2197 = vpop.f32.mrb[0].mxu0
        %v2198 = vadd.f32 0.0, %v2197
        %v2199 = vpop.f32.mrb[0].mxu0
        %v2200 = vpop.f32.mrb[0].mxu0
        %v2201 = vadd.f32 0.0, %v2200
        %v2202 = vpop.f32.mrb[0].mxu0
        %2203 = vmatprep.mubr.bf16.mxu0 0
        %2204 = vmatmul.mubr.bf16.gmra.mrb[0].mxu0 %v2094
        %v2205 = vpop.f32.mrb[0].mxu0
        %v2206 = vadd.f32 0.0, %v2205
        %v2207 = vpop.f32.mrb[0].mxu0
        %v2208 = vpop.f32.mrb[0].mxu0
        %v2209 = vadd.f32 0.0, %v2208
        %v2210 = vpop.f32.mrb[0].mxu0
        %2211 = vmatprep.mubr.bf16.mxu0 0
        %2212 = vmatmul.mubr.bf16.gmra.mrb[0].mxu0 %v2097
        %v2213 = vpop.f32.mrb[0].mxu0
        %v2214 = vadd.f32 0.0, %v2213
        %v2215 = vpop.f32.mrb[0].mxu0
        %v2216 = vpop.f32.mrb[0].mxu0
        %v2217 = vadd.f32 0.0, %v2216
        %v2218 = vpop.f32.mrb[0].mxu0
        %2219 = vmatprep.mubr.bf16.mxu0 0
        %2220 = vmatmul.mubr.bf16.gmra.mrb[0].mxu0 %v2100
        %v2221 = vpop.f32.mrb[0].mxu0
        %v2222 = vadd.f32 0.0, %v2221
        %v2223 = vpop.f32.mrb[0].mxu0
        %v2224 = vpop.f32.mrb[0].mxu0
        %v2225 = vadd.f32 0.0, %v2224
        %v2226 = vpop.f32.mrb[0].mxu0
        %2227 = vmatprep.mubr.bf16.mxu0 0
        %2228 = vmatmul.mubr.bf16.gmra.mrb[0].mxu0 %v2103
        %v2229 = vpop.f32.mrb[0].mxu0
        %v2230 = vadd.f32 0.0, %v2229
        %v2231 = vpop.f32.mrb[0].mxu0
        %v2232 = vpop.f32.mrb[0].mxu0
        %v2233 = vadd.f32 0.0, %v2232
        %v2234 = vpop.f32.mrb[0].mxu0
        %2235 = vmatprep.mubr.bf16.mxu0 0
        %2236 = vmatmul.mubr.bf16.gmra.mrb[0].mxu0 %v2106
        %v2237 = vpop.f32.mrb[0].mxu0
        %v2238 = vadd.f32 0.0, %v2237
        %v2239 = vpop.f32.mrb[0].mxu0
        %v2240 = vpop.f32.mrb[0].mxu0
        %v2241 = vadd.f32 0.0, %v2240
        %v2242 = vpop.f32.mrb[0].mxu0
        %2243 = vmatprep.mubr.bf16.mxu0 0
        %2244 = vmatmul.mubr.bf16.gmra.mrb[0].mxu0 %v2109
        %v2245 = vpop.f32.mrb[0].mxu0
        %v2246 = vadd.f32 0.0, %v2245
        %v2247 = vpop.f32.mrb[0].mxu0
        %v2248 = vpop.f32.mrb[0].mxu0
        %v2249 = vadd.f32 0.0, %v2248
        %v2250 = vpop.f32.mrb[0].mxu0
        %2251 = vmatprep.mubr.bf16.mxu0 0
        %2252 = vmatmul.mubr.bf16.gmra.mrb[0].mxu0 %v2112
        %v2253 = vpop.f32.mrb[0].mxu0
        %v2254 = vadd.f32 0.0, %v2253
        %v2255 = vpop.f32.mrb[0].mxu0
        %v2256 = vpop.f32.mrb[0].mxu0
        %v2257 = vadd.f32 0.0, %v2256
        %v2258 = vpop.f32.mrb[0].mxu0
        %2259 = vmatprep.mubr.bf16.mxu0 0
        %2260 = vmatmul.mubr.bf16.gmra.mrb[0].mxu0 %v2115
        %v2261 = vpop.f32.mrb[0].mxu0
        %v2262 = vadd.f32 0.0, %v2261
        %v2263 = vpop.f32.mrb[0].mxu0
        %v2264 = vpop.f32.mrb[0].mxu0
        %v2265 = vadd.f32 0.0, %v2264
        %v2266 = vpop.f32.mrb[0].mxu0
        %2267 = vmatprep.mubr.bf16.mxu0 0
        %2268 = vmatmul.mubr.bf16.gmra.mrb[0].mxu0 %v2118
        %v2269 = vpop.f32.mrb[0].mxu0
        %v2270 = vadd.f32 0.0, %v2269
        %v2271 = vpop.f32.mrb[0].mxu0
        %v2272 = vpop.f32.mrb[0].mxu0
        %v2273 = vadd.f32 0.0, %v2272
        %v2274 = vpop.f32.mrb[0].mxu0
        %2275 = vmatprep.mubr.bf16.mxu0 0
        %2276 = vmatmul.mubr.bf16.gmra.mrb[0].mxu0 %v2121
        %v2277 = vpop.f32.mrb[0].mxu0
        %v2278 = vadd.f32 0.0, %v2277
        %v2279 = vpop.f32.mrb[0].mxu0
        %v2280 = vpop.f32.mrb[0].mxu0
        %v2281 = vadd.f32 0.0, %v2280
        %v2282 = vpop.f32.mrb[0].mxu0
        %2283 = vdwg.mxu0
        %v2284 = vadd.f32 %v1978, %v2158
        %v2285 = vadd.f32 %v1979, %v2161
        %v2286 = vadd.f32 %v1980, %v2166
        %v2287 = vadd.f32 %v1981, %v2169
        %v2288 = vadd.f32 %v1982, %v2174
        %v2289 = vadd.f32 %v1983, %v2177
        %v2290 = vadd.f32 %v1984, %v2182
        %v2291 = vadd.f32 %v1985, %v2185
        %v2292 = vadd.f32 %v1986, %v2190
        %v2293 = vadd.f32 %v1987, %v2193
        %v2294 = vadd.f32 %v1988, %v2198
        %v2295 = vadd.f32 %v1989, %v2201
        %v2296 = vadd.f32 %v1990, %v2206
        %v2297 = vadd.f32 %v1991, %v2209
        %v2298 = vadd.f32 %v1992, %v2214
        %v2299 = vadd.f32 %v1993, %v2217
        %v2300 = vadd.f32 %v1994, %v2222
        %v2301 = vadd.f32 %v1995, %v2225
        %v2302 = vadd.f32 %v1996, %v2230
        %v2303 = vadd.f32 %v1997, %v2233
        %v2304 = vadd.f32 %v1998, %v2238
        %v2305 = vadd.f32 %v1999, %v2241
        %v2306 = vadd.f32 %v2000, %v2246
        %v2307 = vadd.f32 %v2001, %v2249
        %v2308 = vadd.f32 %v2002, %v2254
        %v2309 = vadd.f32 %v2003, %v2257
        %v2310 = vadd.f32 %v2004, %v2262
        %v2311 = vadd.f32 %v2005, %v2265
        %v2312 = vadd.f32 %v2006, %v2270
        %v2313 = vadd.f32 %v2007, %v2273
        %v2314 = vadd.f32 %v2008, %v2278
        %v2315 = vadd.f32 %v2009, %v2281
        %v2316 = vld [vmem:[%s818 + $0x2] sm:$0xff]
        %v2317 = vld [vmem:[%s818 + $0xa] sm:$0xff]
        %v2318 = vld [vmem:[%s818 + $0x1a] sm:$0xff]
        %v2319 = vld [vmem:[%s818 + $0x22] sm:$0xff]
        %v2320 = vld [vmem:[%s818 + $0x32] sm:$0xff]
        %v2321 = vld [vmem:[%s818 + $0x3a] sm:$0xff]
        %v2322 = vld [vmem:[%s818 + $0x4a] sm:$0xff]
        %v2323 = vld [vmem:[%s818 + $0x52] sm:$0xff]
        %v2324 = vld [vmem:[%s818 + $0x62] sm:$0xff]
        %v2325 = vld [vmem:[%s818 + $0x6a] sm:$0xff]
        %v2326 = vld [vmem:[%s818 + $0x7a] sm:$0xff]
        %v2327 = vld [vmem:[%s818 + $0x82] sm:$0xff]
        %v2328 = vld [vmem:[%s818 + $0x92] sm:$0xff]
        %v2329 = vld [vmem:[%s818 + $0x9a] sm:$0xff]
        %v2330 = vld [vmem:[%s818 + $0xaa] sm:$0xff]
        %v2331 = vld [vmem:[%s818 + $0xb2] sm:$0xff]
        %v2332 = vld [vmem:[%s818 + $0xc2] sm:$0xff]
        %v2333 = vld [vmem:[%s818 + $0xca] sm:$0xff]
        %v2334 = vld [vmem:[%s818 + $0xda] sm:$0xff]
        %v2335 = vld [vmem:[%s818 + $0xe2] sm:$0xff]
        %v2336 = vld [vmem:[%s818 + $0xf2] sm:$0xff]
        %v2337 = vld [vmem:[%s818 + $0xfa] sm:$0xff]
        %v2338 = vld [vmem:[%s818 + $0x10a] sm:$0xff]
        %v2339 = vld [vmem:[%s818 + $0x112] sm:$0xff]
        %v2340 = vld [vmem:[%s818 + $0x122] sm:$0xff]
        %v2341 = vld [vmem:[%s818 + $0x12a] sm:$0xff]
        %v2342 = vld [vmem:[%s818 + $0x13a] sm:$0xff]
        %v2343 = vld [vmem:[%s818 + $0x142] sm:$0xff]
        %v2344 = vld [vmem:[%s818 + $0x152] sm:$0xff]
        %v2345 = vld [vmem:[%s818 + $0x15a] sm:$0xff]
        %v2346 = vld [vmem:[%s818 + $0x16a] sm:$0xff]
        %v2347 = vld [vmem:[%s818 + $0x172] sm:$0xff]
        %v2348 = vpack.c.bf16 %v2317, %v2316
        %v2349 = vpack.c.bf16 %v2319, %v2318
        %v2350 = vpack.c.bf16 %v2321, %v2320
        %v2351 = vpack.c.bf16 %v2323, %v2322
        %v2352 = vpack.c.bf16 %v2325, %v2324
        %v2353 = vpack.c.bf16 %v2327, %v2326
        %v2354 = vpack.c.bf16 %v2329, %v2328
        %v2355 = vpack.c.bf16 %v2331, %v2330
        %v2356 = vpack.c.bf16 %v2333, %v2332
        %v2357 = vpack.c.bf16 %v2335, %v2334
        %v2358 = vpack.c.bf16 %v2337, %v2336
        %v2359 = vpack.c.bf16 %v2339, %v2338
        %v2360 = vpack.c.bf16 %v2341, %v2340
        %v2361 = vpack.c.bf16 %v2343, %v2342
        %v2362 = vpack.c.bf16 %v2345, %v2344
        %v2363 = vpack.c.bf16 %v2347, %v2346
        %s2364 = scalar_lea.vmem %s3, 80
        %v2365 = vld [vmem:[%s2364] sm:$0xf]
        %v2366 = vld [vmem:[%s2364 + $0x4] sm:$0xf]
        %v2367 = vld [vmem:[%s2364 + $0x8] sm:$0xf]
        %v2368 = vld [vmem:[%s2364 + $0xc] sm:$0xf]
        %v2373 = vunpack.c.l.b16 %v2365
        %v2374 = vunpack.c.l.b16 %v2366
        %v2375 = vunpack.c.l.b16 %v2367
        %v2376 = vunpack.c.l.b16 %v2368
        %v2377 = vpack.c.b16 %v2374, %v2373
        %v2378 = vpack.c.b16 %v2376, %v2375
        %v2382 = vsel %vm772, %v2348, 0
        %v2385 = vsel %vm772, %v2349, 0
        %v2388 = vsel %vm772, %v2350, 0
        %v2391 = vsel %vm772, %v2351, 0
        %v2394 = vsel %vm772, %v2352, 0
        %v2397 = vsel %vm772, %v2353, 0
        %v2400 = vsel %vm772, %v2354, 0
        %v2403 = vsel %vm772, %v2355, 0
        %v2406 = vsel %vm772, %v2356, 0
        %v2409 = vsel %vm772, %v2357, 0
        %v2412 = vsel %vm772, %v2358, 0
        %v2415 = vsel %vm772, %v2359, 0
        %v2418 = vsel %vm772, %v2360, 0
        %v2421 = vsel %vm772, %v2361, 0
        %v2424 = vsel %vm772, %v2362, 0
        %v2427 = vsel %vm772, %v2363, 0
        %2429 = vmatprep.subr.bf16.mxu0 0
        %2430 = vmatpush1.bf16.msra.mxu0 %v2377
        %2431 = vmatprep.subr.bf16.mxu0 0
        %2432 = vmatpush1.bf16.msra.mxu0 %v2378
        %2433 = vmatprep.subr.bf16.mxu0 0
        %2434 = vmatpush1.bf16.msra.mxu0 0
        %2435 = vmatprep.subr.bf16.mxu0 0
        %2436 = vmatpush1.bf16.msra.mxu0 0
        %2437 = vmatprep.subr.bf16.mxu0 0
        %2438 = vmatpush1.bf16.msra.mxu0 0
        %2439 = vmatprep.subr.bf16.mxu0 0
        %2440 = vmatpush1.bf16.msra.mxu0 0
        %2441 = vmatprep.subr.bf16.mxu0 0
        %2442 = vmatpush1.bf16.msra.mxu0 0
        %2443 = vmatprep.subr.bf16.mxu0 0
        %2444 = vmatpush1.bf16.msra.mxu0 0
        %2445 = vmatprep.subr.bf16.mxu0 0
        %2446 = vmatpush1.bf16.msra.mxu0 0
        %2447 = vmatprep.subr.bf16.mxu0 0
        %2448 = vmatpush1.bf16.msra.mxu0 0
        %2449 = vmatprep.subr.bf16.mxu0 0
        %2450 = vmatpush1.bf16.msra.mxu0 0
        %2451 = vmatprep.subr.bf16.mxu0 0
        %2452 = vmatpush1.bf16.msra.mxu0 0
        %2453 = vmatprep.subr.bf16.mxu0 0
        %2454 = vmatpush1.bf16.msra.mxu0 0
        %2455 = vmatprep.subr.bf16.mxu0 0
        %2456 = vmatpush1.bf16.msra.mxu0 0
        %2457 = vmatprep.subr.bf16.mxu0 0
        %2458 = vmatpush1.bf16.msra.mxu0 0
        %2459 = vmatprep.subr.bf16.mxu0 0
        %2460 = vmatpush1.bf16.msra.mxu0 0
        %2461 = vmatprep.mubr.bf16.mxu0 0
        %2462 = vmatmul.mubr.bf16.gmra.mrb[0].mxu0 %v2382
        %v2463 = vpop.f32.mrb[0].mxu0
        %v2464 = vadd.f32 0.0, %v2463
        %v2465 = vpop.f32.mrb[0].mxu0
        %v2466 = vpop.f32.mrb[0].mxu0
        %v2467 = vadd.f32 0.0, %v2466
        %v2468 = vpop.f32.mrb[0].mxu0
        %2469 = vmatprep.mubr.bf16.mxu0 0
        %2470 = vmatmul.mubr.bf16.gmra.mrb[0].mxu0 %v2385
        %v2471 = vpop.f32.mrb[0].mxu0
        %v2472 = vadd.f32 0.0, %v2471
        %v2473 = vpop.f32.mrb[0].mxu0
        %v2474 = vpop.f32.mrb[0].mxu0
        %v2475 = vadd.f32 0.0, %v2474
        %v2476 = vpop.f32.mrb[0].mxu0
        %2477 = vmatprep.mubr.bf16.mxu0 0
        %2478 = vmatmul.mubr.bf16.gmra.mrb[0].mxu0 %v2388
        %v2479 = vpop.f32.mrb[0].mxu0
        %v2480 = vadd.f32 0.0, %v2479
        %v2481 = vpop.f32.mrb[0].mxu0
        %v2482 = vpop.f32.mrb[0].mxu0
        %v2483 = vadd.f32 0.0, %v2482
        %v2484 = vpop.f32.mrb[0].mxu0
        %2485 = vmatprep.mubr.bf16.mxu0 0
        %2486 = vmatmul.mubr.bf16.gmra.mrb[0].mxu0 %v2391
        %v2487 = vpop.f32.mrb[0].mxu0
        %v2488 = vadd.f32 0.0, %v2487
        %v2489 = vpop.f32.mrb[0].mxu0
        %v2490 = vpop.f32.mrb[0].mxu0
        %v2491 = vadd.f32 0.0, %v2490
        %v2492 = vpop.f32.mrb[0].mxu0
        %2493 = vmatprep.mubr.bf16.mxu0 0
        %2494 = vmatmul.mubr.bf16.gmra.mrb[0].mxu0 %v2394
        %v2495 = vpop.f32.mrb[0].mxu0
        %v2496 = vadd.f32 0.0, %v2495
        %v2497 = vpop.f32.mrb[0].mxu0
        %v2498 = vpop.f32.mrb[0].mxu0
        %v2499 = vadd.f32 0.0, %v2498
        %v2500 = vpop.f32.mrb[0].mxu0
        %2501 = vmatprep.mubr.bf16.mxu0 0
        %2502 = vmatmul.mubr.bf16.gmra.mrb[0].mxu0 %v2397
        %v2503 = vpop.f32.mrb[0].mxu0
        %v2504 = vadd.f32 0.0, %v2503
        %v2505 = vpop.f32.mrb[0].mxu0
        %v2506 = vpop.f32.mrb[0].mxu0
        %v2507 = vadd.f32 0.0, %v2506
        %v2508 = vpop.f32.mrb[0].mxu0
        %2509 = vmatprep.mubr.bf16.mxu0 0
        %2510 = vmatmul.mubr.bf16.gmra.mrb[0].mxu0 %v2400
        %v2511 = vpop.f32.mrb[0].mxu0
        %v2512 = vadd.f32 0.0, %v2511
        %v2513 = vpop.f32.mrb[0].mxu0
        %v2514 = vpop.f32.mrb[0].mxu0
        %v2515 = vadd.f32 0.0, %v2514
        %v2516 = vpop.f32.mrb[0].mxu0
        %2517 = vmatprep.mubr.bf16.mxu0 0
        %2518 = vmatmul.mubr.bf16.gmra.mrb[0].mxu0 %v2403
        %v2519 = vpop.f32.mrb[0].mxu0
        %v2520 = vadd.f32 0.0, %v2519
        %v2521 = vpop.f32.mrb[0].mxu0
        %v2522 = vpop.f32.mrb[0].mxu0
        %v2523 = vadd.f32 0.0, %v2522
        %v2524 = vpop.f32.mrb[0].mxu0
        %2525 = vmatprep.mubr.bf16.mxu0 0
        %2526 = vmatmul.mubr.bf16.gmra.mrb[0].mxu0 %v2406
        %v2527 = vpop.f32.mrb[0].mxu0
        %v2528 = vadd.f32 0.0, %v2527
        %v2529 = vpop.f32.mrb[0].mxu0
        %v2530 = vpop.f32.mrb[0].mxu0
        %v2531 = vadd.f32 0.0, %v2530
        %v2532 = vpop.f32.mrb[0].mxu0
        %2533 = vmatprep.mubr.bf16.mxu0 0
        %2534 = vmatmul.mubr.bf16.gmra.mrb[0].mxu0 %v2409
        %v2535 = vpop.f32.mrb[0].mxu0
        %v2536 = vadd.f32 0.0, %v2535
        %v2537 = vpop.f32.mrb[0].mxu0
        %v2538 = vpop.f32.mrb[0].mxu0
        %v2539 = vadd.f32 0.0, %v2538
        %v2540 = vpop.f32.mrb[0].mxu0
        %2541 = vmatprep.mubr.bf16.mxu0 0
        %2542 = vmatmul.mubr.bf16.gmra.mrb[0].mxu0 %v2412
        %v2543 = vpop.f32.mrb[0].mxu0
        %v2544 = vadd.f32 0.0, %v2543
        %v2545 = vpop.f32.mrb[0].mxu0
        %v2546 = vpop.f32.mrb[0].mxu0
        %v2547 = vadd.f32 0.0, %v2546
        %v2548 = vpop.f32.mrb[0].mxu0
        %2549 = vmatprep.mubr.bf16.mxu0 0
        %2550 = vmatmul.mubr.bf16.gmra.mrb[0].mxu0 %v2415
        %v2551 = vpop.f32.mrb[0].mxu0
        %v2552 = vadd.f32 0.0, %v2551
        %v2553 = vpop.f32.mrb[0].mxu0
        %v2554 = vpop.f32.mrb[0].mxu0
        %v2555 = vadd.f32 0.0, %v2554
        %v2556 = vpop.f32.mrb[0].mxu0
        %2557 = vmatprep.mubr.bf16.mxu0 0
        %2558 = vmatmul.mubr.bf16.gmra.mrb[0].mxu0 %v2418
        %v2559 = vpop.f32.mrb[0].mxu0
        %v2560 = vadd.f32 0.0, %v2559
        %v2561 = vpop.f32.mrb[0].mxu0
        %v2562 = vpop.f32.mrb[0].mxu0
        %v2563 = vadd.f32 0.0, %v2562
        %v2564 = vpop.f32.mrb[0].mxu0
        %2565 = vmatprep.mubr.bf16.mxu0 0
        %2566 = vmatmul.mubr.bf16.gmra.mrb[0].mxu0 %v2421
        %v2567 = vpop.f32.mrb[0].mxu0
        %v2568 = vadd.f32 0.0, %v2567
        %v2569 = vpop.f32.mrb[0].mxu0
        %v2570 = vpop.f32.mrb[0].mxu0
        %v2571 = vadd.f32 0.0, %v2570
        %v2572 = vpop.f32.mrb[0].mxu0
        %2573 = vmatprep.mubr.bf16.mxu0 0
        %2574 = vmatmul.mubr.bf16.gmra.mrb[0].mxu0 %v2424
        %v2575 = vpop.f32.mrb[0].mxu0
        %v2576 = vadd.f32 0.0, %v2575
        %v2577 = vpop.f32.mrb[0].mxu0
        %v2578 = vpop.f32.mrb[0].mxu0
        %v2579 = vadd.f32 0.0, %v2578
        %v2580 = vpop.f32.mrb[0].mxu0
        %2581 = vmatprep.mubr.bf16.mxu0 0
        %2582 = vmatmul.mubr.bf16.gmra.mrb[0].mxu0 %v2427
        %v2583 = vpop.f32.mrb[0].mxu0
        %v2584 = vadd.f32 0.0, %v2583
        %v2585 = vpop.f32.mrb[0].mxu0
        %v2586 = vpop.f32.mrb[0].mxu0
        %v2587 = vadd.f32 0.0, %v2586
        %v2588 = vpop.f32.mrb[0].mxu0
        %2589 = vdwg.mxu0
        %v2590 = vadd.f32 %v2284, %v2464
        %v2591 = vadd.f32 %v2285, %v2467
        %v2592 = vadd.f32 %v2286, %v2472
        %v2593 = vadd.f32 %v2287, %v2475
        %v2594 = vadd.f32 %v2288, %v2480
        %v2595 = vadd.f32 %v2289, %v2483
        %v2596 = vadd.f32 %v2290, %v2488
        %v2597 = vadd.f32 %v2291, %v2491
        %v2598 = vadd.f32 %v2292, %v2496
        %v2599 = vadd.f32 %v2293, %v2499
        %v2600 = vadd.f32 %v2294, %v2504
        %v2601 = vadd.f32 %v2295, %v2507
        %v2602 = vadd.f32 %v2296, %v2512
        %v2603 = vadd.f32 %v2297, %v2515
        %v2604 = vadd.f32 %v2298, %v2520
        %v2605 = vadd.f32 %v2299, %v2523
        %v2606 = vadd.f32 %v2300, %v2528
        %v2607 = vadd.f32 %v2301, %v2531
        %v2608 = vadd.f32 %v2302, %v2536
        %v2609 = vadd.f32 %v2303, %v2539
        %v2610 = vadd.f32 %v2304, %v2544
        %v2611 = vadd.f32 %v2305, %v2547
        %v2612 = vadd.f32 %v2306, %v2552
        %v2613 = vadd.f32 %v2307, %v2555
        %v2614 = vadd.f32 %v2308, %v2560
        %v2615 = vadd.f32 %v2309, %v2563
        %v2616 = vadd.f32 %v2310, %v2568
        %v2617 = vadd.f32 %v2311, %v2571
        %v2618 = vadd.f32 %v2312, %v2576
        %v2619 = vadd.f32 %v2313, %v2579
        %v2620 = vadd.f32 %v2314, %v2584
        %v2621 = vadd.f32 %v2315, %v2587
        %s2622 = scalar_lea.vmem [#allocation2], 48
        %v2623 = vld [vmem:[%s2622] sm:$0xff]
        %v2624 = vld [vmem:[%s2622 + $0x8] sm:$0xff]
        %v2625 = vld [vmem:[%s2622 + $0x18] sm:$0xff]
        %v2626 = vld [vmem:[%s2622 + $0x20] sm:$0xff]
        %v2627 = vld [vmem:[%s2622 + $0x30] sm:$0xff]
        %v2628 = vld [vmem:[%s2622 + $0x38] sm:$0xff]
        %v2629 = vld [vmem:[%s2622 + $0x48] sm:$0xff]
        %v2630 = vld [vmem:[%s2622 + $0x50] sm:$0xff]
        %v2631 = vld [vmem:[%s2622 + $0x60] sm:$0xff]
        %v2632 = vld [vmem:[%s2622 + $0x68] sm:$0xff]
        %v2633 = vld [vmem:[%s2622 + $0x78] sm:$0xff]
        %v2634 = vld [vmem:[%s2622 + $0x80] sm:$0xff]
        %v2635 = vld [vmem:[%s2622 + $0x90] sm:$0xff]
        %v2636 = vld [vmem:[%s2622 + $0x98] sm:$0xff]
        %v2637 = vld [vmem:[%s2622 + $0xa8] sm:$0xff]
        %v2638 = vld [vmem:[%s2622 + $0xb0] sm:$0xff]
        %v2639 = vld [vmem:[%s2622 + $0xc0] sm:$0xff]
        %v2640 = vld [vmem:[%s2622 + $0xc8] sm:$0xff]
        %v2641 = vld [vmem:[%s2622 + $0xd8] sm:$0xff]
        %v2642 = vld [vmem:[%s2622 + $0xe0] sm:$0xff]
        %v2643 = vld [vmem:[%s2622 + $0xf0] sm:$0xff]
        %v2644 = vld [vmem:[%s2622 + $0xf8] sm:$0xff]
        %v2645 = vld [vmem:[%s2622 + $0x108] sm:$0xff]
        %v2646 = vld [vmem:[%s2622 + $0x110] sm:$0xff]
        %v2647 = vld [vmem:[%s2622 + $0x120] sm:$0xff]
        %v2648 = vld [vmem:[%s2622 + $0x128] sm:$0xff]
        %v2649 = vld [vmem:[%s2622 + $0x138] sm:$0xff]
        %v2650 = vld [vmem:[%s2622 + $0x140] sm:$0xff]
        %v2651 = vld [vmem:[%s2622 + $0x150] sm:$0xff]
        %v2652 = vld [vmem:[%s2622 + $0x158] sm:$0xff]
        %v2653 = vld [vmem:[%s2622 + $0x168] sm:$0xff]
        %v2654 = vld [vmem:[%s2622 + $0x170] sm:$0xff]
        %v2655 = vpack.c.bf16 %v2624, %v2623
        %v2656 = vpack.c.bf16 %v2626, %v2625
        %v2657 = vpack.c.bf16 %v2628, %v2627
        %v2658 = vpack.c.bf16 %v2630, %v2629
        %v2659 = vpack.c.bf16 %v2632, %v2631
        %v2660 = vpack.c.bf16 %v2634, %v2633
        %v2661 = vpack.c.bf16 %v2636, %v2635
        %v2662 = vpack.c.bf16 %v2638, %v2637
        %v2663 = vpack.c.bf16 %v2640, %v2639
        %v2664 = vpack.c.bf16 %v2642, %v2641
        %v2665 = vpack.c.bf16 %v2644, %v2643
        %v2666 = vpack.c.bf16 %v2646, %v2645
        %v2667 = vpack.c.bf16 %v2648, %v2647
        %v2668 = vpack.c.bf16 %v2650, %v2649
        %v2669 = vpack.c.bf16 %v2652, %v2651
        %v2670 = vpack.c.bf16 %v2654, %v2653
        %s2671 = scalar_lea.vmem %s3, 96
        %v2672 = vld [vmem:[%s2671] sm:$0xf]
        %v2673 = vld [vmem:[%s2671 + $0x4] sm:$0xf]
        %v2674 = vld [vmem:[%s2671 + $0x8] sm:$0xf]
        %v2675 = vld [vmem:[%s2671 + $0xc] sm:$0xf]
        %v2680 = vunpack.c.l.b16 %v2672
        %v2681 = vunpack.c.l.b16 %v2673
        %v2682 = vunpack.c.l.b16 %v2674
        %v2683 = vunpack.c.l.b16 %v2675
        %v2684 = vpack.c.b16 %v2681, %v2680
        %v2685 = vpack.c.b16 %v2683, %v2682
        %v2689 = vsel %vm772, %v2655, 0
        %v2692 = vsel %vm772, %v2656, 0
        %v2695 = vsel %vm772, %v2657, 0
        %v2698 = vsel %vm772, %v2658, 0
        %v2701 = vsel %vm772, %v2659, 0
        %v2704 = vsel %vm772, %v2660, 0
        %v2707 = vsel %vm772, %v2661, 0
        %v2710 = vsel %vm772, %v2662, 0
        %v2713 = vsel %vm772, %v2663, 0
        %v2716 = vsel %vm772, %v2664, 0
        %v2719 = vsel %vm772, %v2665, 0
        %v2722 = vsel %vm772, %v2666, 0
        %v2725 = vsel %vm772, %v2667, 0
        %v2728 = vsel %vm772, %v2668, 0
        %v2731 = vsel %vm772, %v2669, 0
        %v2734 = vsel %vm772, %v2670, 0
        %2736 = vmatprep.subr.bf16.mxu0 0
        %2737 = vmatpush1.bf16.msra.mxu0 %v2684
        %2738 = vmatprep.subr.bf16.mxu0 0
        %2739 = vmatpush1.bf16.msra.mxu0 %v2685
        %2740 = vmatprep.subr.bf16.mxu0 0
        %2741 = vmatpush1.bf16.msra.mxu0 0
        %2742 = vmatprep.subr.bf16.mxu0 0
        %2743 = vmatpush1.bf16.msra.mxu0 0
        %2744 = vmatprep.subr.bf16.mxu0 0
        %2745 = vmatpush1.bf16.msra.mxu0 0
        %2746 = vmatprep.subr.bf16.mxu0 0
        %2747 = vmatpush1.bf16.msra.mxu0 0
        %2748 = vmatprep.subr.bf16.mxu0 0
        %2749 = vmatpush1.bf16.msra.mxu0 0
        %2750 = vmatprep.subr.bf16.mxu0 0
        %2751 = vmatpush1.bf16.msra.mxu0 0
        %2752 = vmatprep.subr.bf16.mxu0 0
        %2753 = vmatpush1.bf16.msra.mxu0 0
        %2754 = vmatprep.subr.bf16.mxu0 0
        %2755 = vmatpush1.bf16.msra.mxu0 0
        %2756 = vmatprep.subr.bf16.mxu0 0
        %2757 = vmatpush1.bf16.msra.mxu0 0
        %2758 = vmatprep.subr.bf16.mxu0 0
        %2759 = vmatpush1.bf16.msra.mxu0 0
        %2760 = vmatprep.subr.bf16.mxu0 0
        %2761 = vmatpush1.bf16.msra.mxu0 0
        %2762 = vmatprep.subr.bf16.mxu0 0
        %2763 = vmatpush1.bf16.msra.mxu0 0
        %2764 = vmatprep.subr.bf16.mxu0 0
        %2765 = vmatpush1.bf16.msra.mxu0 0
        %2766 = vmatprep.subr.bf16.mxu0 0
        %2767 = vmatpush1.bf16.msra.mxu0 0
        %2768 = vmatprep.mubr.bf16.mxu0 0
        %2769 = vmatmul.mubr.bf16.gmra.mrb[0].mxu0 %v2689
        %v2770 = vpop.f32.mrb[0].mxu0
        %v2771 = vadd.f32 0.0, %v2770
        %v2772 = vpop.f32.mrb[0].mxu0
        %v2773 = vpop.f32.mrb[0].mxu0
        %v2774 = vadd.f32 0.0, %v2773
        %v2775 = vpop.f32.mrb[0].mxu0
        %2776 = vmatprep.mubr.bf16.mxu0 0
        %2777 = vmatmul.mubr.bf16.gmra.mrb[0].mxu0 %v2692
        %v2778 = vpop.f32.mrb[0].mxu0
        %v2779 = vadd.f32 0.0, %v2778
        %v2780 = vpop.f32.mrb[0].mxu0
        %v2781 = vpop.f32.mrb[0].mxu0
        %v2782 = vadd.f32 0.0, %v2781
        %v2783 = vpop.f32.mrb[0].mxu0
        %2784 = vmatprep.mubr.bf16.mxu0 0
        %2785 = vmatmul.mubr.bf16.gmra.mrb[0].mxu0 %v2695
        %v2786 = vpop.f32.mrb[0].mxu0
        %v2787 = vadd.f32 0.0, %v2786
        %v2788 = vpop.f32.mrb[0].mxu0
        %v2789 = vpop.f32.mrb[0].mxu0
        %v2790 = vadd.f32 0.0, %v2789
        %v2791 = vpop.f32.mrb[0].mxu0
        %2792 = vmatprep.mubr.bf16.mxu0 0
        %2793 = vmatmul.mubr.bf16.gmra.mrb[0].mxu0 %v2698
        %v2794 = vpop.f32.mrb[0].mxu0
        %v2795 = vadd.f32 0.0, %v2794
        %v2796 = vpop.f32.mrb[0].mxu0
        %v2797 = vpop.f32.mrb[0].mxu0
        %v2798 = vadd.f32 0.0, %v2797
        %v2799 = vpop.f32.mrb[0].mxu0
        %2800 = vmatprep.mubr.bf16.mxu0 0
        %2801 = vmatmul.mubr.bf16.gmra.mrb[0].mxu0 %v2701
        %v2802 = vpop.f32.mrb[0].mxu0
        %v2803 = vadd.f32 0.0, %v2802
        %v2804 = vpop.f32.mrb[0].mxu0
        %v2805 = vpop.f32.mrb[0].mxu0
        %v2806 = vadd.f32 0.0, %v2805
        %v2807 = vpop.f32.mrb[0].mxu0
        %2808 = vmatprep.mubr.bf16.mxu0 0
        %2809 = vmatmul.mubr.bf16.gmra.mrb[0].mxu0 %v2704
        %v2810 = vpop.f32.mrb[0].mxu0
        %v2811 = vadd.f32 0.0, %v2810
        %v2812 = vpop.f32.mrb[0].mxu0
        %v2813 = vpop.f32.mrb[0].mxu0
        %v2814 = vadd.f32 0.0, %v2813
        %v2815 = vpop.f32.mrb[0].mxu0
        %2816 = vmatprep.mubr.bf16.mxu0 0
        %2817 = vmatmul.mubr.bf16.gmra.mrb[0].mxu0 %v2707
        %v2818 = vpop.f32.mrb[0].mxu0
        %v2819 = vadd.f32 0.0, %v2818
        %v2820 = vpop.f32.mrb[0].mxu0
        %v2821 = vpop.f32.mrb[0].mxu0
        %v2822 = vadd.f32 0.0, %v2821
        %v2823 = vpop.f32.mrb[0].mxu0
        %2824 = vmatprep.mubr.bf16.mxu0 0
        %2825 = vmatmul.mubr.bf16.gmra.mrb[0].mxu0 %v2710
        %v2826 = vpop.f32.mrb[0].mxu0
        %v2827 = vadd.f32 0.0, %v2826
        %v2828 = vpop.f32.mrb[0].mxu0
        %v2829 = vpop.f32.mrb[0].mxu0
        %v2830 = vadd.f32 0.0, %v2829
        %v2831 = vpop.f32.mrb[0].mxu0
        %2832 = vmatprep.mubr.bf16.mxu0 0
        %2833 = vmatmul.mubr.bf16.gmra.mrb[0].mxu0 %v2713
        %v2834 = vpop.f32.mrb[0].mxu0
        %v2835 = vadd.f32 0.0, %v2834
        %v2836 = vpop.f32.mrb[0].mxu0
        %v2837 = vpop.f32.mrb[0].mxu0
        %v2838 = vadd.f32 0.0, %v2837
        %v2839 = vpop.f32.mrb[0].mxu0
        %2840 = vmatprep.mubr.bf16.mxu0 0
        %2841 = vmatmul.mubr.bf16.gmra.mrb[0].mxu0 %v2716
        %v2842 = vpop.f32.mrb[0].mxu0
        %v2843 = vadd.f32 0.0, %v2842
        %v2844 = vpop.f32.mrb[0].mxu0
        %v2845 = vpop.f32.mrb[0].mxu0
        %v2846 = vadd.f32 0.0, %v2845
        %v2847 = vpop.f32.mrb[0].mxu0
        %2848 = vmatprep.mubr.bf16.mxu0 0
        %2849 = vmatmul.mubr.bf16.gmra.mrb[0].mxu0 %v2719
        %v2850 = vpop.f32.mrb[0].mxu0
        %v2851 = vadd.f32 0.0, %v2850
        %v2852 = vpop.f32.mrb[0].mxu0
        %v2853 = vpop.f32.mrb[0].mxu0
        %v2854 = vadd.f32 0.0, %v2853
        %v2855 = vpop.f32.mrb[0].mxu0
        %2856 = vmatprep.mubr.bf16.mxu0 0
        %2857 = vmatmul.mubr.bf16.gmra.mrb[0].mxu0 %v2722
        %v2858 = vpop.f32.mrb[0].mxu0
        %v2859 = vadd.f32 0.0, %v2858
        %v2860 = vpop.f32.mrb[0].mxu0
        %v2861 = vpop.f32.mrb[0].mxu0
        %v2862 = vadd.f32 0.0, %v2861
        %v2863 = vpop.f32.mrb[0].mxu0
        %2864 = vmatprep.mubr.bf16.mxu0 0
        %2865 = vmatmul.mubr.bf16.gmra.mrb[0].mxu0 %v2725
        %v2866 = vpop.f32.mrb[0].mxu0
        %v2867 = vadd.f32 0.0, %v2866
        %v2868 = vpop.f32.mrb[0].mxu0
        %v2869 = vpop.f32.mrb[0].mxu0
        %v2870 = vadd.f32 0.0, %v2869
        %v2871 = vpop.f32.mrb[0].mxu0
        %2872 = vmatprep.mubr.bf16.mxu0 0
        %2873 = vmatmul.mubr.bf16.gmra.mrb[0].mxu0 %v2728
        %v2874 = vpop.f32.mrb[0].mxu0
        %v2875 = vadd.f32 0.0, %v2874
        %v2876 = vpop.f32.mrb[0].mxu0
        %v2877 = vpop.f32.mrb[0].mxu0
        %v2878 = vadd.f32 0.0, %v2877
        %v2879 = vpop.f32.mrb[0].mxu0
        %2880 = vmatprep.mubr.bf16.mxu0 0
        %2881 = vmatmul.mubr.bf16.gmra.mrb[0].mxu0 %v2731
        %v2882 = vpop.f32.mrb[0].mxu0
        %v2883 = vadd.f32 0.0, %v2882
        %v2884 = vpop.f32.mrb[0].mxu0
        %v2885 = vpop.f32.mrb[0].mxu0
        %v2886 = vadd.f32 0.0, %v2885
        %v2887 = vpop.f32.mrb[0].mxu0
        %2888 = vmatprep.mubr.bf16.mxu0 0
        %2889 = vmatmul.mubr.bf16.gmra.mrb[0].mxu0 %v2734
        %v2890 = vpop.f32.mrb[0].mxu0
        %v2891 = vadd.f32 0.0, %v2890
        %v2892 = vpop.f32.mrb[0].mxu0
        %v2893 = vpop.f32.mrb[0].mxu0
        %v2894 = vadd.f32 0.0, %v2893
        %v2895 = vpop.f32.mrb[0].mxu0
        %2896 = vdwg.mxu0
        %v2897 = vadd.f32 %v2590, %v2771
        %v2898 = vadd.f32 %v2591, %v2774
        %v2899 = vadd.f32 %v2592, %v2779
        %v2900 = vadd.f32 %v2593, %v2782
        %v2901 = vadd.f32 %v2594, %v2787
        %v2902 = vadd.f32 %v2595, %v2790
        %v2903 = vadd.f32 %v2596, %v2795
        %v2904 = vadd.f32 %v2597, %v2798
        %v2905 = vadd.f32 %v2598, %v2803
        %v2906 = vadd.f32 %v2599, %v2806
        %v2907 = vadd.f32 %v2600, %v2811
        %v2908 = vadd.f32 %v2601, %v2814
        %v2909 = vadd.f32 %v2602, %v2819
        %v2910 = vadd.f32 %v2603, %v2822
        %v2911 = vadd.f32 %v2604, %v2827
        %v2912 = vadd.f32 %v2605, %v2830
        %v2913 = vadd.f32 %v2606, %v2835
        %v2914 = vadd.f32 %v2607, %v2838
        %v2915 = vadd.f32 %v2608, %v2843
        %v2916 = vadd.f32 %v2609, %v2846
        %v2917 = vadd.f32 %v2610, %v2851
        %v2918 = vadd.f32 %v2611, %v2854
        %v2919 = vadd.f32 %v2612, %v2859
        %v2920 = vadd.f32 %v2613, %v2862
        %v2921 = vadd.f32 %v2614, %v2867
        %v2922 = vadd.f32 %v2615, %v2870
        %v2923 = vadd.f32 %v2616, %v2875
        %v2924 = vadd.f32 %v2617, %v2878
        %v2925 = vadd.f32 %v2618, %v2883
        %v2926 = vadd.f32 %v2619, %v2886
        %v2927 = vadd.f32 %v2620, %v2891
        %v2928 = vadd.f32 %v2621, %v2894
        %v2929 = vld [vmem:[%s2622 + $0x1] sm:$0xff]
        %v2930 = vld [vmem:[%s2622 + $0x9] sm:$0xff]
        %v2931 = vld [vmem:[%s2622 + $0x19] sm:$0xff]
        %v2932 = vld [vmem:[%s2622 + $0x21] sm:$0xff]
        %v2933 = vld [vmem:[%s2622 + $0x31] sm:$0xff]
        %v2934 = vld [vmem:[%s2622 + $0x39] sm:$0xff]
        %v2935 = vld [vmem:[%s2622 + $0x49] sm:$0xff]
        %v2936 = vld [vmem:[%s2622 + $0x51] sm:$0xff]
        %v2937 = vld [vmem:[%s2622 + $0x61] sm:$0xff]
        %v2938 = vld [vmem:[%s2622 + $0x69] sm:$0xff]
        %v2939 = vld [vmem:[%s2622 + $0x79] sm:$0xff]
        %v2940 = vld [vmem:[%s2622 + $0x81] sm:$0xff]
        %v2941 = vld [vmem:[%s2622 + $0x91] sm:$0xff]
        %v2942 = vld [vmem:[%s2622 + $0x99] sm:$0xff]
        %v2943 = vld [vmem:[%s2622 + $0xa9] sm:$0xff]
        %v2944 = vld [vmem:[%s2622 + $0xb1] sm:$0xff]
        %v2945 = vld [vmem:[%s2622 + $0xc1] sm:$0xff]
        %v2946 = vld [vmem:[%s2622 + $0xc9] sm:$0xff]
        %v2947 = vld [vmem:[%s2622 + $0xd9] sm:$0xff]
        %v2948 = vld [vmem:[%s2622 + $0xe1] sm:$0xff]
        %v2949 = vld [vmem:[%s2622 + $0xf1] sm:$0xff]
        %v2950 = vld [vmem:[%s2622 + $0xf9] sm:$0xff]
        %v2951 = vld [vmem:[%s2622 + $0x109] sm:$0xff]
        %v2952 = vld [vmem:[%s2622 + $0x111] sm:$0xff]
        %v2953 = vld [vmem:[%s2622 + $0x121] sm:$0xff]
        %v2954 = vld [vmem:[%s2622 + $0x129] sm:$0xff]
        %v2955 = vld [vmem:[%s2622 + $0x139] sm:$0xff]
        %v2956 = vld [vmem:[%s2622 + $0x141] sm:$0xff]
        %v2957 = vld [vmem:[%s2622 + $0x151] sm:$0xff]
        %v2958 = vld [vmem:[%s2622 + $0x159] sm:$0xff]
        %v2959 = vld [vmem:[%s2622 + $0x169] sm:$0xff]
        %v2960 = vld [vmem:[%s2622 + $0x171] sm:$0xff]
        %v2961 = vpack.c.bf16 %v2930, %v2929
        %v2962 = vpack.c.bf16 %v2932, %v2931
        %v2963 = vpack.c.bf16 %v2934, %v2933
        %v2964 = vpack.c.bf16 %v2936, %v2935
        %v2965 = vpack.c.bf16 %v2938, %v2937
        %v2966 = vpack.c.bf16 %v2940, %v2939
        %v2967 = vpack.c.bf16 %v2942, %v2941
        %v2968 = vpack.c.bf16 %v2944, %v2943
        %v2969 = vpack.c.bf16 %v2946, %v2945
        %v2970 = vpack.c.bf16 %v2948, %v2947
        %v2971 = vpack.c.bf16 %v2950, %v2949
        %v2972 = vpack.c.bf16 %v2952, %v2951
        %v2973 = vpack.c.bf16 %v2954, %v2953
        %v2974 = vpack.c.bf16 %v2956, %v2955
        %v2975 = vpack.c.bf16 %v2958, %v2957
        %v2976 = vpack.c.bf16 %v2960, %v2959
        %s2977 = scalar_lea.vmem %s3, 112
        %v2978 = vld [vmem:[%s2977] sm:$0xf]
        %v2979 = vld [vmem:[%s2977 + $0x4] sm:$0xf]
        %v2980 = vld [vmem:[%s2977 + $0x8] sm:$0xf]
        %v2981 = vld [vmem:[%s2977 + $0xc] sm:$0xf]
        %v2986 = vunpack.c.l.b16 %v2978
        %v2987 = vunpack.c.l.b16 %v2979
        %v2988 = vunpack.c.l.b16 %v2980
        %v2989 = vunpack.c.l.b16 %v2981
        %v2990 = vpack.c.b16 %v2987, %v2986
        %v2991 = vpack.c.b16 %v2989, %v2988
        %v2995 = vsel %vm772, %v2961, 0
        %v2998 = vsel %vm772, %v2962, 0
        %v3001 = vsel %vm772, %v2963, 0
        %v3004 = vsel %vm772, %v2964, 0
        %v3007 = vsel %vm772, %v2965, 0
        %v3010 = vsel %vm772, %v2966, 0
        %v3013 = vsel %vm772, %v2967, 0
        %v3016 = vsel %vm772, %v2968, 0
        %v3019 = vsel %vm772, %v2969, 0
        %v3022 = vsel %vm772, %v2970, 0
        %v3025 = vsel %vm772, %v2971, 0
        %v3028 = vsel %vm772, %v2972, 0
        %v3031 = vsel %vm772, %v2973, 0
        %v3034 = vsel %vm772, %v2974, 0
        %v3037 = vsel %vm772, %v2975, 0
        %v3040 = vsel %vm772, %v2976, 0
        %3042 = vmatprep.subr.bf16.mxu0 0
        %3043 = vmatpush1.bf16.msra.mxu0 %v2990
        %3044 = vmatprep.subr.bf16.mxu0 0
        %3045 = vmatpush1.bf16.msra.mxu0 %v2991
        %3046 = vmatprep.subr.bf16.mxu0 0
        %3047 = vmatpush1.bf16.msra.mxu0 0
        %3048 = vmatprep.subr.bf16.mxu0 0
        %3049 = vmatpush1.bf16.msra.mxu0 0
        %3050 = vmatprep.subr.bf16.mxu0 0
        %3051 = vmatpush1.bf16.msra.mxu0 0
        %3052 = vmatprep.subr.bf16.mxu0 0
        %3053 = vmatpush1.bf16.msra.mxu0 0
        %3054 = vmatprep.subr.bf16.mxu0 0
        %3055 = vmatpush1.bf16.msra.mxu0 0
        %3056 = vmatprep.subr.bf16.mxu0 0
        %3057 = vmatpush1.bf16.msra.mxu0 0
        %3058 = vmatprep.subr.bf16.mxu0 0
        %3059 = vmatpush1.bf16.msra.mxu0 0
        %3060 = vmatprep.subr.bf16.mxu0 0
        %3061 = vmatpush1.bf16.msra.mxu0 0
        %3062 = vmatprep.subr.bf16.mxu0 0
        %3063 = vmatpush1.bf16.msra.mxu0 0
        %3064 = vmatprep.subr.bf16.mxu0 0
        %3065 = vmatpush1.bf16.msra.mxu0 0
        %3066 = vmatprep.subr.bf16.mxu0 0
        %3067 = vmatpush1.bf16.msra.mxu0 0
        %3068 = vmatprep.subr.bf16.mxu0 0
        %3069 = vmatpush1.bf16.msra.mxu0 0
        %3070 = vmatprep.subr.bf16.mxu0 0
        %3071 = vmatpush1.bf16.msra.mxu0 0
        %3072 = vmatprep.subr.bf16.mxu0 0
        %3073 = vmatpush1.bf16.msra.mxu0 0
        %3074 = vmatprep.mubr.bf16.mxu0 0
        %3075 = vmatmul.mubr.bf16.gmra.mrb[0].mxu0 %v2995
        %v3076 = vpop.f32.mrb[0].mxu0
        %v3077 = vadd.f32 0.0, %v3076
        %v3078 = vpop.f32.mrb[0].mxu0
        %v3079 = vpop.f32.mrb[0].mxu0
        %v3080 = vadd.f32 0.0, %v3079
        %v3081 = vpop.f32.mrb[0].mxu0
        %3082 = vmatprep.mubr.bf16.mxu0 0
        %3083 = vmatmul.mubr.bf16.gmra.mrb[0].mxu0 %v2998
        %v3084 = vpop.f32.mrb[0].mxu0
        %v3085 = vadd.f32 0.0, %v3084
        %v3086 = vpop.f32.mrb[0].mxu0
        %v3087 = vpop.f32.mrb[0].mxu0
        %v3088 = vadd.f32 0.0, %v3087
        %v3089 = vpop.f32.mrb[0].mxu0
        %3090 = vmatprep.mubr.bf16.mxu0 0
        %3091 = vmatmul.mubr.bf16.gmra.mrb[0].mxu0 %v3001
        %v3092 = vpop.f32.mrb[0].mxu0
        %v3093 = vadd.f32 0.0, %v3092
        %v3094 = vpop.f32.mrb[0].mxu0
        %v3095 = vpop.f32.mrb[0].mxu0
        %v3096 = vadd.f32 0.0, %v3095
        %v3097 = vpop.f32.mrb[0].mxu0
        %3098 = vmatprep.mubr.bf16.mxu0 0
        %3099 = vmatmul.mubr.bf16.gmra.mrb[0].mxu0 %v3004
        %v3100 = vpop.f32.mrb[0].mxu0
        %v3101 = vadd.f32 0.0, %v3100
        %v3102 = vpop.f32.mrb[0].mxu0
        %v3103 = vpop.f32.mrb[0].mxu0
        %v3104 = vadd.f32 0.0, %v3103
        %v3105 = vpop.f32.mrb[0].mxu0
        %3106 = vmatprep.mubr.bf16.mxu0 0
        %3107 = vmatmul.mubr.bf16.gmra.mrb[0].mxu0 %v3007
        %v3108 = vpop.f32.mrb[0].mxu0
        %v3109 = vadd.f32 0.0, %v3108
        %v3110 = vpop.f32.mrb[0].mxu0
        %v3111 = vpop.f32.mrb[0].mxu0
        %v3112 = vadd.f32 0.0, %v3111
        %v3113 = vpop.f32.mrb[0].mxu0
        %3114 = vmatprep.mubr.bf16.mxu0 0
        %3115 = vmatmul.mubr.bf16.gmra.mrb[0].mxu0 %v3010
        %v3116 = vpop.f32.mrb[0].mxu0
        %v3117 = vadd.f32 0.0, %v3116
        %v3118 = vpop.f32.mrb[0].mxu0
        %v3119 = vpop.f32.mrb[0].mxu0
        %v3120 = vadd.f32 0.0, %v3119
        %v3121 = vpop.f32.mrb[0].mxu0
        %3122 = vmatprep.mubr.bf16.mxu0 0
        %3123 = vmatmul.mubr.bf16.gmra.mrb[0].mxu0 %v3013
        %v3124 = vpop.f32.mrb[0].mxu0
        %v3125 = vadd.f32 0.0, %v3124
        %v3126 = vpop.f32.mrb[0].mxu0
        %v3127 = vpop.f32.mrb[0].mxu0
        %v3128 = vadd.f32 0.0, %v3127
        %v3129 = vpop.f32.mrb[0].mxu0
        %3130 = vmatprep.mubr.bf16.mxu0 0
        %3131 = vmatmul.mubr.bf16.gmra.mrb[0].mxu0 %v3016
        %v3132 = vpop.f32.mrb[0].mxu0
        %v3133 = vadd.f32 0.0, %v3132
        %v3134 = vpop.f32.mrb[0].mxu0
        %v3135 = vpop.f32.mrb[0].mxu0
        %v3136 = vadd.f32 0.0, %v3135
        %v3137 = vpop.f32.mrb[0].mxu0
        %3138 = vmatprep.mubr.bf16.mxu0 0
        %3139 = vmatmul.mubr.bf16.gmra.mrb[0].mxu0 %v3019
        %v3140 = vpop.f32.mrb[0].mxu0
        %v3141 = vadd.f32 0.0, %v3140
        %v3142 = vpop.f32.mrb[0].mxu0
        %v3143 = vpop.f32.mrb[0].mxu0
        %v3144 = vadd.f32 0.0, %v3143
        %v3145 = vpop.f32.mrb[0].mxu0
        %3146 = vmatprep.mubr.bf16.mxu0 0
        %3147 = vmatmul.mubr.bf16.gmra.mrb[0].mxu0 %v3022
        %v3148 = vpop.f32.mrb[0].mxu0
        %v3149 = vadd.f32 0.0, %v3148
        %v3150 = vpop.f32.mrb[0].mxu0
        %v3151 = vpop.f32.mrb[0].mxu0
        %v3152 = vadd.f32 0.0, %v3151
        %v3153 = vpop.f32.mrb[0].mxu0
        %3154 = vmatprep.mubr.bf16.mxu0 0
        %3155 = vmatmul.mubr.bf16.gmra.mrb[0].mxu0 %v3025
        %v3156 = vpop.f32.mrb[0].mxu0
        %v3157 = vadd.f32 0.0, %v3156
        %v3158 = vpop.f32.mrb[0].mxu0
        %v3159 = vpop.f32.mrb[0].mxu0
        %v3160 = vadd.f32 0.0, %v3159
        %v3161 = vpop.f32.mrb[0].mxu0
        %3162 = vmatprep.mubr.bf16.mxu0 0
        %3163 = vmatmul.mubr.bf16.gmra.mrb[0].mxu0 %v3028
        %v3164 = vpop.f32.mrb[0].mxu0
        %v3165 = vadd.f32 0.0, %v3164
        %v3166 = vpop.f32.mrb[0].mxu0
        %v3167 = vpop.f32.mrb[0].mxu0
        %v3168 = vadd.f32 0.0, %v3167
        %v3169 = vpop.f32.mrb[0].mxu0
        %3170 = vmatprep.mubr.bf16.mxu0 0
        %3171 = vmatmul.mubr.bf16.gmra.mrb[0].mxu0 %v3031
        %v3172 = vpop.f32.mrb[0].mxu0
        %v3173 = vadd.f32 0.0, %v3172
        %v3174 = vpop.f32.mrb[0].mxu0
        %v3175 = vpop.f32.mrb[0].mxu0
        %v3176 = vadd.f32 0.0, %v3175
        %v3177 = vpop.f32.mrb[0].mxu0
        %3178 = vmatprep.mubr.bf16.mxu0 0
        %3179 = vmatmul.mubr.bf16.gmra.mrb[0].mxu0 %v3034
        %v3180 = vpop.f32.mrb[0].mxu0
        %v3181 = vadd.f32 0.0, %v3180
        %v3182 = vpop.f32.mrb[0].mxu0
        %v3183 = vpop.f32.mrb[0].mxu0
        %v3184 = vadd.f32 0.0, %v3183
        %v3185 = vpop.f32.mrb[0].mxu0
        %3186 = vmatprep.mubr.bf16.mxu0 0
        %3187 = vmatmul.mubr.bf16.gmra.mrb[0].mxu0 %v3037
        %v3188 = vpop.f32.mrb[0].mxu0
        %v3189 = vadd.f32 0.0, %v3188
        %v3190 = vpop.f32.mrb[0].mxu0
        %v3191 = vpop.f32.mrb[0].mxu0
        %v3192 = vadd.f32 0.0, %v3191
        %v3193 = vpop.f32.mrb[0].mxu0
        %3194 = vmatprep.mubr.bf16.mxu0 0
        %3195 = vmatmul.mubr.bf16.gmra.mrb[0].mxu0 %v3040
        %v3196 = vpop.f32.mrb[0].mxu0
        %v3197 = vadd.f32 0.0, %v3196
        %v3198 = vpop.f32.mrb[0].mxu0
        %v3199 = vpop.f32.mrb[0].mxu0
        %v3200 = vadd.f32 0.0, %v3199
        %v3201 = vpop.f32.mrb[0].mxu0
        %3202 = vdwg.mxu0
        %v3203 = vadd.f32 %v2897, %v3077
        %v3204 = vadd.f32 %v2898, %v3080
        %v3205 = vadd.f32 %v2899, %v3085
        %v3206 = vadd.f32 %v2900, %v3088
        %v3207 = vadd.f32 %v2901, %v3093
        %v3208 = vadd.f32 %v2902, %v3096
        %v3209 = vadd.f32 %v2903, %v3101
        %v3210 = vadd.f32 %v2904, %v3104
        %v3211 = vadd.f32 %v2905, %v3109
        %v3212 = vadd.f32 %v2906, %v3112
        %v3213 = vadd.f32 %v2907, %v3117
        %v3214 = vadd.f32 %v2908, %v3120
        %v3215 = vadd.f32 %v2909, %v3125
        %v3216 = vadd.f32 %v2910, %v3128
        %v3217 = vadd.f32 %v2911, %v3133
        %v3218 = vadd.f32 %v2912, %v3136
        %v3219 = vadd.f32 %v2913, %v3141
        %v3220 = vadd.f32 %v2914, %v3144
        %v3221 = vadd.f32 %v2915, %v3149
        %v3222 = vadd.f32 %v2916, %v3152
        %v3223 = vadd.f32 %v2917, %v3157
        %v3224 = vadd.f32 %v2918, %v3160
        %v3225 = vadd.f32 %v2919, %v3165
        %v3226 = vadd.f32 %v2920, %v3168
        %v3227 = vadd.f32 %v2921, %v3173
        %v3228 = vadd.f32 %v2922, %v3176
        %v3229 = vadd.f32 %v2923, %v3181
        %v3230 = vadd.f32 %v2924, %v3184
        %v3231 = vadd.f32 %v2925, %v3189
        %v3232 = vadd.f32 %v2926, %v3192
        %v3233 = vadd.f32 %v2927, %v3197
        %v3234 = vadd.f32 %v2928, %v3200
        %v3235 = vld [vmem:[%s2622 + $0x2] sm:$0xff]
        %v3236 = vld [vmem:[%s2622 + $0xa] sm:$0xff]
        %v3237 = vld [vmem:[%s2622 + $0x1a] sm:$0xff]
        %v3238 = vld [vmem:[%s2622 + $0x22] sm:$0xff]
        %v3239 = vld [vmem:[%s2622 + $0x32] sm:$0xff]
        %v3240 = vld [vmem:[%s2622 + $0x3a] sm:$0xff]
        %v3241 = vld [vmem:[%s2622 + $0x4a] sm:$0xff]
        %v3242 = vld [vmem:[%s2622 + $0x52] sm:$0xff]
        %v3243 = vld [vmem:[%s2622 + $0x62] sm:$0xff]
        %v3244 = vld [vmem:[%s2622 + $0x6a] sm:$0xff]
        %v3245 = vld [vmem:[%s2622 + $0x7a] sm:$0xff]
        %v3246 = vld [vmem:[%s2622 + $0x82] sm:$0xff]
        %v3247 = vld [vmem:[%s2622 + $0x92] sm:$0xff]
        %v3248 = vld [vmem:[%s2622 + $0x9a] sm:$0xff]
        %v3249 = vld [vmem:[%s2622 + $0xaa] sm:$0xff]
        %v3250 = vld [vmem:[%s2622 + $0xb2] sm:$0xff]
        %v3251 = vld [vmem:[%s2622 + $0xc2] sm:$0xff]
        %v3252 = vld [vmem:[%s2622 + $0xca] sm:$0xff]
        %v3253 = vld [vmem:[%s2622 + $0xda] sm:$0xff]
        %v3254 = vld [vmem:[%s2622 + $0xe2] sm:$0xff]
        %v3255 = vld [vmem:[%s2622 + $0xf2] sm:$0xff]
        %v3256 = vld [vmem:[%s2622 + $0xfa] sm:$0xff]
        %v3257 = vld [vmem:[%s2622 + $0x10a] sm:$0xff]
        %v3258 = vld [vmem:[%s2622 + $0x112] sm:$0xff]
        %v3259 = vld [vmem:[%s2622 + $0x122] sm:$0xff]
        %v3260 = vld [vmem:[%s2622 + $0x12a] sm:$0xff]
        %v3261 = vld [vmem:[%s2622 + $0x13a] sm:$0xff]
        %v3262 = vld [vmem:[%s2622 + $0x142] sm:$0xff]
        %v3263 = vld [vmem:[%s2622 + $0x152] sm:$0xff]
        %v3264 = vld [vmem:[%s2622 + $0x15a] sm:$0xff]
        %v3265 = vld [vmem:[%s2622 + $0x16a] sm:$0xff]
        %v3266 = vld [vmem:[%s2622 + $0x172] sm:$0xff]
        %v3267 = vpack.c.bf16 %v3236, %v3235
        %v3268 = vpack.c.bf16 %v3238, %v3237
        %v3269 = vpack.c.bf16 %v3240, %v3239
        %v3270 = vpack.c.bf16 %v3242, %v3241
        %v3271 = vpack.c.bf16 %v3244, %v3243
        %v3272 = vpack.c.bf16 %v3246, %v3245
        %v3273 = vpack.c.bf16 %v3248, %v3247
        %v3274 = vpack.c.bf16 %v3250, %v3249
        %v3275 = vpack.c.bf16 %v3252, %v3251
        %v3276 = vpack.c.bf16 %v3254, %v3253
        %v3277 = vpack.c.bf16 %v3256, %v3255
        %v3278 = vpack.c.bf16 %v3258, %v3257
        %v3279 = vpack.c.bf16 %v3260, %v3259
        %v3280 = vpack.c.bf16 %v3262, %v3261
        %v3281 = vpack.c.bf16 %v3264, %v3263
        %v3282 = vpack.c.bf16 %v3266, %v3265
        %s3283 = scalar_lea.vmem %s3, 128
        %v3284 = vld [vmem:[%s3283] sm:$0xf]
        %v3285 = vld [vmem:[%s3283 + $0x4] sm:$0xf]
        %v3286 = vld [vmem:[%s3283 + $0x8] sm:$0xf]
        %v3287 = vld [vmem:[%s3283 + $0xc] sm:$0xf]
        %v3292 = vunpack.c.l.b16 %v3284
        %v3293 = vunpack.c.l.b16 %v3285
        %v3294 = vunpack.c.l.b16 %v3286
        %v3295 = vunpack.c.l.b16 %v3287
        %v3296 = vpack.c.b16 %v3293, %v3292
        %v3297 = vpack.c.b16 %v3295, %v3294
        %v3301 = vsel %vm772, %v3267, 0
        %v3304 = vsel %vm772, %v3268, 0
        %v3307 = vsel %vm772, %v3269, 0
        %v3310 = vsel %vm772, %v3270, 0
        %v3313 = vsel %vm772, %v3271, 0
        %v3316 = vsel %vm772, %v3272, 0
        %v3319 = vsel %vm772, %v3273, 0
        %v3322 = vsel %vm772, %v3274, 0
        %v3325 = vsel %vm772, %v3275, 0
        %v3328 = vsel %vm772, %v3276, 0
        %v3331 = vsel %vm772, %v3277, 0
        %v3334 = vsel %vm772, %v3278, 0
        %v3337 = vsel %vm772, %v3279, 0
        %v3340 = vsel %vm772, %v3280, 0
        %v3343 = vsel %vm772, %v3281, 0
        %v3346 = vsel %vm772, %v3282, 0
        %3348 = vmatprep.subr.bf16.mxu0 0
        %3349 = vmatpush1.bf16.msra.mxu0 %v3296
        %3350 = vmatprep.subr.bf16.mxu0 0
        %3351 = vmatpush1.bf16.msra.mxu0 %v3297
        %3352 = vmatprep.subr.bf16.mxu0 0
        %3353 = vmatpush1.bf16.msra.mxu0 0
        %3354 = vmatprep.subr.bf16.mxu0 0
        %3355 = vmatpush1.bf16.msra.mxu0 0
        %3356 = vmatprep.subr.bf16.mxu0 0
        %3357 = vmatpush1.bf16.msra.mxu0 0
        %3358 = vmatprep.subr.bf16.mxu0 0
        %3359 = vmatpush1.bf16.msra.mxu0 0
        %3360 = vmatprep.subr.bf16.mxu0 0
        %3361 = vmatpush1.bf16.msra.mxu0 0
        %3362 = vmatprep.subr.bf16.mxu0 0
        %3363 = vmatpush1.bf16.msra.mxu0 0
        %3364 = vmatprep.subr.bf16.mxu0 0
        %3365 = vmatpush1.bf16.msra.mxu0 0
        %3366 = vmatprep.subr.bf16.mxu0 0
        %3367 = vmatpush1.bf16.msra.mxu0 0
        %3368 = vmatprep.subr.bf16.mxu0 0
        %3369 = vmatpush1.bf16.msra.mxu0 0
        %3370 = vmatprep.subr.bf16.mxu0 0
        %3371 = vmatpush1.bf16.msra.mxu0 0
        %3372 = vmatprep.subr.bf16.mxu0 0
        %3373 = vmatpush1.bf16.msra.mxu0 0
        %3374 = vmatprep.subr.bf16.mxu0 0
        %3375 = vmatpush1.bf16.msra.mxu0 0
        %3376 = vmatprep.subr.bf16.mxu0 0
        %3377 = vmatpush1.bf16.msra.mxu0 0
        %3378 = vmatprep.subr.bf16.mxu0 0
        %3379 = vmatpush1.bf16.msra.mxu0 0
        %3380 = vmatprep.mubr.bf16.mxu0 0
        %3381 = vmatmul.mubr.bf16.gmra.mrb[0].mxu0 %v3301
        %v3382 = vpop.f32.mrb[0].mxu0
        %v3383 = vadd.f32 0.0, %v3382
        %v3384 = vpop.f32.mrb[0].mxu0
        %v3385 = vpop.f32.mrb[0].mxu0
        %v3386 = vadd.f32 0.0, %v3385
        %v3387 = vpop.f32.mrb[0].mxu0
        %3388 = vmatprep.mubr.bf16.mxu0 0
        %3389 = vmatmul.mubr.bf16.gmra.mrb[0].mxu0 %v3304
        %v3390 = vpop.f32.mrb[0].mxu0
        %v3391 = vadd.f32 0.0, %v3390
        %v3392 = vpop.f32.mrb[0].mxu0
        %v3393 = vpop.f32.mrb[0].mxu0
        %v3394 = vadd.f32 0.0, %v3393
        %v3395 = vpop.f32.mrb[0].mxu0
        %3396 = vmatprep.mubr.bf16.mxu0 0
        %3397 = vmatmul.mubr.bf16.gmra.mrb[0].mxu0 %v3307
        %v3398 = vpop.f32.mrb[0].mxu0
        %v3399 = vadd.f32 0.0, %v3398
        %v3400 = vpop.f32.mrb[0].mxu0
        %v3401 = vpop.f32.mrb[0].mxu0
        %v3402 = vadd.f32 0.0, %v3401
        %v3403 = vpop.f32.mrb[0].mxu0
        %3404 = vmatprep.mubr.bf16.mxu0 0
        %3405 = vmatmul.mubr.bf16.gmra.mrb[0].mxu0 %v3310
        %v3406 = vpop.f32.mrb[0].mxu0
        %v3407 = vadd.f32 0.0, %v3406
        %v3408 = vpop.f32.mrb[0].mxu0
        %v3409 = vpop.f32.mrb[0].mxu0
        %v3410 = vadd.f32 0.0, %v3409
        %v3411 = vpop.f32.mrb[0].mxu0
        %3412 = vmatprep.mubr.bf16.mxu0 0
        %3413 = vmatmul.mubr.bf16.gmra.mrb[0].mxu0 %v3313
        %v3414 = vpop.f32.mrb[0].mxu0
        %v3415 = vadd.f32 0.0, %v3414
        %v3416 = vpop.f32.mrb[0].mxu0
        %v3417 = vpop.f32.mrb[0].mxu0
        %v3418 = vadd.f32 0.0, %v3417
        %v3419 = vpop.f32.mrb[0].mxu0
        %3420 = vmatprep.mubr.bf16.mxu0 0
        %3421 = vmatmul.mubr.bf16.gmra.mrb[0].mxu0 %v3316
        %v3422 = vpop.f32.mrb[0].mxu0
        %v3423 = vadd.f32 0.0, %v3422
        %v3424 = vpop.f32.mrb[0].mxu0
        %v3425 = vpop.f32.mrb[0].mxu0
        %v3426 = vadd.f32 0.0, %v3425
        %v3427 = vpop.f32.mrb[0].mxu0
        %3428 = vmatprep.mubr.bf16.mxu0 0
        %3429 = vmatmul.mubr.bf16.gmra.mrb[0].mxu0 %v3319
        %v3430 = vpop.f32.mrb[0].mxu0
        %v3431 = vadd.f32 0.0, %v3430
        %v3432 = vpop.f32.mrb[0].mxu0
        %v3433 = vpop.f32.mrb[0].mxu0
        %v3434 = vadd.f32 0.0, %v3433
        %v3435 = vpop.f32.mrb[0].mxu0
        %3436 = vmatprep.mubr.bf16.mxu0 0
        %3437 = vmatmul.mubr.bf16.gmra.mrb[0].mxu0 %v3322
        %v3438 = vpop.f32.mrb[0].mxu0
        %v3439 = vadd.f32 0.0, %v3438
        %v3440 = vpop.f32.mrb[0].mxu0
        %v3441 = vpop.f32.mrb[0].mxu0
        %v3442 = vadd.f32 0.0, %v3441
        %v3443 = vpop.f32.mrb[0].mxu0
        %3444 = vmatprep.mubr.bf16.mxu0 0
        %3445 = vmatmul.mubr.bf16.gmra.mrb[0].mxu0 %v3325
        %v3446 = vpop.f32.mrb[0].mxu0
        %v3447 = vadd.f32 0.0, %v3446
        %v3448 = vpop.f32.mrb[0].mxu0
        %v3449 = vpop.f32.mrb[0].mxu0
        %v3450 = vadd.f32 0.0, %v3449
        %v3451 = vpop.f32.mrb[0].mxu0
        %3452 = vmatprep.mubr.bf16.mxu0 0
        %3453 = vmatmul.mubr.bf16.gmra.mrb[0].mxu0 %v3328
        %v3454 = vpop.f32.mrb[0].mxu0
        %v3455 = vadd.f32 0.0, %v3454
        %v3456 = vpop.f32.mrb[0].mxu0
        %v3457 = vpop.f32.mrb[0].mxu0
        %v3458 = vadd.f32 0.0, %v3457
        %v3459 = vpop.f32.mrb[0].mxu0
        %3460 = vmatprep.mubr.bf16.mxu0 0
        %3461 = vmatmul.mubr.bf16.gmra.mrb[0].mxu0 %v3331
        %v3462 = vpop.f32.mrb[0].mxu0
        %v3463 = vadd.f32 0.0, %v3462
        %v3464 = vpop.f32.mrb[0].mxu0
        %v3465 = vpop.f32.mrb[0].mxu0
        %v3466 = vadd.f32 0.0, %v3465
        %v3467 = vpop.f32.mrb[0].mxu0
        %3468 = vmatprep.mubr.bf16.mxu0 0
        %3469 = vmatmul.mubr.bf16.gmra.mrb[0].mxu0 %v3334
        %v3470 = vpop.f32.mrb[0].mxu0
        %v3471 = vadd.f32 0.0, %v3470
        %v3472 = vpop.f32.mrb[0].mxu0
        %v3473 = vpop.f32.mrb[0].mxu0
        %v3474 = vadd.f32 0.0, %v3473
        %v3475 = vpop.f32.mrb[0].mxu0
        %3476 = vmatprep.mubr.bf16.mxu0 0
        %3477 = vmatmul.mubr.bf16.gmra.mrb[0].mxu0 %v3337
        %v3478 = vpop.f32.mrb[0].mxu0
        %v3479 = vadd.f32 0.0, %v3478
        %v3480 = vpop.f32.mrb[0].mxu0
        %v3481 = vpop.f32.mrb[0].mxu0
        %v3482 = vadd.f32 0.0, %v3481
        %v3483 = vpop.f32.mrb[0].mxu0
        %3484 = vmatprep.mubr.bf16.mxu0 0
        %3485 = vmatmul.mubr.bf16.gmra.mrb[0].mxu0 %v3340
        %v3486 = vpop.f32.mrb[0].mxu0
        %v3487 = vadd.f32 0.0, %v3486
        %v3488 = vpop.f32.mrb[0].mxu0
        %v3489 = vpop.f32.mrb[0].mxu0
        %v3490 = vadd.f32 0.0, %v3489
        %v3491 = vpop.f32.mrb[0].mxu0
        %3492 = vmatprep.mubr.bf16.mxu0 0
        %3493 = vmatmul.mubr.bf16.gmra.mrb[0].mxu0 %v3343
        %v3494 = vpop.f32.mrb[0].mxu0
        %v3495 = vadd.f32 0.0, %v3494
        %v3496 = vpop.f32.mrb[0].mxu0
        %v3497 = vpop.f32.mrb[0].mxu0
        %v3498 = vadd.f32 0.0, %v3497
        %v3499 = vpop.f32.mrb[0].mxu0
        %3500 = vmatprep.mubr.bf16.mxu0 0
        %3501 = vmatmul.mubr.bf16.gmra.mrb[0].mxu0 %v3346
        %v3502 = vpop.f32.mrb[0].mxu0
        %v3503 = vadd.f32 0.0, %v3502
        %v3504 = vpop.f32.mrb[0].mxu0
        %v3505 = vpop.f32.mrb[0].mxu0
        %v3506 = vadd.f32 0.0, %v3505
        %v3507 = vpop.f32.mrb[0].mxu0
        %3508 = vdwg.mxu0
        %v3509 = vadd.f32 %v3203, %v3383
        %v3510 = vadd.f32 %v3204, %v3386
        %v3511 = vadd.f32 %v3205, %v3391
        %v3512 = vadd.f32 %v3206, %v3394
        %v3513 = vadd.f32 %v3207, %v3399
        %v3514 = vadd.f32 %v3208, %v3402
        %v3515 = vadd.f32 %v3209, %v3407
        %v3516 = vadd.f32 %v3210, %v3410
        %v3517 = vadd.f32 %v3211, %v3415
        %v3518 = vadd.f32 %v3212, %v3418
        %v3519 = vadd.f32 %v3213, %v3423
        %v3520 = vadd.f32 %v3214, %v3426
        %v3521 = vadd.f32 %v3215, %v3431
        %v3522 = vadd.f32 %v3216, %v3434
        %v3523 = vadd.f32 %v3217, %v3439
        %v3524 = vadd.f32 %v3218, %v3442
        %v3525 = vadd.f32 %v3219, %v3447
        %v3526 = vadd.f32 %v3220, %v3450
        %v3527 = vadd.f32 %v3221, %v3455
        %v3528 = vadd.f32 %v3222, %v3458
        %v3529 = vadd.f32 %v3223, %v3463
        %v3530 = vadd.f32 %v3224, %v3466
        %v3531 = vadd.f32 %v3225, %v3471
        %v3532 = vadd.f32 %v3226, %v3474
        %v3533 = vadd.f32 %v3227, %v3479
        %v3534 = vadd.f32 %v3228, %v3482
        %v3535 = vadd.f32 %v3229, %v3487
        %v3536 = vadd.f32 %v3230, %v3490
        %v3537 = vadd.f32 %v3231, %v3495
        %v3538 = vadd.f32 %v3232, %v3498
        %v3539 = vadd.f32 %v3233, %v3503
        %v3540 = vadd.f32 %v3234, %v3506
        %v3541 = vld [vmem:[%s4] sm:$0x1]
        %v3543 = vlaneseq
        %v3544 = vshrl.u32 %v3543, 7
        %v3545 = vsub.s32 0, %v3544
        %v3546 = vrot.slane %v3541, %v3545
        %v3548 = vadd.f32 %v3509, %v3546
        %v3549 = vadd.f32 %v3510, %v3546
        %v3550 = vadd.f32 %v3511, %v3546
        %v3551 = vadd.f32 %v3512, %v3546
        %v3552 = vadd.f32 %v3513, %v3546
        %v3553 = vadd.f32 %v3514, %v3546
        %v3554 = vadd.f32 %v3515, %v3546
        %v3555 = vadd.f32 %v3516, %v3546
        %v3556 = vadd.f32 %v3517, %v3546
        %v3557 = vadd.f32 %v3518, %v3546
        %v3558 = vadd.f32 %v3519, %v3546
        %v3559 = vadd.f32 %v3520, %v3546
        %v3560 = vadd.f32 %v3521, %v3546
        %v3561 = vadd.f32 %v3522, %v3546
        %v3562 = vadd.f32 %v3523, %v3546
        %v3563 = vadd.f32 %v3524, %v3546
        %v3564 = vadd.f32 %v3525, %v3546
        %v3565 = vadd.f32 %v3526, %v3546
        %v3566 = vadd.f32 %v3527, %v3546
        %v3567 = vadd.f32 %v3528, %v3546
        %v3568 = vadd.f32 %v3529, %v3546
        %v3569 = vadd.f32 %v3530, %v3546
        %v3570 = vadd.f32 %v3531, %v3546
        %v3571 = vadd.f32 %v3532, %v3546
        %v3572 = vadd.f32 %v3533, %v3546
        %v3573 = vadd.f32 %v3534, %v3546
        %v3574 = vadd.f32 %v3535, %v3546
        %v3575 = vadd.f32 %v3536, %v3546
        %v3576 = vadd.f32 %v3537, %v3546
        %v3577 = vadd.f32 %v3538, %v3546
        %v3578 = vadd.f32 %v3539, %v3546
        %v3579 = vadd.f32 %v3540, %v3546
        %v3580 = vmax.f32 %v3548, 0.0
        %v3581 = vmax.f32 %v3549, 0.0
        %v3582 = vmax.f32 %v3550, 0.0
        %v3583 = vmax.f32 %v3551, 0.0
        %v3584 = vmax.f32 %v3552, 0.0
        %v3585 = vmax.f32 %v3553, 0.0
        %v3586 = vmax.f32 %v3554, 0.0
        %v3587 = vmax.f32 %v3555, 0.0
        %v3588 = vmax.f32 %v3556, 0.0
        %v3589 = vmax.f32 %v3557, 0.0
        %v3590 = vmax.f32 %v3558, 0.0
        %v3591 = vmax.f32 %v3559, 0.0
        %v3592 = vmax.f32 %v3560, 0.0
        %v3593 = vmax.f32 %v3561, 0.0
        %v3594 = vmax.f32 %v3562, 0.0
        %v3595 = vmax.f32 %v3563, 0.0
        %v3596 = vmax.f32 %v3564, 0.0
        %v3597 = vmax.f32 %v3565, 0.0
        %v3598 = vmax.f32 %v3566, 0.0
        %v3599 = vmax.f32 %v3567, 0.0
        %v3600 = vmax.f32 %v3568, 0.0
        %v3601 = vmax.f32 %v3569, 0.0
        %v3602 = vmax.f32 %v3570, 0.0
        %v3603 = vmax.f32 %v3571, 0.0
        %v3604 = vmax.f32 %v3572, 0.0
        %v3605 = vmax.f32 %v3573, 0.0
        %v3606 = vmax.f32 %v3574, 0.0
        %v3607 = vmax.f32 %v3575, 0.0
        %v3608 = vmax.f32 %v3576, 0.0
        %v3609 = vmax.f32 %v3577, 0.0
        %v3610 = vmax.f32 %v3578, 0.0
        %v3611 = vmax.f32 %v3579, 0.0
        %3612 = vst.msk [vmem:[%s818 + $0x1] sm:$0xff] %vm772, %v3580
        %3613 = vst.msk [vmem:[%s818 + $0x9] sm:$0xff] %vm772, %v3581
        %3614 = vst.msk [vmem:[%s818 + $0x19] sm:$0xff] %vm772, %v3582
        %3615 = vst.msk [vmem:[%s818 + $0x21] sm:$0xff] %vm772, %v3583
        %3616 = vst.msk [vmem:[%s818 + $0x31] sm:$0xff] %vm772, %v3584
        %3617 = vst.msk [vmem:[%s818 + $0x39] sm:$0xff] %vm772, %v3585
        %3618 = vst.msk [vmem:[%s818 + $0x49] sm:$0xff] %vm772, %v3586
        %3619 = vst.msk [vmem:[%s818 + $0x51] sm:$0xff] %vm772, %v3587
        %3620 = vst.msk [vmem:[%s818 + $0x61] sm:$0xff] %vm772, %v3588
        %3621 = vst.msk [vmem:[%s818 + $0x69] sm:$0xff] %vm772, %v3589
        %3622 = vst.msk [vmem:[%s818 + $0x79] sm:$0xff] %vm772, %v3590
        %3623 = vst.msk [vmem:[%s818 + $0x81] sm:$0xff] %vm772, %v3591
        %3624 = vst.msk [vmem:[%s818 + $0x91] sm:$0xff] %vm772, %v3592
        %3625 = vst.msk [vmem:[%s818 + $0x99] sm:$0xff] %vm772, %v3593
        %3626 = vst.msk [vmem:[%s818 + $0xa9] sm:$0xff] %vm772, %v3594
        %3627 = vst.msk [vmem:[%s818 + $0xb1] sm:$0xff] %vm772, %v3595
        %3628 = vst.msk [vmem:[%s818 + $0xc1] sm:$0xff] %vm772, %v3596
        %3629 = vst.msk [vmem:[%s818 + $0xc9] sm:$0xff] %vm772, %v3597
        %3630 = vst.msk [vmem:[%s818 + $0xd9] sm:$0xff] %vm772, %v3598
        %3631 = vst.msk [vmem:[%s818 + $0xe1] sm:$0xff] %vm772, %v3599
        %3632 = vst.msk [vmem:[%s818 + $0xf1] sm:$0xff] %vm772, %v3600
        %3633 = vst.msk [vmem:[%s818 + $0xf9] sm:$0xff] %vm772, %v3601
        %3634 = vst.msk [vmem:[%s818 + $0x109] sm:$0xff] %vm772, %v3602
        %3635 = vst.msk [vmem:[%s818 + $0x111] sm:$0xff] %vm772, %v3603
        %3636 = vst.msk [vmem:[%s818 + $0x121] sm:$0xff] %vm772, %v3604
        %3637 = vst.msk [vmem:[%s818 + $0x129] sm:$0xff] %vm772, %v3605
        %3638 = vst.msk [vmem:[%s818 + $0x139] sm:$0xff] %vm772, %v3606
        %3639 = vst.msk [vmem:[%s818 + $0x141] sm:$0xff] %vm772, %v3607
        %3640 = vst.msk [vmem:[%s818 + $0x151] sm:$0xff] %vm772, %v3608
        %3641 = vst.msk [vmem:[%s818 + $0x159] sm:$0xff] %vm772, %v3609
        %3642 = vst.msk [vmem:[%s818 + $0x169] sm:$0xff] %vm772, %v3610
        %3643 = vst.msk [vmem:[%s818 + $0x171] sm:$0xff] %vm772, %v3611
        %v3644 = vld [vmem:[#allocation2] sm:$0xff]
        %v3645 = vld [vmem:[#allocation2 + $0x8] sm:$0xff]
        %v3646 = vld [vmem:[#allocation2 + $0x18] sm:$0xff]
        %v3647 = vld [vmem:[#allocation2 + $0x20] sm:$0xff]
        %v3648 = vld [vmem:[#allocation2 + $0x30] sm:$0xff]
        %v3649 = vld [vmem:[#allocation2 + $0x38] sm:$0xff]
        %v3650 = vld [vmem:[#allocation2 + $0x48] sm:$0xff]
        %v3651 = vld [vmem:[#allocation2 + $0x50] sm:$0xff]
        %v3652 = vld [vmem:[#allocation2 + $0x60] sm:$0xff]
        %v3653 = vld [vmem:[#allocation2 + $0x68] sm:$0xff]
        %v3654 = vld [vmem:[#allocation2 + $0x78] sm:$0xff]
        %v3655 = vld [vmem:[#allocation2 + $0x80] sm:$0xff]
        %v3656 = vld [vmem:[#allocation2 + $0x90] sm:$0xff]
        %v3657 = vld [vmem:[#allocation2 + $0x98] sm:$0xff]
        %v3658 = vld [vmem:[#allocation2 + $0xa8] sm:$0xff]
        %v3659 = vld [vmem:[#allocation2 + $0xb0] sm:$0xff]
        %v3660 = vld [vmem:[#allocation2 + $0xc0] sm:$0xff]
        %v3661 = vld [vmem:[#allocation2 + $0xc8] sm:$0xff]
        %v3662 = vld [vmem:[#allocation2 + $0xd8] sm:$0xff]
        %v3663 = vld [vmem:[#allocation2 + $0xe0] sm:$0xff]
        %v3664 = vld [vmem:[#allocation2 + $0xf0] sm:$0xff]
        %v3665 = vld [vmem:[#allocation2 + $0xf8] sm:$0xff]
        %v3666 = vld [vmem:[#allocation2 + $0x108] sm:$0xff]
        %v3667 = vld [vmem:[#allocation2 + $0x110] sm:$0xff]
        %v3668 = vld [vmem:[#allocation2 + $0x120] sm:$0xff]
        %v3669 = vld [vmem:[#allocation2 + $0x128] sm:$0xff]
        %v3670 = vld [vmem:[#allocation2 + $0x138] sm:$0xff]
        %v3671 = vld [vmem:[#allocation2 + $0x140] sm:$0xff]
        %v3672 = vld [vmem:[#allocation2 + $0x150] sm:$0xff]
        %v3673 = vld [vmem:[#allocation2 + $0x158] sm:$0xff]
        %v3674 = vld [vmem:[#allocation2 + $0x168] sm:$0xff]
        %v3675 = vld [vmem:[#allocation2 + $0x170] sm:$0xff]
        %v3676 = vpack.c.bf16 %v3645, %v3644
        %v3677 = vpack.c.bf16 %v3647, %v3646
        %v3678 = vpack.c.bf16 %v3649, %v3648
        %v3679 = vpack.c.bf16 %v3651, %v3650
        %v3680 = vpack.c.bf16 %v3653, %v3652
        %v3681 = vpack.c.bf16 %v3655, %v3654
        %v3682 = vpack.c.bf16 %v3657, %v3656
        %v3683 = vpack.c.bf16 %v3659, %v3658
        %v3684 = vpack.c.bf16 %v3661, %v3660
        %v3685 = vpack.c.bf16 %v3663, %v3662
        %v3686 = vpack.c.bf16 %v3665, %v3664
        %v3687 = vpack.c.bf16 %v3667, %v3666
        %v3688 = vpack.c.bf16 %v3669, %v3668
        %v3689 = vpack.c.bf16 %v3671, %v3670
        %v3690 = vpack.c.bf16 %v3673, %v3672
        %v3691 = vpack.c.bf16 %v3675, %v3674
        %s3692 = scalar_lea.vmem %s3, 144
        %v3693 = vld [vmem:[%s3692] sm:$0xf]
        %v3694 = vld [vmem:[%s3692 + $0x4] sm:$0xf]
        %v3695 = vld [vmem:[%s3692 + $0x8] sm:$0xf]
        %v3696 = vld [vmem:[%s3692 + $0xc] sm:$0xf]
        %v3697 = vld [vmem:[#allocation2 + $0x1] sm:$0xff]
        %v3698 = vld [vmem:[#allocation2 + $0x9] sm:$0xff]
        %v3699 = vld [vmem:[#allocation2 + $0x19] sm:$0xff]
        %v3700 = vld [vmem:[#allocation2 + $0x21] sm:$0xff]
        %v3701 = vld [vmem:[#allocation2 + $0x31] sm:$0xff]
        %v3702 = vld [vmem:[#allocation2 + $0x39] sm:$0xff]
        %v3703 = vld [vmem:[#allocation2 + $0x49] sm:$0xff]
        %v3704 = vld [vmem:[#allocation2 + $0x51] sm:$0xff]
        %v3705 = vld [vmem:[#allocation2 + $0x61] sm:$0xff]
        %v3706 = vld [vmem:[#allocation2 + $0x69] sm:$0xff]
        %v3707 = vld [vmem:[#allocation2 + $0x79] sm:$0xff]
        %v3708 = vld [vmem:[#allocation2 + $0x81] sm:$0xff]
        %v3709 = vld [vmem:[#allocation2 + $0x91] sm:$0xff]
        %v3710 = vld [vmem:[#allocation2 + $0x99] sm:$0xff]
        %v3711 = vld [vmem:[#allocation2 + $0xa9] sm:$0xff]
        %v3712 = vld [vmem:[#allocation2 + $0xb1] sm:$0xff]
        %v3713 = vld [vmem:[#allocation2 + $0xc1] sm:$0xff]
        %v3714 = vld [vmem:[#allocation2 + $0xc9] sm:$0xff]
        %v3715 = vld [vmem:[#allocation2 + $0xd9] sm:$0xff]
        %v3716 = vld [vmem:[#allocation2 + $0xe1] sm:$0xff]
        %v3717 = vld [vmem:[#allocation2 + $0xf1] sm:$0xff]
        %v3718 = vld [vmem:[#allocation2 + $0xf9] sm:$0xff]
        %v3719 = vld [vmem:[#allocation2 + $0x109] sm:$0xff]
        %v3720 = vld [vmem:[#allocation2 + $0x111] sm:$0xff]
        %v3721 = vld [vmem:[#allocation2 + $0x121] sm:$0xff]
        %v3722 = vld [vmem:[#allocation2 + $0x129] sm:$0xff]
        %v3723 = vld [vmem:[#allocation2 + $0x139] sm:$0xff]
        %v3724 = vld [vmem:[#allocation2 + $0x141] sm:$0xff]
        %v3725 = vld [vmem:[#allocation2 + $0x151] sm:$0xff]
        %v3726 = vld [vmem:[#allocation2 + $0x159] sm:$0xff]
        %v3727 = vld [vmem:[#allocation2 + $0x169] sm:$0xff]
        %v3728 = vld [vmem:[#allocation2 + $0x171] sm:$0xff]
        %v3729 = vpack.c.bf16 %v3698, %v3697
        %v3730 = vpack.c.bf16 %v3700, %v3699
        %v3731 = vpack.c.bf16 %v3702, %v3701
        %v3732 = vpack.c.bf16 %v3704, %v3703
        %v3733 = vpack.c.bf16 %v3706, %v3705
        %v3734 = vpack.c.bf16 %v3708, %v3707
        %v3735 = vpack.c.bf16 %v3710, %v3709
        %v3736 = vpack.c.bf16 %v3712, %v3711
        %v3737 = vpack.c.bf16 %v3714, %v3713
        %v3738 = vpack.c.bf16 %v3716, %v3715
        %v3739 = vpack.c.bf16 %v3718, %v3717
        %v3740 = vpack.c.bf16 %v3720, %v3719
        %v3741 = vpack.c.bf16 %v3722, %v3721
        %v3742 = vpack.c.bf16 %v3724, %v3723
        %v3743 = vpack.c.bf16 %v3726, %v3725
        %v3744 = vpack.c.bf16 %v3728, %v3727
        %s3745 = scalar_lea.vmem %s3, 160
        %v3746 = vld [vmem:[%s3745] sm:$0xf]
        %v3747 = vld [vmem:[%s3745 + $0x4] sm:$0xf]
        %v3748 = vld [vmem:[%s3745 + $0x8] sm:$0xf]
        %v3749 = vld [vmem:[%s3745 + $0xc] sm:$0xf]
        %v3754 = vunpack.c.l.b16 %v3746
        %v3755 = vunpack.c.l.b16 %v3747
        %v3756 = vunpack.c.l.b16 %v3748
        %v3757 = vunpack.c.l.b16 %v3749
        %v3758 = vpack.c.b16 %v3755, %v3754
        %v3759 = vpack.c.b16 %v3757, %v3756
        %v3763 = vsel %vm772, %v3729, 0
        %v3766 = vsel %vm772, %v3730, 0
        %v3769 = vsel %vm772, %v3731, 0
        %v3772 = vsel %vm772, %v3732, 0
        %v3775 = vsel %vm772, %v3733, 0
        %v3778 = vsel %vm772, %v3734, 0
        %v3781 = vsel %vm772, %v3735, 0
        %v3784 = vsel %vm772, %v3736, 0
        %v3787 = vsel %vm772, %v3737, 0
        %v3790 = vsel %vm772, %v3738, 0
        %v3793 = vsel %vm772, %v3739, 0
        %v3796 = vsel %vm772, %v3740, 0
        %v3799 = vsel %vm772, %v3741, 0
        %v3802 = vsel %vm772, %v3742, 0
        %v3805 = vsel %vm772, %v3743, 0
        %v3808 = vsel %vm772, %v3744, 0
        %3810 = vmatprep.subr.bf16.mxu0 0
        %3811 = vmatpush1.bf16.msra.mxu0 %v3758
        %3812 = vmatprep.subr.bf16.mxu0 0
        %3813 = vmatpush1.bf16.msra.mxu0 %v3759
        %3814 = vmatprep.subr.bf16.mxu0 0
        %3815 = vmatpush1.bf16.msra.mxu0 0
        %3816 = vmatprep.subr.bf16.mxu0 0
        %3817 = vmatpush1.bf16.msra.mxu0 0
        %3818 = vmatprep.subr.bf16.mxu0 0
        %3819 = vmatpush1.bf16.msra.mxu0 0
        %3820 = vmatprep.subr.bf16.mxu0 0
        %3821 = vmatpush1.bf16.msra.mxu0 0
        %3822 = vmatprep.subr.bf16.mxu0 0
        %3823 = vmatpush1.bf16.msra.mxu0 0
        %3824 = vmatprep.subr.bf16.mxu0 0
        %3825 = vmatpush1.bf16.msra.mxu0 0
        %3826 = vmatprep.subr.bf16.mxu0 0
        %3827 = vmatpush1.bf16.msra.mxu0 0
        %3828 = vmatprep.subr.bf16.mxu0 0
        %3829 = vmatpush1.bf16.msra.mxu0 0
        %3830 = vmatprep.subr.bf16.mxu0 0
        %3831 = vmatpush1.bf16.msra.mxu0 0
        %3832 = vmatprep.subr.bf16.mxu0 0
        %3833 = vmatpush1.bf16.msra.mxu0 0
        %3834 = vmatprep.subr.bf16.mxu0 0
        %3835 = vmatpush1.bf16.msra.mxu0 0
        %3836 = vmatprep.subr.bf16.mxu0 0
        %3837 = vmatpush1.bf16.msra.mxu0 0
        %3838 = vmatprep.subr.bf16.mxu0 0
        %3839 = vmatpush1.bf16.msra.mxu0 0
        %3840 = vmatprep.subr.bf16.mxu0 0
        %3841 = vmatpush1.bf16.msra.mxu0 0
        %3842 = vmatprep.mubr.bf16.mxu0 0
        %3843 = vmatmul.mubr.bf16.gmra.mrb[0].mxu0 %v3763
        %v3844 = vpop.f32.mrb[0].mxu0
        %v3845 = vadd.f32 0.0, %v3844
        %v3846 = vpop.f32.mrb[0].mxu0
        %v3847 = vpop.f32.mrb[0].mxu0
        %v3848 = vadd.f32 0.0, %v3847
        %v3849 = vpop.f32.mrb[0].mxu0
        %3850 = vmatprep.mubr.bf16.mxu0 0
        %3851 = vmatmul.mubr.bf16.gmra.mrb[0].mxu0 %v3766
        %v3852 = vpop.f32.mrb[0].mxu0
        %v3853 = vadd.f32 0.0, %v3852
        %v3854 = vpop.f32.mrb[0].mxu0
        %v3855 = vpop.f32.mrb[0].mxu0
        %v3856 = vadd.f32 0.0, %v3855
        %v3857 = vpop.f32.mrb[0].mxu0
        %3858 = vmatprep.mubr.bf16.mxu0 0
        %3859 = vmatmul.mubr.bf16.gmra.mrb[0].mxu0 %v3769
        %v3860 = vpop.f32.mrb[0].mxu0
        %v3861 = vadd.f32 0.0, %v3860
        %v3862 = vpop.f32.mrb[0].mxu0
        %v3863 = vpop.f32.mrb[0].mxu0
        %v3864 = vadd.f32 0.0, %v3863
        %v3865 = vpop.f32.mrb[0].mxu0
        %3866 = vmatprep.mubr.bf16.mxu0 0
        %3867 = vmatmul.mubr.bf16.gmra.mrb[0].mxu0 %v3772
        %v3868 = vpop.f32.mrb[0].mxu0
        %v3869 = vadd.f32 0.0, %v3868
        %v3870 = vpop.f32.mrb[0].mxu0
        %v3871 = vpop.f32.mrb[0].mxu0
        %v3872 = vadd.f32 0.0, %v3871
        %v3873 = vpop.f32.mrb[0].mxu0
        %3874 = vmatprep.mubr.bf16.mxu0 0
        %3875 = vmatmul.mubr.bf16.gmra.mrb[0].mxu0 %v3775
        %v3876 = vpop.f32.mrb[0].mxu0
        %v3877 = vadd.f32 0.0, %v3876
        %v3878 = vpop.f32.mrb[0].mxu0
        %v3879 = vpop.f32.mrb[0].mxu0
        %v3880 = vadd.f32 0.0, %v3879
        %v3881 = vpop.f32.mrb[0].mxu0
        %3882 = vmatprep.mubr.bf16.mxu0 0
        %3883 = vmatmul.mubr.bf16.gmra.mrb[0].mxu0 %v3778
        %v3884 = vpop.f32.mrb[0].mxu0
        %v3885 = vadd.f32 0.0, %v3884
        %v3886 = vpop.f32.mrb[0].mxu0
        %v3887 = vpop.f32.mrb[0].mxu0
        %v3888 = vadd.f32 0.0, %v3887
        %v3889 = vpop.f32.mrb[0].mxu0
        %3890 = vmatprep.mubr.bf16.mxu0 0
        %3891 = vmatmul.mubr.bf16.gmra.mrb[0].mxu0 %v3781
        %v3892 = vpop.f32.mrb[0].mxu0
        %v3893 = vadd.f32 0.0, %v3892
        %v3894 = vpop.f32.mrb[0].mxu0
        %v3895 = vpop.f32.mrb[0].mxu0
        %v3896 = vadd.f32 0.0, %v3895
        %v3897 = vpop.f32.mrb[0].mxu0
        %3898 = vmatprep.mubr.bf16.mxu0 0
        %3899 = vmatmul.mubr.bf16.gmra.mrb[0].mxu0 %v3784
        %v3900 = vpop.f32.mrb[0].mxu0
        %v3901 = vadd.f32 0.0, %v3900
        %v3902 = vpop.f32.mrb[0].mxu0
        %v3903 = vpop.f32.mrb[0].mxu0
        %v3904 = vadd.f32 0.0, %v3903
        %v3905 = vpop.f32.mrb[0].mxu0
        %3906 = vmatprep.mubr.bf16.mxu0 0
        %3907 = vmatmul.mubr.bf16.gmra.mrb[0].mxu0 %v3787
        %v3908 = vpop.f32.mrb[0].mxu0
        %v3909 = vadd.f32 0.0, %v3908
        %v3910 = vpop.f32.mrb[0].mxu0
        %v3911 = vpop.f32.mrb[0].mxu0
        %v3912 = vadd.f32 0.0, %v3911
        %v3913 = vpop.f32.mrb[0].mxu0
        %3914 = vmatprep.mubr.bf16.mxu0 0
        %3915 = vmatmul.mubr.bf16.gmra.mrb[0].mxu0 %v3790
        %v3916 = vpop.f32.mrb[0].mxu0
        %v3917 = vadd.f32 0.0, %v3916
        %v3918 = vpop.f32.mrb[0].mxu0
        %v3919 = vpop.f32.mrb[0].mxu0
        %v3920 = vadd.f32 0.0, %v3919
        %v3921 = vpop.f32.mrb[0].mxu0
        %3922 = vmatprep.mubr.bf16.mxu0 0
        %3923 = vmatmul.mubr.bf16.gmra.mrb[0].mxu0 %v3793
        %v3924 = vpop.f32.mrb[0].mxu0
        %v3925 = vadd.f32 0.0, %v3924
        %v3926 = vpop.f32.mrb[0].mxu0
        %v3927 = vpop.f32.mrb[0].mxu0
        %v3928 = vadd.f32 0.0, %v3927
        %v3929 = vpop.f32.mrb[0].mxu0
        %3930 = vmatprep.mubr.bf16.mxu0 0
        %3931 = vmatmul.mubr.bf16.gmra.mrb[0].mxu0 %v3796
        %v3932 = vpop.f32.mrb[0].mxu0
        %v3933 = vadd.f32 0.0, %v3932
        %v3934 = vpop.f32.mrb[0].mxu0
        %v3935 = vpop.f32.mrb[0].mxu0
        %v3936 = vadd.f32 0.0, %v3935
        %v3937 = vpop.f32.mrb[0].mxu0
        %3938 = vmatprep.mubr.bf16.mxu0 0
        %3939 = vmatmul.mubr.bf16.gmra.mrb[0].mxu0 %v3799
        %v3940 = vpop.f32.mrb[0].mxu0
        %v3941 = vadd.f32 0.0, %v3940
        %v3942 = vpop.f32.mrb[0].mxu0
        %v3943 = vpop.f32.mrb[0].mxu0
        %v3944 = vadd.f32 0.0, %v3943
        %v3945 = vpop.f32.mrb[0].mxu0
        %3946 = vmatprep.mubr.bf16.mxu0 0
        %3947 = vmatmul.mubr.bf16.gmra.mrb[0].mxu0 %v3802
        %v3948 = vpop.f32.mrb[0].mxu0
        %v3949 = vadd.f32 0.0, %v3948
        %v3950 = vpop.f32.mrb[0].mxu0
        %v3951 = vpop.f32.mrb[0].mxu0
        %v3952 = vadd.f32 0.0, %v3951
        %v3953 = vpop.f32.mrb[0].mxu0
        %3954 = vmatprep.mubr.bf16.mxu0 0
        %3955 = vmatmul.mubr.bf16.gmra.mrb[0].mxu0 %v3805
        %v3956 = vpop.f32.mrb[0].mxu0
        %v3957 = vadd.f32 0.0, %v3956
        %v3958 = vpop.f32.mrb[0].mxu0
        %v3959 = vpop.f32.mrb[0].mxu0
        %v3960 = vadd.f32 0.0, %v3959
        %v3961 = vpop.f32.mrb[0].mxu0
        %3962 = vmatprep.mubr.bf16.mxu0 0
        %3963 = vmatmul.mubr.bf16.gmra.mrb[0].mxu0 %v3808
        %v3964 = vpop.f32.mrb[0].mxu0
        %v3965 = vadd.f32 0.0, %v3964
        %v3966 = vpop.f32.mrb[0].mxu0
        %v3967 = vpop.f32.mrb[0].mxu0
        %v3968 = vadd.f32 0.0, %v3967
        %v3969 = vpop.f32.mrb[0].mxu0
        %3970 = vdwg.mxu0
        %v3975 = vunpack.c.l.b16 %v3693
        %v3976 = vunpack.c.l.b16 %v3694
        %v3977 = vunpack.c.l.b16 %v3695
        %v3978 = vunpack.c.l.b16 %v3696
        %v3979 = vpack.c.b16 %v3976, %v3975
        %v3980 = vpack.c.b16 %v3978, %v3977
        %v3984 = vsel %vm772, %v3676, 0
        %v3987 = vsel %vm772, %v3677, 0
        %v3990 = vsel %vm772, %v3678, 0
        %v3993 = vsel %vm772, %v3679, 0
        %v3996 = vsel %vm772, %v3680, 0
        %v3999 = vsel %vm772, %v3681, 0
        %v4002 = vsel %vm772, %v3682, 0
        %v4005 = vsel %vm772, %v3683, 0
        %v4008 = vsel %vm772, %v3684, 0
        %v4011 = vsel %vm772, %v3685, 0
        %v4014 = vsel %vm772, %v3686, 0
        %v4017 = vsel %vm772, %v3687, 0
        %v4020 = vsel %vm772, %v3688, 0
        %v4023 = vsel %vm772, %v3689, 0
        %v4026 = vsel %vm772, %v3690, 0
        %v4029 = vsel %vm772, %v3691, 0
        %4031 = vmatprep.subr.bf16.mxu0 0
        %4032 = vmatpush1.bf16.msra.mxu0 %v3979
        %4033 = vmatprep.subr.bf16.mxu0 0
        %4034 = vmatpush1.bf16.msra.mxu0 %v3980
        %4035 = vmatprep.subr.bf16.mxu0 0
        %4036 = vmatpush1.bf16.msra.mxu0 0
        %4037 = vmatprep.subr.bf16.mxu0 0
        %4038 = vmatpush1.bf16.msra.mxu0 0
        %4039 = vmatprep.subr.bf16.mxu0 0
        %4040 = vmatpush1.bf16.msra.mxu0 0
        %4041 = vmatprep.subr.bf16.mxu0 0
        %4042 = vmatpush1.bf16.msra.mxu0 0
        %4043 = vmatprep.subr.bf16.mxu0 0
        %4044 = vmatpush1.bf16.msra.mxu0 0
        %4045 = vmatprep.subr.bf16.mxu0 0
        %4046 = vmatpush1.bf16.msra.mxu0 0
        %4047 = vmatprep.subr.bf16.mxu0 0
        %4048 = vmatpush1.bf16.msra.mxu0 0
        %4049 = vmatprep.subr.bf16.mxu0 0
        %4050 = vmatpush1.bf16.msra.mxu0 0
        %4051 = vmatprep.subr.bf16.mxu0 0
        %4052 = vmatpush1.bf16.msra.mxu0 0
        %4053 = vmatprep.subr.bf16.mxu0 0
        %4054 = vmatpush1.bf16.msra.mxu0 0
        %4055 = vmatprep.subr.bf16.mxu0 0
        %4056 = vmatpush1.bf16.msra.mxu0 0
        %4057 = vmatprep.subr.bf16.mxu0 0
        %4058 = vmatpush1.bf16.msra.mxu0 0
        %4059 = vmatprep.subr.bf16.mxu0 0
        %4060 = vmatpush1.bf16.msra.mxu0 0
        %4061 = vmatprep.subr.bf16.mxu0 0
        %4062 = vmatpush1.bf16.msra.mxu0 0
        %4063 = vmatprep.mubr.bf16.mxu0 0
        %4064 = vmatmul.mubr.bf16.gmra.mrb[0].mxu0 %v3984
        %v4065 = vpop.f32.mrb[0].mxu0
        %v4066 = vadd.f32 %v3845, %v4065
        %v4067 = vpop.f32.mrb[0].mxu0
        %v4068 = vpop.f32.mrb[0].mxu0
        %v4069 = vadd.f32 %v3848, %v4068
        %v4070 = vpop.f32.mrb[0].mxu0
        %4071 = vmatprep.mubr.bf16.mxu0 0
        %4072 = vmatmul.mubr.bf16.gmra.mrb[0].mxu0 %v3987
        %v4073 = vpop.f32.mrb[0].mxu0
        %v4074 = vadd.f32 %v3853, %v4073
        %v4075 = vpop.f32.mrb[0].mxu0
        %v4076 = vpop.f32.mrb[0].mxu0
        %v4077 = vadd.f32 %v3856, %v4076
        %v4078 = vpop.f32.mrb[0].mxu0
        %4079 = vmatprep.mubr.bf16.mxu0 0
        %4080 = vmatmul.mubr.bf16.gmra.mrb[0].mxu0 %v3990
        %v4081 = vpop.f32.mrb[0].mxu0
        %v4082 = vadd.f32 %v3861, %v4081
        %v4083 = vpop.f32.mrb[0].mxu0
        %v4084 = vpop.f32.mrb[0].mxu0
        %v4085 = vadd.f32 %v3864, %v4084
        %v4086 = vpop.f32.mrb[0].mxu0
        %4087 = vmatprep.mubr.bf16.mxu0 0
        %4088 = vmatmul.mubr.bf16.gmra.mrb[0].mxu0 %v3993
        %v4089 = vpop.f32.mrb[0].mxu0
        %v4090 = vadd.f32 %v3869, %v4089
        %v4091 = vpop.f32.mrb[0].mxu0
        %v4092 = vpop.f32.mrb[0].mxu0
        %v4093 = vadd.f32 %v3872, %v4092
        %v4094 = vpop.f32.mrb[0].mxu0
        %4095 = vmatprep.mubr.bf16.mxu0 0
        %4096 = vmatmul.mubr.bf16.gmra.mrb[0].mxu0 %v3996
        %v4097 = vpop.f32.mrb[0].mxu0
        %v4098 = vadd.f32 %v3877, %v4097
        %v4099 = vpop.f32.mrb[0].mxu0
        %v4100 = vpop.f32.mrb[0].mxu0
        %v4101 = vadd.f32 %v3880, %v4100
        %v4102 = vpop.f32.mrb[0].mxu0
        %4103 = vmatprep.mubr.bf16.mxu0 0
        %4104 = vmatmul.mubr.bf16.gmra.mrb[0].mxu0 %v3999
        %v4105 = vpop.f32.mrb[0].mxu0
        %v4106 = vadd.f32 %v3885, %v4105
        %v4107 = vpop.f32.mrb[0].mxu0
        %v4108 = vpop.f32.mrb[0].mxu0
        %v4109 = vadd.f32 %v3888, %v4108
        %v4110 = vpop.f32.mrb[0].mxu0
        %4111 = vmatprep.mubr.bf16.mxu0 0
        %4112 = vmatmul.mubr.bf16.gmra.mrb[0].mxu0 %v4002
        %v4113 = vpop.f32.mrb[0].mxu0
        %v4114 = vadd.f32 %v3893, %v4113
        %v4115 = vpop.f32.mrb[0].mxu0
        %v4116 = vpop.f32.mrb[0].mxu0
        %v4117 = vadd.f32 %v3896, %v4116
        %v4118 = vpop.f32.mrb[0].mxu0
        %4119 = vmatprep.mubr.bf16.mxu0 0
        %4120 = vmatmul.mubr.bf16.gmra.mrb[0].mxu0 %v4005
        %v4121 = vpop.f32.mrb[0].mxu0
        %v4122 = vadd.f32 %v3901, %v4121
        %v4123 = vpop.f32.mrb[0].mxu0
        %v4124 = vpop.f32.mrb[0].mxu0
        %v4125 = vadd.f32 %v3904, %v4124
        %v4126 = vpop.f32.mrb[0].mxu0
        %4127 = vmatprep.mubr.bf16.mxu0 0
        %4128 = vmatmul.mubr.bf16.gmra.mrb[0].mxu0 %v4008
        %v4129 = vpop.f32.mrb[0].mxu0
        %v4130 = vadd.f32 %v3909, %v4129
        %v4131 = vpop.f32.mrb[0].mxu0
        %v4132 = vpop.f32.mrb[0].mxu0
        %v4133 = vadd.f32 %v3912, %v4132
        %v4134 = vpop.f32.mrb[0].mxu0
        %4135 = vmatprep.mubr.bf16.mxu0 0
        %4136 = vmatmul.mubr.bf16.gmra.mrb[0].mxu0 %v4011
        %v4137 = vpop.f32.mrb[0].mxu0
        %v4138 = vadd.f32 %v3917, %v4137
        %v4139 = vpop.f32.mrb[0].mxu0
        %v4140 = vpop.f32.mrb[0].mxu0
        %v4141 = vadd.f32 %v3920, %v4140
        %v4142 = vpop.f32.mrb[0].mxu0
        %4143 = vmatprep.mubr.bf16.mxu0 0
        %4144 = vmatmul.mubr.bf16.gmra.mrb[0].mxu0 %v4014
        %v4145 = vpop.f32.mrb[0].mxu0
        %v4146 = vadd.f32 %v3925, %v4145
        %v4147 = vpop.f32.mrb[0].mxu0
        %v4148 = vpop.f32.mrb[0].mxu0
        %v4149 = vadd.f32 %v3928, %v4148
        %v4150 = vpop.f32.mrb[0].mxu0
        %4151 = vmatprep.mubr.bf16.mxu0 0
        %4152 = vmatmul.mubr.bf16.gmra.mrb[0].mxu0 %v4017
        %v4153 = vpop.f32.mrb[0].mxu0
        %v4154 = vadd.f32 %v3933, %v4153
        %v4155 = vpop.f32.mrb[0].mxu0
        %v4156 = vpop.f32.mrb[0].mxu0
        %v4157 = vadd.f32 %v3936, %v4156
        %v4158 = vpop.f32.mrb[0].mxu0
        %4159 = vmatprep.mubr.bf16.mxu0 0
        %4160 = vmatmul.mubr.bf16.gmra.mrb[0].mxu0 %v4020
        %v4161 = vpop.f32.mrb[0].mxu0
        %v4162 = vadd.f32 %v3941, %v4161
        %v4163 = vpop.f32.mrb[0].mxu0
        %v4164 = vpop.f32.mrb[0].mxu0
        %v4165 = vadd.f32 %v3944, %v4164
        %v4166 = vpop.f32.mrb[0].mxu0
        %4167 = vmatprep.mubr.bf16.mxu0 0
        %4168 = vmatmul.mubr.bf16.gmra.mrb[0].mxu0 %v4023
        %v4169 = vpop.f32.mrb[0].mxu0
        %v4170 = vadd.f32 %v3949, %v4169
        %v4171 = vpop.f32.mrb[0].mxu0
        %v4172 = vpop.f32.mrb[0].mxu0
        %v4173 = vadd.f32 %v3952, %v4172
        %v4174 = vpop.f32.mrb[0].mxu0
        %4175 = vmatprep.mubr.bf16.mxu0 0
        %4176 = vmatmul.mubr.bf16.gmra.mrb[0].mxu0 %v4026
        %v4177 = vpop.f32.mrb[0].mxu0
        %v4178 = vadd.f32 %v3957, %v4177
        %v4179 = vpop.f32.mrb[0].mxu0
        %v4180 = vpop.f32.mrb[0].mxu0
        %v4181 = vadd.f32 %v3960, %v4180
        %v4182 = vpop.f32.mrb[0].mxu0
        %4183 = vmatprep.mubr.bf16.mxu0 0
        %4184 = vmatmul.mubr.bf16.gmra.mrb[0].mxu0 %v4029
        %v4185 = vpop.f32.mrb[0].mxu0
        %v4186 = vadd.f32 %v3965, %v4185
        %v4187 = vpop.f32.mrb[0].mxu0
        %v4188 = vpop.f32.mrb[0].mxu0
        %v4189 = vadd.f32 %v3968, %v4188
        %v4190 = vpop.f32.mrb[0].mxu0
        %4191 = vdwg.mxu0
        %v4192 = vld [vmem:[#allocation2 + $0x2] sm:$0xff]
        %v4193 = vld [vmem:[#allocation2 + $0xa] sm:$0xff]
        %v4194 = vld [vmem:[#allocation2 + $0x1a] sm:$0xff]
        %v4195 = vld [vmem:[#allocation2 + $0x22] sm:$0xff]
        %v4196 = vld [vmem:[#allocation2 + $0x32] sm:$0xff]
        %v4197 = vld [vmem:[#allocation2 + $0x3a] sm:$0xff]
        %v4198 = vld [vmem:[#allocation2 + $0x4a] sm:$0xff]
        %v4199 = vld [vmem:[#allocation2 + $0x52] sm:$0xff]
        %v4200 = vld [vmem:[#allocation2 + $0x62] sm:$0xff]
        %v4201 = vld [vmem:[#allocation2 + $0x6a] sm:$0xff]
        %v4202 = vld [vmem:[#allocation2 + $0x7a] sm:$0xff]
        %v4203 = vld [vmem:[#allocation2 + $0x82] sm:$0xff]
        %v4204 = vld [vmem:[#allocation2 + $0x92] sm:$0xff]
        %v4205 = vld [vmem:[#allocation2 + $0x9a] sm:$0xff]
        %v4206 = vld [vmem:[#allocation2 + $0xaa] sm:$0xff]
        %v4207 = vld [vmem:[#allocation2 + $0xb2] sm:$0xff]
        %v4208 = vld [vmem:[#allocation2 + $0xc2] sm:$0xff]
        %v4209 = vld [vmem:[#allocation2 + $0xca] sm:$0xff]
        %v4210 = vld [vmem:[#allocation2 + $0xda] sm:$0xff]
        %v4211 = vld [vmem:[#allocation2 + $0xe2] sm:$0xff]
        %v4212 = vld [vmem:[#allocation2 + $0xf2] sm:$0xff]
        %v4213 = vld [vmem:[#allocation2 + $0xfa] sm:$0xff]
        %v4214 = vld [vmem:[#allocation2 + $0x10a] sm:$0xff]
        %v4215 = vld [vmem:[#allocation2 + $0x112] sm:$0xff]
        %v4216 = vld [vmem:[#allocation2 + $0x122] sm:$0xff]
        %v4217 = vld [vmem:[#allocation2 + $0x12a] sm:$0xff]
        %v4218 = vld [vmem:[#allocation2 + $0x13a] sm:$0xff]
        %v4219 = vld [vmem:[#allocation2 + $0x142] sm:$0xff]
        %v4220 = vld [vmem:[#allocation2 + $0x152] sm:$0xff]
        %v4221 = vld [vmem:[#allocation2 + $0x15a] sm:$0xff]
        %v4222 = vld [vmem:[#allocation2 + $0x16a] sm:$0xff]
        %v4223 = vld [vmem:[#allocation2 + $0x172] sm:$0xff]
        %v4224 = vpack.c.bf16 %v4193, %v4192
        %v4225 = vpack.c.bf16 %v4195, %v4194
        %v4226 = vpack.c.bf16 %v4197, %v4196
        %v4227 = vpack.c.bf16 %v4199, %v4198
        %v4228 = vpack.c.bf16 %v4201, %v4200
        %v4229 = vpack.c.bf16 %v4203, %v4202
        %v4230 = vpack.c.bf16 %v4205, %v4204
        %v4231 = vpack.c.bf16 %v4207, %v4206
        %v4232 = vpack.c.bf16 %v4209, %v4208
        %v4233 = vpack.c.bf16 %v4211, %v4210
        %v4234 = vpack.c.bf16 %v4213, %v4212
        %v4235 = vpack.c.bf16 %v4215, %v4214
        %v4236 = vpack.c.bf16 %v4217, %v4216
        %v4237 = vpack.c.bf16 %v4219, %v4218
        %v4238 = vpack.c.bf16 %v4221, %v4220
        %v4239 = vpack.c.bf16 %v4223, %v4222
        %s4240 = scalar_lea.vmem %s3, 176
        %v4241 = vld [vmem:[%s4240] sm:$0xf]
        %v4242 = vld [vmem:[%s4240 + $0x4] sm:$0xf]
        %v4243 = vld [vmem:[%s4240 + $0x8] sm:$0xf]
        %v4244 = vld [vmem:[%s4240 + $0xc] sm:$0xf]
        %v4249 = vunpack.c.l.b16 %v4241
        %v4250 = vunpack.c.l.b16 %v4242
        %v4251 = vunpack.c.l.b16 %v4243
        %v4252 = vunpack.c.l.b16 %v4244
        %v4253 = vpack.c.b16 %v4250, %v4249
        %v4254 = vpack.c.b16 %v4252, %v4251
        %v4258 = vsel %vm772, %v4224, 0
        %v4261 = vsel %vm772, %v4225, 0
        %v4264 = vsel %vm772, %v4226, 0
        %v4267 = vsel %vm772, %v4227, 0
        %v4270 = vsel %vm772, %v4228, 0
        %v4273 = vsel %vm772, %v4229, 0
        %v4276 = vsel %vm772, %v4230, 0
        %v4279 = vsel %vm772, %v4231, 0
        %v4282 = vsel %vm772, %v4232, 0
        %v4285 = vsel %vm772, %v4233, 0
        %v4288 = vsel %vm772, %v4234, 0
        %v4291 = vsel %vm772, %v4235, 0
        %v4294 = vsel %vm772, %v4236, 0
        %v4297 = vsel %vm772, %v4237, 0
        %v4300 = vsel %vm772, %v4238, 0
        %v4303 = vsel %vm772, %v4239, 0
        %4305 = vmatprep.subr.bf16.mxu0 0
        %4306 = vmatpush1.bf16.msra.mxu0 %v4253
        %4307 = vmatprep.subr.bf16.mxu0 0
        %4308 = vmatpush1.bf16.msra.mxu0 %v4254
        %4309 = vmatprep.subr.bf16.mxu0 0
        %4310 = vmatpush1.bf16.msra.mxu0 0
        %4311 = vmatprep.subr.bf16.mxu0 0
        %4312 = vmatpush1.bf16.msra.mxu0 0
        %4313 = vmatprep.subr.bf16.mxu0 0
        %4314 = vmatpush1.bf16.msra.mxu0 0
        %4315 = vmatprep.subr.bf16.mxu0 0
        %4316 = vmatpush1.bf16.msra.mxu0 0
        %4317 = vmatprep.subr.bf16.mxu0 0
        %4318 = vmatpush1.bf16.msra.mxu0 0
        %4319 = vmatprep.subr.bf16.mxu0 0
        %4320 = vmatpush1.bf16.msra.mxu0 0
        %4321 = vmatprep.subr.bf16.mxu0 0
        %4322 = vmatpush1.bf16.msra.mxu0 0
        %4323 = vmatprep.subr.bf16.mxu0 0
        %4324 = vmatpush1.bf16.msra.mxu0 0
        %4325 = vmatprep.subr.bf16.mxu0 0
        %4326 = vmatpush1.bf16.msra.mxu0 0
        %4327 = vmatprep.subr.bf16.mxu0 0
        %4328 = vmatpush1.bf16.msra.mxu0 0
        %4329 = vmatprep.subr.bf16.mxu0 0
        %4330 = vmatpush1.bf16.msra.mxu0 0
        %4331 = vmatprep.subr.bf16.mxu0 0
        %4332 = vmatpush1.bf16.msra.mxu0 0
        %4333 = vmatprep.subr.bf16.mxu0 0
        %4334 = vmatpush1.bf16.msra.mxu0 0
        %4335 = vmatprep.subr.bf16.mxu0 0
        %4336 = vmatpush1.bf16.msra.mxu0 0
        %4337 = vmatprep.mubr.bf16.mxu0 0
        %4338 = vmatmul.mubr.bf16.gmra.mrb[0].mxu0 %v4258
        %v4339 = vpop.f32.mrb[0].mxu0
        %v4340 = vadd.f32 0.0, %v4339
        %v4341 = vpop.f32.mrb[0].mxu0
        %v4342 = vpop.f32.mrb[0].mxu0
        %v4343 = vadd.f32 0.0, %v4342
        %v4344 = vpop.f32.mrb[0].mxu0
        %4345 = vmatprep.mubr.bf16.mxu0 0
        %4346 = vmatmul.mubr.bf16.gmra.mrb[0].mxu0 %v4261
        %v4347 = vpop.f32.mrb[0].mxu0
        %v4348 = vadd.f32 0.0, %v4347
        %v4349 = vpop.f32.mrb[0].mxu0
        %v4350 = vpop.f32.mrb[0].mxu0
        %v4351 = vadd.f32 0.0, %v4350
        %v4352 = vpop.f32.mrb[0].mxu0
        %4353 = vmatprep.mubr.bf16.mxu0 0
        %4354 = vmatmul.mubr.bf16.gmra.mrb[0].mxu0 %v4264
        %v4355 = vpop.f32.mrb[0].mxu0
        %v4356 = vadd.f32 0.0, %v4355
        %v4357 = vpop.f32.mrb[0].mxu0
        %v4358 = vpop.f32.mrb[0].mxu0
        %v4359 = vadd.f32 0.0, %v4358
        %v4360 = vpop.f32.mrb[0].mxu0
        %4361 = vmatprep.mubr.bf16.mxu0 0
        %4362 = vmatmul.mubr.bf16.gmra.mrb[0].mxu0 %v4267
        %v4363 = vpop.f32.mrb[0].mxu0
        %v4364 = vadd.f32 0.0, %v4363
        %v4365 = vpop.f32.mrb[0].mxu0
        %v4366 = vpop.f32.mrb[0].mxu0
        %v4367 = vadd.f32 0.0, %v4366
        %v4368 = vpop.f32.mrb[0].mxu0
        %4369 = vmatprep.mubr.bf16.mxu0 0
        %4370 = vmatmul.mubr.bf16.gmra.mrb[0].mxu0 %v4270
        %v4371 = vpop.f32.mrb[0].mxu0
        %v4372 = vadd.f32 0.0, %v4371
        %v4373 = vpop.f32.mrb[0].mxu0
        %v4374 = vpop.f32.mrb[0].mxu0
        %v4375 = vadd.f32 0.0, %v4374
        %v4376 = vpop.f32.mrb[0].mxu0
        %4377 = vmatprep.mubr.bf16.mxu0 0
        %4378 = vmatmul.mubr.bf16.gmra.mrb[0].mxu0 %v4273
        %v4379 = vpop.f32.mrb[0].mxu0
        %v4380 = vadd.f32 0.0, %v4379
        %v4381 = vpop.f32.mrb[0].mxu0
        %v4382 = vpop.f32.mrb[0].mxu0
        %v4383 = vadd.f32 0.0, %v4382
        %v4384 = vpop.f32.mrb[0].mxu0
        %4385 = vmatprep.mubr.bf16.mxu0 0
        %4386 = vmatmul.mubr.bf16.gmra.mrb[0].mxu0 %v4276
        %v4387 = vpop.f32.mrb[0].mxu0
        %v4388 = vadd.f32 0.0, %v4387
        %v4389 = vpop.f32.mrb[0].mxu0
        %v4390 = vpop.f32.mrb[0].mxu0
        %v4391 = vadd.f32 0.0, %v4390
        %v4392 = vpop.f32.mrb[0].mxu0
        %4393 = vmatprep.mubr.bf16.mxu0 0
        %4394 = vmatmul.mubr.bf16.gmra.mrb[0].mxu0 %v4279
        %v4395 = vpop.f32.mrb[0].mxu0
        %v4396 = vadd.f32 0.0, %v4395
        %v4397 = vpop.f32.mrb[0].mxu0
        %v4398 = vpop.f32.mrb[0].mxu0
        %v4399 = vadd.f32 0.0, %v4398
        %v4400 = vpop.f32.mrb[0].mxu0
        %4401 = vmatprep.mubr.bf16.mxu0 0
        %4402 = vmatmul.mubr.bf16.gmra.mrb[0].mxu0 %v4282
        %v4403 = vpop.f32.mrb[0].mxu0
        %v4404 = vadd.f32 0.0, %v4403
        %v4405 = vpop.f32.mrb[0].mxu0
        %v4406 = vpop.f32.mrb[0].mxu0
        %v4407 = vadd.f32 0.0, %v4406
        %v4408 = vpop.f32.mrb[0].mxu0
        %4409 = vmatprep.mubr.bf16.mxu0 0
        %4410 = vmatmul.mubr.bf16.gmra.mrb[0].mxu0 %v4285
        %v4411 = vpop.f32.mrb[0].mxu0
        %v4412 = vadd.f32 0.0, %v4411
        %v4413 = vpop.f32.mrb[0].mxu0
        %v4414 = vpop.f32.mrb[0].mxu0
        %v4415 = vadd.f32 0.0, %v4414
        %v4416 = vpop.f32.mrb[0].mxu0
        %4417 = vmatprep.mubr.bf16.mxu0 0
        %4418 = vmatmul.mubr.bf16.gmra.mrb[0].mxu0 %v4288
        %v4419 = vpop.f32.mrb[0].mxu0
        %v4420 = vadd.f32 0.0, %v4419
        %v4421 = vpop.f32.mrb[0].mxu0
        %v4422 = vpop.f32.mrb[0].mxu0
        %v4423 = vadd.f32 0.0, %v4422
        %v4424 = vpop.f32.mrb[0].mxu0
        %4425 = vmatprep.mubr.bf16.mxu0 0
        %4426 = vmatmul.mubr.bf16.gmra.mrb[0].mxu0 %v4291
        %v4427 = vpop.f32.mrb[0].mxu0
        %v4428 = vadd.f32 0.0, %v4427
        %v4429 = vpop.f32.mrb[0].mxu0
        %v4430 = vpop.f32.mrb[0].mxu0
        %v4431 = vadd.f32 0.0, %v4430
        %v4432 = vpop.f32.mrb[0].mxu0
        %4433 = vmatprep.mubr.bf16.mxu0 0
        %4434 = vmatmul.mubr.bf16.gmra.mrb[0].mxu0 %v4294
        %v4435 = vpop.f32.mrb[0].mxu0
        %v4436 = vadd.f32 0.0, %v4435
        %v4437 = vpop.f32.mrb[0].mxu0
        %v4438 = vpop.f32.mrb[0].mxu0
        %v4439 = vadd.f32 0.0, %v4438
        %v4440 = vpop.f32.mrb[0].mxu0
        %4441 = vmatprep.mubr.bf16.mxu0 0
        %4442 = vmatmul.mubr.bf16.gmra.mrb[0].mxu0 %v4297
        %v4443 = vpop.f32.mrb[0].mxu0
        %v4444 = vadd.f32 0.0, %v4443
        %v4445 = vpop.f32.mrb[0].mxu0
        %v4446 = vpop.f32.mrb[0].mxu0
        %v4447 = vadd.f32 0.0, %v4446
        %v4448 = vpop.f32.mrb[0].mxu0
        %4449 = vmatprep.mubr.bf16.mxu0 0
        %4450 = vmatmul.mubr.bf16.gmra.mrb[0].mxu0 %v4300
        %v4451 = vpop.f32.mrb[0].mxu0
        %v4452 = vadd.f32 0.0, %v4451
        %v4453 = vpop.f32.mrb[0].mxu0
        %v4454 = vpop.f32.mrb[0].mxu0
        %v4455 = vadd.f32 0.0, %v4454
        %v4456 = vpop.f32.mrb[0].mxu0
        %4457 = vmatprep.mubr.bf16.mxu0 0
        %4458 = vmatmul.mubr.bf16.gmra.mrb[0].mxu0 %v4303
        %v4459 = vpop.f32.mrb[0].mxu0
        %v4460 = vadd.f32 0.0, %v4459
        %v4461 = vpop.f32.mrb[0].mxu0
        %v4462 = vpop.f32.mrb[0].mxu0
        %v4463 = vadd.f32 0.0, %v4462
        %v4464 = vpop.f32.mrb[0].mxu0
        %4465 = vdwg.mxu0
        %v4466 = vadd.f32 %v4066, %v4340
        %v4467 = vadd.f32 %v4069, %v4343
        %v4468 = vadd.f32 %v4074, %v4348
        %v4469 = vadd.f32 %v4077, %v4351
        %v4470 = vadd.f32 %v4082, %v4356
        %v4471 = vadd.f32 %v4085, %v4359
        %v4472 = vadd.f32 %v4090, %v4364
        %v4473 = vadd.f32 %v4093, %v4367
        %v4474 = vadd.f32 %v4098, %v4372
        %v4475 = vadd.f32 %v4101, %v4375
        %v4476 = vadd.f32 %v4106, %v4380
        %v4477 = vadd.f32 %v4109, %v4383
        %v4478 = vadd.f32 %v4114, %v4388
        %v4479 = vadd.f32 %v4117, %v4391
        %v4480 = vadd.f32 %v4122, %v4396
        %v4481 = vadd.f32 %v4125, %v4399
        %v4482 = vadd.f32 %v4130, %v4404
        %v4483 = vadd.f32 %v4133, %v4407
        %v4484 = vadd.f32 %v4138, %v4412
        %v4485 = vadd.f32 %v4141, %v4415
        %v4486 = vadd.f32 %v4146, %v4420
        %v4487 = vadd.f32 %v4149, %v4423
        %v4488 = vadd.f32 %v4154, %v4428
        %v4489 = vadd.f32 %v4157, %v4431
        %v4490 = vadd.f32 %v4162, %v4436
        %v4491 = vadd.f32 %v4165, %v4439
        %v4492 = vadd.f32 %v4170, %v4444
        %v4493 = vadd.f32 %v4173, %v4447
        %v4494 = vadd.f32 %v4178, %v4452
        %v4495 = vadd.f32 %v4181, %v4455
        %v4496 = vadd.f32 %v4186, %v4460
        %v4497 = vadd.f32 %v4189, %v4463
        %v4498 = vld [vmem:[%s818] sm:$0xff]
        %v4499 = vld [vmem:[%s818 + $0x8] sm:$0xff]
        %v4500 = vld [vmem:[%s818 + $0x18] sm:$0xff]
        %v4501 = vld [vmem:[%s818 + $0x20] sm:$0xff]
        %v4502 = vld [vmem:[%s818 + $0x30] sm:$0xff]
        %v4503 = vld [vmem:[%s818 + $0x38] sm:$0xff]
        %v4504 = vld [vmem:[%s818 + $0x48] sm:$0xff]
        %v4505 = vld [vmem:[%s818 + $0x50] sm:$0xff]
        %v4506 = vld [vmem:[%s818 + $0x60] sm:$0xff]
        %v4507 = vld [vmem:[%s818 + $0x68] sm:$0xff]
        %v4508 = vld [vmem:[%s818 + $0x78] sm:$0xff]
        %v4509 = vld [vmem:[%s818 + $0x80] sm:$0xff]
        %v4510 = vld [vmem:[%s818 + $0x90] sm:$0xff]
        %v4511 = vld [vmem:[%s818 + $0x98] sm:$0xff]
        %v4512 = vld [vmem:[%s818 + $0xa8] sm:$0xff]
        %v4513 = vld [vmem:[%s818 + $0xb0] sm:$0xff]
        %v4514 = vld [vmem:[%s818 + $0xc0] sm:$0xff]
        %v4515 = vld [vmem:[%s818 + $0xc8] sm:$0xff]
        %v4516 = vld [vmem:[%s818 + $0xd8] sm:$0xff]
        %v4517 = vld [vmem:[%s818 + $0xe0] sm:$0xff]
        %v4518 = vld [vmem:[%s818 + $0xf0] sm:$0xff]
        %v4519 = vld [vmem:[%s818 + $0xf8] sm:$0xff]
        %v4520 = vld [vmem:[%s818 + $0x108] sm:$0xff]
        %v4521 = vld [vmem:[%s818 + $0x110] sm:$0xff]
        %v4522 = vld [vmem:[%s818 + $0x120] sm:$0xff]
        %v4523 = vld [vmem:[%s818 + $0x128] sm:$0xff]
        %v4524 = vld [vmem:[%s818 + $0x138] sm:$0xff]
        %v4525 = vld [vmem:[%s818 + $0x140] sm:$0xff]
        %v4526 = vld [vmem:[%s818 + $0x150] sm:$0xff]
        %v4527 = vld [vmem:[%s818 + $0x158] sm:$0xff]
        %v4528 = vld [vmem:[%s818 + $0x168] sm:$0xff]
        %v4529 = vld [vmem:[%s818 + $0x170] sm:$0xff]
        %v4530 = vpack.c.bf16 %v4499, %v4498
        %v4531 = vpack.c.bf16 %v4501, %v4500
        %v4532 = vpack.c.bf16 %v4503, %v4502
        %v4533 = vpack.c.bf16 %v4505, %v4504
        %v4534 = vpack.c.bf16 %v4507, %v4506
        %v4535 = vpack.c.bf16 %v4509, %v4508
        %v4536 = vpack.c.bf16 %v4511, %v4510
        %v4537 = vpack.c.bf16 %v4513, %v4512
        %v4538 = vpack.c.bf16 %v4515, %v4514
        %v4539 = vpack.c.bf16 %v4517, %v4516
        %v4540 = vpack.c.bf16 %v4519, %v4518
        %v4541 = vpack.c.bf16 %v4521, %v4520
        %v4542 = vpack.c.bf16 %v4523, %v4522
        %v4543 = vpack.c.bf16 %v4525, %v4524
        %v4544 = vpack.c.bf16 %v4527, %v4526
        %v4545 = vpack.c.bf16 %v4529, %v4528
        %s4546 = scalar_lea.vmem %s3, 192
        %v4547 = vld [vmem:[%s4546] sm:$0xf]
        %v4548 = vld [vmem:[%s4546 + $0x4] sm:$0xf]
        %v4549 = vld [vmem:[%s4546 + $0x8] sm:$0xf]
        %v4550 = vld [vmem:[%s4546 + $0xc] sm:$0xf]
        %v4555 = vunpack.c.l.b16 %v4547
        %v4556 = vunpack.c.l.b16 %v4548
        %v4557 = vunpack.c.l.b16 %v4549
        %v4558 = vunpack.c.l.b16 %v4550
        %v4559 = vpack.c.b16 %v4556, %v4555
        %v4560 = vpack.c.b16 %v4558, %v4557
        %v4564 = vsel %vm772, %v4530, 0
        %v4567 = vsel %vm772, %v4531, 0
        %v4570 = vsel %vm772, %v4532, 0
        %v4573 = vsel %vm772, %v4533, 0
        %v4576 = vsel %vm772, %v4534, 0
        %v4579 = vsel %vm772, %v4535, 0
        %v4582 = vsel %vm772, %v4536, 0
        %v4585 = vsel %vm772, %v4537, 0
        %v4588 = vsel %vm772, %v4538, 0
        %v4591 = vsel %vm772, %v4539, 0
        %v4594 = vsel %vm772, %v4540, 0
        %v4597 = vsel %vm772, %v4541, 0
        %v4600 = vsel %vm772, %v4542, 0
        %v4603 = vsel %vm772, %v4543, 0
        %v4606 = vsel %vm772, %v4544, 0
        %v4609 = vsel %vm772, %v4545, 0
        %4611 = vmatprep.subr.bf16.mxu0 0
        %4612 = vmatpush1.bf16.msra.mxu0 %v4559
        %4613 = vmatprep.subr.bf16.mxu0 0
        %4614 = vmatpush1.bf16.msra.mxu0 %v4560
        %4615 = vmatprep.subr.bf16.mxu0 0
        %4616 = vmatpush1.bf16.msra.mxu0 0
        %4617 = vmatprep.subr.bf16.mxu0 0
        %4618 = vmatpush1.bf16.msra.mxu0 0
        %4619 = vmatprep.subr.bf16.mxu0 0
        %4620 = vmatpush1.bf16.msra.mxu0 0
        %4621 = vmatprep.subr.bf16.mxu0 0
        %4622 = vmatpush1.bf16.msra.mxu0 0
        %4623 = vmatprep.subr.bf16.mxu0 0
        %4624 = vmatpush1.bf16.msra.mxu0 0
        %4625 = vmatprep.subr.bf16.mxu0 0
        %4626 = vmatpush1.bf16.msra.mxu0 0
        %4627 = vmatprep.subr.bf16.mxu0 0
        %4628 = vmatpush1.bf16.msra.mxu0 0
        %4629 = vmatprep.subr.bf16.mxu0 0
        %4630 = vmatpush1.bf16.msra.mxu0 0
        %4631 = vmatprep.subr.bf16.mxu0 0
        %4632 = vmatpush1.bf16.msra.mxu0 0
        %4633 = vmatprep.subr.bf16.mxu0 0
        %4634 = vmatpush1.bf16.msra.mxu0 0
        %4635 = vmatprep.subr.bf16.mxu0 0
        %4636 = vmatpush1.bf16.msra.mxu0 0
        %4637 = vmatprep.subr.bf16.mxu0 0
        %4638 = vmatpush1.bf16.msra.mxu0 0
        %4639 = vmatprep.subr.bf16.mxu0 0
        %4640 = vmatpush1.bf16.msra.mxu0 0
        %4641 = vmatprep.subr.bf16.mxu0 0
        %4642 = vmatpush1.bf16.msra.mxu0 0
        %4643 = vmatprep.mubr.bf16.mxu0 0
        %4644 = vmatmul.mubr.bf16.gmra.mrb[0].mxu0 %v4564
        %v4645 = vpop.f32.mrb[0].mxu0
        %v4646 = vadd.f32 0.0, %v4645
        %v4647 = vpop.f32.mrb[0].mxu0
        %v4648 = vpop.f32.mrb[0].mxu0
        %v4649 = vadd.f32 0.0, %v4648
        %v4650 = vpop.f32.mrb[0].mxu0
        %4651 = vmatprep.mubr.bf16.mxu0 0
        %4652 = vmatmul.mubr.bf16.gmra.mrb[0].mxu0 %v4567
        %v4653 = vpop.f32.mrb[0].mxu0
        %v4654 = vadd.f32 0.0, %v4653
        %v4655 = vpop.f32.mrb[0].mxu0
        %v4656 = vpop.f32.mrb[0].mxu0
        %v4657 = vadd.f32 0.0, %v4656
        %v4658 = vpop.f32.mrb[0].mxu0
        %4659 = vmatprep.mubr.bf16.mxu0 0
        %4660 = vmatmul.mubr.bf16.gmra.mrb[0].mxu0 %v4570
        %v4661 = vpop.f32.mrb[0].mxu0
        %v4662 = vadd.f32 0.0, %v4661
        %v4663 = vpop.f32.mrb[0].mxu0
        %v4664 = vpop.f32.mrb[0].mxu0
        %v4665 = vadd.f32 0.0, %v4664
        %v4666 = vpop.f32.mrb[0].mxu0
        %4667 = vmatprep.mubr.bf16.mxu0 0
        %4668 = vmatmul.mubr.bf16.gmra.mrb[0].mxu0 %v4573
        %v4669 = vpop.f32.mrb[0].mxu0
        %v4670 = vadd.f32 0.0, %v4669
        %v4671 = vpop.f32.mrb[0].mxu0
        %v4672 = vpop.f32.mrb[0].mxu0
        %v4673 = vadd.f32 0.0, %v4672
        %v4674 = vpop.f32.mrb[0].mxu0
        %4675 = vmatprep.mubr.bf16.mxu0 0
        %4676 = vmatmul.mubr.bf16.gmra.mrb[0].mxu0 %v4576
        %v4677 = vpop.f32.mrb[0].mxu0
        %v4678 = vadd.f32 0.0, %v4677
        %v4679 = vpop.f32.mrb[0].mxu0
        %v4680 = vpop.f32.mrb[0].mxu0
        %v4681 = vadd.f32 0.0, %v4680
        %v4682 = vpop.f32.mrb[0].mxu0
        %4683 = vmatprep.mubr.bf16.mxu0 0
        %4684 = vmatmul.mubr.bf16.gmra.mrb[0].mxu0 %v4579
        %v4685 = vpop.f32.mrb[0].mxu0
        %v4686 = vadd.f32 0.0, %v4685
        %v4687 = vpop.f32.mrb[0].mxu0
        %v4688 = vpop.f32.mrb[0].mxu0
        %v4689 = vadd.f32 0.0, %v4688
        %v4690 = vpop.f32.mrb[0].mxu0
        %4691 = vmatprep.mubr.bf16.mxu0 0
        %4692 = vmatmul.mubr.bf16.gmra.mrb[0].mxu0 %v4582
        %v4693 = vpop.f32.mrb[0].mxu0
        %v4694 = vadd.f32 0.0, %v4693
        %v4695 = vpop.f32.mrb[0].mxu0
        %v4696 = vpop.f32.mrb[0].mxu0
        %v4697 = vadd.f32 0.0, %v4696
        %v4698 = vpop.f32.mrb[0].mxu0
        %4699 = vmatprep.mubr.bf16.mxu0 0
        %4700 = vmatmul.mubr.bf16.gmra.mrb[0].mxu0 %v4585
        %v4701 = vpop.f32.mrb[0].mxu0
        %v4702 = vadd.f32 0.0, %v4701
        %v4703 = vpop.f32.mrb[0].mxu0
        %v4704 = vpop.f32.mrb[0].mxu0
        %v4705 = vadd.f32 0.0, %v4704
        %v4706 = vpop.f32.mrb[0].mxu0
        %4707 = vmatprep.mubr.bf16.mxu0 0
        %4708 = vmatmul.mubr.bf16.gmra.mrb[0].mxu0 %v4588
        %v4709 = vpop.f32.mrb[0].mxu0
        %v4710 = vadd.f32 0.0, %v4709
        %v4711 = vpop.f32.mrb[0].mxu0
        %v4712 = vpop.f32.mrb[0].mxu0
        %v4713 = vadd.f32 0.0, %v4712
        %v4714 = vpop.f32.mrb[0].mxu0
        %4715 = vmatprep.mubr.bf16.mxu0 0
        %4716 = vmatmul.mubr.bf16.gmra.mrb[0].mxu0 %v4591
        %v4717 = vpop.f32.mrb[0].mxu0
        %v4718 = vadd.f32 0.0, %v4717
        %v4719 = vpop.f32.mrb[0].mxu0
        %v4720 = vpop.f32.mrb[0].mxu0
        %v4721 = vadd.f32 0.0, %v4720
        %v4722 = vpop.f32.mrb[0].mxu0
        %4723 = vmatprep.mubr.bf16.mxu0 0
        %4724 = vmatmul.mubr.bf16.gmra.mrb[0].mxu0 %v4594
        %v4725 = vpop.f32.mrb[0].mxu0
        %v4726 = vadd.f32 0.0, %v4725
        %v4727 = vpop.f32.mrb[0].mxu0
        %v4728 = vpop.f32.mrb[0].mxu0
        %v4729 = vadd.f32 0.0, %v4728
        %v4730 = vpop.f32.mrb[0].mxu0
        %4731 = vmatprep.mubr.bf16.mxu0 0
        %4732 = vmatmul.mubr.bf16.gmra.mrb[0].mxu0 %v4597
        %v4733 = vpop.f32.mrb[0].mxu0
        %v4734 = vadd.f32 0.0, %v4733
        %v4735 = vpop.f32.mrb[0].mxu0
        %v4736 = vpop.f32.mrb[0].mxu0
        %v4737 = vadd.f32 0.0, %v4736
        %v4738 = vpop.f32.mrb[0].mxu0
        %4739 = vmatprep.mubr.bf16.mxu0 0
        %4740 = vmatmul.mubr.bf16.gmra.mrb[0].mxu0 %v4600
        %v4741 = vpop.f32.mrb[0].mxu0
        %v4742 = vadd.f32 0.0, %v4741
        %v4743 = vpop.f32.mrb[0].mxu0
        %v4744 = vpop.f32.mrb[0].mxu0
        %v4745 = vadd.f32 0.0, %v4744
        %v4746 = vpop.f32.mrb[0].mxu0
        %4747 = vmatprep.mubr.bf16.mxu0 0
        %4748 = vmatmul.mubr.bf16.gmra.mrb[0].mxu0 %v4603
        %v4749 = vpop.f32.mrb[0].mxu0
        %v4750 = vadd.f32 0.0, %v4749
        %v4751 = vpop.f32.mrb[0].mxu0
        %v4752 = vpop.f32.mrb[0].mxu0
        %v4753 = vadd.f32 0.0, %v4752
        %v4754 = vpop.f32.mrb[0].mxu0
        %4755 = vmatprep.mubr.bf16.mxu0 0
        %4756 = vmatmul.mubr.bf16.gmra.mrb[0].mxu0 %v4606
        %v4757 = vpop.f32.mrb[0].mxu0
        %v4758 = vadd.f32 0.0, %v4757
        %v4759 = vpop.f32.mrb[0].mxu0
        %v4760 = vpop.f32.mrb[0].mxu0
        %v4761 = vadd.f32 0.0, %v4760
        %v4762 = vpop.f32.mrb[0].mxu0
        %4763 = vmatprep.mubr.bf16.mxu0 0
        %4764 = vmatmul.mubr.bf16.gmra.mrb[0].mxu0 %v4609
        %v4765 = vpop.f32.mrb[0].mxu0
        %v4766 = vadd.f32 0.0, %v4765
        %v4767 = vpop.f32.mrb[0].mxu0
        %v4768 = vpop.f32.mrb[0].mxu0
        %v4769 = vadd.f32 0.0, %v4768
        %v4770 = vpop.f32.mrb[0].mxu0
        %4771 = vdwg.mxu0
        %v4772 = vadd.f32 %v4466, %v4646
        %v4773 = vadd.f32 %v4467, %v4649
        %v4774 = vadd.f32 %v4468, %v4654
        %v4775 = vadd.f32 %v4469, %v4657
        %v4776 = vadd.f32 %v4470, %v4662
        %v4777 = vadd.f32 %v4471, %v4665
        %v4778 = vadd.f32 %v4472, %v4670
        %v4779 = vadd.f32 %v4473, %v4673
        %v4780 = vadd.f32 %v4474, %v4678
        %v4781 = vadd.f32 %v4475, %v4681
        %v4782 = vadd.f32 %v4476, %v4686
        %v4783 = vadd.f32 %v4477, %v4689
        %v4784 = vadd.f32 %v4478, %v4694
        %v4785 = vadd.f32 %v4479, %v4697
        %v4786 = vadd.f32 %v4480, %v4702
        %v4787 = vadd.f32 %v4481, %v4705
        %v4788 = vadd.f32 %v4482, %v4710
        %v4789 = vadd.f32 %v4483, %v4713
        %v4790 = vadd.f32 %v4484, %v4718
        %v4791 = vadd.f32 %v4485, %v4721
        %v4792 = vadd.f32 %v4486, %v4726
        %v4793 = vadd.f32 %v4487, %v4729
        %v4794 = vadd.f32 %v4488, %v4734
        %v4795 = vadd.f32 %v4489, %v4737
        %v4796 = vadd.f32 %v4490, %v4742
        %v4797 = vadd.f32 %v4491, %v4745
        %v4798 = vadd.f32 %v4492, %v4750
        %v4799 = vadd.f32 %v4493, %v4753
        %v4800 = vadd.f32 %v4494, %v4758
        %v4801 = vadd.f32 %v4495, %v4761
        %v4802 = vadd.f32 %v4496, %v4766
        %v4803 = vadd.f32 %v4497, %v4769
        %v4804 = vld [vmem:[%s818 + $0x1] sm:$0xff]
        %v4805 = vld [vmem:[%s818 + $0x9] sm:$0xff]
        %v4806 = vld [vmem:[%s818 + $0x19] sm:$0xff]
        %v4807 = vld [vmem:[%s818 + $0x21] sm:$0xff]
        %v4808 = vld [vmem:[%s818 + $0x31] sm:$0xff]
        %v4809 = vld [vmem:[%s818 + $0x39] sm:$0xff]
        %v4810 = vld [vmem:[%s818 + $0x49] sm:$0xff]
        %v4811 = vld [vmem:[%s818 + $0x51] sm:$0xff]
        %v4812 = vld [vmem:[%s818 + $0x61] sm:$0xff]
        %v4813 = vld [vmem:[%s818 + $0x69] sm:$0xff]
        %v4814 = vld [vmem:[%s818 + $0x79] sm:$0xff]
        %v4815 = vld [vmem:[%s818 + $0x81] sm:$0xff]
        %v4816 = vld [vmem:[%s818 + $0x91] sm:$0xff]
        %v4817 = vld [vmem:[%s818 + $0x99] sm:$0xff]
        %v4818 = vld [vmem:[%s818 + $0xa9] sm:$0xff]
        %v4819 = vld [vmem:[%s818 + $0xb1] sm:$0xff]
        %v4820 = vld [vmem:[%s818 + $0xc1] sm:$0xff]
        %v4821 = vld [vmem:[%s818 + $0xc9] sm:$0xff]
        %v4822 = vld [vmem:[%s818 + $0xd9] sm:$0xff]
        %v4823 = vld [vmem:[%s818 + $0xe1] sm:$0xff]
        %v4824 = vld [vmem:[%s818 + $0xf1] sm:$0xff]
        %v4825 = vld [vmem:[%s818 + $0xf9] sm:$0xff]
        %v4826 = vld [vmem:[%s818 + $0x109] sm:$0xff]
        %v4827 = vld [vmem:[%s818 + $0x111] sm:$0xff]
        %v4828 = vld [vmem:[%s818 + $0x121] sm:$0xff]
        %v4829 = vld [vmem:[%s818 + $0x129] sm:$0xff]
        %v4830 = vld [vmem:[%s818 + $0x139] sm:$0xff]
        %v4831 = vld [vmem:[%s818 + $0x141] sm:$0xff]
        %v4832 = vld [vmem:[%s818 + $0x151] sm:$0xff]
        %v4833 = vld [vmem:[%s818 + $0x159] sm:$0xff]
        %v4834 = vld [vmem:[%s818 + $0x169] sm:$0xff]
        %v4835 = vld [vmem:[%s818 + $0x171] sm:$0xff]
        %v4836 = vpack.c.bf16 %v4805, %v4804
        %v4837 = vpack.c.bf16 %v4807, %v4806
        %v4838 = vpack.c.bf16 %v4809, %v4808
        %v4839 = vpack.c.bf16 %v4811, %v4810
        %v4840 = vpack.c.bf16 %v4813, %v4812
        %v4841 = vpack.c.bf16 %v4815, %v4814
        %v4842 = vpack.c.bf16 %v4817, %v4816
        %v4843 = vpack.c.bf16 %v4819, %v4818
        %v4844 = vpack.c.bf16 %v4821, %v4820
        %v4845 = vpack.c.bf16 %v4823, %v4822
        %v4846 = vpack.c.bf16 %v4825, %v4824
        %v4847 = vpack.c.bf16 %v4827, %v4826
        %v4848 = vpack.c.bf16 %v4829, %v4828
        %v4849 = vpack.c.bf16 %v4831, %v4830
        %v4850 = vpack.c.bf16 %v4833, %v4832
        %v4851 = vpack.c.bf16 %v4835, %v4834
        %s4852 = scalar_lea.vmem %s3, 208
        %v4853 = vld [vmem:[%s4852] sm:$0xf]
        %v4854 = vld [vmem:[%s4852 + $0x4] sm:$0xf]
        %v4855 = vld [vmem:[%s4852 + $0x8] sm:$0xf]
        %v4856 = vld [vmem:[%s4852 + $0xc] sm:$0xf]
        %v4861 = vunpack.c.l.b16 %v4853
        %v4862 = vunpack.c.l.b16 %v4854
        %v4863 = vunpack.c.l.b16 %v4855
        %v4864 = vunpack.c.l.b16 %v4856
        %v4865 = vpack.c.b16 %v4862, %v4861
        %v4866 = vpack.c.b16 %v4864, %v4863
        %v4870 = vsel %vm772, %v4836, 0
        %v4873 = vsel %vm772, %v4837, 0
        %v4876 = vsel %vm772, %v4838, 0
        %v4879 = vsel %vm772, %v4839, 0
        %v4882 = vsel %vm772, %v4840, 0
        %v4885 = vsel %vm772, %v4841, 0
        %v4888 = vsel %vm772, %v4842, 0
        %v4891 = vsel %vm772, %v4843, 0
        %v4894 = vsel %vm772, %v4844, 0
        %v4897 = vsel %vm772, %v4845, 0
        %v4900 = vsel %vm772, %v4846, 0
        %v4903 = vsel %vm772, %v4847, 0
        %v4906 = vsel %vm772, %v4848, 0
        %v4909 = vsel %vm772, %v4849, 0
        %v4912 = vsel %vm772, %v4850, 0
        %v4915 = vsel %vm772, %v4851, 0
        %4917 = vmatprep.subr.bf16.mxu0 0
        %4918 = vmatpush1.bf16.msra.mxu0 %v4865
        %4919 = vmatprep.subr.bf16.mxu0 0
        %4920 = vmatpush1.bf16.msra.mxu0 %v4866
        %4921 = vmatprep.subr.bf16.mxu0 0
        %4922 = vmatpush1.bf16.msra.mxu0 0
        %4923 = vmatprep.subr.bf16.mxu0 0
        %4924 = vmatpush1.bf16.msra.mxu0 0
        %4925 = vmatprep.subr.bf16.mxu0 0
        %4926 = vmatpush1.bf16.msra.mxu0 0
        %4927 = vmatprep.subr.bf16.mxu0 0
        %4928 = vmatpush1.bf16.msra.mxu0 0
        %4929 = vmatprep.subr.bf16.mxu0 0
        %4930 = vmatpush1.bf16.msra.mxu0 0
        %4931 = vmatprep.subr.bf16.mxu0 0
        %4932 = vmatpush1.bf16.msra.mxu0 0
        %4933 = vmatprep.subr.bf16.mxu0 0
        %4934 = vmatpush1.bf16.msra.mxu0 0
        %4935 = vmatprep.subr.bf16.mxu0 0
        %4936 = vmatpush1.bf16.msra.mxu0 0
        %4937 = vmatprep.subr.bf16.mxu0 0
        %4938 = vmatpush1.bf16.msra.mxu0 0
        %4939 = vmatprep.subr.bf16.mxu0 0
        %4940 = vmatpush1.bf16.msra.mxu0 0
        %4941 = vmatprep.subr.bf16.mxu0 0
        %4942 = vmatpush1.bf16.msra.mxu0 0
        %4943 = vmatprep.subr.bf16.mxu0 0
        %4944 = vmatpush1.bf16.msra.mxu0 0
        %4945 = vmatprep.subr.bf16.mxu0 0
        %4946 = vmatpush1.bf16.msra.mxu0 0
        %4947 = vmatprep.subr.bf16.mxu0 0
        %4948 = vmatpush1.bf16.msra.mxu0 0
        %4949 = vmatprep.mubr.bf16.mxu0 0
        %4950 = vmatmul.mubr.bf16.gmra.mrb[0].mxu0 %v4870
        %v4951 = vpop.f32.mrb[0].mxu0
        %v4952 = vadd.f32 0.0, %v4951
        %v4953 = vpop.f32.mrb[0].mxu0
        %v4954 = vpop.f32.mrb[0].mxu0
        %v4955 = vadd.f32 0.0, %v4954
        %v4956 = vpop.f32.mrb[0].mxu0
        %4957 = vmatprep.mubr.bf16.mxu0 0
        %4958 = vmatmul.mubr.bf16.gmra.mrb[0].mxu0 %v4873
        %v4959 = vpop.f32.mrb[0].mxu0
        %v4960 = vadd.f32 0.0, %v4959
        %v4961 = vpop.f32.mrb[0].mxu0
        %v4962 = vpop.f32.mrb[0].mxu0
        %v4963 = vadd.f32 0.0, %v4962
        %v4964 = vpop.f32.mrb[0].mxu0
        %4965 = vmatprep.mubr.bf16.mxu0 0
        %4966 = vmatmul.mubr.bf16.gmra.mrb[0].mxu0 %v4876
        %v4967 = vpop.f32.mrb[0].mxu0
        %v4968 = vadd.f32 0.0, %v4967
        %v4969 = vpop.f32.mrb[0].mxu0
        %v4970 = vpop.f32.mrb[0].mxu0
        %v4971 = vadd.f32 0.0, %v4970
        %v4972 = vpop.f32.mrb[0].mxu0
        %4973 = vmatprep.mubr.bf16.mxu0 0
        %4974 = vmatmul.mubr.bf16.gmra.mrb[0].mxu0 %v4879
        %v4975 = vpop.f32.mrb[0].mxu0
        %v4976 = vadd.f32 0.0, %v4975
        %v4977 = vpop.f32.mrb[0].mxu0
        %v4978 = vpop.f32.mrb[0].mxu0
        %v4979 = vadd.f32 0.0, %v4978
        %v4980 = vpop.f32.mrb[0].mxu0
        %4981 = vmatprep.mubr.bf16.mxu0 0
        %4982 = vmatmul.mubr.bf16.gmra.mrb[0].mxu0 %v4882
        %v4983 = vpop.f32.mrb[0].mxu0
        %v4984 = vadd.f32 0.0, %v4983
        %v4985 = vpop.f32.mrb[0].mxu0
        %v4986 = vpop.f32.mrb[0].mxu0
        %v4987 = vadd.f32 0.0, %v4986
        %v4988 = vpop.f32.mrb[0].mxu0
        %4989 = vmatprep.mubr.bf16.mxu0 0
        %4990 = vmatmul.mubr.bf16.gmra.mrb[0].mxu0 %v4885
        %v4991 = vpop.f32.mrb[0].mxu0
        %v4992 = vadd.f32 0.0, %v4991
        %v4993 = vpop.f32.mrb[0].mxu0
        %v4994 = vpop.f32.mrb[0].mxu0
        %v4995 = vadd.f32 0.0, %v4994
        %v4996 = vpop.f32.mrb[0].mxu0
        %4997 = vmatprep.mubr.bf16.mxu0 0
        %4998 = vmatmul.mubr.bf16.gmra.mrb[0].mxu0 %v4888
        %v4999 = vpop.f32.mrb[0].mxu0
        %v5000 = vadd.f32 0.0, %v4999
        %v5001 = vpop.f32.mrb[0].mxu0
        %v5002 = vpop.f32.mrb[0].mxu0
        %v5003 = vadd.f32 0.0, %v5002
        %v5004 = vpop.f32.mrb[0].mxu0
        %5005 = vmatprep.mubr.bf16.mxu0 0
        %5006 = vmatmul.mubr.bf16.gmra.mrb[0].mxu0 %v4891
        %v5007 = vpop.f32.mrb[0].mxu0
        %v5008 = vadd.f32 0.0, %v5007
        %v5009 = vpop.f32.mrb[0].mxu0
        %v5010 = vpop.f32.mrb[0].mxu0
        %v5011 = vadd.f32 0.0, %v5010
        %v5012 = vpop.f32.mrb[0].mxu0
        %5013 = vmatprep.mubr.bf16.mxu0 0
        %5014 = vmatmul.mubr.bf16.gmra.mrb[0].mxu0 %v4894
        %v5015 = vpop.f32.mrb[0].mxu0
        %v5016 = vadd.f32 0.0, %v5015
        %v5017 = vpop.f32.mrb[0].mxu0
        %v5018 = vpop.f32.mrb[0].mxu0
        %v5019 = vadd.f32 0.0, %v5018
        %v5020 = vpop.f32.mrb[0].mxu0
        %5021 = vmatprep.mubr.bf16.mxu0 0
        %5022 = vmatmul.mubr.bf16.gmra.mrb[0].mxu0 %v4897
        %v5023 = vpop.f32.mrb[0].mxu0
        %v5024 = vadd.f32 0.0, %v5023
        %v5025 = vpop.f32.mrb[0].mxu0
        %v5026 = vpop.f32.mrb[0].mxu0
        %v5027 = vadd.f32 0.0, %v5026
        %v5028 = vpop.f32.mrb[0].mxu0
        %5029 = vmatprep.mubr.bf16.mxu0 0
        %5030 = vmatmul.mubr.bf16.gmra.mrb[0].mxu0 %v4900
        %v5031 = vpop.f32.mrb[0].mxu0
        %v5032 = vadd.f32 0.0, %v5031
        %v5033 = vpop.f32.mrb[0].mxu0
        %v5034 = vpop.f32.mrb[0].mxu0
        %v5035 = vadd.f32 0.0, %v5034
        %v5036 = vpop.f32.mrb[0].mxu0
        %5037 = vmatprep.mubr.bf16.mxu0 0
        %5038 = vmatmul.mubr.bf16.gmra.mrb[0].mxu0 %v4903
        %v5039 = vpop.f32.mrb[0].mxu0
        %v5040 = vadd.f32 0.0, %v5039
        %v5041 = vpop.f32.mrb[0].mxu0
        %v5042 = vpop.f32.mrb[0].mxu0
        %v5043 = vadd.f32 0.0, %v5042
        %v5044 = vpop.f32.mrb[0].mxu0
        %5045 = vmatprep.mubr.bf16.mxu0 0
        %5046 = vmatmul.mubr.bf16.gmra.mrb[0].mxu0 %v4906
        %v5047 = vpop.f32.mrb[0].mxu0
        %v5048 = vadd.f32 0.0, %v5047
        %v5049 = vpop.f32.mrb[0].mxu0
        %v5050 = vpop.f32.mrb[0].mxu0
        %v5051 = vadd.f32 0.0, %v5050
        %v5052 = vpop.f32.mrb[0].mxu0
        %5053 = vmatprep.mubr.bf16.mxu0 0
        %5054 = vmatmul.mubr.bf16.gmra.mrb[0].mxu0 %v4909
        %v5055 = vpop.f32.mrb[0].mxu0
        %v5056 = vadd.f32 0.0, %v5055
        %v5057 = vpop.f32.mrb[0].mxu0
        %v5058 = vpop.f32.mrb[0].mxu0
        %v5059 = vadd.f32 0.0, %v5058
        %v5060 = vpop.f32.mrb[0].mxu0
        %5061 = vmatprep.mubr.bf16.mxu0 0
        %5062 = vmatmul.mubr.bf16.gmra.mrb[0].mxu0 %v4912
        %v5063 = vpop.f32.mrb[0].mxu0
        %v5064 = vadd.f32 0.0, %v5063
        %v5065 = vpop.f32.mrb[0].mxu0
        %v5066 = vpop.f32.mrb[0].mxu0
        %v5067 = vadd.f32 0.0, %v5066
        %v5068 = vpop.f32.mrb[0].mxu0
        %5069 = vmatprep.mubr.bf16.mxu0 0
        %5070 = vmatmul.mubr.bf16.gmra.mrb[0].mxu0 %v4915
        %v5071 = vpop.f32.mrb[0].mxu0
        %v5072 = vadd.f32 0.0, %v5071
        %v5073 = vpop.f32.mrb[0].mxu0
        %v5074 = vpop.f32.mrb[0].mxu0
        %v5075 = vadd.f32 0.0, %v5074
        %v5076 = vpop.f32.mrb[0].mxu0
        %5077 = vdwg.mxu0
        %v5078 = vadd.f32 %v4772, %v4952
        %v5079 = vadd.f32 %v4773, %v4955
        %v5080 = vadd.f32 %v4774, %v4960
        %v5081 = vadd.f32 %v4775, %v4963
        %v5082 = vadd.f32 %v4776, %v4968
        %v5083 = vadd.f32 %v4777, %v4971
        %v5084 = vadd.f32 %v4778, %v4976
        %v5085 = vadd.f32 %v4779, %v4979
        %v5086 = vadd.f32 %v4780, %v4984
        %v5087 = vadd.f32 %v4781, %v4987
        %v5088 = vadd.f32 %v4782, %v4992
        %v5089 = vadd.f32 %v4783, %v4995
        %v5090 = vadd.f32 %v4784, %v5000
        %v5091 = vadd.f32 %v4785, %v5003
        %v5092 = vadd.f32 %v4786, %v5008
        %v5093 = vadd.f32 %v4787, %v5011
        %v5094 = vadd.f32 %v4788, %v5016
        %v5095 = vadd.f32 %v4789, %v5019
        %v5096 = vadd.f32 %v4790, %v5024
        %v5097 = vadd.f32 %v4791, %v5027
        %v5098 = vadd.f32 %v4792, %v5032
        %v5099 = vadd.f32 %v4793, %v5035
        %v5100 = vadd.f32 %v4794, %v5040
        %v5101 = vadd.f32 %v4795, %v5043
        %v5102 = vadd.f32 %v4796, %v5048
        %v5103 = vadd.f32 %v4797, %v5051
        %v5104 = vadd.f32 %v4798, %v5056
        %v5105 = vadd.f32 %v4799, %v5059
        %v5106 = vadd.f32 %v4800, %v5064
        %v5107 = vadd.f32 %v4801, %v5067
        %v5108 = vadd.f32 %v4802, %v5072
        %v5109 = vadd.f32 %v4803, %v5075
        %v5110 = vld [vmem:[%s818 + $0x2] sm:$0xff]
        %v5111 = vld [vmem:[%s818 + $0xa] sm:$0xff]
        %v5112 = vld [vmem:[%s818 + $0x1a] sm:$0xff]
        %v5113 = vld [vmem:[%s818 + $0x22] sm:$0xff]
        %v5114 = vld [vmem:[%s818 + $0x32] sm:$0xff]
        %v5115 = vld [vmem:[%s818 + $0x3a] sm:$0xff]
        %v5116 = vld [vmem:[%s818 + $0x4a] sm:$0xff]
        %v5117 = vld [vmem:[%s818 + $0x52] sm:$0xff]
        %v5118 = vld [vmem:[%s818 + $0x62] sm:$0xff]
        %v5119 = vld [vmem:[%s818 + $0x6a] sm:$0xff]
        %v5120 = vld [vmem:[%s818 + $0x7a] sm:$0xff]
        %v5121 = vld [vmem:[%s818 + $0x82] sm:$0xff]
        %v5122 = vld [vmem:[%s818 + $0x92] sm:$0xff]
        %v5123 = vld [vmem:[%s818 + $0x9a] sm:$0xff]
        %v5124 = vld [vmem:[%s818 + $0xaa] sm:$0xff]
        %v5125 = vld [vmem:[%s818 + $0xb2] sm:$0xff]
        %v5126 = vld [vmem:[%s818 + $0xc2] sm:$0xff]
        %v5127 = vld [vmem:[%s818 + $0xca] sm:$0xff]
        %v5128 = vld [vmem:[%s818 + $0xda] sm:$0xff]
        %v5129 = vld [vmem:[%s818 + $0xe2] sm:$0xff]
        %v5130 = vld [vmem:[%s818 + $0xf2] sm:$0xff]
        %v5131 = vld [vmem:[%s818 + $0xfa] sm:$0xff]
        %v5132 = vld [vmem:[%s818 + $0x10a] sm:$0xff]
        %v5133 = vld [vmem:[%s818 + $0x112] sm:$0xff]
        %v5134 = vld [vmem:[%s818 + $0x122] sm:$0xff]
        %v5135 = vld [vmem:[%s818 + $0x12a] sm:$0xff]
        %v5136 = vld [vmem:[%s818 + $0x13a] sm:$0xff]
        %v5137 = vld [vmem:[%s818 + $0x142] sm:$0xff]
        %v5138 = vld [vmem:[%s818 + $0x152] sm:$0xff]
        %v5139 = vld [vmem:[%s818 + $0x15a] sm:$0xff]
        %v5140 = vld [vmem:[%s818 + $0x16a] sm:$0xff]
        %v5141 = vld [vmem:[%s818 + $0x172] sm:$0xff]
        %v5142 = vpack.c.bf16 %v5111, %v5110
        %v5143 = vpack.c.bf16 %v5113, %v5112
        %v5144 = vpack.c.bf16 %v5115, %v5114
        %v5145 = vpack.c.bf16 %v5117, %v5116
        %v5146 = vpack.c.bf16 %v5119, %v5118
        %v5147 = vpack.c.bf16 %v5121, %v5120
        %v5148 = vpack.c.bf16 %v5123, %v5122
        %v5149 = vpack.c.bf16 %v5125, %v5124
        %v5150 = vpack.c.bf16 %v5127, %v5126
        %v5151 = vpack.c.bf16 %v5129, %v5128
        %v5152 = vpack.c.bf16 %v5131, %v5130
        %v5153 = vpack.c.bf16 %v5133, %v5132
        %v5154 = vpack.c.bf16 %v5135, %v5134
        %v5155 = vpack.c.bf16 %v5137, %v5136
        %v5156 = vpack.c.bf16 %v5139, %v5138
        %v5157 = vpack.c.bf16 %v5141, %v5140
        %s5158 = scalar_lea.vmem %s3, 224
        %v5159 = vld [vmem:[%s5158] sm:$0xf]
        %v5160 = vld [vmem:[%s5158 + $0x4] sm:$0xf]
        %v5161 = vld [vmem:[%s5158 + $0x8] sm:$0xf]
        %v5162 = vld [vmem:[%s5158 + $0xc] sm:$0xf]
        %v5167 = vunpack.c.l.b16 %v5159
        %v5168 = vunpack.c.l.b16 %v5160
        %v5169 = vunpack.c.l.b16 %v5161
        %v5170 = vunpack.c.l.b16 %v5162
        %v5171 = vpack.c.b16 %v5168, %v5167
        %v5172 = vpack.c.b16 %v5170, %v5169
        %v5176 = vsel %vm772, %v5142, 0
        %v5179 = vsel %vm772, %v5143, 0
        %v5182 = vsel %vm772, %v5144, 0
        %v5185 = vsel %vm772, %v5145, 0
        %v5188 = vsel %vm772, %v5146, 0
        %v5191 = vsel %vm772, %v5147, 0
        %v5194 = vsel %vm772, %v5148, 0
        %v5197 = vsel %vm772, %v5149, 0
        %v5200 = vsel %vm772, %v5150, 0
        %v5203 = vsel %vm772, %v5151, 0
        %v5206 = vsel %vm772, %v5152, 0
        %v5209 = vsel %vm772, %v5153, 0
        %v5212 = vsel %vm772, %v5154, 0
        %v5215 = vsel %vm772, %v5155, 0
        %v5218 = vsel %vm772, %v5156, 0
        %v5221 = vsel %vm772, %v5157, 0
        %5223 = vmatprep.subr.bf16.mxu0 0
        %5224 = vmatpush1.bf16.msra.mxu0 %v5171
        %5225 = vmatprep.subr.bf16.mxu0 0
        %5226 = vmatpush1.bf16.msra.mxu0 %v5172
        %5227 = vmatprep.subr.bf16.mxu0 0
        %5228 = vmatpush1.bf16.msra.mxu0 0
        %5229 = vmatprep.subr.bf16.mxu0 0
        %5230 = vmatpush1.bf16.msra.mxu0 0
        %5231 = vmatprep.subr.bf16.mxu0 0
        %5232 = vmatpush1.bf16.msra.mxu0 0
        %5233 = vmatprep.subr.bf16.mxu0 0
        %5234 = vmatpush1.bf16.msra.mxu0 0
        %5235 = vmatprep.subr.bf16.mxu0 0
        %5236 = vmatpush1.bf16.msra.mxu0 0
        %5237 = vmatprep.subr.bf16.mxu0 0
        %5238 = vmatpush1.bf16.msra.mxu0 0
        %5239 = vmatprep.subr.bf16.mxu0 0
        %5240 = vmatpush1.bf16.msra.mxu0 0
        %5241 = vmatprep.subr.bf16.mxu0 0
        %5242 = vmatpush1.bf16.msra.mxu0 0
        %5243 = vmatprep.subr.bf16.mxu0 0
        %5244 = vmatpush1.bf16.msra.mxu0 0
        %5245 = vmatprep.subr.bf16.mxu0 0
        %5246 = vmatpush1.bf16.msra.mxu0 0
        %5247 = vmatprep.subr.bf16.mxu0 0
        %5248 = vmatpush1.bf16.msra.mxu0 0
        %5249 = vmatprep.subr.bf16.mxu0 0
        %5250 = vmatpush1.bf16.msra.mxu0 0
        %5251 = vmatprep.subr.bf16.mxu0 0
        %5252 = vmatpush1.bf16.msra.mxu0 0
        %5253 = vmatprep.subr.bf16.mxu0 0
        %5254 = vmatpush1.bf16.msra.mxu0 0
        %5255 = vmatprep.mubr.bf16.mxu0 0
        %5256 = vmatmul.mubr.bf16.gmra.mrb[0].mxu0 %v5176
        %v5257 = vpop.f32.mrb[0].mxu0
        %v5258 = vadd.f32 0.0, %v5257
        %v5259 = vpop.f32.mrb[0].mxu0
        %v5260 = vpop.f32.mrb[0].mxu0
        %v5261 = vadd.f32 0.0, %v5260
        %v5262 = vpop.f32.mrb[0].mxu0
        %5263 = vmatprep.mubr.bf16.mxu0 0
        %5264 = vmatmul.mubr.bf16.gmra.mrb[0].mxu0 %v5179
        %v5265 = vpop.f32.mrb[0].mxu0
        %v5266 = vadd.f32 0.0, %v5265
        %v5267 = vpop.f32.mrb[0].mxu0
        %v5268 = vpop.f32.mrb[0].mxu0
        %v5269 = vadd.f32 0.0, %v5268
        %v5270 = vpop.f32.mrb[0].mxu0
        %5271 = vmatprep.mubr.bf16.mxu0 0
        %5272 = vmatmul.mubr.bf16.gmra.mrb[0].mxu0 %v5182
        %v5273 = vpop.f32.mrb[0].mxu0
        %v5274 = vadd.f32 0.0, %v5273
        %v5275 = vpop.f32.mrb[0].mxu0
        %v5276 = vpop.f32.mrb[0].mxu0
        %v5277 = vadd.f32 0.0, %v5276
        %v5278 = vpop.f32.mrb[0].mxu0
        %5279 = vmatprep.mubr.bf16.mxu0 0
        %5280 = vmatmul.mubr.bf16.gmra.mrb[0].mxu0 %v5185
        %v5281 = vpop.f32.mrb[0].mxu0
        %v5282 = vadd.f32 0.0, %v5281
        %v5283 = vpop.f32.mrb[0].mxu0
        %v5284 = vpop.f32.mrb[0].mxu0
        %v5285 = vadd.f32 0.0, %v5284
        %v5286 = vpop.f32.mrb[0].mxu0
        %5287 = vmatprep.mubr.bf16.mxu0 0
        %5288 = vmatmul.mubr.bf16.gmra.mrb[0].mxu0 %v5188
        %v5289 = vpop.f32.mrb[0].mxu0
        %v5290 = vadd.f32 0.0, %v5289
        %v5291 = vpop.f32.mrb[0].mxu0
        %v5292 = vpop.f32.mrb[0].mxu0
        %v5293 = vadd.f32 0.0, %v5292
        %v5294 = vpop.f32.mrb[0].mxu0
        %5295 = vmatprep.mubr.bf16.mxu0 0
        %5296 = vmatmul.mubr.bf16.gmra.mrb[0].mxu0 %v5191
        %v5297 = vpop.f32.mrb[0].mxu0
        %v5298 = vadd.f32 0.0, %v5297
        %v5299 = vpop.f32.mrb[0].mxu0
        %v5300 = vpop.f32.mrb[0].mxu0
        %v5301 = vadd.f32 0.0, %v5300
        %v5302 = vpop.f32.mrb[0].mxu0
        %5303 = vmatprep.mubr.bf16.mxu0 0
        %5304 = vmatmul.mubr.bf16.gmra.mrb[0].mxu0 %v5194
        %v5305 = vpop.f32.mrb[0].mxu0
        %v5306 = vadd.f32 0.0, %v5305
        %v5307 = vpop.f32.mrb[0].mxu0
        %v5308 = vpop.f32.mrb[0].mxu0
        %v5309 = vadd.f32 0.0, %v5308
        %v5310 = vpop.f32.mrb[0].mxu0
        %5311 = vmatprep.mubr.bf16.mxu0 0
        %5312 = vmatmul.mubr.bf16.gmra.mrb[0].mxu0 %v5197
        %v5313 = vpop.f32.mrb[0].mxu0
        %v5314 = vadd.f32 0.0, %v5313
        %v5315 = vpop.f32.mrb[0].mxu0
        %v5316 = vpop.f32.mrb[0].mxu0
        %v5317 = vadd.f32 0.0, %v5316
        %v5318 = vpop.f32.mrb[0].mxu0
        %5319 = vmatprep.mubr.bf16.mxu0 0
        %5320 = vmatmul.mubr.bf16.gmra.mrb[0].mxu0 %v5200
        %v5321 = vpop.f32.mrb[0].mxu0
        %v5322 = vadd.f32 0.0, %v5321
        %v5323 = vpop.f32.mrb[0].mxu0
        %v5324 = vpop.f32.mrb[0].mxu0
        %v5325 = vadd.f32 0.0, %v5324
        %v5326 = vpop.f32.mrb[0].mxu0
        %5327 = vmatprep.mubr.bf16.mxu0 0
        %5328 = vmatmul.mubr.bf16.gmra.mrb[0].mxu0 %v5203
        %v5329 = vpop.f32.mrb[0].mxu0
        %v5330 = vadd.f32 0.0, %v5329
        %v5331 = vpop.f32.mrb[0].mxu0
        %v5332 = vpop.f32.mrb[0].mxu0
        %v5333 = vadd.f32 0.0, %v5332
        %v5334 = vpop.f32.mrb[0].mxu0
        %5335 = vmatprep.mubr.bf16.mxu0 0
        %5336 = vmatmul.mubr.bf16.gmra.mrb[0].mxu0 %v5206
        %v5337 = vpop.f32.mrb[0].mxu0
        %v5338 = vadd.f32 0.0, %v5337
        %v5339 = vpop.f32.mrb[0].mxu0
        %v5340 = vpop.f32.mrb[0].mxu0
        %v5341 = vadd.f32 0.0, %v5340
        %v5342 = vpop.f32.mrb[0].mxu0
        %5343 = vmatprep.mubr.bf16.mxu0 0
        %5344 = vmatmul.mubr.bf16.gmra.mrb[0].mxu0 %v5209
        %v5345 = vpop.f32.mrb[0].mxu0
        %v5346 = vadd.f32 0.0, %v5345
        %v5347 = vpop.f32.mrb[0].mxu0
        %v5348 = vpop.f32.mrb[0].mxu0
        %v5349 = vadd.f32 0.0, %v5348
        %v5350 = vpop.f32.mrb[0].mxu0
        %5351 = vmatprep.mubr.bf16.mxu0 0
        %5352 = vmatmul.mubr.bf16.gmra.mrb[0].mxu0 %v5212
        %v5353 = vpop.f32.mrb[0].mxu0
        %v5354 = vadd.f32 0.0, %v5353
        %v5355 = vpop.f32.mrb[0].mxu0
        %v5356 = vpop.f32.mrb[0].mxu0
        %v5357 = vadd.f32 0.0, %v5356
        %v5358 = vpop.f32.mrb[0].mxu0
        %5359 = vmatprep.mubr.bf16.mxu0 0
        %5360 = vmatmul.mubr.bf16.gmra.mrb[0].mxu0 %v5215
        %v5361 = vpop.f32.mrb[0].mxu0
        %v5362 = vadd.f32 0.0, %v5361
        %v5363 = vpop.f32.mrb[0].mxu0
        %v5364 = vpop.f32.mrb[0].mxu0
        %v5365 = vadd.f32 0.0, %v5364
        %v5366 = vpop.f32.mrb[0].mxu0
        %5367 = vmatprep.mubr.bf16.mxu0 0
        %5368 = vmatmul.mubr.bf16.gmra.mrb[0].mxu0 %v5218
        %v5369 = vpop.f32.mrb[0].mxu0
        %v5370 = vadd.f32 0.0, %v5369
        %v5371 = vpop.f32.mrb[0].mxu0
        %v5372 = vpop.f32.mrb[0].mxu0
        %v5373 = vadd.f32 0.0, %v5372
        %v5374 = vpop.f32.mrb[0].mxu0
        %5375 = vmatprep.mubr.bf16.mxu0 0
        %5376 = vmatmul.mubr.bf16.gmra.mrb[0].mxu0 %v5221
        %v5377 = vpop.f32.mrb[0].mxu0
        %v5378 = vadd.f32 0.0, %v5377
        %v5379 = vpop.f32.mrb[0].mxu0
        %v5380 = vpop.f32.mrb[0].mxu0
        %v5381 = vadd.f32 0.0, %v5380
        %v5382 = vpop.f32.mrb[0].mxu0
        %5383 = vdwg.mxu0
        %v5384 = vadd.f32 %v5078, %v5258
        %v5385 = vadd.f32 %v5079, %v5261
        %v5386 = vadd.f32 %v5080, %v5266
        %v5387 = vadd.f32 %v5081, %v5269
        %v5388 = vadd.f32 %v5082, %v5274
        %v5389 = vadd.f32 %v5083, %v5277
        %v5390 = vadd.f32 %v5084, %v5282
        %v5391 = vadd.f32 %v5085, %v5285
        %v5392 = vadd.f32 %v5086, %v5290
        %v5393 = vadd.f32 %v5087, %v5293
        %v5394 = vadd.f32 %v5088, %v5298
        %v5395 = vadd.f32 %v5089, %v5301
        %v5396 = vadd.f32 %v5090, %v5306
        %v5397 = vadd.f32 %v5091, %v5309
        %v5398 = vadd.f32 %v5092, %v5314
        %v5399 = vadd.f32 %v5093, %v5317
        %v5400 = vadd.f32 %v5094, %v5322
        %v5401 = vadd.f32 %v5095, %v5325
        %v5402 = vadd.f32 %v5096, %v5330
        %v5403 = vadd.f32 %v5097, %v5333
        %v5404 = vadd.f32 %v5098, %v5338
        %v5405 = vadd.f32 %v5099, %v5341
        %v5406 = vadd.f32 %v5100, %v5346
        %v5407 = vadd.f32 %v5101, %v5349
        %v5408 = vadd.f32 %v5102, %v5354
        %v5409 = vadd.f32 %v5103, %v5357
        %v5410 = vadd.f32 %v5104, %v5362
        %v5411 = vadd.f32 %v5105, %v5365
        %v5412 = vadd.f32 %v5106, %v5370
        %v5413 = vadd.f32 %v5107, %v5373
        %v5414 = vadd.f32 %v5108, %v5378
        %v5415 = vadd.f32 %v5109, %v5381
        %v5416 = vld [vmem:[%s2622] sm:$0xff]
        %v5417 = vld [vmem:[%s2622 + $0x8] sm:$0xff]
        %v5418 = vld [vmem:[%s2622 + $0x18] sm:$0xff]
        %v5419 = vld [vmem:[%s2622 + $0x20] sm:$0xff]
        %v5420 = vld [vmem:[%s2622 + $0x30] sm:$0xff]
        %v5421 = vld [vmem:[%s2622 + $0x38] sm:$0xff]
        %v5422 = vld [vmem:[%s2622 + $0x48] sm:$0xff]
        %v5423 = vld [vmem:[%s2622 + $0x50] sm:$0xff]
        %v5424 = vld [vmem:[%s2622 + $0x60] sm:$0xff]
        %v5425 = vld [vmem:[%s2622 + $0x68] sm:$0xff]
        %v5426 = vld [vmem:[%s2622 + $0x78] sm:$0xff]
        %v5427 = vld [vmem:[%s2622 + $0x80] sm:$0xff]
        %v5428 = vld [vmem:[%s2622 + $0x90] sm:$0xff]
        %v5429 = vld [vmem:[%s2622 + $0x98] sm:$0xff]
        %v5430 = vld [vmem:[%s2622 + $0xa8] sm:$0xff]
        %v5431 = vld [vmem:[%s2622 + $0xb0] sm:$0xff]
        %v5432 = vld [vmem:[%s2622 + $0xc0] sm:$0xff]
        %v5433 = vld [vmem:[%s2622 + $0xc8] sm:$0xff]
        %v5434 = vld [vmem:[%s2622 + $0xd8] sm:$0xff]
        %v5435 = vld [vmem:[%s2622 + $0xe0] sm:$0xff]
        %v5436 = vld [vmem:[%s2622 + $0xf0] sm:$0xff]
        %v5437 = vld [vmem:[%s2622 + $0xf8] sm:$0xff]
        %v5438 = vld [vmem:[%s2622 + $0x108] sm:$0xff]
        %v5439 = vld [vmem:[%s2622 + $0x110] sm:$0xff]
        %v5440 = vld [vmem:[%s2622 + $0x120] sm:$0xff]
        %v5441 = vld [vmem:[%s2622 + $0x128] sm:$0xff]
        %v5442 = vld [vmem:[%s2622 + $0x138] sm:$0xff]
        %v5443 = vld [vmem:[%s2622 + $0x140] sm:$0xff]
        %v5444 = vld [vmem:[%s2622 + $0x150] sm:$0xff]
        %v5445 = vld [vmem:[%s2622 + $0x158] sm:$0xff]
        %v5446 = vld [vmem:[%s2622 + $0x168] sm:$0xff]
        %v5447 = vld [vmem:[%s2622 + $0x170] sm:$0xff]
        %v5448 = vpack.c.bf16 %v5417, %v5416
        %v5449 = vpack.c.bf16 %v5419, %v5418
        %v5450 = vpack.c.bf16 %v5421, %v5420
        %v5451 = vpack.c.bf16 %v5423, %v5422
        %v5452 = vpack.c.bf16 %v5425, %v5424
        %v5453 = vpack.c.bf16 %v5427, %v5426
        %v5454 = vpack.c.bf16 %v5429, %v5428
        %v5455 = vpack.c.bf16 %v5431, %v5430
        %v5456 = vpack.c.bf16 %v5433, %v5432
        %v5457 = vpack.c.bf16 %v5435, %v5434
        %v5458 = vpack.c.bf16 %v5437, %v5436
        %v5459 = vpack.c.bf16 %v5439, %v5438
        %v5460 = vpack.c.bf16 %v5441, %v5440
        %v5461 = vpack.c.bf16 %v5443, %v5442
        %v5462 = vpack.c.bf16 %v5445, %v5444
        %v5463 = vpack.c.bf16 %v5447, %v5446
        %s5464 = scalar_lea.vmem %s3, 240
        %v5465 = vld [vmem:[%s5464] sm:$0xf]
        %v5466 = vld [vmem:[%s5464 + $0x4] sm:$0xf]
        %v5467 = vld [vmem:[%s5464 + $0x8] sm:$0xf]
        %v5468 = vld [vmem:[%s5464 + $0xc] sm:$0xf]
        %v5473 = vunpack.c.l.b16 %v5465
        %v5474 = vunpack.c.l.b16 %v5466
        %v5475 = vunpack.c.l.b16 %v5467
        %v5476 = vunpack.c.l.b16 %v5468
        %v5477 = vpack.c.b16 %v5474, %v5473
        %v5478 = vpack.c.b16 %v5476, %v5475
        %v5482 = vsel %vm772, %v5448, 0
        %v5485 = vsel %vm772, %v5449, 0
        %v5488 = vsel %vm772, %v5450, 0
        %v5491 = vsel %vm772, %v5451, 0
        %v5494 = vsel %vm772, %v5452, 0
        %v5497 = vsel %vm772, %v5453, 0
        %v5500 = vsel %vm772, %v5454, 0
        %v5503 = vsel %vm772, %v5455, 0
        %v5506 = vsel %vm772, %v5456, 0
        %v5509 = vsel %vm772, %v5457, 0
        %v5512 = vsel %vm772, %v5458, 0
        %v5515 = vsel %vm772, %v5459, 0
        %v5518 = vsel %vm772, %v5460, 0
        %v5521 = vsel %vm772, %v5461, 0
        %v5524 = vsel %vm772, %v5462, 0
        %v5527 = vsel %vm772, %v5463, 0
        %5529 = vmatprep.subr.bf16.mxu0 0
        %5530 = vmatpush1.bf16.msra.mxu0 %v5477
        %5531 = vmatprep.subr.bf16.mxu0 0
        %5532 = vmatpush1.bf16.msra.mxu0 %v5478
        %5533 = vmatprep.subr.bf16.mxu0 0
        %5534 = vmatpush1.bf16.msra.mxu0 0
        %5535 = vmatprep.subr.bf16.mxu0 0
        %5536 = vmatpush1.bf16.msra.mxu0 0
        %5537 = vmatprep.subr.bf16.mxu0 0
        %5538 = vmatpush1.bf16.msra.mxu0 0
        %5539 = vmatprep.subr.bf16.mxu0 0
        %5540 = vmatpush1.bf16.msra.mxu0 0
        %5541 = vmatprep.subr.bf16.mxu0 0
        %5542 = vmatpush1.bf16.msra.mxu0 0
        %5543 = vmatprep.subr.bf16.mxu0 0
        %5544 = vmatpush1.bf16.msra.mxu0 0
        %5545 = vmatprep.subr.bf16.mxu0 0
        %5546 = vmatpush1.bf16.msra.mxu0 0
        %5547 = vmatprep.subr.bf16.mxu0 0
        %5548 = vmatpush1.bf16.msra.mxu0 0
        %5549 = vmatprep.subr.bf16.mxu0 0
        %5550 = vmatpush1.bf16.msra.mxu0 0
        %5551 = vmatprep.subr.bf16.mxu0 0
        %5552 = vmatpush1.bf16.msra.mxu0 0
        %5553 = vmatprep.subr.bf16.mxu0 0
        %5554 = vmatpush1.bf16.msra.mxu0 0
        %5555 = vmatprep.subr.bf16.mxu0 0
        %5556 = vmatpush1.bf16.msra.mxu0 0
        %5557 = vmatprep.subr.bf16.mxu0 0
        %5558 = vmatpush1.bf16.msra.mxu0 0
        %5559 = vmatprep.subr.bf16.mxu0 0
        %5560 = vmatpush1.bf16.msra.mxu0 0
        %5561 = vmatprep.mubr.bf16.mxu0 0
        %5562 = vmatmul.mubr.bf16.gmra.mrb[0].mxu0 %v5482
        %v5563 = vpop.f32.mrb[0].mxu0
        %v5564 = vadd.f32 0.0, %v5563
        %v5565 = vpop.f32.mrb[0].mxu0
        %v5566 = vpop.f32.mrb[0].mxu0
        %v5567 = vadd.f32 0.0, %v5566
        %v5568 = vpop.f32.mrb[0].mxu0
        %5569 = vmatprep.mubr.bf16.mxu0 0
        %5570 = vmatmul.mubr.bf16.gmra.mrb[0].mxu0 %v5485
        %v5571 = vpop.f32.mrb[0].mxu0
        %v5572 = vadd.f32 0.0, %v5571
        %v5573 = vpop.f32.mrb[0].mxu0
        %v5574 = vpop.f32.mrb[0].mxu0
        %v5575 = vadd.f32 0.0, %v5574
        %v5576 = vpop.f32.mrb[0].mxu0
        %5577 = vmatprep.mubr.bf16.mxu0 0
        %5578 = vmatmul.mubr.bf16.gmra.mrb[0].mxu0 %v5488
        %v5579 = vpop.f32.mrb[0].mxu0
        %v5580 = vadd.f32 0.0, %v5579
        %v5581 = vpop.f32.mrb[0].mxu0
        %v5582 = vpop.f32.mrb[0].mxu0
        %v5583 = vadd.f32 0.0, %v5582
        %v5584 = vpop.f32.mrb[0].mxu0
        %5585 = vmatprep.mubr.bf16.mxu0 0
        %5586 = vmatmul.mubr.bf16.gmra.mrb[0].mxu0 %v5491
        %v5587 = vpop.f32.mrb[0].mxu0
        %v5588 = vadd.f32 0.0, %v5587
        %v5589 = vpop.f32.mrb[0].mxu0
        %v5590 = vpop.f32.mrb[0].mxu0
        %v5591 = vadd.f32 0.0, %v5590
        %v5592 = vpop.f32.mrb[0].mxu0
        %5593 = vmatprep.mubr.bf16.mxu0 0
        %5594 = vmatmul.mubr.bf16.gmra.mrb[0].mxu0 %v5494
        %v5595 = vpop.f32.mrb[0].mxu0
        %v5596 = vadd.f32 0.0, %v5595
        %v5597 = vpop.f32.mrb[0].mxu0
        %v5598 = vpop.f32.mrb[0].mxu0
        %v5599 = vadd.f32 0.0, %v5598
        %v5600 = vpop.f32.mrb[0].mxu0
        %5601 = vmatprep.mubr.bf16.mxu0 0
        %5602 = vmatmul.mubr.bf16.gmra.mrb[0].mxu0 %v5497
        %v5603 = vpop.f32.mrb[0].mxu0
        %v5604 = vadd.f32 0.0, %v5603
        %v5605 = vpop.f32.mrb[0].mxu0
        %v5606 = vpop.f32.mrb[0].mxu0
        %v5607 = vadd.f32 0.0, %v5606
        %v5608 = vpop.f32.mrb[0].mxu0
        %5609 = vmatprep.mubr.bf16.mxu0 0
        %5610 = vmatmul.mubr.bf16.gmra.mrb[0].mxu0 %v5500
        %v5611 = vpop.f32.mrb[0].mxu0
        %v5612 = vadd.f32 0.0, %v5611
        %v5613 = vpop.f32.mrb[0].mxu0
        %v5614 = vpop.f32.mrb[0].mxu0
        %v5615 = vadd.f32 0.0, %v5614
        %v5616 = vpop.f32.mrb[0].mxu0
        %5617 = vmatprep.mubr.bf16.mxu0 0
        %5618 = vmatmul.mubr.bf16.gmra.mrb[0].mxu0 %v5503
        %v5619 = vpop.f32.mrb[0].mxu0
        %v5620 = vadd.f32 0.0, %v5619
        %v5621 = vpop.f32.mrb[0].mxu0
        %v5622 = vpop.f32.mrb[0].mxu0
        %v5623 = vadd.f32 0.0, %v5622
        %v5624 = vpop.f32.mrb[0].mxu0
        %5625 = vmatprep.mubr.bf16.mxu0 0
        %5626 = vmatmul.mubr.bf16.gmra.mrb[0].mxu0 %v5506
        %v5627 = vpop.f32.mrb[0].mxu0
        %v5628 = vadd.f32 0.0, %v5627
        %v5629 = vpop.f32.mrb[0].mxu0
        %v5630 = vpop.f32.mrb[0].mxu0
        %v5631 = vadd.f32 0.0, %v5630
        %v5632 = vpop.f32.mrb[0].mxu0
        %5633 = vmatprep.mubr.bf16.mxu0 0
        %5634 = vmatmul.mubr.bf16.gmra.mrb[0].mxu0 %v5509
        %v5635 = vpop.f32.mrb[0].mxu0
        %v5636 = vadd.f32 0.0, %v5635
        %v5637 = vpop.f32.mrb[0].mxu0
        %v5638 = vpop.f32.mrb[0].mxu0
        %v5639 = vadd.f32 0.0, %v5638
        %v5640 = vpop.f32.mrb[0].mxu0
        %5641 = vmatprep.mubr.bf16.mxu0 0
        %5642 = vmatmul.mubr.bf16.gmra.mrb[0].mxu0 %v5512
        %v5643 = vpop.f32.mrb[0].mxu0
        %v5644 = vadd.f32 0.0, %v5643
        %v5645 = vpop.f32.mrb[0].mxu0
        %v5646 = vpop.f32.mrb[0].mxu0
        %v5647 = vadd.f32 0.0, %v5646
        %v5648 = vpop.f32.mrb[0].mxu0
        %5649 = vmatprep.mubr.bf16.mxu0 0
        %5650 = vmatmul.mubr.bf16.gmra.mrb[0].mxu0 %v5515
        %v5651 = vpop.f32.mrb[0].mxu0
        %v5652 = vadd.f32 0.0, %v5651
        %v5653 = vpop.f32.mrb[0].mxu0
        %v5654 = vpop.f32.mrb[0].mxu0
        %v5655 = vadd.f32 0.0, %v5654
        %v5656 = vpop.f32.mrb[0].mxu0
        %5657 = vmatprep.mubr.bf16.mxu0 0
        %5658 = vmatmul.mubr.bf16.gmra.mrb[0].mxu0 %v5518
        %v5659 = vpop.f32.mrb[0].mxu0
        %v5660 = vadd.f32 0.0, %v5659
        %v5661 = vpop.f32.mrb[0].mxu0
        %v5662 = vpop.f32.mrb[0].mxu0
        %v5663 = vadd.f32 0.0, %v5662
        %v5664 = vpop.f32.mrb[0].mxu0
        %5665 = vmatprep.mubr.bf16.mxu0 0
        %5666 = vmatmul.mubr.bf16.gmra.mrb[0].mxu0 %v5521
        %v5667 = vpop.f32.mrb[0].mxu0
        %v5668 = vadd.f32 0.0, %v5667
        %v5669 = vpop.f32.mrb[0].mxu0
        %v5670 = vpop.f32.mrb[0].mxu0
        %v5671 = vadd.f32 0.0, %v5670
        %v5672 = vpop.f32.mrb[0].mxu0
        %5673 = vmatprep.mubr.bf16.mxu0 0
        %5674 = vmatmul.mubr.bf16.gmra.mrb[0].mxu0 %v5524
        %v5675 = vpop.f32.mrb[0].mxu0
        %v5676 = vadd.f32 0.0, %v5675
        %v5677 = vpop.f32.mrb[0].mxu0
        %v5678 = vpop.f32.mrb[0].mxu0
        %v5679 = vadd.f32 0.0, %v5678
        %v5680 = vpop.f32.mrb[0].mxu0
        %5681 = vmatprep.mubr.bf16.mxu0 0
        %5682 = vmatmul.mubr.bf16.gmra.mrb[0].mxu0 %v5527
        %v5683 = vpop.f32.mrb[0].mxu0
        %v5684 = vadd.f32 0.0, %v5683
        %v5685 = vpop.f32.mrb[0].mxu0
        %v5686 = vpop.f32.mrb[0].mxu0
        %v5687 = vadd.f32 0.0, %v5686
        %v5688 = vpop.f32.mrb[0].mxu0
        %5689 = vdwg.mxu0
        %v5690 = vadd.f32 %v5384, %v5564
        %v5691 = vadd.f32 %v5385, %v5567
        %v5692 = vadd.f32 %v5386, %v5572
        %v5693 = vadd.f32 %v5387, %v5575
        %v5694 = vadd.f32 %v5388, %v5580
        %v5695 = vadd.f32 %v5389, %v5583
        %v5696 = vadd.f32 %v5390, %v5588
        %v5697 = vadd.f32 %v5391, %v5591
        %v5698 = vadd.f32 %v5392, %v5596
        %v5699 = vadd.f32 %v5393, %v5599
        %v5700 = vadd.f32 %v5394, %v5604
        %v5701 = vadd.f32 %v5395, %v5607
        %v5702 = vadd.f32 %v5396, %v5612
        %v5703 = vadd.f32 %v5397, %v5615
        %v5704 = vadd.f32 %v5398, %v5620
        %v5705 = vadd.f32 %v5399, %v5623
        %v5706 = vadd.f32 %v5400, %v5628
        %v5707 = vadd.f32 %v5401, %v5631
        %v5708 = vadd.f32 %v5402, %v5636
        %v5709 = vadd.f32 %v5403, %v5639
        %v5710 = vadd.f32 %v5404, %v5644
        %v5711 = vadd.f32 %v5405, %v5647
        %v5712 = vadd.f32 %v5406, %v5652
        %v5713 = vadd.f32 %v5407, %v5655
        %v5714 = vadd.f32 %v5408, %v5660
        %v5715 = vadd.f32 %v5409, %v5663
        %v5716 = vadd.f32 %v5410, %v5668
        %v5717 = vadd.f32 %v5411, %v5671
        %v5718 = vadd.f32 %v5412, %v5676
        %v5719 = vadd.f32 %v5413, %v5679
        %v5720 = vadd.f32 %v5414, %v5684
        %v5721 = vadd.f32 %v5415, %v5687
        %v5722 = vld [vmem:[%s2622 + $0x1] sm:$0xff]
        %v5723 = vld [vmem:[%s2622 + $0x9] sm:$0xff]
        %v5724 = vld [vmem:[%s2622 + $0x19] sm:$0xff]
        %v5725 = vld [vmem:[%s2622 + $0x21] sm:$0xff]
        %v5726 = vld [vmem:[%s2622 + $0x31] sm:$0xff]
        %v5727 = vld [vmem:[%s2622 + $0x39] sm:$0xff]
        %v5728 = vld [vmem:[%s2622 + $0x49] sm:$0xff]
        %v5729 = vld [vmem:[%s2622 + $0x51] sm:$0xff]
        %v5730 = vld [vmem:[%s2622 + $0x61] sm:$0xff]
        %v5731 = vld [vmem:[%s2622 + $0x69] sm:$0xff]
        %v5732 = vld [vmem:[%s2622 + $0x79] sm:$0xff]
        %v5733 = vld [vmem:[%s2622 + $0x81] sm:$0xff]
        %v5734 = vld [vmem:[%s2622 + $0x91] sm:$0xff]
        %v5735 = vld [vmem:[%s2622 + $0x99] sm:$0xff]
        %v5736 = vld [vmem:[%s2622 + $0xa9] sm:$0xff]
        %v5737 = vld [vmem:[%s2622 + $0xb1] sm:$0xff]
        %v5738 = vld [vmem:[%s2622 + $0xc1] sm:$0xff]
        %v5739 = vld [vmem:[%s2622 + $0xc9] sm:$0xff]
        %v5740 = vld [vmem:[%s2622 + $0xd9] sm:$0xff]
        %v5741 = vld [vmem:[%s2622 + $0xe1] sm:$0xff]
        %v5742 = vld [vmem:[%s2622 + $0xf1] sm:$0xff]
        %v5743 = vld [vmem:[%s2622 + $0xf9] sm:$0xff]
        %v5744 = vld [vmem:[%s2622 + $0x109] sm:$0xff]
        %v5745 = vld [vmem:[%s2622 + $0x111] sm:$0xff]
        %v5746 = vld [vmem:[%s2622 + $0x121] sm:$0xff]
        %v5747 = vld [vmem:[%s2622 + $0x129] sm:$0xff]
        %v5748 = vld [vmem:[%s2622 + $0x139] sm:$0xff]
        %v5749 = vld [vmem:[%s2622 + $0x141] sm:$0xff]
        %v5750 = vld [vmem:[%s2622 + $0x151] sm:$0xff]
        %v5751 = vld [vmem:[%s2622 + $0x159] sm:$0xff]
        %v5752 = vld [vmem:[%s2622 + $0x169] sm:$0xff]
        %v5753 = vld [vmem:[%s2622 + $0x171] sm:$0xff]
        %v5754 = vpack.c.bf16 %v5723, %v5722
        %v5755 = vpack.c.bf16 %v5725, %v5724
        %v5756 = vpack.c.bf16 %v5727, %v5726
        %v5757 = vpack.c.bf16 %v5729, %v5728
        %v5758 = vpack.c.bf16 %v5731, %v5730
        %v5759 = vpack.c.bf16 %v5733, %v5732
        %v5760 = vpack.c.bf16 %v5735, %v5734
        %v5761 = vpack.c.bf16 %v5737, %v5736
        %v5762 = vpack.c.bf16 %v5739, %v5738
        %v5763 = vpack.c.bf16 %v5741, %v5740
        %v5764 = vpack.c.bf16 %v5743, %v5742
        %v5765 = vpack.c.bf16 %v5745, %v5744
        %v5766 = vpack.c.bf16 %v5747, %v5746
        %v5767 = vpack.c.bf16 %v5749, %v5748
        %v5768 = vpack.c.bf16 %v5751, %v5750
        %v5769 = vpack.c.bf16 %v5753, %v5752
        %s5770 = scalar_lea.vmem %s3, 256
        %v5771 = vld [vmem:[%s5770] sm:$0xf]
        %v5772 = vld [vmem:[%s5770 + $0x4] sm:$0xf]
        %v5773 = vld [vmem:[%s5770 + $0x8] sm:$0xf]
        %v5774 = vld [vmem:[%s5770 + $0xc] sm:$0xf]
        %v5779 = vunpack.c.l.b16 %v5771
        %v5780 = vunpack.c.l.b16 %v5772
        %v5781 = vunpack.c.l.b16 %v5773
        %v5782 = vunpack.c.l.b16 %v5774
        %v5783 = vpack.c.b16 %v5780, %v5779
        %v5784 = vpack.c.b16 %v5782, %v5781
        %v5788 = vsel %vm772, %v5754, 0
        %v5791 = vsel %vm772, %v5755, 0
        %v5794 = vsel %vm772, %v5756, 0
        %v5797 = vsel %vm772, %v5757, 0
        %v5800 = vsel %vm772, %v5758, 0
        %v5803 = vsel %vm772, %v5759, 0
        %v5806 = vsel %vm772, %v5760, 0
        %v5809 = vsel %vm772, %v5761, 0
        %v5812 = vsel %vm772, %v5762, 0
        %v5815 = vsel %vm772, %v5763, 0
        %v5818 = vsel %vm772, %v5764, 0
        %v5821 = vsel %vm772, %v5765, 0
        %v5824 = vsel %vm772, %v5766, 0
        %v5827 = vsel %vm772, %v5767, 0
        %v5830 = vsel %vm772, %v5768, 0
        %v5833 = vsel %vm772, %v5769, 0
        %5835 = vmatprep.subr.bf16.mxu0 0
        %5836 = vmatpush1.bf16.msra.mxu0 %v5783
        %5837 = vmatprep.subr.bf16.mxu0 0
        %5838 = vmatpush1.bf16.msra.mxu0 %v5784
        %5839 = vmatprep.subr.bf16.mxu0 0
        %5840 = vmatpush1.bf16.msra.mxu0 0
        %5841 = vmatprep.subr.bf16.mxu0 0
        %5842 = vmatpush1.bf16.msra.mxu0 0
        %5843 = vmatprep.subr.bf16.mxu0 0
        %5844 = vmatpush1.bf16.msra.mxu0 0
        %5845 = vmatprep.subr.bf16.mxu0 0
        %5846 = vmatpush1.bf16.msra.mxu0 0
        %5847 = vmatprep.subr.bf16.mxu0 0
        %5848 = vmatpush1.bf16.msra.mxu0 0
        %5849 = vmatprep.subr.bf16.mxu0 0
        %5850 = vmatpush1.bf16.msra.mxu0 0
        %5851 = vmatprep.subr.bf16.mxu0 0
        %5852 = vmatpush1.bf16.msra.mxu0 0
        %5853 = vmatprep.subr.bf16.mxu0 0
        %5854 = vmatpush1.bf16.msra.mxu0 0
        %5855 = vmatprep.subr.bf16.mxu0 0
        %5856 = vmatpush1.bf16.msra.mxu0 0
        %5857 = vmatprep.subr.bf16.mxu0 0
        %5858 = vmatpush1.bf16.msra.mxu0 0
        %5859 = vmatprep.subr.bf16.mxu0 0
        %5860 = vmatpush1.bf16.msra.mxu0 0
        %5861 = vmatprep.subr.bf16.mxu0 0
        %5862 = vmatpush1.bf16.msra.mxu0 0
        %5863 = vmatprep.subr.bf16.mxu0 0
        %5864 = vmatpush1.bf16.msra.mxu0 0
        %5865 = vmatprep.subr.bf16.mxu0 0
        %5866 = vmatpush1.bf16.msra.mxu0 0
        %5867 = vmatprep.mubr.bf16.mxu0 0
        %5868 = vmatmul.mubr.bf16.gmra.mrb[0].mxu0 %v5788
        %v5869 = vpop.f32.mrb[0].mxu0
        %v5870 = vadd.f32 0.0, %v5869
        %v5871 = vpop.f32.mrb[0].mxu0
        %v5872 = vpop.f32.mrb[0].mxu0
        %v5873 = vadd.f32 0.0, %v5872
        %v5874 = vpop.f32.mrb[0].mxu0
        %5875 = vmatprep.mubr.bf16.mxu0 0
        %5876 = vmatmul.mubr.bf16.gmra.mrb[0].mxu0 %v5791
        %v5877 = vpop.f32.mrb[0].mxu0
        %v5878 = vadd.f32 0.0, %v5877
        %v5879 = vpop.f32.mrb[0].mxu0
        %v5880 = vpop.f32.mrb[0].mxu0
        %v5881 = vadd.f32 0.0, %v5880
        %v5882 = vpop.f32.mrb[0].mxu0
        %5883 = vmatprep.mubr.bf16.mxu0 0
        %5884 = vmatmul.mubr.bf16.gmra.mrb[0].mxu0 %v5794
        %v5885 = vpop.f32.mrb[0].mxu0
        %v5886 = vadd.f32 0.0, %v5885
        %v5887 = vpop.f32.mrb[0].mxu0
        %v5888 = vpop.f32.mrb[0].mxu0
        %v5889 = vadd.f32 0.0, %v5888
        %v5890 = vpop.f32.mrb[0].mxu0
        %5891 = vmatprep.mubr.bf16.mxu0 0
        %5892 = vmatmul.mubr.bf16.gmra.mrb[0].mxu0 %v5797
        %v5893 = vpop.f32.mrb[0].mxu0
        %v5894 = vadd.f32 0.0, %v5893
        %v5895 = vpop.f32.mrb[0].mxu0
        %v5896 = vpop.f32.mrb[0].mxu0
        %v5897 = vadd.f32 0.0, %v5896
        %v5898 = vpop.f32.mrb[0].mxu0
        %5899 = vmatprep.mubr.bf16.mxu0 0
        %5900 = vmatmul.mubr.bf16.gmra.mrb[0].mxu0 %v5800
        %v5901 = vpop.f32.mrb[0].mxu0
        %v5902 = vadd.f32 0.0, %v5901
        %v5903 = vpop.f32.mrb[0].mxu0
        %v5904 = vpop.f32.mrb[0].mxu0
        %v5905 = vadd.f32 0.0, %v5904
        %v5906 = vpop.f32.mrb[0].mxu0
        %5907 = vmatprep.mubr.bf16.mxu0 0
        %5908 = vmatmul.mubr.bf16.gmra.mrb[0].mxu0 %v5803
        %v5909 = vpop.f32.mrb[0].mxu0
        %v5910 = vadd.f32 0.0, %v5909
        %v5911 = vpop.f32.mrb[0].mxu0
        %v5912 = vpop.f32.mrb[0].mxu0
        %v5913 = vadd.f32 0.0, %v5912
        %v5914 = vpop.f32.mrb[0].mxu0
        %5915 = vmatprep.mubr.bf16.mxu0 0
        %5916 = vmatmul.mubr.bf16.gmra.mrb[0].mxu0 %v5806
        %v5917 = vpop.f32.mrb[0].mxu0
        %v5918 = vadd.f32 0.0, %v5917
        %v5919 = vpop.f32.mrb[0].mxu0
        %v5920 = vpop.f32.mrb[0].mxu0
        %v5921 = vadd.f32 0.0, %v5920
        %v5922 = vpop.f32.mrb[0].mxu0
        %5923 = vmatprep.mubr.bf16.mxu0 0
        %5924 = vmatmul.mubr.bf16.gmra.mrb[0].mxu0 %v5809
        %v5925 = vpop.f32.mrb[0].mxu0
        %v5926 = vadd.f32 0.0, %v5925
        %v5927 = vpop.f32.mrb[0].mxu0
        %v5928 = vpop.f32.mrb[0].mxu0
        %v5929 = vadd.f32 0.0, %v5928
        %v5930 = vpop.f32.mrb[0].mxu0
        %5931 = vmatprep.mubr.bf16.mxu0 0
        %5932 = vmatmul.mubr.bf16.gmra.mrb[0].mxu0 %v5812
        %v5933 = vpop.f32.mrb[0].mxu0
        %v5934 = vadd.f32 0.0, %v5933
        %v5935 = vpop.f32.mrb[0].mxu0
        %v5936 = vpop.f32.mrb[0].mxu0
        %v5937 = vadd.f32 0.0, %v5936
        %v5938 = vpop.f32.mrb[0].mxu0
        %5939 = vmatprep.mubr.bf16.mxu0 0
        %5940 = vmatmul.mubr.bf16.gmra.mrb[0].mxu0 %v5815
        %v5941 = vpop.f32.mrb[0].mxu0
        %v5942 = vadd.f32 0.0, %v5941
        %v5943 = vpop.f32.mrb[0].mxu0
        %v5944 = vpop.f32.mrb[0].mxu0
        %v5945 = vadd.f32 0.0, %v5944
        %v5946 = vpop.f32.mrb[0].mxu0
        %5947 = vmatprep.mubr.bf16.mxu0 0
        %5948 = vmatmul.mubr.bf16.gmra.mrb[0].mxu0 %v5818
        %v5949 = vpop.f32.mrb[0].mxu0
        %v5950 = vadd.f32 0.0, %v5949
        %v5951 = vpop.f32.mrb[0].mxu0
        %v5952 = vpop.f32.mrb[0].mxu0
        %v5953 = vadd.f32 0.0, %v5952
        %v5954 = vpop.f32.mrb[0].mxu0
        %5955 = vmatprep.mubr.bf16.mxu0 0
        %5956 = vmatmul.mubr.bf16.gmra.mrb[0].mxu0 %v5821
        %v5957 = vpop.f32.mrb[0].mxu0
        %v5958 = vadd.f32 0.0, %v5957
        %v5959 = vpop.f32.mrb[0].mxu0
        %v5960 = vpop.f32.mrb[0].mxu0
        %v5961 = vadd.f32 0.0, %v5960
        %v5962 = vpop.f32.mrb[0].mxu0
        %5963 = vmatprep.mubr.bf16.mxu0 0
        %5964 = vmatmul.mubr.bf16.gmra.mrb[0].mxu0 %v5824
        %v5965 = vpop.f32.mrb[0].mxu0
        %v5966 = vadd.f32 0.0, %v5965
        %v5967 = vpop.f32.mrb[0].mxu0
        %v5968 = vpop.f32.mrb[0].mxu0
        %v5969 = vadd.f32 0.0, %v5968
        %v5970 = vpop.f32.mrb[0].mxu0
        %5971 = vmatprep.mubr.bf16.mxu0 0
        %5972 = vmatmul.mubr.bf16.gmra.mrb[0].mxu0 %v5827
        %v5973 = vpop.f32.mrb[0].mxu0
        %v5974 = vadd.f32 0.0, %v5973
        %v5975 = vpop.f32.mrb[0].mxu0
        %v5976 = vpop.f32.mrb[0].mxu0
        %v5977 = vadd.f32 0.0, %v5976
        %v5978 = vpop.f32.mrb[0].mxu0
        %5979 = vmatprep.mubr.bf16.mxu0 0
        %5980 = vmatmul.mubr.bf16.gmra.mrb[0].mxu0 %v5830
        %v5981 = vpop.f32.mrb[0].mxu0
        %v5982 = vadd.f32 0.0, %v5981
        %v5983 = vpop.f32.mrb[0].mxu0
        %v5984 = vpop.f32.mrb[0].mxu0
        %v5985 = vadd.f32 0.0, %v5984
        %v5986 = vpop.f32.mrb[0].mxu0
        %5987 = vmatprep.mubr.bf16.mxu0 0
        %5988 = vmatmul.mubr.bf16.gmra.mrb[0].mxu0 %v5833
        %v5989 = vpop.f32.mrb[0].mxu0
        %v5990 = vadd.f32 0.0, %v5989
        %v5991 = vpop.f32.mrb[0].mxu0
        %v5992 = vpop.f32.mrb[0].mxu0
        %v5993 = vadd.f32 0.0, %v5992
        %v5994 = vpop.f32.mrb[0].mxu0
        %5995 = vdwg.mxu0
        %v5996 = vadd.f32 %v5690, %v5870
        %v5997 = vadd.f32 %v5691, %v5873
        %v5998 = vadd.f32 %v5692, %v5878
        %v5999 = vadd.f32 %v5693, %v5881
        %v6000 = vadd.f32 %v5694, %v5886
        %v6001 = vadd.f32 %v5695, %v5889
        %v6002 = vadd.f32 %v5696, %v5894
        %v6003 = vadd.f32 %v5697, %v5897
        %v6004 = vadd.f32 %v5698, %v5902
        %v6005 = vadd.f32 %v5699, %v5905
        %v6006 = vadd.f32 %v5700, %v5910
        %v6007 = vadd.f32 %v5701, %v5913
        %v6008 = vadd.f32 %v5702, %v5918
        %v6009 = vadd.f32 %v5703, %v5921
        %v6010 = vadd.f32 %v5704, %v5926
        %v6011 = vadd.f32 %v5705, %v5929
        %v6012 = vadd.f32 %v5706, %v5934
        %v6013 = vadd.f32 %v5707, %v5937
        %v6014 = vadd.f32 %v5708, %v5942
        %v6015 = vadd.f32 %v5709, %v5945
        %v6016 = vadd.f32 %v5710, %v5950
        %v6017 = vadd.f32 %v5711, %v5953
        %v6018 = vadd.f32 %v5712, %v5958
        %v6019 = vadd.f32 %v5713, %v5961
        %v6020 = vadd.f32 %v5714, %v5966
        %v6021 = vadd.f32 %v5715, %v5969
        %v6022 = vadd.f32 %v5716, %v5974
        %v6023 = vadd.f32 %v5717, %v5977
        %v6024 = vadd.f32 %v5718, %v5982
        %v6025 = vadd.f32 %v5719, %v5985
        %v6026 = vadd.f32 %v5720, %v5990
        %v6027 = vadd.f32 %v5721, %v5993
        %v6028 = vld [vmem:[%s2622 + $0x2] sm:$0xff]
        %v6029 = vld [vmem:[%s2622 + $0xa] sm:$0xff]
        %v6030 = vld [vmem:[%s2622 + $0x1a] sm:$0xff]
        %v6031 = vld [vmem:[%s2622 + $0x22] sm:$0xff]
        %v6032 = vld [vmem:[%s2622 + $0x32] sm:$0xff]
        %v6033 = vld [vmem:[%s2622 + $0x3a] sm:$0xff]
        %v6034 = vld [vmem:[%s2622 + $0x4a] sm:$0xff]
        %v6035 = vld [vmem:[%s2622 + $0x52] sm:$0xff]
        %v6036 = vld [vmem:[%s2622 + $0x62] sm:$0xff]
        %v6037 = vld [vmem:[%s2622 + $0x6a] sm:$0xff]
        %v6038 = vld [vmem:[%s2622 + $0x7a] sm:$0xff]
        %v6039 = vld [vmem:[%s2622 + $0x82] sm:$0xff]
        %v6040 = vld [vmem:[%s2622 + $0x92] sm:$0xff]
        %v6041 = vld [vmem:[%s2622 + $0x9a] sm:$0xff]
        %v6042 = vld [vmem:[%s2622 + $0xaa] sm:$0xff]
        %v6043 = vld [vmem:[%s2622 + $0xb2] sm:$0xff]
        %v6044 = vld [vmem:[%s2622 + $0xc2] sm:$0xff]
        %v6045 = vld [vmem:[%s2622 + $0xca] sm:$0xff]
        %v6046 = vld [vmem:[%s2622 + $0xda] sm:$0xff]
        %v6047 = vld [vmem:[%s2622 + $0xe2] sm:$0xff]
        %v6048 = vld [vmem:[%s2622 + $0xf2] sm:$0xff]
        %v6049 = vld [vmem:[%s2622 + $0xfa] sm:$0xff]
        %v6050 = vld [vmem:[%s2622 + $0x10a] sm:$0xff]
        %v6051 = vld [vmem:[%s2622 + $0x112] sm:$0xff]
        %v6052 = vld [vmem:[%s2622 + $0x122] sm:$0xff]
        %v6053 = vld [vmem:[%s2622 + $0x12a] sm:$0xff]
        %v6054 = vld [vmem:[%s2622 + $0x13a] sm:$0xff]
        %v6055 = vld [vmem:[%s2622 + $0x142] sm:$0xff]
        %v6056 = vld [vmem:[%s2622 + $0x152] sm:$0xff]
        %v6057 = vld [vmem:[%s2622 + $0x15a] sm:$0xff]
        %v6058 = vld [vmem:[%s2622 + $0x16a] sm:$0xff]
        %v6059 = vld [vmem:[%s2622 + $0x172] sm:$0xff]
        %v6060 = vpack.c.bf16 %v6029, %v6028
        %v6061 = vpack.c.bf16 %v6031, %v6030
        %v6062 = vpack.c.bf16 %v6033, %v6032
        %v6063 = vpack.c.bf16 %v6035, %v6034
        %v6064 = vpack.c.bf16 %v6037, %v6036
        %v6065 = vpack.c.bf16 %v6039, %v6038
        %v6066 = vpack.c.bf16 %v6041, %v6040
        %v6067 = vpack.c.bf16 %v6043, %v6042
        %v6068 = vpack.c.bf16 %v6045, %v6044
        %v6069 = vpack.c.bf16 %v6047, %v6046
        %v6070 = vpack.c.bf16 %v6049, %v6048
        %v6071 = vpack.c.bf16 %v6051, %v6050
        %v6072 = vpack.c.bf16 %v6053, %v6052
        %v6073 = vpack.c.bf16 %v6055, %v6054
        %v6074 = vpack.c.bf16 %v6057, %v6056
        %v6075 = vpack.c.bf16 %v6059, %v6058
        %s6076 = scalar_lea.vmem %s3, 272
        %v6077 = vld [vmem:[%s6076] sm:$0xf]
        %v6078 = vld [vmem:[%s6076 + $0x4] sm:$0xf]
        %v6079 = vld [vmem:[%s6076 + $0x8] sm:$0xf]
        %v6080 = vld [vmem:[%s6076 + $0xc] sm:$0xf]
        %v6085 = vunpack.c.l.b16 %v6077
        %v6086 = vunpack.c.l.b16 %v6078
        %v6087 = vunpack.c.l.b16 %v6079
        %v6088 = vunpack.c.l.b16 %v6080
        %v6089 = vpack.c.b16 %v6086, %v6085
        %v6090 = vpack.c.b16 %v6088, %v6087
        %v6094 = vsel %vm772, %v6060, 0
        %v6097 = vsel %vm772, %v6061, 0
        %v6100 = vsel %vm772, %v6062, 0
        %v6103 = vsel %vm772, %v6063, 0
        %v6106 = vsel %vm772, %v6064, 0
        %v6109 = vsel %vm772, %v6065, 0
        %v6112 = vsel %vm772, %v6066, 0
        %v6115 = vsel %vm772, %v6067, 0
        %v6118 = vsel %vm772, %v6068, 0
        %v6121 = vsel %vm772, %v6069, 0
        %v6124 = vsel %vm772, %v6070, 0
        %v6127 = vsel %vm772, %v6071, 0
        %v6130 = vsel %vm772, %v6072, 0
        %v6133 = vsel %vm772, %v6073, 0
        %v6136 = vsel %vm772, %v6074, 0
        %v6139 = vsel %vm772, %v6075, 0
        %6141 = vmatprep.subr.bf16.mxu0 0
        %6142 = vmatpush1.bf16.msra.mxu0 %v6089
        %6143 = vmatprep.subr.bf16.mxu0 0
        %6144 = vmatpush1.bf16.msra.mxu0 %v6090
        %6145 = vmatprep.subr.bf16.mxu0 0
        %6146 = vmatpush1.bf16.msra.mxu0 0
        %6147 = vmatprep.subr.bf16.mxu0 0
        %6148 = vmatpush1.bf16.msra.mxu0 0
        %6149 = vmatprep.subr.bf16.mxu0 0
        %6150 = vmatpush1.bf16.msra.mxu0 0
        %6151 = vmatprep.subr.bf16.mxu0 0
        %6152 = vmatpush1.bf16.msra.mxu0 0
        %6153 = vmatprep.subr.bf16.mxu0 0
        %6154 = vmatpush1.bf16.msra.mxu0 0
        %6155 = vmatprep.subr.bf16.mxu0 0
        %6156 = vmatpush1.bf16.msra.mxu0 0
        %6157 = vmatprep.subr.bf16.mxu0 0
        %6158 = vmatpush1.bf16.msra.mxu0 0
        %6159 = vmatprep.subr.bf16.mxu0 0
        %6160 = vmatpush1.bf16.msra.mxu0 0
        %6161 = vmatprep.subr.bf16.mxu0 0
        %6162 = vmatpush1.bf16.msra.mxu0 0
        %6163 = vmatprep.subr.bf16.mxu0 0
        %6164 = vmatpush1.bf16.msra.mxu0 0
        %6165 = vmatprep.subr.bf16.mxu0 0
        %6166 = vmatpush1.bf16.msra.mxu0 0
        %6167 = vmatprep.subr.bf16.mxu0 0
        %6168 = vmatpush1.bf16.msra.mxu0 0
        %6169 = vmatprep.subr.bf16.mxu0 0
        %6170 = vmatpush1.bf16.msra.mxu0 0
        %6171 = vmatprep.subr.bf16.mxu0 0
        %6172 = vmatpush1.bf16.msra.mxu0 0
        %6173 = vmatprep.mubr.bf16.mxu0 0
        %6174 = vmatmul.mubr.bf16.gmra.mrb[0].mxu0 %v6094
        %v6175 = vpop.f32.mrb[0].mxu0
        %v6176 = vadd.f32 0.0, %v6175
        %v6177 = vpop.f32.mrb[0].mxu0
        %v6178 = vpop.f32.mrb[0].mxu0
        %v6179 = vadd.f32 0.0, %v6178
        %v6180 = vpop.f32.mrb[0].mxu0
        %6181 = vmatprep.mubr.bf16.mxu0 0
        %6182 = vmatmul.mubr.bf16.gmra.mrb[0].mxu0 %v6097
        %v6183 = vpop.f32.mrb[0].mxu0
        %v6184 = vadd.f32 0.0, %v6183
        %v6185 = vpop.f32.mrb[0].mxu0
        %v6186 = vpop.f32.mrb[0].mxu0
        %v6187 = vadd.f32 0.0, %v6186
        %v6188 = vpop.f32.mrb[0].mxu0
        %6189 = vmatprep.mubr.bf16.mxu0 0
        %6190 = vmatmul.mubr.bf16.gmra.mrb[0].mxu0 %v6100
        %v6191 = vpop.f32.mrb[0].mxu0
        %v6192 = vadd.f32 0.0, %v6191
        %v6193 = vpop.f32.mrb[0].mxu0
        %v6194 = vpop.f32.mrb[0].mxu0
        %v6195 = vadd.f32 0.0, %v6194
        %v6196 = vpop.f32.mrb[0].mxu0
        %6197 = vmatprep.mubr.bf16.mxu0 0
        %6198 = vmatmul.mubr.bf16.gmra.mrb[0].mxu0 %v6103
        %v6199 = vpop.f32.mrb[0].mxu0
        %v6200 = vadd.f32 0.0, %v6199
        %v6201 = vpop.f32.mrb[0].mxu0
        %v6202 = vpop.f32.mrb[0].mxu0
        %v6203 = vadd.f32 0.0, %v6202
        %v6204 = vpop.f32.mrb[0].mxu0
        %6205 = vmatprep.mubr.bf16.mxu0 0
        %6206 = vmatmul.mubr.bf16.gmra.mrb[0].mxu0 %v6106
        %v6207 = vpop.f32.mrb[0].mxu0
        %v6208 = vadd.f32 0.0, %v6207
        %v6209 = vpop.f32.mrb[0].mxu0
        %v6210 = vpop.f32.mrb[0].mxu0
        %v6211 = vadd.f32 0.0, %v6210
        %v6212 = vpop.f32.mrb[0].mxu0
        %6213 = vmatprep.mubr.bf16.mxu0 0
        %6214 = vmatmul.mubr.bf16.gmra.mrb[0].mxu0 %v6109
        %v6215 = vpop.f32.mrb[0].mxu0
        %v6216 = vadd.f32 0.0, %v6215
        %v6217 = vpop.f32.mrb[0].mxu0
        %v6218 = vpop.f32.mrb[0].mxu0
        %v6219 = vadd.f32 0.0, %v6218
        %v6220 = vpop.f32.mrb[0].mxu0
        %6221 = vmatprep.mubr.bf16.mxu0 0
        %6222 = vmatmul.mubr.bf16.gmra.mrb[0].mxu0 %v6112
        %v6223 = vpop.f32.mrb[0].mxu0
        %v6224 = vadd.f32 0.0, %v6223
        %v6225 = vpop.f32.mrb[0].mxu0
        %v6226 = vpop.f32.mrb[0].mxu0
        %v6227 = vadd.f32 0.0, %v6226
        %v6228 = vpop.f32.mrb[0].mxu0
        %6229 = vmatprep.mubr.bf16.mxu0 0
        %6230 = vmatmul.mubr.bf16.gmra.mrb[0].mxu0 %v6115
        %v6231 = vpop.f32.mrb[0].mxu0
        %v6232 = vadd.f32 0.0, %v6231
        %v6233 = vpop.f32.mrb[0].mxu0
        %v6234 = vpop.f32.mrb[0].mxu0
        %v6235 = vadd.f32 0.0, %v6234
        %v6236 = vpop.f32.mrb[0].mxu0
        %6237 = vmatprep.mubr.bf16.mxu0 0
        %6238 = vmatmul.mubr.bf16.gmra.mrb[0].mxu0 %v6118
        %v6239 = vpop.f32.mrb[0].mxu0
        %v6240 = vadd.f32 0.0, %v6239
        %v6241 = vpop.f32.mrb[0].mxu0
        %v6242 = vpop.f32.mrb[0].mxu0
        %v6243 = vadd.f32 0.0, %v6242
        %v6244 = vpop.f32.mrb[0].mxu0
        %6245 = vmatprep.mubr.bf16.mxu0 0
        %6246 = vmatmul.mubr.bf16.gmra.mrb[0].mxu0 %v6121
        %v6247 = vpop.f32.mrb[0].mxu0
        %v6248 = vadd.f32 0.0, %v6247
        %v6249 = vpop.f32.mrb[0].mxu0
        %v6250 = vpop.f32.mrb[0].mxu0
        %v6251 = vadd.f32 0.0, %v6250
        %v6252 = vpop.f32.mrb[0].mxu0
        %6253 = vmatprep.mubr.bf16.mxu0 0
        %6254 = vmatmul.mubr.bf16.gmra.mrb[0].mxu0 %v6124
        %v6255 = vpop.f32.mrb[0].mxu0
        %v6256 = vadd.f32 0.0, %v6255
        %v6257 = vpop.f32.mrb[0].mxu0
        %v6258 = vpop.f32.mrb[0].mxu0
        %v6259 = vadd.f32 0.0, %v6258
        %v6260 = vpop.f32.mrb[0].mxu0
        %6261 = vmatprep.mubr.bf16.mxu0 0
        %6262 = vmatmul.mubr.bf16.gmra.mrb[0].mxu0 %v6127
        %v6263 = vpop.f32.mrb[0].mxu0
        %v6264 = vadd.f32 0.0, %v6263
        %v6265 = vpop.f32.mrb[0].mxu0
        %v6266 = vpop.f32.mrb[0].mxu0
        %v6267 = vadd.f32 0.0, %v6266
        %v6268 = vpop.f32.mrb[0].mxu0
        %6269 = vmatprep.mubr.bf16.mxu0 0
        %6270 = vmatmul.mubr.bf16.gmra.mrb[0].mxu0 %v6130
        %v6271 = vpop.f32.mrb[0].mxu0
        %v6272 = vadd.f32 0.0, %v6271
        %v6273 = vpop.f32.mrb[0].mxu0
        %v6274 = vpop.f32.mrb[0].mxu0
        %v6275 = vadd.f32 0.0, %v6274
        %v6276 = vpop.f32.mrb[0].mxu0
        %6277 = vmatprep.mubr.bf16.mxu0 0
        %6278 = vmatmul.mubr.bf16.gmra.mrb[0].mxu0 %v6133
        %v6279 = vpop.f32.mrb[0].mxu0
        %v6280 = vadd.f32 0.0, %v6279
        %v6281 = vpop.f32.mrb[0].mxu0
        %v6282 = vpop.f32.mrb[0].mxu0
        %v6283 = vadd.f32 0.0, %v6282
        %v6284 = vpop.f32.mrb[0].mxu0
        %6285 = vmatprep.mubr.bf16.mxu0 0
        %6286 = vmatmul.mubr.bf16.gmra.mrb[0].mxu0 %v6136
        %v6287 = vpop.f32.mrb[0].mxu0
        %v6288 = vadd.f32 0.0, %v6287
        %v6289 = vpop.f32.mrb[0].mxu0
        %v6290 = vpop.f32.mrb[0].mxu0
        %v6291 = vadd.f32 0.0, %v6290
        %v6292 = vpop.f32.mrb[0].mxu0
        %6293 = vmatprep.mubr.bf16.mxu0 0
        %6294 = vmatmul.mubr.bf16.gmra.mrb[0].mxu0 %v6139
        %v6295 = vpop.f32.mrb[0].mxu0
        %v6296 = vadd.f32 0.0, %v6295
        %v6297 = vpop.f32.mrb[0].mxu0
        %v6298 = vpop.f32.mrb[0].mxu0
        %v6299 = vadd.f32 0.0, %v6298
        %v6300 = vpop.f32.mrb[0].mxu0
        %6301 = vdwg.mxu0
        %v6302 = vadd.f32 %v5996, %v6176
        %v6303 = vadd.f32 %v5997, %v6179
        %v6304 = vadd.f32 %v5998, %v6184
        %v6305 = vadd.f32 %v5999, %v6187
        %v6306 = vadd.f32 %v6000, %v6192
        %v6307 = vadd.f32 %v6001, %v6195
        %v6308 = vadd.f32 %v6002, %v6200
        %v6309 = vadd.f32 %v6003, %v6203
        %v6310 = vadd.f32 %v6004, %v6208
        %v6311 = vadd.f32 %v6005, %v6211
        %v6312 = vadd.f32 %v6006, %v6216
        %v6313 = vadd.f32 %v6007, %v6219
        %v6314 = vadd.f32 %v6008, %v6224
        %v6315 = vadd.f32 %v6009, %v6227
        %v6316 = vadd.f32 %v6010, %v6232
        %v6317 = vadd.f32 %v6011, %v6235
        %v6318 = vadd.f32 %v6012, %v6240
        %v6319 = vadd.f32 %v6013, %v6243
        %v6320 = vadd.f32 %v6014, %v6248
        %v6321 = vadd.f32 %v6015, %v6251
        %v6322 = vadd.f32 %v6016, %v6256
        %v6323 = vadd.f32 %v6017, %v6259
        %v6324 = vadd.f32 %v6018, %v6264
        %v6325 = vadd.f32 %v6019, %v6267
        %v6326 = vadd.f32 %v6020, %v6272
        %v6327 = vadd.f32 %v6021, %v6275
        %v6328 = vadd.f32 %v6022, %v6280
        %v6329 = vadd.f32 %v6023, %v6283
        %v6330 = vadd.f32 %v6024, %v6288
        %v6331 = vadd.f32 %v6025, %v6291
        %v6332 = vadd.f32 %v6026, %v6296
        %v6333 = vadd.f32 %v6027, %v6299
        %s6334 = scalar_lea.vmem %s4, 1
        %v6335 = vld [vmem:[%s6334] sm:$0x1]
        %v6337 = vlaneseq
        %v6338 = vshrl.u32 %v6337, 7
        %v6339 = vsub.s32 0, %v6338
        %v6340 = vrot.slane %v6335, %v6339
        %v6342 = vadd.f32 %v6302, %v6340
        %v6343 = vadd.f32 %v6303, %v6340
        %v6344 = vadd.f32 %v6304, %v6340
        %v6345 = vadd.f32 %v6305, %v6340
        %v6346 = vadd.f32 %v6306, %v6340
        %v6347 = vadd.f32 %v6307, %v6340
        %v6348 = vadd.f32 %v6308, %v6340
        %v6349 = vadd.f32 %v6309, %v6340
        %v6350 = vadd.f32 %v6310, %v6340
        %v6351 = vadd.f32 %v6311, %v6340
        %v6352 = vadd.f32 %v6312, %v6340
        %v6353 = vadd.f32 %v6313, %v6340
        %v6354 = vadd.f32 %v6314, %v6340
        %v6355 = vadd.f32 %v6315, %v6340
        %v6356 = vadd.f32 %v6316, %v6340
        %v6357 = vadd.f32 %v6317, %v6340
        %v6358 = vadd.f32 %v6318, %v6340
        %v6359 = vadd.f32 %v6319, %v6340
        %v6360 = vadd.f32 %v6320, %v6340
        %v6361 = vadd.f32 %v6321, %v6340
        %v6362 = vadd.f32 %v6322, %v6340
        %v6363 = vadd.f32 %v6323, %v6340
        %v6364 = vadd.f32 %v6324, %v6340
        %v6365 = vadd.f32 %v6325, %v6340
        %v6366 = vadd.f32 %v6326, %v6340
        %v6367 = vadd.f32 %v6327, %v6340
        %v6368 = vadd.f32 %v6328, %v6340
        %v6369 = vadd.f32 %v6329, %v6340
        %v6370 = vadd.f32 %v6330, %v6340
        %v6371 = vadd.f32 %v6331, %v6340
        %v6372 = vadd.f32 %v6332, %v6340
        %v6373 = vadd.f32 %v6333, %v6340
        %v6374 = vmax.f32 %v6342, 0.0
        %v6375 = vmax.f32 %v6343, 0.0
        %v6376 = vmax.f32 %v6344, 0.0
        %v6377 = vmax.f32 %v6345, 0.0
        %v6378 = vmax.f32 %v6346, 0.0
        %v6379 = vmax.f32 %v6347, 0.0
        %v6380 = vmax.f32 %v6348, 0.0
        %v6381 = vmax.f32 %v6349, 0.0
        %v6382 = vmax.f32 %v6350, 0.0
        %v6383 = vmax.f32 %v6351, 0.0
        %v6384 = vmax.f32 %v6352, 0.0
        %v6385 = vmax.f32 %v6353, 0.0
        %v6386 = vmax.f32 %v6354, 0.0
        %v6387 = vmax.f32 %v6355, 0.0
        %v6388 = vmax.f32 %v6356, 0.0
        %v6389 = vmax.f32 %v6357, 0.0
        %v6390 = vmax.f32 %v6358, 0.0
        %v6391 = vmax.f32 %v6359, 0.0
        %v6392 = vmax.f32 %v6360, 0.0
        %v6393 = vmax.f32 %v6361, 0.0
        %v6394 = vmax.f32 %v6362, 0.0
        %v6395 = vmax.f32 %v6363, 0.0
        %v6396 = vmax.f32 %v6364, 0.0
        %v6397 = vmax.f32 %v6365, 0.0
        %v6398 = vmax.f32 %v6366, 0.0
        %v6399 = vmax.f32 %v6367, 0.0
        %v6400 = vmax.f32 %v6368, 0.0
        %v6401 = vmax.f32 %v6369, 0.0
        %v6402 = vmax.f32 %v6370, 0.0
        %v6403 = vmax.f32 %v6371, 0.0
        %v6404 = vmax.f32 %v6372, 0.0
        %v6405 = vmax.f32 %v6373, 0.0
        %v6406 = vld [vmem:[%s5] sm:$0xf]
        %v6407 = vld [vmem:[%s5 + $0x4] sm:$0xf]
        %v6408 = vpack.c.bf16 %v6375, %v6374
        %v6409 = vpack.c.bf16 %v6377, %v6376
        %v6410 = vpack.c.bf16 %v6379, %v6378
        %v6411 = vpack.c.bf16 %v6381, %v6380
        %v6412 = vpack.c.bf16 %v6383, %v6382
        %v6413 = vpack.c.bf16 %v6385, %v6384
        %v6414 = vpack.c.bf16 %v6387, %v6386
        %v6415 = vpack.c.bf16 %v6389, %v6388
        %v6416 = vpack.c.bf16 %v6391, %v6390
        %v6417 = vpack.c.bf16 %v6393, %v6392
        %v6418 = vpack.c.bf16 %v6395, %v6394
        %v6419 = vpack.c.bf16 %v6397, %v6396
        %v6420 = vpack.c.bf16 %v6399, %v6398
        %v6421 = vpack.c.bf16 %v6401, %v6400
        %v6422 = vpack.c.bf16 %v6403, %v6402
        %v6423 = vpack.c.bf16 %v6405, %v6404
        %v6424 = vld [vmem:[%s6] sm:$0xff]
        %v6425 = vld [vmem:[%s6 + $0x8] sm:$0xff]
        %6427 = vset.pattern.permute.xlu0 0
        %6428 = vperm.xlu0 %6427, %v6424
        %v6429 = vpop.permute.xlu0 %6428
        %6432 = vset.pattern.permute.xlu0 0
        %6433 = vperm.xlu0 %6432, %v6425
        %v6434 = vpop.permute.xlu0 %6433
        %v6438 = vunpack.c.l.b16 %v6406
        %v6439 = vunpack.c.l.b16 %v6407
        %v6440 = vpack.c.b16 %v6439, %v6438
        %v6442 = vsel %vm772, %v6440, 0
        %v6445 = vsel %vm772, %v6408, 0
        %v6448 = vsel %vm772, %v6409, 0
        %v6451 = vsel %vm772, %v6410, 0
        %v6454 = vsel %vm772, %v6411, 0
        %v6457 = vsel %vm772, %v6412, 0
        %v6460 = vsel %vm772, %v6413, 0
        %v6463 = vsel %vm772, %v6414, 0
        %v6466 = vsel %vm772, %v6415, 0
        %v6469 = vsel %vm772, %v6416, 0
        %v6472 = vsel %vm772, %v6417, 0
        %v6475 = vsel %vm772, %v6418, 0
        %v6478 = vsel %vm772, %v6419, 0
        %v6481 = vsel %vm772, %v6420, 0
        %v6484 = vsel %vm772, %v6421, 0
        %v6487 = vsel %vm772, %v6422, 0
        %v6490 = vsel %vm772, %v6423, 0
        %6492 = vmatprep.subr.bf16.mxu0 0
        %6493 = vmatpush1.bf16.xpose.msra.mxu0 %v6445
        %6494 = vmatprep.subr.bf16.mxu0 0
        %6495 = vmatpush1.bf16.xpose.msra.mxu0 %v6448
        %6496 = vmatprep.subr.bf16.mxu0 0
        %6497 = vmatpush1.bf16.xpose.msra.mxu0 %v6451
        %6498 = vmatprep.subr.bf16.mxu0 0
        %6499 = vmatpush1.bf16.xpose.msra.mxu0 %v6454
        %6500 = vmatprep.subr.bf16.mxu0 0
        %6501 = vmatpush1.bf16.xpose.msra.mxu0 %v6457
        %6502 = vmatprep.subr.bf16.mxu0 0
        %6503 = vmatpush1.bf16.xpose.msra.mxu0 %v6460
        %6504 = vmatprep.subr.bf16.mxu0 0
        %6505 = vmatpush1.bf16.xpose.msra.mxu0 %v6463
        %6506 = vmatprep.subr.bf16.mxu0 0
        %6507 = vmatpush1.bf16.xpose.msra.mxu0 %v6466
        %6508 = vmatprep.subr.bf16.mxu0 0
        %6509 = vmatpush1.bf16.xpose.msra.mxu0 %v6469
        %6510 = vmatprep.subr.bf16.mxu0 0
        %6511 = vmatpush1.bf16.xpose.msra.mxu0 %v6472
        %6512 = vmatprep.subr.bf16.mxu0 0
        %6513 = vmatpush1.bf16.xpose.msra.mxu0 %v6475
        %6514 = vmatprep.subr.bf16.mxu0 0
        %6515 = vmatpush1.bf16.xpose.msra.mxu0 %v6478
        %6516 = vmatprep.subr.bf16.mxu0 0
        %6517 = vmatpush1.bf16.xpose.msra.mxu0 %v6481
        %6518 = vmatprep.subr.bf16.mxu0 0
        %6519 = vmatpush1.bf16.xpose.msra.mxu0 %v6484
        %6520 = vmatprep.subr.bf16.mxu0 0
        %6521 = vmatpush1.bf16.xpose.msra.mxu0 %v6487
        %6522 = vmatprep.subr.bf16.mxu0 0
        %6523 = vmatpush1.bf16.xpose.msra.mxu0 %v6490
        %6524 = vmatprep.mubr.bf16.mxu0 0
        %6525 = vmatmul.mubr.bf16.gmra.mrb[0].mxu0 %v6442
        %v6526 = vpop.f32.mrb[0].mxu0
        %v6527 = vadd.f32 %v6429, %v6526
        %v6528 = vpop.f32.mrb[0].mxu0
        %v6529 = vadd.f32 %v6429, %v6528
        %v6530 = vpop.f32.mrb[0].mxu0
        %v6531 = vadd.f32 %v6434, %v6530
        %v6532 = vpop.f32.mrb[0].mxu0
        %v6533 = vadd.f32 %v6434, %v6532
        %6534 = vdwg.mxu0
        %v6535 = vxor.u32 %v6527, 2147483648
        %v6536 = vxor.u32 %v6529, 2147483648
        %v6537 = vxor.u32 %v6531, 2147483648
        %v6538 = vxor.u32 %v6533, 2147483648
        %v6539 = vmul.f32 %v6535, 1.442695
        %v6540 = vpow.pop %v6539
        %v6541 = vmul.f32 %v6536, 1.442695
        %v6542 = vpow.pop %v6541
        %v6543 = vmul.f32 %v6537, 1.442695
        %v6544 = vpow.pop %v6543
        %v6545 = vmul.f32 %v6538, 1.442695
        %v6546 = vpow.pop %v6545
        %v6547 = vadd.f32 %v6540, 1.0
        %v6548 = vadd.f32 %v6542, 1.0
        %v6549 = vadd.f32 %v6544, 1.0
        %v6550 = vadd.f32 %v6546, 1.0
        %v6551 = vrcp.pop %v6547
        %v6552 = vmul.f32 1.0, %v6551
        %v6553 = vrcp.pop %v6548
        %v6554 = vmul.f32 1.0, %v6553
        %v6555 = vrcp.pop %v6549
        %v6556 = vmul.f32 1.0, %v6555
        %v6557 = vrcp.pop %v6550
        %v6558 = vmul.f32 1.0, %v6557
        %v6559 = vmul.f32 %v6527, %v6552
        %v6560 = vmul.f32 %v6529, %v6554
        %v6561 = vmul.f32 %v6531, %v6556
        %v6562 = vmul.f32 %v6533, %v6558
        %6563 = vst [vmem:[%s271] sm:$0xff] %v6559
        %6564 = vst [vmem:[%s271 + $0x8] sm:$0xff] %v6560
        %6565 = vst [vmem:[%s271 + $0x10] sm:$0xff] %v6561
        %6566 = vst [vmem:[%s271 + $0x18] sm:$0xff] %v6562
        %s6567 = sand.u32 %s181, 1
        %s6568 = scalar_lea.sflag [#allocation4], %s6567
        %s6569 = sand.u32 %s181, 1
        %s6570 = smul.addr %s6569, 32
        %s6571 = scalar_lea.vmem [#allocation3], %s6570
        // Predicated region
        $region49: #{tpu_custom_call.1} parent=47 // pred_check
          %p6572 = pneg %p191
        $region50: #{tpu_custom_call.1} parent=47 // pred_check_branch
          %6574 = sbr.rel (%p6572) target = $region52
        $region51: #{tpu_custom_call.1} parent=47 // pred_region
          %s6576 = ssub.s32 512, 512
          %6577 = vsyncadd %s6568, %s6576
          %s6578 = smul.addr %s21, 4
          %s6579 = smul.addr %s6578, 128
          %s6580 = scalar_lea.hbm %s7, %s6579
          %s6581 = sshll.u32 %s6571, 4
          %s6582 = int_to_ptr.vmem [resolvable:$true] %s6581
          %6587 = dma.vmem_to_hbm [thread:$0]  %s6582, 512, %s6580, %s6568, 256, 256, 16
        $region52: #{tpu_custom_call.1} parent=47 // pred_fallthru
          _
      $region48: #{tpu_custom_call.1} parent=5 // pred_fallthru
        _
      %p6588 = scmp.le.s32.totalorder 2, %s16
      // Predicated region
      $region53: #{tpu_custom_call.1} parent=5 // pred_check
        %p6589 = pneg %p6588
      $region54: #{tpu_custom_call.1} parent=5 // pred_check_branch
        %6591 = sbr.rel (%p6589) target = $region56
      $region55: #{tpu_custom_call.1} parent=5 // pred_region
        %s6592 = ssub.s32 %s16, 2
        // Predicated region
        $region57: #{tpu_custom_call.1} parent=55 // pred_check
          %p6593 = pneg %p197
        $region58: #{tpu_custom_call.1} parent=55 // pred_check_branch
          %6595 = sbr.rel (%p6593) target = $region60
        $region59: #{tpu_custom_call.1} parent=55 // pred_region
          %s6596 = sand.u32 %s182, 1
          %s6597 = scalar_lea.sflag [#allocation4], %s6596
          %s6598 = sand.u32 %s182, 1
          %s6599 = smul.addr %s6598, 32
          %s6600 = scalar_lea.vmem [#allocation3], %s6599
          %6601 = dma.done %s6597, 512
        $region60: #{tpu_custom_call.1} parent=55 // pred_fallthru
          _
      $region56: #{tpu_custom_call.1} parent=5 // pred_fallthru
        _
    $region6: #{tpu_custom_call.1} parent=1 // loop_footer
      %s20 = sadd.s32 1, %s16
    $region7: #{tpu_custom_call.1} parent=1 // loop_footer_branch
      %15 = sbr.rel target = $region3
    $region8: #{tpu_custom_call.1} parent=1 // loop_exit
      _
    %6602 = vsyncpa [#allocation4], 1
    %s6603 = scalar_lea.sflag [#allocation4], 1
    %6604 = vsyncpa %s6603, 1

</llo_original>
